<compile_context>
chip_gen: v7x
topology: tpu7x:2x2x1
jax: 0.10.0
libtpu: 0.0.40
codegen_flags: <defaults>
</compile_context>

<pallas_src>
import math
import numpy as np

import jax
import jax.numpy as jnp
from jax.experimental import pallas as pl
from jax.experimental.pallas import tpu as pltpu


def _round_up(v, m):
    return (v + m - 1) // m * m


# ----------------------------- parameters -----------------------------------
def build_fsrcnn_params(key, n_colors=3, d=56, s=12, m=4, scale=2):
    """Deterministic synthetic parameters in the PyTorch module's layouts.

    head: conv5x5(n_colors->d)+PReLU, conv1x1(d->s)+PReLU
    body: m x [conv3x3(s->s)+PReLU]
    tail: conv1x1(s->d)+PReLU, ConvTranspose2d(d->n_colors, k=9, stride=scale,
          padding=4, output_padding=scale-1)
    """
    conv_shapes = [(n_colors, d, 5), (d, s, 1)] + [(s, s, 3)] * m + [(s, d, 1)]
    convs = []
    for (cin, cout, k) in conv_shapes:
        key, kw_, kb_, ka_ = jax.random.split(key, 4)
        wgt = jax.random.normal(kw_, (cout, cin, k, k), jnp.float32) / math.sqrt(cin * k * k)
        bias = 0.01 * jax.random.normal(kb_, (cout,), jnp.float32)
        alpha = jax.random.uniform(ka_, (cout,), jnp.float32, 0.1, 0.4)   # PReLU slopes
        convs.append(dict(w=wgt, b=bias, alpha=alpha, k=k, pad=k // 2,
                          cin=cin, cout=cout))
    key, kw_, kb_ = jax.random.split(key, 3)
    wt = jax.random.normal(kw_, (d, n_colors, 9, 9), jnp.float32) / math.sqrt(d * 81.0)
    bt = 0.01 * jax.random.normal(kb_, (n_colors,), jnp.float32)
    deconv = dict(w=wt, b=bt, k=9, stride=scale, pad=9 // 2,
                  output_padding=scale - 1, cin=d, cout=n_colors)
    return convs, deconv


# ------------------------------ host packing ---------------------------------
def pack_fsrcnn(convs, deconv, h, w):
    """Pack PyTorch-layout params into kernel layouts + static tap metadata."""
    scale, p, k = deconv["stride"], deconv["pad"], deconv["k"]
    n_colors, d_in = deconv["cout"], deconv["cin"]

    # Sub-pixel deconv tap range (per output phase rh: delta in [lo, hi]).
    dmax = max((k - 1 - r - p) // scale for r in range(scale))
    dmin = min(-((r + p) // scale) for r in range(scale))
    margin = max(max(cv["pad"] for cv in convs), dmax, -dmin)
    hp, wp = h + 2 * margin, w + 2 * margin
    f = hp * wp
    f_pad = _round_up(f, 128)          # lane-dense flat spatial axis

    # ---- conv layers: W (Cout_pad, k*k*Cin_pad) bf16, bias/alpha (Cout_pad,1) f32
    conv_arrays, conv_shifts = [], []
    for cv in convs:
        kk, pd, cin, cout = cv["k"], cv["pad"], cv["cin"], cv["cout"]
        cinp, coutp = _round_up(cin, 8), _round_up(cout, 8)
        w_t = np.asarray(cv["w"], np.float32)                        # (cout,cin,k,k)
        taps = [(kh, kw) for kh in range(kk) for kw in range(kk)]
        wpk = np.zeros((coutp, len(taps) * cinp), np.float32)
        for t, (kh, kw) in enumerate(taps):
            wpk[:cout, t * cinp:t * cinp + cin] = w_t[:, :, kh, kw]
        bp = np.zeros((coutp, 1), np.float32); bp[:cout, 0] = np.asarray(cv["b"])
        ap = np.zeros((coutp, 1), np.float32); ap[:cout, 0] = np.asarray(cv["alpha"])
        # shifted[q] = A[q + (kh-pd)*wp + (kw-pd)]  ->  roll shift = -offset
        conv_shifts.append([(-((kh - pd) * wp + (kw - pd))) % f_pad for kh, kw in taps])
        conv_arrays.append((jnp.asarray(wpk, jnp.bfloat16),
                            jnp.asarray(bp), jnp.asarray(ap)))

    # ---- ConvTranspose2d in sub-pixel form, chunked over the dh tap rows ----
    d_inp = _round_up(d_in, 8)
    tw = dmax - dmin + 1
    out_rows = scale * scale * n_colors
    wt = np.asarray(deconv["w"], np.float32)                         # (d_in,n_colors,k,k)
    wd = np.zeros((tw, out_rows, tw * d_inp), np.float32)
    dec_shifts = []
    for ci, dh in enumerate(range(dmin, dmax + 1)):
        dec_shifts.append([(dh * wp + dw) % f_pad for dw in range(dmin, dmax + 1)])
        for ti, dw in enumerate(range(dmin, dmax + 1)):
            for rh in range(scale):
                kh = scale * dh + rh + p
                if not 0 <= kh < k:
                    continue
                for rw in range(scale):
                    kw = scale * dw + rw + p
                    if not 0 <= kw < k:
                        continue
                    ph = rh * scale + rw
                    wd[ci, ph * n_colors:(ph + 1) * n_colors,
                       ti * d_inp:ti * d_inp + d_in] = wt[:, :, kh, kw].T
    bd = np.tile(np.asarray(deconv["b"], np.float32), scale * scale).reshape(out_rows, 1)

    # Valid-position mask (interior of the padded grid, 0 on halo/lane padding).
    mask = np.zeros((hp, wp), np.float32)
    mask[margin:margin + h, margin:margin + w] = 1.0
    mask = np.concatenate([mask.reshape(1, f),
                           np.zeros((1, f_pad - f), np.float32)], axis=1)

    meta = dict(margin=margin, hp=hp, wp=wp, f=f, f_pad=f_pad,
                scale=scale, n_colors=n_colors, out_rows=out_rows,
                c0=convs[0]["cin"], c0p=_round_up(convs[0]["cin"], 8),
                conv_shifts=conv_shifts, dec_shifts=dec_shifts)
    arrays = dict(conv=conv_arrays, wd=jnp.asarray(wd, jnp.bfloat16),
                  bd=jnp.asarray(bd), mask=jnp.asarray(mask))
    return meta, arrays


# ------------------------------ fused kernel ---------------------------------
def _make_fsrcnn_kernel(meta):
    conv_shifts = meta["conv_shifts"]
    dec_shifts = meta["dec_shifts"]
    n_convs = len(conv_shifts)

    def rolled(a, shifts):
        # XLU lane rotations of the flat spatial axis (no slice+reshape relayout).
        return [a if s == 0 else pltpu.roll(a, s, axis=1) for s in shifts]

    def kernel(*refs):
        it = iter(refs)
        a_ref = next(it)                                           # (C0P, Fp) f32
        mask_ref = next(it)                                        # (1, Fp)   f32
        conv_refs = [(next(it), next(it), next(it)) for _ in range(n_convs)]
        wd_ref = next(it)                                          # (Tw, R, Tw*Dp) bf16
        bd_ref = next(it)                                          # (R, 1)    f32
        o_ref = next(it)                                           # (R, Fp)   f32

        mask = mask_ref[...]
        cur = a_ref[...]                                           # f32 activations

        # ---- conv + PReLU stack: one (Cout_pad, K) @ (K, Fp) MXU matmul per layer
        for li in range(n_convs):
            w_ref, b_ref, al_ref = conv_refs[li]
            shifts = conv_shifts[li]
            if len(shifts) == 1:                                   # 1x1 conv
                x = cur
            else:                                                  # tap-concatenated im2col
                x = jnp.concatenate(rolled(cur, shifts), axis=0)
            y = jnp.dot(w_ref[...], x.astype(jnp.bfloat16),
                        preferred_element_type=jnp.float32)
            z = y + b_ref[...]
            cur = mask * jnp.where(z >= 0.0, z, al_ref[...] * z)   # PReLU + halo re-zero

        # ---- ConvTranspose2d: sub-pixel phases, chunked over kernel-row offsets
        acc = None
        for ci, shifts in enumerate(dec_shifts):
            xd = jnp.concatenate(rolled(cur, shifts), axis=0).astype(jnp.bfloat16)
            part = jnp.dot(wd_ref[ci], xd, preferred_element_type=jnp.float32)
            acc = part if acc is None else acc + part
        o_ref[...] = acc + bd_ref[...]

    return kernel


# ------------------------------- forward -------------------------------------
def fsrcnn_forward(meta, arrays, x_nchw):
    """FSRCNN forward (PyTorch NCHW in / NCHW out) as one fused Pallas call."""
    n, c_in, h, w = x_nchw.shape
    mgn, hp, wp = meta["margin"], meta["hp"], meta["wp"]
    f, f_pad = meta["f"], meta["f_pad"]
    c0, c0p = meta["c0"], meta["c0p"]
    scale, n_colors, out_rows = meta["scale"], meta["n_colors"], meta["out_rows"]
    assert c_in == c0 and hp == h + 2 * mgn and wp == w + 2 * mgn

    # Embed the input into the universal padded-flat layout:
    # channel pad -> 8, spatial margin M, flat axis padded to a lane multiple.
    xg = jnp.pad(x_nchw.astype(jnp.float32),
                 ((0, 0), (0, c0p - c0), (mgn, mgn), (mgn, mgn)))
    a0 = jnp.pad(xg.reshape(n, c0p, f), ((0, 0), (0, 0), (0, f_pad - f)))

    inputs = [a0, arrays["mask"]]
    for (w_k, b_k, al_k) in arrays["conv"]:
        inputs += [w_k, b_k, al_k]
    inputs += [arrays["wd"], arrays["bd"]]

    def _resident_spec(arr):                 # whole array VMEM-resident across grid
        zeros = (0,) * arr.ndim
        return pl.BlockSpec(arr.shape, lambda b: zeros)

    in_specs = [pl.BlockSpec((None, c0p, f_pad), lambda b: (b, 0, 0))]
    in_specs += [_resident_spec(a) for a in inputs[1:]]
    out_specs = pl.BlockSpec((None, out_rows, f_pad), lambda b: (b, 0, 0))

    wd = arrays["wd"]
    flops = 2 * n * f_pad * (sum(wk.shape[0] * wk.shape[1] for (wk, _, _) in arrays["conv"])
                             + wd.shape[0] * wd.shape[1] * wd.shape[2])
    bytes_accessed = sum(int(np.prod(a.shape)) * a.dtype.itemsize for a in inputs) \
        + n * out_rows * f_pad * 4

    out = pl.pallas_call(
        _make_fsrcnn_kernel(meta),
        out_shape=jax.ShapeDtypeStruct((n, out_rows, f_pad), jnp.float32),
        grid=(n,),
        in_specs=in_specs,
        out_specs=out_specs,
        compiler_params=pltpu.CompilerParams(
            dimension_semantics=("parallel",)),
        cost_estimate=pl.CostEstimate(flops=int(flops), transcendentals=0,
                                      bytes_accessed=int(bytes_accessed)),
    )(*inputs)

    # Drop lane padding, peel the margins off the flat grid, pixel-shuffle phases.
    grid_out = out[..., :f].reshape(n, scale, scale, n_colors, hp, wp)
    grid_out = grid_out[:, :, :, :, mgn:mgn + h, mgn:mgn + w]
    y = jnp.transpose(grid_out, (0, 3, 4, 1, 5, 2))           # (n, C, h, s, w, s)
    return y.reshape(n, n_colors, h * scale, w * scale)


# ------------------------------ reference ------------------------------------
def fsrcnn_reference(convs, deconv, x_nchw):
    """Pure-XLA reference with exact PyTorch layer semantics."""
    hi = jax.lax.Precision.HIGHEST
    out = x_nchw
    for cv in convs:
        out = jax.lax.conv_general_dilated(
            out, cv["w"], window_strides=(1, 1),
            padding=((cv["pad"], cv["pad"]), (cv["pad"], cv["pad"])),
            dimension_numbers=("NCHW", "OIHW", "NCHW"), precision=hi)
        out = out + cv["b"].reshape(1, -1, 1, 1)
        alpha = cv["alpha"].reshape(1, -1, 1, 1)
        out = jnp.where(out >= 0, out, alpha * out)
    k, s, p, op = deconv["k"], deconv["stride"], deconv["pad"], deconv["output_padding"]
    w_eq = jnp.transpose(jnp.flip(deconv["w"], axis=(2, 3)), (1, 0, 2, 3))   # OIHW
    out = jax.lax.conv_general_dilated(
        out, w_eq, window_strides=(1, 1),
        padding=((k - 1 - p, k - 1 - p + op), (k - 1 - p, k - 1 - p + op)),
        lhs_dilation=(s, s),
        dimension_numbers=("NCHW", "OIHW", "NCHW"), precision=hi)
    return out + deconv["b"].reshape(1, -1, 1, 1)


if __name__ == "__main__":
    key = jax.random.PRNGKey(0)
    k_x, k_p = jax.random.split(key)
    n, n_colors, h, w, scale = 2, 3, 16, 16, 2
    x = jax.random.normal(k_x, (n, n_colors, h, w), jnp.float32)   # PyTorch-style NCHW
    convs, deconv = build_fsrcnn_params(k_p, n_colors=n_colors, scale=scale)

    meta, arrays = pack_fsrcnn(convs, deconv, h, w)
    fwd = jax.jit(lambda xx: fsrcnn_forward(meta, arrays, xx))
    out = fwd(x)
    jax.block_until_ready(out)

    assert out.shape == (n, n_colors, h * scale, w * scale), out.shape
    assert bool(jnp.isfinite(out).all())

    # Check against a pure-XLA f32 reference of the PyTorch module semantics.
    # bf16 matmul operands across 8 stacked layers give ~1e-2-class deviations;
    # layout / tap-mapping bugs would be O(1), so the check stays meaningful.
    ref = fsrcnn_reference(convs, deconv, x)
    max_err = float(jnp.max(jnp.abs(out - ref)))
    ref_mag = float(jnp.max(jnp.abs(ref))) + 1e-6
    assert max_err <= 4e-2 * ref_mag, (max_err, ref_mag)

    print("KERNEL_OK")
</pallas_src>

<mosaic_0001>
module attributes {stable_mosaic.version = 11 : i64} {
  func.func @kernel(%arg0: i32, %arg1: memref<1x8x512xf32, #tpu.memory_space<vmem>>, %arg2: memref<1x512xf32, #tpu.memory_space<vmem>>, %arg3: memref<56x200xbf16, #tpu.memory_space<vmem>>, %arg4: memref<56x1xf32, #tpu.memory_space<vmem>>, %arg5: memref<56x1xf32, #tpu.memory_space<vmem>>, %arg6: memref<16x56xbf16, #tpu.memory_space<vmem>>, %arg7: memref<16x1xf32, #tpu.memory_space<vmem>>, %arg8: memref<16x1xf32, #tpu.memory_space<vmem>>, %arg9: memref<16x144xbf16, #tpu.memory_space<vmem>>, %arg10: memref<16x1xf32, #tpu.memory_space<vmem>>, %arg11: memref<16x1xf32, #tpu.memory_space<vmem>>, %arg12: memref<16x144xbf16, #tpu.memory_space<vmem>>, %arg13: memref<16x1xf32, #tpu.memory_space<vmem>>, %arg14: memref<16x1xf32, #tpu.memory_space<vmem>>, %arg15: memref<16x144xbf16, #tpu.memory_space<vmem>>, %arg16: memref<16x1xf32, #tpu.memory_space<vmem>>, %arg17: memref<16x1xf32, #tpu.memory_space<vmem>>, %arg18: memref<16x144xbf16, #tpu.memory_space<vmem>>, %arg19: memref<16x1xf32, #tpu.memory_space<vmem>>, %arg20: memref<16x1xf32, #tpu.memory_space<vmem>>, %arg21: memref<56x16xbf16, #tpu.memory_space<vmem>>, %arg22: memref<56x1xf32, #tpu.memory_space<vmem>>, %arg23: memref<56x1xf32, #tpu.memory_space<vmem>>, %arg24: memref<5x12x280xbf16, #tpu.memory_space<vmem>>, %arg25: memref<12x1xf32, #tpu.memory_space<vmem>>, %arg26: memref<1x12x512xf32, #tpu.memory_space<vmem>>) attributes {dimension_semantics = [#tpu.dimension_semantics<parallel>], iteration_bounds = array<i64: 2>, scalar_prefetch = 0 : i64, scratch_operands = 0 : i64, tpu.core_type = #tpu.core_type<tc>, window_params = [{transform_indices = @transform_0, window_bounds = array<i64: 1, 8, 512>}, {pipeline_mode = #tpu.pipeline_mode<synchronous>, transform_indices = @transform_1, window_bounds = array<i64: 1, 512>}, {pipeline_mode = #tpu.pipeline_mode<synchronous>, transform_indices = @transform_2, window_bounds = array<i64: 56, 200>}, {pipeline_mode = #tpu.pipeline_mode<synchronous>, transform_indices = @transform_3, window_bounds = array<i64: 56, 1>}, {pipeline_mode = #tpu.pipeline_mode<synchronous>, transform_indices = @transform_4, window_bounds = array<i64: 56, 1>}, {pipeline_mode = #tpu.pipeline_mode<synchronous>, transform_indices = @transform_5, window_bounds = array<i64: 16, 56>}, {pipeline_mode = #tpu.pipeline_mode<synchronous>, transform_indices = @transform_6, window_bounds = array<i64: 16, 1>}, {pipeline_mode = #tpu.pipeline_mode<synchronous>, transform_indices = @transform_7, window_bounds = array<i64: 16, 1>}, {pipeline_mode = #tpu.pipeline_mode<synchronous>, transform_indices = @transform_8, window_bounds = array<i64: 16, 144>}, {pipeline_mode = #tpu.pipeline_mode<synchronous>, transform_indices = @transform_9, window_bounds = array<i64: 16, 1>}, {pipeline_mode = #tpu.pipeline_mode<synchronous>, transform_indices = @transform_10, window_bounds = array<i64: 16, 1>}, {pipeline_mode = #tpu.pipeline_mode<synchronous>, transform_indices = @transform_11, window_bounds = array<i64: 16, 144>}, {pipeline_mode = #tpu.pipeline_mode<synchronous>, transform_indices = @transform_12, window_bounds = array<i64: 16, 1>}, {pipeline_mode = #tpu.pipeline_mode<synchronous>, transform_indices = @transform_13, window_bounds = array<i64: 16, 1>}, {pipeline_mode = #tpu.pipeline_mode<synchronous>, transform_indices = @transform_14, window_bounds = array<i64: 16, 144>}, {pipeline_mode = #tpu.pipeline_mode<synchronous>, transform_indices = @transform_15, window_bounds = array<i64: 16, 1>}, {pipeline_mode = #tpu.pipeline_mode<synchronous>, transform_indices = @transform_16, window_bounds = array<i64: 16, 1>}, {pipeline_mode = #tpu.pipeline_mode<synchronous>, transform_indices = @transform_17, window_bounds = array<i64: 16, 144>}, {pipeline_mode = #tpu.pipeline_mode<synchronous>, transform_indices = @transform_18, window_bounds = array<i64: 16, 1>}, {pipeline_mode = #tpu.pipeline_mode<synchronous>, transform_indices = @transform_19, window_bounds = array<i64: 16, 1>}, {pipeline_mode = #tpu.pipeline_mode<synchronous>, transform_indices = @transform_20, window_bounds = array<i64: 56, 16>}, {pipeline_mode = #tpu.pipeline_mode<synchronous>, transform_indices = @transform_21, window_bounds = array<i64: 56, 1>}, {pipeline_mode = #tpu.pipeline_mode<synchronous>, transform_indices = @transform_22, window_bounds = array<i64: 56, 1>}, {pipeline_mode = #tpu.pipeline_mode<synchronous>, transform_indices = @transform_23, window_bounds = array<i64: 5, 12, 280>}, {pipeline_mode = #tpu.pipeline_mode<synchronous>, transform_indices = @transform_24, window_bounds = array<i64: 12, 1>}, {transform_indices = @transform_25, window_bounds = array<i64: 1, 12, 512>}]} {
    %c0 = arith.constant 0 : index
    %c0_0 = arith.constant 0 : index
    %0 = vector.load %arg2[%c0, %c0_0] : memref<1x512xf32, #tpu.memory_space<vmem>>, vector<1x512xf32>
    %c0_1 = arith.constant 0 : index
    %c0_2 = arith.constant 0 : index
    %c0_3 = arith.constant 0 : index
    %1 = vector.load %arg1[%c0_1, %c0_2, %c0_3] : memref<1x8x512xf32, #tpu.memory_space<vmem>>, vector<1x8x512xf32>
    %2 = vector.shape_cast %1 : vector<1x8x512xf32> to vector<8x512xf32>
    %c42_i32 = arith.constant 42 : i32
    %3 = tpu.dynamic_rotate %2 by %c42_i32 dim 1 : vector<8x512xf32>, i32 -> vector<8x512xf32>
    %c41_i32 = arith.constant 41 : i32
    %4 = tpu.dynamic_rotate %2 by %c41_i32 dim 1 : vector<8x512xf32>, i32 -> vector<8x512xf32>
    %c40_i32 = arith.constant 40 : i32
    %5 = tpu.dynamic_rotate %2 by %c40_i32 dim 1 : vector<8x512xf32>, i32 -> vector<8x512xf32>
    %c39_i32 = arith.constant 39 : i32
    %6 = tpu.dynamic_rotate %2 by %c39_i32 dim 1 : vector<8x512xf32>, i32 -> vector<8x512xf32>
    %c38_i32 = arith.constant 38 : i32
    %7 = tpu.dynamic_rotate %2 by %c38_i32 dim 1 : vector<8x512xf32>, i32 -> vector<8x512xf32>
    %c22_i32 = arith.constant 22 : i32
    %8 = tpu.dynamic_rotate %2 by %c22_i32 dim 1 : vector<8x512xf32>, i32 -> vector<8x512xf32>
    %c21_i32 = arith.constant 21 : i32
    %9 = tpu.dynamic_rotate %2 by %c21_i32 dim 1 : vector<8x512xf32>, i32 -> vector<8x512xf32>
    %c20_i32 = arith.constant 20 : i32
    %10 = tpu.dynamic_rotate %2 by %c20_i32 dim 1 : vector<8x512xf32>, i32 -> vector<8x512xf32>
    %c19_i32 = arith.constant 19 : i32
    %11 = tpu.dynamic_rotate %2 by %c19_i32 dim 1 : vector<8x512xf32>, i32 -> vector<8x512xf32>
    %c18_i32 = arith.constant 18 : i32
    %12 = tpu.dynamic_rotate %2 by %c18_i32 dim 1 : vector<8x512xf32>, i32 -> vector<8x512xf32>
    %c2_i32 = arith.constant 2 : i32
    %13 = tpu.dynamic_rotate %2 by %c2_i32 dim 1 : vector<8x512xf32>, i32 -> vector<8x512xf32>
    %c1_i32 = arith.constant 1 : i32
    %14 = tpu.dynamic_rotate %2 by %c1_i32 dim 1 : vector<8x512xf32>, i32 -> vector<8x512xf32>
    %c511_i32 = arith.constant 511 : i32
    %15 = tpu.dynamic_rotate %2 by %c511_i32 dim 1 : vector<8x512xf32>, i32 -> vector<8x512xf32>
    %c510_i32 = arith.constant 510 : i32
    %16 = tpu.dynamic_rotate %2 by %c510_i32 dim 1 : vector<8x512xf32>, i32 -> vector<8x512xf32>
    %c494_i32 = arith.constant 494 : i32
    %17 = tpu.dynamic_rotate %2 by %c494_i32 dim 1 : vector<8x512xf32>, i32 -> vector<8x512xf32>
    %c493_i32 = arith.constant 493 : i32
    %18 = tpu.dynamic_rotate %2 by %c493_i32 dim 1 : vector<8x512xf32>, i32 -> vector<8x512xf32>
    %c492_i32 = arith.constant 492 : i32
    %19 = tpu.dynamic_rotate %2 by %c492_i32 dim 1 : vector<8x512xf32>, i32 -> vector<8x512xf32>
    %c491_i32 = arith.constant 491 : i32
    %20 = tpu.dynamic_rotate %2 by %c491_i32 dim 1 : vector<8x512xf32>, i32 -> vector<8x512xf32>
    %c490_i32 = arith.constant 490 : i32
    %21 = tpu.dynamic_rotate %2 by %c490_i32 dim 1 : vector<8x512xf32>, i32 -> vector<8x512xf32>
    %c474_i32 = arith.constant 474 : i32
    %22 = tpu.dynamic_rotate %2 by %c474_i32 dim 1 : vector<8x512xf32>, i32 -> vector<8x512xf32>
    %c473_i32 = arith.constant 473 : i32
    %23 = tpu.dynamic_rotate %2 by %c473_i32 dim 1 : vector<8x512xf32>, i32 -> vector<8x512xf32>
    %c472_i32 = arith.constant 472 : i32
    %24 = tpu.dynamic_rotate %2 by %c472_i32 dim 1 : vector<8x512xf32>, i32 -> vector<8x512xf32>
    %c471_i32 = arith.constant 471 : i32
    %25 = tpu.dynamic_rotate %2 by %c471_i32 dim 1 : vector<8x512xf32>, i32 -> vector<8x512xf32>
    %c470_i32 = arith.constant 470 : i32
    %26 = tpu.dynamic_rotate %2 by %c470_i32 dim 1 : vector<8x512xf32>, i32 -> vector<8x512xf32>
    %27 = tpu.concatenate %3, %4, %5, %6, %7, %8, %9, %10, %11, %12, %13, %14, %2, %15, %16, %17 in 0 : vector<8x512xf32>, vector<8x512xf32>, vector<8x512xf32>, vector<8x512xf32>, vector<8x512xf32>, vector<8x512xf32>, vector<8x512xf32>, vector<8x512xf32>, vector<8x512xf32>, vector<8x512xf32>, vector<8x512xf32>, vector<8x512xf32>, vector<8x512xf32>, vector<8x512xf32>, vector<8x512xf32>, vector<8x512xf32> -> vector<128x512xf32>
    %28 = tpu.concatenate %18, %19, %20, %21, %22, %23, %24, %25, %26 in 0 : vector<8x512xf32>, vector<8x512xf32>, vector<8x512xf32>, vector<8x512xf32>, vector<8x512xf32>, vector<8x512xf32>, vector<8x512xf32>, vector<8x512xf32>, vector<8x512xf32> -> vector<72x512xf32>
    %29 = tpu.concatenate %27, %28 in 0 : vector<128x512xf32>, vector<72x512xf32> -> vector<200x512xf32>
    %c0_4 = arith.constant 0 : index
    %c0_5 = arith.constant 0 : index
    %30 = vector.load %arg3[%c0_4, %c0_5] : memref<56x200xbf16, #tpu.memory_space<vmem>>, vector<56x200xbf16>
    %31 = arith.truncf %29 : vector<200x512xf32> to vector<200x512xbf16>
    %cst = arith.constant dense<0.000000e+00> : vector<56x512xf32>
    %32 = tpu.matmul %30, %31, %cst {dimension_numbers = #tpu.dot_dimension_numbers<[1], [0], [0], [1], [0, 0, 1, 1], [], []>} : vector<56x200xbf16>, vector<200x512xbf16>, vector<56x512xf32> -> vector<56x512xf32>
    %c0_6 = arith.constant 0 : index
    %c0_7 = arith.constant 0 : index
    %33 = vector.load %arg4[%c0_6, %c0_7] : memref<56x1xf32, #tpu.memory_space<vmem>>, vector<56x1xf32>
    %34 = vector.broadcast %33 : vector<56x1xf32> to vector<56x512xf32>
    %35 = arith.addf %32, %34 : vector<56x512xf32>
    %cst_8 = arith.constant 0.000000e+00 : f32
    %36 = vector.broadcast %cst_8 : f32 to vector<56x512xf32>
    %37 = arith.cmpf oge, %35, %36 : vector<56x512xf32>
    %c0_9 = arith.constant 0 : index
    %c0_10 = arith.constant 0 : index
    %38 = vector.load %arg5[%c0_9, %c0_10] : memref<56x1xf32, #tpu.memory_space<vmem>>, vector<56x1xf32>
    %39 = vector.broadcast %38 : vector<56x1xf32> to vector<56x512xf32>
    %40 = arith.mulf %39, %35 : vector<56x512xf32>
    %41 = arith.select %37, %35, %40 : vector<56x512xi1>, vector<56x512xf32>
    %42 = vector.broadcast %0 : vector<1x512xf32> to vector<56x512xf32>
    %43 = arith.mulf %42, %41 : vector<56x512xf32>
    %c0_11 = arith.constant 0 : index
    %c0_12 = arith.constant 0 : index
    %44 = vector.load %arg6[%c0_11, %c0_12] : memref<16x56xbf16, #tpu.memory_space<vmem>>, vector<16x56xbf16>
    %45 = arith.truncf %43 : vector<56x512xf32> to vector<56x512xbf16>
    %cst_13 = arith.constant dense<0.000000e+00> : vector<16x512xf32>
    %46 = tpu.matmul %44, %45, %cst_13 {dimension_numbers = #tpu.dot_dimension_numbers<[1], [0], [0], [1], [0, 0, 1, 1], [], []>} : vector<16x56xbf16>, vector<56x512xbf16>, vector<16x512xf32> -> vector<16x512xf32>
    %c0_14 = arith.constant 0 : index
    %c0_15 = arith.constant 0 : index
    %47 = vector.load %arg7[%c0_14, %c0_15] : memref<16x1xf32, #tpu.memory_space<vmem>>, vector<16x1xf32>
    %48 = vector.broadcast %47 : vector<16x1xf32> to vector<16x512xf32>
    %49 = arith.addf %46, %48 : vector<16x512xf32>
    %cst_16 = arith.constant 0.000000e+00 : f32
    %50 = vector.broadcast %cst_16 : f32 to vector<16x512xf32>
    %51 = arith.cmpf oge, %49, %50 : vector<16x512xf32>
    %c0_17 = arith.constant 0 : index
    %c0_18 = arith.constant 0 : index
    %52 = vector.load %arg8[%c0_17, %c0_18] : memref<16x1xf32, #tpu.memory_space<vmem>>, vector<16x1xf32>
    %53 = vector.broadcast %52 : vector<16x1xf32> to vector<16x512xf32>
    %54 = arith.mulf %53, %49 : vector<16x512xf32>
    %55 = arith.select %51, %49, %54 : vector<16x512xi1>, vector<16x512xf32>
    %56 = vector.broadcast %0 : vector<1x512xf32> to vector<16x512xf32>
    %57 = arith.mulf %56, %55 : vector<16x512xf32>
    %c21_i32_19 = arith.constant 21 : i32
    %58 = tpu.dynamic_rotate %57 by %c21_i32_19 dim 1 : vector<16x512xf32>, i32 -> vector<16x512xf32>
    %c20_i32_20 = arith.constant 20 : i32
    %59 = tpu.dynamic_rotate %57 by %c20_i32_20 dim 1 : vector<16x512xf32>, i32 -> vector<16x512xf32>
    %c19_i32_21 = arith.constant 19 : i32
    %60 = tpu.dynamic_rotate %57 by %c19_i32_21 dim 1 : vector<16x512xf32>, i32 -> vector<16x512xf32>
    %c1_i32_22 = arith.constant 1 : i32
    %61 = tpu.dynamic_rotate %57 by %c1_i32_22 dim 1 : vector<16x512xf32>, i32 -> vector<16x512xf32>
    %c511_i32_23 = arith.constant 511 : i32
    %62 = tpu.dynamic_rotate %57 by %c511_i32_23 dim 1 : vector<16x512xf32>, i32 -> vector<16x512xf32>
    %c493_i32_24 = arith.constant 493 : i32
    %63 = tpu.dynamic_rotate %57 by %c493_i32_24 dim 1 : vector<16x512xf32>, i32 -> vector<16x512xf32>
    %c492_i32_25 = arith.constant 492 : i32
    %64 = tpu.dynamic_rotate %57 by %c492_i32_25 dim 1 : vector<16x512xf32>, i32 -> vector<16x512xf32>
    %c491_i32_26 = arith.constant 491 : i32
    %65 = tpu.dynamic_rotate %57 by %c491_i32_26 dim 1 : vector<16x512xf32>, i32 -> vector<16x512xf32>
    %66 = tpu.concatenate %58, %59, %60, %61, %57, %62, %63, %64, %65 in 0 : vector<16x512xf32>, vector<16x512xf32>, vector<16x512xf32>, vector<16x512xf32>, vector<16x512xf32>, vector<16x512xf32>, vector<16x512xf32>, vector<16x512xf32>, vector<16x512xf32> -> vector<144x512xf32>
    %c0_27 = arith.constant 0 : index
    %c0_28 = arith.constant 0 : index
    %67 = vector.load %arg9[%c0_27, %c0_28] : memref<16x144xbf16, #tpu.memory_space<vmem>>, vector<16x144xbf16>
    %68 = arith.truncf %66 : vector<144x512xf32> to vector<144x512xbf16>
    %cst_29 = arith.constant dense<0.000000e+00> : vector<16x512xf32>
    %69 = tpu.matmul %67, %68, %cst_29 {dimension_numbers = #tpu.dot_dimension_numbers<[1], [0], [0], [1], [0, 0, 1, 1], [], []>} : vector<16x144xbf16>, vector<144x512xbf16>, vector<16x512xf32> -> vector<16x512xf32>
    %c0_30 = arith.constant 0 : index
    %c0_31 = arith.constant 0 : index
    %70 = vector.load %arg10[%c0_30, %c0_31] : memref<16x1xf32, #tpu.memory_space<vmem>>, vector<16x1xf32>
    %71 = vector.broadcast %70 : vector<16x1xf32> to vector<16x512xf32>
    %72 = arith.addf %69, %71 : vector<16x512xf32>
    %cst_32 = arith.constant 0.000000e+00 : f32
    %73 = vector.broadcast %cst_32 : f32 to vector<16x512xf32>
    %74 = arith.cmpf oge, %72, %73 : vector<16x512xf32>
    %c0_33 = arith.constant 0 : index
    %c0_34 = arith.constant 0 : index
    %75 = vector.load %arg11[%c0_33, %c0_34] : memref<16x1xf32, #tpu.memory_space<vmem>>, vector<16x1xf32>
    %76 = vector.broadcast %75 : vector<16x1xf32> to vector<16x512xf32>
    %77 = arith.mulf %76, %72 : vector<16x512xf32>
    %78 = arith.select %74, %72, %77 : vector<16x512xi1>, vector<16x512xf32>
    %79 = vector.broadcast %0 : vector<1x512xf32> to vector<16x512xf32>
    %80 = arith.mulf %79, %78 : vector<16x512xf32>
    %c21_i32_35 = arith.constant 21 : i32
    %81 = tpu.dynamic_rotate %80 by %c21_i32_35 dim 1 : vector<16x512xf32>, i32 -> vector<16x512xf32>
    %c20_i32_36 = arith.constant 20 : i32
    %82 = tpu.dynamic_rotate %80 by %c20_i32_36 dim 1 : vector<16x512xf32>, i32 -> vector<16x512xf32>
    %c19_i32_37 = arith.constant 19 : i32
    %83 = tpu.dynamic_rotate %80 by %c19_i32_37 dim 1 : vector<16x512xf32>, i32 -> vector<16x512xf32>
    %c1_i32_38 = arith.constant 1 : i32
    %84 = tpu.dynamic_rotate %80 by %c1_i32_38 dim 1 : vector<16x512xf32>, i32 -> vector<16x512xf32>
    %c511_i32_39 = arith.constant 511 : i32
    %85 = tpu.dynamic_rotate %80 by %c511_i32_39 dim 1 : vector<16x512xf32>, i32 -> vector<16x512xf32>
    %c493_i32_40 = arith.constant 493 : i32
    %86 = tpu.dynamic_rotate %80 by %c493_i32_40 dim 1 : vector<16x512xf32>, i32 -> vector<16x512xf32>
    %c492_i32_41 = arith.constant 492 : i32
    %87 = tpu.dynamic_rotate %80 by %c492_i32_41 dim 1 : vector<16x512xf32>, i32 -> vector<16x512xf32>
    %c491_i32_42 = arith.constant 491 : i32
    %88 = tpu.dynamic_rotate %80 by %c491_i32_42 dim 1 : vector<16x512xf32>, i32 -> vector<16x512xf32>
    %89 = tpu.concatenate %81, %82, %83, %84, %80, %85, %86, %87, %88 in 0 : vector<16x512xf32>, vector<16x512xf32>, vector<16x512xf32>, vector<16x512xf32>, vector<16x512xf32>, vector<16x512xf32>, vector<16x512xf32>, vector<16x512xf32>, vector<16x512xf32> -> vector<144x512xf32>
    %c0_43 = arith.constant 0 : index
    %c0_44 = arith.constant 0 : index
    %90 = vector.load %arg12[%c0_43, %c0_44] : memref<16x144xbf16, #tpu.memory_space<vmem>>, vector<16x144xbf16>
    %91 = arith.truncf %89 : vector<144x512xf32> to vector<144x512xbf16>
    %cst_45 = arith.constant dense<0.000000e+00> : vector<16x512xf32>
    %92 = tpu.matmul %90, %91, %cst_45 {dimension_numbers = #tpu.dot_dimension_numbers<[1], [0], [0], [1], [0, 0, 1, 1], [], []>} : vector<16x144xbf16>, vector<144x512xbf16>, vector<16x512xf32> -> vector<16x512xf32>
    %c0_46 = arith.constant 0 : index
    %c0_47 = arith.constant 0 : index
    %93 = vector.load %arg13[%c0_46, %c0_47] : memref<16x1xf32, #tpu.memory_space<vmem>>, vector<16x1xf32>
    %94 = vector.broadcast %93 : vector<16x1xf32> to vector<16x512xf32>
    %95 = arith.addf %92, %94 : vector<16x512xf32>
    %cst_48 = arith.constant 0.000000e+00 : f32
    %96 = vector.broadcast %cst_48 : f32 to vector<16x512xf32>
    %97 = arith.cmpf oge, %95, %96 : vector<16x512xf32>
    %c0_49 = arith.constant 0 : index
    %c0_50 = arith.constant 0 : index
    %98 = vector.load %arg14[%c0_49, %c0_50] : memref<16x1xf32, #tpu.memory_space<vmem>>, vector<16x1xf32>
    %99 = vector.broadcast %98 : vector<16x1xf32> to vector<16x512xf32>
    %100 = arith.mulf %99, %95 : vector<16x512xf32>
    %101 = arith.select %97, %95, %100 : vector<16x512xi1>, vector<16x512xf32>
    %102 = vector.broadcast %0 : vector<1x512xf32> to vector<16x512xf32>
    %103 = arith.mulf %102, %101 : vector<16x512xf32>
    %c21_i32_51 = arith.constant 21 : i32
    %104 = tpu.dynamic_rotate %103 by %c21_i32_51 dim 1 : vector<16x512xf32>, i32 -> vector<16x512xf32>
    %c20_i32_52 = arith.constant 20 : i32
    %105 = tpu.dynamic_rotate %103 by %c20_i32_52 dim 1 : vector<16x512xf32>, i32 -> vector<16x512xf32>
    %c19_i32_53 = arith.constant 19 : i32
    %106 = tpu.dynamic_rotate %103 by %c19_i32_53 dim 1 : vector<16x512xf32>, i32 -> vector<16x512xf32>
    %c1_i32_54 = arith.constant 1 : i32
    %107 = tpu.dynamic_rotate %103 by %c1_i32_54 dim 1 : vector<16x512xf32>, i32 -> vector<16x512xf32>
    %c511_i32_55 = arith.constant 511 : i32
    %108 = tpu.dynamic_rotate %103 by %c511_i32_55 dim 1 : vector<16x512xf32>, i32 -> vector<16x512xf32>
    %c493_i32_56 = arith.constant 493 : i32
    %109 = tpu.dynamic_rotate %103 by %c493_i32_56 dim 1 : vector<16x512xf32>, i32 -> vector<16x512xf32>
    %c492_i32_57 = arith.constant 492 : i32
    %110 = tpu.dynamic_rotate %103 by %c492_i32_57 dim 1 : vector<16x512xf32>, i32 -> vector<16x512xf32>
    %c491_i32_58 = arith.constant 491 : i32
    %111 = tpu.dynamic_rotate %103 by %c491_i32_58 dim 1 : vector<16x512xf32>, i32 -> vector<16x512xf32>
    %112 = tpu.concatenate %104, %105, %106, %107, %103, %108, %109, %110, %111 in 0 : vector<16x512xf32>, vector<16x512xf32>, vector<16x512xf32>, vector<16x512xf32>, vector<16x512xf32>, vector<16x512xf32>, vector<16x512xf32>, vector<16x512xf32>, vector<16x512xf32> -> vector<144x512xf32>
    %c0_59 = arith.constant 0 : index
    %c0_60 = arith.constant 0 : index
    %113 = vector.load %arg15[%c0_59, %c0_60] : memref<16x144xbf16, #tpu.memory_space<vmem>>, vector<16x144xbf16>
    %114 = arith.truncf %112 : vector<144x512xf32> to vector<144x512xbf16>
    %cst_61 = arith.constant dense<0.000000e+00> : vector<16x512xf32>
    %115 = tpu.matmul %113, %114, %cst_61 {dimension_numbers = #tpu.dot_dimension_numbers<[1], [0], [0], [1], [0, 0, 1, 1], [], []>} : vector<16x144xbf16>, vector<144x512xbf16>, vector<16x512xf32> -> vector<16x512xf32>
    %c0_62 = arith.constant 0 : index
    %c0_63 = arith.constant 0 : index
    %116 = vector.load %arg16[%c0_62, %c0_63] : memref<16x1xf32, #tpu.memory_space<vmem>>, vector<16x1xf32>
    %117 = vector.broadcast %116 : vector<16x1xf32> to vector<16x512xf32>
    %118 = arith.addf %115, %117 : vector<16x512xf32>
    %cst_64 = arith.constant 0.000000e+00 : f32
    %119 = vector.broadcast %cst_64 : f32 to vector<16x512xf32>
    %120 = arith.cmpf oge, %118, %119 : vector<16x512xf32>
    %c0_65 = arith.constant 0 : index
    %c0_66 = arith.constant 0 : index
    %121 = vector.load %arg17[%c0_65, %c0_66] : memref<16x1xf32, #tpu.memory_space<vmem>>, vector<16x1xf32>
    %122 = vector.broadcast %121 : vector<16x1xf32> to vector<16x512xf32>
    %123 = arith.mulf %122, %118 : vector<16x512xf32>
    %124 = arith.select %120, %118, %123 : vector<16x512xi1>, vector<16x512xf32>
    %125 = vector.broadcast %0 : vector<1x512xf32> to vector<16x512xf32>
    %126 = arith.mulf %125, %124 : vector<16x512xf32>
    %c21_i32_67 = arith.constant 21 : i32
    %127 = tpu.dynamic_rotate %126 by %c21_i32_67 dim 1 : vector<16x512xf32>, i32 -> vector<16x512xf32>
    %c20_i32_68 = arith.constant 20 : i32
    %128 = tpu.dynamic_rotate %126 by %c20_i32_68 dim 1 : vector<16x512xf32>, i32 -> vector<16x512xf32>
    %c19_i32_69 = arith.constant 19 : i32
    %129 = tpu.dynamic_rotate %126 by %c19_i32_69 dim 1 : vector<16x512xf32>, i32 -> vector<16x512xf32>
    %c1_i32_70 = arith.constant 1 : i32
    %130 = tpu.dynamic_rotate %126 by %c1_i32_70 dim 1 : vector<16x512xf32>, i32 -> vector<16x512xf32>
    %c511_i32_71 = arith.constant 511 : i32
    %131 = tpu.dynamic_rotate %126 by %c511_i32_71 dim 1 : vector<16x512xf32>, i32 -> vector<16x512xf32>
    %c493_i32_72 = arith.constant 493 : i32
    %132 = tpu.dynamic_rotate %126 by %c493_i32_72 dim 1 : vector<16x512xf32>, i32 -> vector<16x512xf32>
    %c492_i32_73 = arith.constant 492 : i32
    %133 = tpu.dynamic_rotate %126 by %c492_i32_73 dim 1 : vector<16x512xf32>, i32 -> vector<16x512xf32>
    %c491_i32_74 = arith.constant 491 : i32
    %134 = tpu.dynamic_rotate %126 by %c491_i32_74 dim 1 : vector<16x512xf32>, i32 -> vector<16x512xf32>
    %135 = tpu.concatenate %127, %128, %129, %130, %126, %131, %132, %133, %134 in 0 : vector<16x512xf32>, vector<16x512xf32>, vector<16x512xf32>, vector<16x512xf32>, vector<16x512xf32>, vector<16x512xf32>, vector<16x512xf32>, vector<16x512xf32>, vector<16x512xf32> -> vector<144x512xf32>
    %c0_75 = arith.constant 0 : index
    %c0_76 = arith.constant 0 : index
    %136 = vector.load %arg18[%c0_75, %c0_76] : memref<16x144xbf16, #tpu.memory_space<vmem>>, vector<16x144xbf16>
    %137 = arith.truncf %135 : vector<144x512xf32> to vector<144x512xbf16>
    %cst_77 = arith.constant dense<0.000000e+00> : vector<16x512xf32>
    %138 = tpu.matmul %136, %137, %cst_77 {dimension_numbers = #tpu.dot_dimension_numbers<[1], [0], [0], [1], [0, 0, 1, 1], [], []>} : vector<16x144xbf16>, vector<144x512xbf16>, vector<16x512xf32> -> vector<16x512xf32>
    %c0_78 = arith.constant 0 : index
    %c0_79 = arith.constant 0 : index
    %139 = vector.load %arg19[%c0_78, %c0_79] : memref<16x1xf32, #tpu.memory_space<vmem>>, vector<16x1xf32>
    %140 = vector.broadcast %139 : vector<16x1xf32> to vector<16x512xf32>
    %141 = arith.addf %138, %140 : vector<16x512xf32>
    %cst_80 = arith.constant 0.000000e+00 : f32
    %142 = vector.broadcast %cst_80 : f32 to vector<16x512xf32>
    %143 = arith.cmpf oge, %141, %142 : vector<16x512xf32>
    %c0_81 = arith.constant 0 : index
    %c0_82 = arith.constant 0 : index
    %144 = vector.load %arg20[%c0_81, %c0_82] : memref<16x1xf32, #tpu.memory_space<vmem>>, vector<16x1xf32>
    %145 = vector.broadcast %144 : vector<16x1xf32> to vector<16x512xf32>
    %146 = arith.mulf %145, %141 : vector<16x512xf32>
    %147 = arith.select %143, %141, %146 : vector<16x512xi1>, vector<16x512xf32>
    %148 = vector.broadcast %0 : vector<1x512xf32> to vector<16x512xf32>
    %149 = arith.mulf %148, %147 : vector<16x512xf32>
    %c0_83 = arith.constant 0 : index
    %c0_84 = arith.constant 0 : index
    %150 = vector.load %arg21[%c0_83, %c0_84] : memref<56x16xbf16, #tpu.memory_space<vmem>>, vector<56x16xbf16>
    %151 = arith.truncf %149 : vector<16x512xf32> to vector<16x512xbf16>
    %cst_85 = arith.constant dense<0.000000e+00> : vector<56x512xf32>
    %152 = tpu.matmul %150, %151, %cst_85 {dimension_numbers = #tpu.dot_dimension_numbers<[1], [0], [0], [1], [0, 0, 1, 1], [], []>} : vector<56x16xbf16>, vector<16x512xbf16>, vector<56x512xf32> -> vector<56x512xf32>
    %c0_86 = arith.constant 0 : index
    %c0_87 = arith.constant 0 : index
    %153 = vector.load %arg22[%c0_86, %c0_87] : memref<56x1xf32, #tpu.memory_space<vmem>>, vector<56x1xf32>
    %154 = vector.broadcast %153 : vector<56x1xf32> to vector<56x512xf32>
    %155 = arith.addf %152, %154 : vector<56x512xf32>
    %cst_88 = arith.constant 0.000000e+00 : f32
    %156 = vector.broadcast %cst_88 : f32 to vector<56x512xf32>
    %157 = arith.cmpf oge, %155, %156 : vector<56x512xf32>
    %c0_89 = arith.constant 0 : index
    %c0_90 = arith.constant 0 : index
    %158 = vector.load %arg23[%c0_89, %c0_90] : memref<56x1xf32, #tpu.memory_space<vmem>>, vector<56x1xf32>
    %159 = vector.broadcast %158 : vector<56x1xf32> to vector<56x512xf32>
    %160 = arith.mulf %159, %155 : vector<56x512xf32>
    %161 = arith.select %157, %155, %160 : vector<56x512xi1>, vector<56x512xf32>
    %162 = vector.broadcast %0 : vector<1x512xf32> to vector<56x512xf32>
    %163 = arith.mulf %162, %161 : vector<56x512xf32>
    %c470_i32_91 = arith.constant 470 : i32
    %164 = tpu.dynamic_rotate %163 by %c470_i32_91 dim 1 : vector<56x512xf32>, i32 -> vector<56x512xf32>
    %c471_i32_92 = arith.constant 471 : i32
    %165 = tpu.dynamic_rotate %163 by %c471_i32_92 dim 1 : vector<56x512xf32>, i32 -> vector<56x512xf32>
    %c472_i32_93 = arith.constant 472 : i32
    %166 = tpu.dynamic_rotate %163 by %c472_i32_93 dim 1 : vector<56x512xf32>, i32 -> vector<56x512xf32>
    %c473_i32_94 = arith.constant 473 : i32
    %167 = tpu.dynamic_rotate %163 by %c473_i32_94 dim 1 : vector<56x512xf32>, i32 -> vector<56x512xf32>
    %c474_i32_95 = arith.constant 474 : i32
    %168 = tpu.dynamic_rotate %163 by %c474_i32_95 dim 1 : vector<56x512xf32>, i32 -> vector<56x512xf32>
    %169 = tpu.concatenate %164, %165, %166, %167, %168 in 0 : vector<56x512xf32>, vector<56x512xf32>, vector<56x512xf32>, vector<56x512xf32>, vector<56x512xf32> -> vector<280x512xf32>
    %170 = arith.truncf %169 : vector<280x512xf32> to vector<280x512xbf16>
    %c0_96 = arith.constant 0 : index
    %c0_97 = arith.constant 0 : index
    %c0_98 = arith.constant 0 : index
    %171 = vector.load %arg24[%c0_96, %c0_97, %c0_98] : memref<5x12x280xbf16, #tpu.memory_space<vmem>>, vector<1x12x280xbf16>
    %172 = vector.shape_cast %171 : vector<1x12x280xbf16> to vector<12x280xbf16>
    %cst_99 = arith.constant dense<0.000000e+00> : vector<12x512xf32>
    %173 = tpu.matmul %172, %170, %cst_99 {dimension_numbers = #tpu.dot_dimension_numbers<[1], [0], [0], [1], [0, 0, 1, 1], [], []>} : vector<12x280xbf16>, vector<280x512xbf16>, vector<12x512xf32> -> vector<12x512xf32>
    %c490_i32_100 = arith.constant 490 : i32
    %174 = tpu.dynamic_rotate %163 by %c490_i32_100 dim 1 : vector<56x512xf32>, i32 -> vector<56x512xf32>
    %c491_i32_101 = arith.constant 491 : i32
    %175 = tpu.dynamic_rotate %163 by %c491_i32_101 dim 1 : vector<56x512xf32>, i32 -> vector<56x512xf32>
    %c492_i32_102 = arith.constant 492 : i32
    %176 = tpu.dynamic_rotate %163 by %c492_i32_102 dim 1 : vector<56x512xf32>, i32 -> vector<56x512xf32>
    %c493_i32_103 = arith.constant 493 : i32
    %177 = tpu.dynamic_rotate %163 by %c493_i32_103 dim 1 : vector<56x512xf32>, i32 -> vector<56x512xf32>
    %c494_i32_104 = arith.constant 494 : i32
    %178 = tpu.dynamic_rotate %163 by %c494_i32_104 dim 1 : vector<56x512xf32>, i32 -> vector<56x512xf32>
    %179 = tpu.concatenate %174, %175, %176, %177, %178 in 0 : vector<56x512xf32>, vector<56x512xf32>, vector<56x512xf32>, vector<56x512xf32>, vector<56x512xf32> -> vector<280x512xf32>
    %180 = arith.truncf %179 : vector<280x512xf32> to vector<280x512xbf16>
    %c1 = arith.constant 1 : index
    %c0_105 = arith.constant 0 : index
    %c0_106 = arith.constant 0 : index
    %181 = vector.load %arg24[%c1, %c0_105, %c0_106] : memref<5x12x280xbf16, #tpu.memory_space<vmem>>, vector<1x12x280xbf16>
    %182 = vector.shape_cast %181 : vector<1x12x280xbf16> to vector<12x280xbf16>
    %cst_107 = arith.constant dense<0.000000e+00> : vector<12x512xf32>
    %183 = tpu.matmul %182, %180, %cst_107 {dimension_numbers = #tpu.dot_dimension_numbers<[1], [0], [0], [1], [0, 0, 1, 1], [], []>} : vector<12x280xbf16>, vector<280x512xbf16>, vector<12x512xf32> -> vector<12x512xf32>
    %184 = arith.addf %173, %183 : vector<12x512xf32>
    %c510_i32_108 = arith.constant 510 : i32
    %185 = tpu.dynamic_rotate %163 by %c510_i32_108 dim 1 : vector<56x512xf32>, i32 -> vector<56x512xf32>
    %c511_i32_109 = arith.constant 511 : i32
    %186 = tpu.dynamic_rotate %163 by %c511_i32_109 dim 1 : vector<56x512xf32>, i32 -> vector<56x512xf32>
    %c1_i32_110 = arith.constant 1 : i32
    %187 = tpu.dynamic_rotate %163 by %c1_i32_110 dim 1 : vector<56x512xf32>, i32 -> vector<56x512xf32>
    %c2_i32_111 = arith.constant 2 : i32
    %188 = tpu.dynamic_rotate %163 by %c2_i32_111 dim 1 : vector<56x512xf32>, i32 -> vector<56x512xf32>
    %189 = tpu.concatenate %185, %186, %163, %187, %188 in 0 : vector<56x512xf32>, vector<56x512xf32>, vector<56x512xf32>, vector<56x512xf32>, vector<56x512xf32> -> vector<280x512xf32>
    %190 = arith.truncf %189 : vector<280x512xf32> to vector<280x512xbf16>
    %c2 = arith.constant 2 : index
    %c0_112 = arith.constant 0 : index
    %c0_113 = arith.constant 0 : index
    %191 = vector.load %arg24[%c2, %c0_112, %c0_113] : memref<5x12x280xbf16, #tpu.memory_space<vmem>>, vector<1x12x280xbf16>
    %192 = vector.shape_cast %191 : vector<1x12x280xbf16> to vector<12x280xbf16>
    %cst_114 = arith.constant dense<0.000000e+00> : vector<12x512xf32>
    %193 = tpu.matmul %192, %190, %cst_114 {dimension_numbers = #tpu.dot_dimension_numbers<[1], [0], [0], [1], [0, 0, 1, 1], [], []>} : vector<12x280xbf16>, vector<280x512xbf16>, vector<12x512xf32> -> vector<12x512xf32>
    %194 = arith.addf %184, %193 : vector<12x512xf32>
    %c18_i32_115 = arith.constant 18 : i32
    %195 = tpu.dynamic_rotate %163 by %c18_i32_115 dim 1 : vector<56x512xf32>, i32 -> vector<56x512xf32>
    %c19_i32_116 = arith.constant 19 : i32
    %196 = tpu.dynamic_rotate %163 by %c19_i32_116 dim 1 : vector<56x512xf32>, i32 -> vector<56x512xf32>
    %c20_i32_117 = arith.constant 20 : i32
    %197 = tpu.dynamic_rotate %163 by %c20_i32_117 dim 1 : vector<56x512xf32>, i32 -> vector<56x512xf32>
    %c21_i32_118 = arith.constant 21 : i32
    %198 = tpu.dynamic_rotate %163 by %c21_i32_118 dim 1 : vector<56x512xf32>, i32 -> vector<56x512xf32>
    %c22_i32_119 = arith.constant 22 : i32
    %199 = tpu.dynamic_rotate %163 by %c22_i32_119 dim 1 : vector<56x512xf32>, i32 -> vector<56x512xf32>
    %200 = tpu.concatenate %195, %196, %197, %198, %199 in 0 : vector<56x512xf32>, vector<56x512xf32>, vector<56x512xf32>, vector<56x512xf32>, vector<56x512xf32> -> vector<280x512xf32>
    %201 = arith.truncf %200 : vector<280x512xf32> to vector<280x512xbf16>
    %c3 = arith.constant 3 : index
    %c0_120 = arith.constant 0 : index
    %c0_121 = arith.constant 0 : index
    %202 = vector.load %arg24[%c3, %c0_120, %c0_121] : memref<5x12x280xbf16, #tpu.memory_space<vmem>>, vector<1x12x280xbf16>
    %203 = vector.shape_cast %202 : vector<1x12x280xbf16> to vector<12x280xbf16>
    %cst_122 = arith.constant dense<0.000000e+00> : vector<12x512xf32>
    %204 = tpu.matmul %203, %201, %cst_122 {dimension_numbers = #tpu.dot_dimension_numbers<[1], [0], [0], [1], [0, 0, 1, 1], [], []>} : vector<12x280xbf16>, vector<280x512xbf16>, vector<12x512xf32> -> vector<12x512xf32>
    %205 = arith.addf %194, %204 : vector<12x512xf32>
    %c38_i32_123 = arith.constant 38 : i32
    %206 = tpu.dynamic_rotate %163 by %c38_i32_123 dim 1 : vector<56x512xf32>, i32 -> vector<56x512xf32>
    %c39_i32_124 = arith.constant 39 : i32
    %207 = tpu.dynamic_rotate %163 by %c39_i32_124 dim 1 : vector<56x512xf32>, i32 -> vector<56x512xf32>
    %c40_i32_125 = arith.constant 40 : i32
    %208 = tpu.dynamic_rotate %163 by %c40_i32_125 dim 1 : vector<56x512xf32>, i32 -> vector<56x512xf32>
    %c41_i32_126 = arith.constant 41 : i32
    %209 = tpu.dynamic_rotate %163 by %c41_i32_126 dim 1 : vector<56x512xf32>, i32 -> vector<56x512xf32>
    %c42_i32_127 = arith.constant 42 : i32
    %210 = tpu.dynamic_rotate %163 by %c42_i32_127 dim 1 : vector<56x512xf32>, i32 -> vector<56x512xf32>
    %211 = tpu.concatenate %206, %207, %208, %209, %210 in 0 : vector<56x512xf32>, vector<56x512xf32>, vector<56x512xf32>, vector<56x512xf32>, vector<56x512xf32> -> vector<280x512xf32>
    %212 = arith.truncf %211 : vector<280x512xf32> to vector<280x512xbf16>
    %c4 = arith.constant 4 : index
    %c0_128 = arith.constant 0 : index
    %c0_129 = arith.constant 0 : index
    %213 = vector.load %arg24[%c4, %c0_128, %c0_129] : memref<5x12x280xbf16, #tpu.memory_space<vmem>>, vector<1x12x280xbf16>
    %214 = vector.shape_cast %213 : vector<1x12x280xbf16> to vector<12x280xbf16>
    %cst_130 = arith.constant dense<0.000000e+00> : vector<12x512xf32>
    %215 = tpu.matmul %214, %212, %cst_130 {dimension_numbers = #tpu.dot_dimension_numbers<[1], [0], [0], [1], [0, 0, 1, 1], [], []>} : vector<12x280xbf16>, vector<280x512xbf16>, vector<12x512xf32> -> vector<12x512xf32>
    %216 = arith.addf %205, %215 : vector<12x512xf32>
    %c0_131 = arith.constant 0 : index
    %c0_132 = arith.constant 0 : index
    %217 = vector.load %arg25[%c0_131, %c0_132] : memref<12x1xf32, #tpu.memory_space<vmem>>, vector<12x1xf32>
    %218 = vector.broadcast %217 : vector<12x1xf32> to vector<12x512xf32>
    %219 = arith.addf %216, %218 : vector<12x512xf32>
    %c0_133 = arith.constant 0 : index
    %c0_134 = arith.constant 0 : index
    %c0_135 = arith.constant 0 : index
    %220 = vector.load %arg26[%c0_133, %c0_134, %c0_135] : memref<1x12x512xf32, #tpu.memory_space<vmem>>, vector<1x12x512xf32>
    %221 = vector.shape_cast %220 : vector<1x12x512xf32> to vector<12x512xf32>
    %222 = vector.shape_cast %219 : vector<12x512xf32> to vector<1x12x512xf32>
    tpu.vector_store %arg26[%c0_133, %c0_134, %c0_135], %222 {strides = array<i32>} : memref<1x12x512xf32, #tpu.memory_space<vmem>>, vector<1x12x512xf32>,
    return
  }
  func.func @transform_0(%arg0: i32) -> (i32, i32, i32) {
    %c0_i32 = arith.constant 0 : i32
    %c0_i32_0 = arith.constant 0 : i32
    %c0_i32_1 = arith.constant 0 : i32
    return %arg0, %c0_i32, %c0_i32_0 : i32, i32, i32
  }
  func.func @transform_1(%arg0: i32) -> (i32, i32) {
    %c0_i32 = arith.constant 0 : i32
    %c0_i32_0 = arith.constant 0 : i32
    %c0_i32_1 = arith.constant 0 : i32
    return %c0_i32, %c0_i32_0 : i32, i32
  }
  func.func @transform_2(%arg0: i32) -> (i32, i32) {
    %c0_i32 = arith.constant 0 : i32
    %c0_i32_0 = arith.constant 0 : i32
    %c0_i32_1 = arith.constant 0 : i32
    return %c0_i32, %c0_i32_0 : i32, i32
  }
  func.func @transform_3(%arg0: i32) -> (i32, i32) {
    %c0_i32 = arith.constant 0 : i32
    %c0_i32_0 = arith.constant 0 : i32
    %c0_i32_1 = arith.constant 0 : i32
    return %c0_i32, %c0_i32_0 : i32, i32
  }
  func.func @transform_4(%arg0: i32) -> (i32, i32) {
    %c0_i32 = arith.constant 0 : i32
    %c0_i32_0 = arith.constant 0 : i32
    %c0_i32_1 = arith.constant 0 : i32
    return %c0_i32, %c0_i32_0 : i32, i32
  }
  func.func @transform_5(%arg0: i32) -> (i32, i32) {
    %c0_i32 = arith.constant 0 : i32
    %c0_i32_0 = arith.constant 0 : i32
    %c0_i32_1 = arith.constant 0 : i32
    return %c0_i32, %c0_i32_0 : i32, i32
  }
  func.func @transform_6(%arg0: i32) -> (i32, i32) {
    %c0_i32 = arith.constant 0 : i32
    %c0_i32_0 = arith.constant 0 : i32
    %c0_i32_1 = arith.constant 0 : i32
    return %c0_i32, %c0_i32_0 : i32, i32
  }
  func.func @transform_7(%arg0: i32) -> (i32, i32) {
    %c0_i32 = arith.constant 0 : i32
    %c0_i32_0 = arith.constant 0 : i32
    %c0_i32_1 = arith.constant 0 : i32
    return %c0_i32, %c0_i32_0 : i32, i32
  }
  func.func @transform_8(%arg0: i32) -> (i32, i32) {
    %c0_i32 = arith.constant 0 : i32
    %c0_i32_0 = arith.constant 0 : i32
    %c0_i32_1 = arith.constant 0 : i32
    return %c0_i32, %c0_i32_0 : i32, i32
  }
  func.func @transform_9(%arg0: i32) -> (i32, i32) {
    %c0_i32 = arith.constant 0 : i32
    %c0_i32_0 = arith.constant 0 : i32
    %c0_i32_1 = arith.constant 0 : i32
    return %c0_i32, %c0_i32_0 : i32, i32
  }
  func.func @transform_10(%arg0: i32) -> (i32, i32) {
    %c0_i32 = arith.constant 0 : i32
    %c0_i32_0 = arith.constant 0 : i32
    %c0_i32_1 = arith.constant 0 : i32
    return %c0_i32, %c0_i32_0 : i32, i32
  }
  func.func @transform_11(%arg0: i32) -> (i32, i32) {
    %c0_i32 = arith.constant 0 : i32
    %c0_i32_0 = arith.constant 0 : i32
    %c0_i32_1 = arith.constant 0 : i32
    return %c0_i32, %c0_i32_0 : i32, i32
  }
  func.func @transform_12(%arg0: i32) -> (i32, i32) {
    %c0_i32 = arith.constant 0 : i32
    %c0_i32_0 = arith.constant 0 : i32
    %c0_i32_1 = arith.constant 0 : i32
    return %c0_i32, %c0_i32_0 : i32, i32
  }
  func.func @transform_13(%arg0: i32) -> (i32, i32) {
    %c0_i32 = arith.constant 0 : i32
    %c0_i32_0 = arith.constant 0 : i32
    %c0_i32_1 = arith.constant 0 : i32
    return %c0_i32, %c0_i32_0 : i32, i32
  }
  func.func @transform_14(%arg0: i32) -> (i32, i32) {
    %c0_i32 = arith.constant 0 : i32
    %c0_i32_0 = arith.constant 0 : i32
    %c0_i32_1 = arith.constant 0 : i32
    return %c0_i32, %c0_i32_0 : i32, i32
  }
  func.func @transform_15(%arg0: i32) -> (i32, i32) {
    %c0_i32 = arith.constant 0 : i32
    %c0_i32_0 = arith.constant 0 : i32
    %c0_i32_1 = arith.constant 0 : i32
    return %c0_i32, %c0_i32_0 : i32, i32
  }
  func.func @transform_16(%arg0: i32) -> (i32, i32) {
    %c0_i32 = arith.constant 0 : i32
    %c0_i32_0 = arith.constant 0 : i32
    %c0_i32_1 = arith.constant 0 : i32
    return %c0_i32, %c0_i32_0 : i32, i32
  }
  func.func @transform_17(%arg0: i32) -> (i32, i32) {
    %c0_i32 = arith.constant 0 : i32
    %c0_i32_0 = arith.constant 0 : i32
    %c0_i32_1 = arith.constant 0 : i32
    return %c0_i32, %c0_i32_0 : i32, i32
  }
  func.func @transform_18(%arg0: i32) -> (i32, i32) {
    %c0_i32 = arith.constant 0 : i32
    %c0_i32_0 = arith.constant 0 : i32
    %c0_i32_1 = arith.constant 0 : i32
    return %c0_i32, %c0_i32_0 : i32, i32
  }
  func.func @transform_19(%arg0: i32) -> (i32, i32) {
    %c0_i32 = arith.constant 0 : i32
    %c0_i32_0 = arith.constant 0 : i32
    %c0_i32_1 = arith.constant 0 : i32
    return %c0_i32, %c0_i32_0 : i32, i32
  }
  func.func @transform_20(%arg0: i32) -> (i32, i32) {
    %c0_i32 = arith.constant 0 : i32
    %c0_i32_0 = arith.constant 0 : i32
    %c0_i32_1 = arith.constant 0 : i32
    return %c0_i32, %c0_i32_0 : i32, i32
  }
  func.func @transform_21(%arg0: i32) -> (i32, i32) {
    %c0_i32 = arith.constant 0 : i32
    %c0_i32_0 = arith.constant 0 : i32
    %c0_i32_1 = arith.constant 0 : i32
    return %c0_i32, %c0_i32_0 : i32, i32
  }
  func.func @transform_22(%arg0: i32) -> (i32, i32) {
    %c0_i32 = arith.constant 0 : i32
    %c0_i32_0 = arith.constant 0 : i32
    %c0_i32_1 = arith.constant 0 : i32
    return %c0_i32, %c0_i32_0 : i32, i32
  }
  func.func @transform_23(%arg0: i32) -> (i32, i32, i32) {
    %c0_i32 = arith.constant 0 : i32
    %c0_i32_0 = arith.constant 0 : i32
    %c0_i32_1 = arith.constant 0 : i32
    %c0_i32_2 = arith.constant 0 : i32
    return %c0_i32, %c0_i32_0, %c0_i32_1 : i32, i32, i32
  }
  func.func @transform_24(%arg0: i32) -> (i32, i32) {
    %c0_i32 = arith.constant 0 : i32
    %c0_i32_0 = arith.constant 0 : i32
    %c0_i32_1 = arith.constant 0 : i32
    return %c0_i32, %c0_i32_0 : i32, i32
  }
  func.func @transform_25(%arg0: i32) -> (i32, i32, i32) {
    %c0_i32 = arith.constant 0 : i32
    %c0_i32_0 = arith.constant 0 : i32
    %c0_i32_1 = arith.constant 0 : i32
    return %arg0, %c0_i32, %c0_i32_0 : i32, i32, i32
  }
}

</mosaic_0001>

<llo_original>
// kernel: _lambda_.1
$region0: #{_lambda_.1}
  #allocation0 [shape = 'u32[]', space=smem, size = 0x4, offset = 0x4, fixed_abs, tag = 'smem constant byte address 0x4 - core index']
  #allocation1 [shape = 'u32[144,128]{1,0:T(1,128)}', space=vmem, size = 0x12000, scoped, tag = 'internal scratch']
  %s0 = inlined_call_operand.vmem [shape: f32[2,8,512], index: 0, kind: input, shape index: {}]
  %s1 = inlined_call_operand.hbm [shape: f32[1,512], index: 1, kind: input, shape index: {}]
  %s2 = inlined_call_operand.hbm [shape: bf16[56,200], index: 2, kind: input, shape index: {}]
  %s3 = inlined_call_operand.hbm [shape: f32[56,1], index: 3, kind: input, shape index: {}]
  %s4 = inlined_call_operand.hbm [shape: f32[56,1], index: 4, kind: input, shape index: {}]
  %s5 = inlined_call_operand.hbm [shape: bf16[16,56], index: 5, kind: input, shape index: {}]
  %s6 = inlined_call_operand.hbm [shape: f32[16,1], index: 6, kind: input, shape index: {}]
  %s7 = inlined_call_operand.hbm [shape: f32[16,1], index: 7, kind: input, shape index: {}]
  %s8 = inlined_call_operand.vmem [shape: bf16[16,144], index: 8, kind: input, shape index: {}]
  %s9 = inlined_call_operand.hbm [shape: f32[16,1], index: 9, kind: input, shape index: {}]
  %s10 = inlined_call_operand.hbm [shape: f32[16,1], index: 10, kind: input, shape index: {}]
  %s11 = inlined_call_operand.vmem [shape: bf16[16,144], index: 11, kind: input, shape index: {}]
  %s12 = inlined_call_operand.hbm [shape: f32[16,1], index: 12, kind: input, shape index: {}]
  %s13 = inlined_call_operand.hbm [shape: f32[16,1], index: 13, kind: input, shape index: {}]
  %s14 = inlined_call_operand.vmem [shape: bf16[16,144], index: 14, kind: input, shape index: {}]
  %s15 = inlined_call_operand.hbm [shape: f32[16,1], index: 15, kind: input, shape index: {}]
  %s16 = inlined_call_operand.hbm [shape: f32[16,1], index: 16, kind: input, shape index: {}]
  %s17 = inlined_call_operand.vmem [shape: bf16[16,144], index: 17, kind: input, shape index: {}]
  %s18 = inlined_call_operand.hbm [shape: f32[16,1], index: 18, kind: input, shape index: {}]
  %s19 = inlined_call_operand.hbm [shape: f32[16,1], index: 19, kind: input, shape index: {}]
  %s20 = inlined_call_operand.hbm [shape: bf16[56,16], index: 20, kind: input, shape index: {}]
  %s21 = inlined_call_operand.hbm [shape: f32[56,1], index: 21, kind: input, shape index: {}]
  %s22 = inlined_call_operand.hbm [shape: f32[56,1], index: 22, kind: input, shape index: {}]
  %s23 = inlined_call_operand.hbm [shape: bf16[5,12,280], index: 23, kind: input, shape index: {}]
  %s24 = inlined_call_operand.hbm [shape: f32[12,1], index: 24, kind: input, shape index: {}]
  %s25 = inlined_call_operand.vmem [shape: f32[2,12,512], index: 25, kind: output, shape index: {}]
  %s26 = sld [smem:[#allocation0]]
  $region213: #{_lambda_.1} parent=0
    _
  %s28 = ssub.s32 1, %s26
  %s29 = scalar_select 0, %s28, %s26
  $region1: #{_lambda_.1} parent=0
    #allocation2 [shape = 'u8[2048]{0}', space=vmem, size = 0x800, scoped, tag = 'input window, operand 1, single buffered']
    #allocation3 [shape = 's32[2]{0}', space=sflag, size = 0x8, scoped, tag = 'scoped memory for _lambda_.1']
    #allocation4 [shape = 'u8[28672]{0}', space=vmem, size = 0x7000, scoped, tag = 'input window, operand 2, single buffered']
    #allocation5 [shape = 's32[1]{0}', space=sflag, size = 0x4, scoped, tag = 'scoped memory for _lambda_.1']
    #allocation6 [shape = 'u8[28672]{0}', space=vmem, size = 0x7000, scoped, tag = 'input window, operand 3, single buffered']
    #allocation7 [shape = 'u8[28672]{0}', space=vmem, size = 0x7000, scoped, tag = 'input window, operand 4, single buffered']
    #allocation8 [shape = 's32[1]{0}', space=sflag, size = 0x4, scoped, tag = 'scoped memory for _lambda_.1']
    #allocation9 [shape = 'u8[4096]{0}', space=vmem, size = 0x1000, scoped, tag = 'input window, operand 5, single buffered']
    #allocation10 [shape = 'u8[8192]{0}', space=vmem, size = 0x2000, scoped, tag = 'input window, operand 6, single buffered']
    #allocation11 [shape = 's32[1]{0}', space=sflag, size = 0x4, scoped, tag = 'scoped memory for _lambda_.1']
    #allocation12 [shape = 'u8[8192]{0}', space=vmem, size = 0x2000, scoped, tag = 'input window, operand 7, single buffered']
    #allocation13 [shape = 'u8[8192]{0}', space=vmem, size = 0x2000, scoped, tag = 'input window, operand 9, single buffered']
    #allocation14 [shape = 's32[1]{0}', space=sflag, size = 0x4, scoped, tag = 'scoped memory for _lambda_.1']
    #allocation15 [shape = 'u8[8192]{0}', space=vmem, size = 0x2000, scoped, tag = 'input window, operand 10, single buffered']
    #allocation16 [shape = 'u8[8192]{0}', space=vmem, size = 0x2000, scoped, tag = 'input window, operand 12, single buffered']
    #allocation17 [shape = 's32[1]{0}', space=sflag, size = 0x4, scoped, tag = 'scoped memory for _lambda_.1']
    #allocation18 [shape = 'u8[8192]{0}', space=vmem, size = 0x2000, scoped, tag = 'input window, operand 13, single buffered']
    #allocation19 [shape = 'u8[8192]{0}', space=vmem, size = 0x2000, scoped, tag = 'input window, operand 15, single buffered']
    #allocation20 [shape = 's32[1]{0}', space=sflag, size = 0x4, scoped, tag = 'scoped memory for _lambda_.1']
    #allocation21 [shape = 'u8[8192]{0}', space=vmem, size = 0x2000, scoped, tag = 'input window, operand 16, single buffered']
    #allocation22 [shape = 'u8[8192]{0}', space=vmem, size = 0x2000, scoped, tag = 'input window, operand 18, single buffered']
    #allocation23 [shape = 's32[1]{0}', space=sflag, size = 0x4, scoped, tag = 'scoped memory for _lambda_.1']
    #allocation24 [shape = 'u8[8192]{0}', space=vmem, size = 0x2000, scoped, tag = 'input window, operand 19, single buffered']
    #allocation25 [shape = 'u8[14336]{0}', space=vmem, size = 0x3800, scoped, tag = 'input window, operand 20, single buffered']
    #allocation26 [shape = 's32[1]{0}', space=sflag, size = 0x4, scoped, tag = 'scoped memory for _lambda_.1']
    #allocation27 [shape = 'u8[28672]{0}', space=vmem, size = 0x7000, scoped, tag = 'input window, operand 21, single buffered']
    #allocation28 [shape = 'u8[28672]{0}', space=vmem, size = 0x7000, scoped, tag = 'input window, operand 22, single buffered']
    #allocation29 [shape = 's32[1]{0}', space=sflag, size = 0x4, scoped, tag = 'scoped memory for _lambda_.1']
    #allocation30 [shape = 'u8[61440]{0}', space=vmem, size = 0xf000, scoped, tag = 'input window, operand 23, single buffered']
    #allocation31 [shape = 'u8[8192]{0}', space=vmem, size = 0x2000, scoped, tag = 'input window, operand 24, single buffered']
    #allocation32 [shape = 's32[1]{0}', space=sflag, size = 0x4, scoped, tag = 'scoped memory for _lambda_.1']
    %30 = vsyncpa [#allocation3], 0
    %31 = vsyncpa [#allocation5], 0
    %32 = vsyncpa [#allocation8], 0
    %33 = vsyncpa [#allocation11], 0
    %34 = vsyncpa [#allocation14], 0
    %35 = vsyncpa [#allocation17], 0
    %36 = vsyncpa [#allocation20], 0
    %37 = vsyncpa [#allocation23], 0
    %38 = vsyncpa [#allocation26], 0
    %39 = vsyncpa [#allocation29], 0
    %40 = vsyncpa [#allocation32], 0
    loop: start=0, step=1, limit=4
    $region2: #{_lambda_.1} parent=1 // loop_pre_header
      _
    $region3: #{_lambda_.1} parent=1 // loop_header
      %s42 = sphi 0, %s46
      %p43 = scmp.ge.s32.totalorder %s42, 4
      %s52 = sphi 0, %s54
      %s55 = sphi 0, %s52
      %s56 = sphi 0, %s55
      %s72 = sphi 0, %s56
      %s76 = sphi 0, %s76
      %s78 = sphi 0, %s76
      %s79 = sphi 0, %s78
      %s93 = sphi 0, %s79
      %s97 = sphi 0, %s97
      %s99 = sphi 0, %s97
      %s100 = sphi 0, %s99
      %s114 = sphi 0, %s100
      %s118 = sphi 0, %s118
      %s120 = sphi 0, %s118
      %s121 = sphi 0, %s120
      %s135 = sphi 0, %s121
      %s139 = sphi 0, %s139
      %s141 = sphi 0, %s139
      %s142 = sphi 0, %s141
      %s156 = sphi 0, %s142
      %s160 = sphi 0, %s160
      %s162 = sphi 0, %s160
      %s163 = sphi 0, %s162
      %s177 = sphi 0, %s163
      %s181 = sphi 0, %s181
      %s183 = sphi 0, %s181
      %s184 = sphi 0, %s183
      %s198 = sphi 0, %s184
      %s202 = sphi 0, %s202
      %s204 = sphi 0, %s202
      %s205 = sphi 0, %s204
      %s219 = sphi 0, %s205
      %s223 = sphi 0, %s223
      %s225 = sphi 0, %s223
      %s226 = sphi 0, %s225
      %s240 = sphi 0, %s226
      %s244 = sphi 0, %s244
      %s246 = sphi 0, %s244
      %s247 = sphi 0, %s246
      %s261 = sphi 0, %s247
      %s265 = sphi 0, %s265
      %s267 = sphi 0, %s265
      %s268 = sphi 0, %s267
      %s282 = sphi 0, %s268
      %s286 = sphi 0, %s286
      %s288 = sphi 0, %s286
      %s289 = sphi 0, %s288
      %s303 = sphi 0, %s289
      %s307 = sphi 0, %s307
      %s309 = sphi 0, %s307
      %s310 = sphi 0, %s309
      %s324 = sphi 0, %s310
      %s328 = sphi 0, %s328
      %s330 = sphi 0, %s328
      %s331 = sphi 0, %s330
      %s345 = sphi 0, %s331
      %s349 = sphi 0, %s349
      %s351 = sphi 0, %s349
      %s352 = sphi 0, %s351
      %s366 = sphi 0, %s352
      %s370 = sphi 0, %s370
      %s372 = sphi 0, %s370
      %s373 = sphi 0, %s372
      %s387 = sphi 0, %s373
      %s391 = sphi 0, %s391
      %s393 = sphi 0, %s391
      %s394 = sphi 0, %s393
      %s408 = sphi 0, %s394
      %s412 = sphi 0, %s412
      %s414 = sphi 0, %s412
      %s415 = sphi 0, %s414
      %s429 = sphi 0, %s415
      %s433 = sphi 0, %s433
      %s435 = sphi 0, %s433
      %s436 = sphi 0, %s435
      %s450 = sphi 0, %s436
      %s454 = sphi 0, %s454
      %s456 = sphi 0, %s454
      %s457 = sphi 0, %s456
      %s471 = sphi 0, %s457
      %s475 = sphi 0, %s475
      %s477 = sphi 0, %s475
      %s478 = sphi 0, %s477
      %s492 = sphi 0, %s478
      %s496 = sphi 0, %s496
      %s498 = sphi 0, %s496
      %s499 = sphi 0, %s498
      %s513 = sphi 0, %s499
      %s517 = sphi 0, %s517
      %s519 = sphi 0, %s517
      %s520 = sphi 0, %s519
      %s534 = sphi 0, %s520
      %s538 = sphi 0, %s538
      %s540 = sphi 0, %s538
      %s541 = sphi 0, %s540
      %s555 = sphi 0, %s541
      %s559 = sphi 0, %s559
      %s561 = sphi 0, %s559
      %s562 = sphi 0, %s561
      %s576 = sphi 0, %s562
      %s582 = sphi 0, %s584
      %s585 = sphi 0, %s582
      %s586 = sphi 0, %s585
      %s602 = sphi 0, %s586
    $region4: #{_lambda_.1} parent=1 // loop_header_branch
      %45 = sbr.rel (%p43) target = $region8
    $region5: #{_lambda_.1} parent=1 // loop_body
      %s47 = ssub.s32 %s42, 1
      %s48 = ssub.s32 %s42, 2
      %s49 = sadd.s32 %s42, 1
      %s50 = ssub.s32 %s42, %s49
      %p51 = scmp.eq.s32.totalorder %s50, 0
      %s53 = sadd.s32 %s52, 1
      %s54 = scalar_select %p51, %s52, %s53
      %p57 = pneg %p51
      %p58 = scmp.eq.s32.totalorder %s42, 1
      %p59 = por %p57, %p58
      %p60 = scmp.ne.s32.totalorder %s52, %s55
      %p61 = scmp.eq.s32.totalorder %s42, 0
      %p62 = por %p60, %p61
      %p63 = scmp.ne.s32.totalorder %s52, %s55
      %p64 = scmp.eq.s32.totalorder %s47, 1
      %p65 = por %p63, %p64
      %p66 = scmp.ne.s32.totalorder %s55, %s56
      %p67 = scmp.eq.s32.totalorder %s47, 0
      %p68 = por %p66, %p67
      %p69 = scmp.ne.s32.totalorder %s55, %s56
      %p70 = scmp.eq.s32.totalorder %s48, 1
      %p71 = por %p69, %p70
      %p73 = scmp.ne.s32.totalorder %s56, %s72
      %p74 = scmp.eq.s32.totalorder %s48, 0
      %p75 = por %p73, %p74
      %s77 = sadd.s32 %s76, 1
      %p80 = scmp.eq.s32.totalorder %s42, 1
      %p81 = scmp.ne.s32.totalorder %s76, %s78
      %p82 = scmp.eq.s32.totalorder %s42, 0
      %p83 = por %p81, %p82
      %p84 = scmp.ne.s32.totalorder %s76, %s78
      %p85 = scmp.eq.s32.totalorder %s47, 1
      %p86 = por %p84, %p85
      %p87 = scmp.ne.s32.totalorder %s78, %s79
      %p88 = scmp.eq.s32.totalorder %s47, 0
      %p89 = por %p87, %p88
      %p90 = scmp.ne.s32.totalorder %s78, %s79
      %p91 = scmp.eq.s32.totalorder %s48, 1
      %p92 = por %p90, %p91
      %p94 = scmp.ne.s32.totalorder %s79, %s93
      %p95 = scmp.eq.s32.totalorder %s48, 0
      %p96 = por %p94, %p95
      %s98 = sadd.s32 %s97, 1
      %p101 = scmp.eq.s32.totalorder %s42, 1
      %p102 = scmp.ne.s32.totalorder %s97, %s99
      %p103 = scmp.eq.s32.totalorder %s42, 0
      %p104 = por %p102, %p103
      %p105 = scmp.ne.s32.totalorder %s97, %s99
      %p106 = scmp.eq.s32.totalorder %s47, 1
      %p107 = por %p105, %p106
      %p108 = scmp.ne.s32.totalorder %s99, %s100
      %p109 = scmp.eq.s32.totalorder %s47, 0
      %p110 = por %p108, %p109
      %p111 = scmp.ne.s32.totalorder %s99, %s100
      %p112 = scmp.eq.s32.totalorder %s48, 1
      %p113 = por %p111, %p112
      %p115 = scmp.ne.s32.totalorder %s100, %s114
      %p116 = scmp.eq.s32.totalorder %s48, 0
      %p117 = por %p115, %p116
      %s119 = sadd.s32 %s118, 1
      %p122 = scmp.eq.s32.totalorder %s42, 1
      %p123 = scmp.ne.s32.totalorder %s118, %s120
      %p124 = scmp.eq.s32.totalorder %s42, 0
      %p125 = por %p123, %p124
      %p126 = scmp.ne.s32.totalorder %s118, %s120
      %p127 = scmp.eq.s32.totalorder %s47, 1
      %p128 = por %p126, %p127
      %p129 = scmp.ne.s32.totalorder %s120, %s121
      %p130 = scmp.eq.s32.totalorder %s47, 0
      %p131 = por %p129, %p130
      %p132 = scmp.ne.s32.totalorder %s120, %s121
      %p133 = scmp.eq.s32.totalorder %s48, 1
      %p134 = por %p132, %p133
      %p136 = scmp.ne.s32.totalorder %s121, %s135
      %p137 = scmp.eq.s32.totalorder %s48, 0
      %p138 = por %p136, %p137
      %s140 = sadd.s32 %s139, 1
      %p143 = scmp.eq.s32.totalorder %s42, 1
      %p144 = scmp.ne.s32.totalorder %s139, %s141
      %p145 = scmp.eq.s32.totalorder %s42, 0
      %p146 = por %p144, %p145
      %p147 = scmp.ne.s32.totalorder %s139, %s141
      %p148 = scmp.eq.s32.totalorder %s47, 1
      %p149 = por %p147, %p148
      %p150 = scmp.ne.s32.totalorder %s141, %s142
      %p151 = scmp.eq.s32.totalorder %s47, 0
      %p152 = por %p150, %p151
      %p153 = scmp.ne.s32.totalorder %s141, %s142
      %p154 = scmp.eq.s32.totalorder %s48, 1
      %p155 = por %p153, %p154
      %p157 = scmp.ne.s32.totalorder %s142, %s156
      %p158 = scmp.eq.s32.totalorder %s48, 0
      %p159 = por %p157, %p158
      %s161 = sadd.s32 %s160, 1
      %p164 = scmp.eq.s32.totalorder %s42, 1
      %p165 = scmp.ne.s32.totalorder %s160, %s162
      %p166 = scmp.eq.s32.totalorder %s42, 0
      %p167 = por %p165, %p166
      %p168 = scmp.ne.s32.totalorder %s160, %s162
      %p169 = scmp.eq.s32.totalorder %s47, 1
      %p170 = por %p168, %p169
      %p171 = scmp.ne.s32.totalorder %s162, %s163
      %p172 = scmp.eq.s32.totalorder %s47, 0
      %p173 = por %p171, %p172
      %p174 = scmp.ne.s32.totalorder %s162, %s163
      %p175 = scmp.eq.s32.totalorder %s48, 1
      %p176 = por %p174, %p175
      %p178 = scmp.ne.s32.totalorder %s163, %s177
      %p179 = scmp.eq.s32.totalorder %s48, 0
      %p180 = por %p178, %p179
      %s182 = sadd.s32 %s181, 1
      %p185 = scmp.eq.s32.totalorder %s42, 1
      %p186 = scmp.ne.s32.totalorder %s181, %s183
      %p187 = scmp.eq.s32.totalorder %s42, 0
      %p188 = por %p186, %p187
      %p189 = scmp.ne.s32.totalorder %s181, %s183
      %p190 = scmp.eq.s32.totalorder %s47, 1
      %p191 = por %p189, %p190
      %p192 = scmp.ne.s32.totalorder %s183, %s184
      %p193 = scmp.eq.s32.totalorder %s47, 0
      %p194 = por %p192, %p193
      %p195 = scmp.ne.s32.totalorder %s183, %s184
      %p196 = scmp.eq.s32.totalorder %s48, 1
      %p197 = por %p195, %p196
      %p199 = scmp.ne.s32.totalorder %s184, %s198
      %p200 = scmp.eq.s32.totalorder %s48, 0
      %p201 = por %p199, %p200
      %s203 = sadd.s32 %s202, 1
      %p206 = scmp.eq.s32.totalorder %s42, 1
      %p207 = scmp.ne.s32.totalorder %s202, %s204
      %p208 = scmp.eq.s32.totalorder %s42, 0
      %p209 = por %p207, %p208
      %p210 = scmp.ne.s32.totalorder %s202, %s204
      %p211 = scmp.eq.s32.totalorder %s47, 1
      %p212 = por %p210, %p211
      %p213 = scmp.ne.s32.totalorder %s204, %s205
      %p214 = scmp.eq.s32.totalorder %s47, 0
      %p215 = por %p213, %p214
      %p216 = scmp.ne.s32.totalorder %s204, %s205
      %p217 = scmp.eq.s32.totalorder %s48, 1
      %p218 = por %p216, %p217
      %p220 = scmp.ne.s32.totalorder %s205, %s219
      %p221 = scmp.eq.s32.totalorder %s48, 0
      %p222 = por %p220, %p221
      %s224 = sadd.s32 %s223, 1
      %p227 = scmp.eq.s32.totalorder %s42, 1
      %p228 = scmp.ne.s32.totalorder %s223, %s225
      %p229 = scmp.eq.s32.totalorder %s42, 0
      %p230 = por %p228, %p229
      %p231 = scmp.ne.s32.totalorder %s223, %s225
      %p232 = scmp.eq.s32.totalorder %s47, 1
      %p233 = por %p231, %p232
      %p234 = scmp.ne.s32.totalorder %s225, %s226
      %p235 = scmp.eq.s32.totalorder %s47, 0
      %p236 = por %p234, %p235
      %p237 = scmp.ne.s32.totalorder %s225, %s226
      %p238 = scmp.eq.s32.totalorder %s48, 1
      %p239 = por %p237, %p238
      %p241 = scmp.ne.s32.totalorder %s226, %s240
      %p242 = scmp.eq.s32.totalorder %s48, 0
      %p243 = por %p241, %p242
      %s245 = sadd.s32 %s244, 1
      %p248 = scmp.eq.s32.totalorder %s42, 1
      %p249 = scmp.ne.s32.totalorder %s244, %s246
      %p250 = scmp.eq.s32.totalorder %s42, 0
      %p251 = por %p249, %p250
      %p252 = scmp.ne.s32.totalorder %s244, %s246
      %p253 = scmp.eq.s32.totalorder %s47, 1
      %p254 = por %p252, %p253
      %p255 = scmp.ne.s32.totalorder %s246, %s247
      %p256 = scmp.eq.s32.totalorder %s47, 0
      %p257 = por %p255, %p256
      %p258 = scmp.ne.s32.totalorder %s246, %s247
      %p259 = scmp.eq.s32.totalorder %s48, 1
      %p260 = por %p258, %p259
      %p262 = scmp.ne.s32.totalorder %s247, %s261
      %p263 = scmp.eq.s32.totalorder %s48, 0
      %p264 = por %p262, %p263
      %s266 = sadd.s32 %s265, 1
      %p269 = scmp.eq.s32.totalorder %s42, 1
      %p270 = scmp.ne.s32.totalorder %s265, %s267
      %p271 = scmp.eq.s32.totalorder %s42, 0
      %p272 = por %p270, %p271
      %p273 = scmp.ne.s32.totalorder %s265, %s267
      %p274 = scmp.eq.s32.totalorder %s47, 1
      %p275 = por %p273, %p274
      %p276 = scmp.ne.s32.totalorder %s267, %s268
      %p277 = scmp.eq.s32.totalorder %s47, 0
      %p278 = por %p276, %p277
      %p279 = scmp.ne.s32.totalorder %s267, %s268
      %p280 = scmp.eq.s32.totalorder %s48, 1
      %p281 = por %p279, %p280
      %p283 = scmp.ne.s32.totalorder %s268, %s282
      %p284 = scmp.eq.s32.totalorder %s48, 0
      %p285 = por %p283, %p284
      %s287 = sadd.s32 %s286, 1
      %p290 = scmp.eq.s32.totalorder %s42, 1
      %p291 = scmp.ne.s32.totalorder %s286, %s288
      %p292 = scmp.eq.s32.totalorder %s42, 0
      %p293 = por %p291, %p292
      %p294 = scmp.ne.s32.totalorder %s286, %s288
      %p295 = scmp.eq.s32.totalorder %s47, 1
      %p296 = por %p294, %p295
      %p297 = scmp.ne.s32.totalorder %s288, %s289
      %p298 = scmp.eq.s32.totalorder %s47, 0
      %p299 = por %p297, %p298
      %p300 = scmp.ne.s32.totalorder %s288, %s289
      %p301 = scmp.eq.s32.totalorder %s48, 1
      %p302 = por %p300, %p301
      %p304 = scmp.ne.s32.totalorder %s289, %s303
      %p305 = scmp.eq.s32.totalorder %s48, 0
      %p306 = por %p304, %p305
      %s308 = sadd.s32 %s307, 1
      %p311 = scmp.eq.s32.totalorder %s42, 1
      %p312 = scmp.ne.s32.totalorder %s307, %s309
      %p313 = scmp.eq.s32.totalorder %s42, 0
      %p314 = por %p312, %p313
      %p315 = scmp.ne.s32.totalorder %s307, %s309
      %p316 = scmp.eq.s32.totalorder %s47, 1
      %p317 = por %p315, %p316
      %p318 = scmp.ne.s32.totalorder %s309, %s310
      %p319 = scmp.eq.s32.totalorder %s47, 0
      %p320 = por %p318, %p319
      %p321 = scmp.ne.s32.totalorder %s309, %s310
      %p322 = scmp.eq.s32.totalorder %s48, 1
      %p323 = por %p321, %p322
      %p325 = scmp.ne.s32.totalorder %s310, %s324
      %p326 = scmp.eq.s32.totalorder %s48, 0
      %p327 = por %p325, %p326
      %s329 = sadd.s32 %s328, 1
      %p332 = scmp.eq.s32.totalorder %s42, 1
      %p333 = scmp.ne.s32.totalorder %s328, %s330
      %p334 = scmp.eq.s32.totalorder %s42, 0
      %p335 = por %p333, %p334
      %p336 = scmp.ne.s32.totalorder %s328, %s330
      %p337 = scmp.eq.s32.totalorder %s47, 1
      %p338 = por %p336, %p337
      %p339 = scmp.ne.s32.totalorder %s330, %s331
      %p340 = scmp.eq.s32.totalorder %s47, 0
      %p341 = por %p339, %p340
      %p342 = scmp.ne.s32.totalorder %s330, %s331
      %p343 = scmp.eq.s32.totalorder %s48, 1
      %p344 = por %p342, %p343
      %p346 = scmp.ne.s32.totalorder %s331, %s345
      %p347 = scmp.eq.s32.totalorder %s48, 0
      %p348 = por %p346, %p347
      %s350 = sadd.s32 %s349, 1
      %p353 = scmp.eq.s32.totalorder %s42, 1
      %p354 = scmp.ne.s32.totalorder %s349, %s351
      %p355 = scmp.eq.s32.totalorder %s42, 0
      %p356 = por %p354, %p355
      %p357 = scmp.ne.s32.totalorder %s349, %s351
      %p358 = scmp.eq.s32.totalorder %s47, 1
      %p359 = por %p357, %p358
      %p360 = scmp.ne.s32.totalorder %s351, %s352
      %p361 = scmp.eq.s32.totalorder %s47, 0
      %p362 = por %p360, %p361
      %p363 = scmp.ne.s32.totalorder %s351, %s352
      %p364 = scmp.eq.s32.totalorder %s48, 1
      %p365 = por %p363, %p364
      %p367 = scmp.ne.s32.totalorder %s352, %s366
      %p368 = scmp.eq.s32.totalorder %s48, 0
      %p369 = por %p367, %p368
      %s371 = sadd.s32 %s370, 1
      %p374 = scmp.eq.s32.totalorder %s42, 1
      %p375 = scmp.ne.s32.totalorder %s370, %s372
      %p376 = scmp.eq.s32.totalorder %s42, 0
      %p377 = por %p375, %p376
      %p378 = scmp.ne.s32.totalorder %s370, %s372
      %p379 = scmp.eq.s32.totalorder %s47, 1
      %p380 = por %p378, %p379
      %p381 = scmp.ne.s32.totalorder %s372, %s373
      %p382 = scmp.eq.s32.totalorder %s47, 0
      %p383 = por %p381, %p382
      %p384 = scmp.ne.s32.totalorder %s372, %s373
      %p385 = scmp.eq.s32.totalorder %s48, 1
      %p386 = por %p384, %p385
      %p388 = scmp.ne.s32.totalorder %s373, %s387
      %p389 = scmp.eq.s32.totalorder %s48, 0
      %p390 = por %p388, %p389
      %s392 = sadd.s32 %s391, 1
      %p395 = scmp.eq.s32.totalorder %s42, 1
      %p396 = scmp.ne.s32.totalorder %s391, %s393
      %p397 = scmp.eq.s32.totalorder %s42, 0
      %p398 = por %p396, %p397
      %p399 = scmp.ne.s32.totalorder %s391, %s393
      %p400 = scmp.eq.s32.totalorder %s47, 1
      %p401 = por %p399, %p400
      %p402 = scmp.ne.s32.totalorder %s393, %s394
      %p403 = scmp.eq.s32.totalorder %s47, 0
      %p404 = por %p402, %p403
      %p405 = scmp.ne.s32.totalorder %s393, %s394
      %p406 = scmp.eq.s32.totalorder %s48, 1
      %p407 = por %p405, %p406
      %p409 = scmp.ne.s32.totalorder %s394, %s408
      %p410 = scmp.eq.s32.totalorder %s48, 0
      %p411 = por %p409, %p410
      %s413 = sadd.s32 %s412, 1
      %p416 = scmp.eq.s32.totalorder %s42, 1
      %p417 = scmp.ne.s32.totalorder %s412, %s414
      %p418 = scmp.eq.s32.totalorder %s42, 0
      %p419 = por %p417, %p418
      %p420 = scmp.ne.s32.totalorder %s412, %s414
      %p421 = scmp.eq.s32.totalorder %s47, 1
      %p422 = por %p420, %p421
      %p423 = scmp.ne.s32.totalorder %s414, %s415
      %p424 = scmp.eq.s32.totalorder %s47, 0
      %p425 = por %p423, %p424
      %p426 = scmp.ne.s32.totalorder %s414, %s415
      %p427 = scmp.eq.s32.totalorder %s48, 1
      %p428 = por %p426, %p427
      %p430 = scmp.ne.s32.totalorder %s415, %s429
      %p431 = scmp.eq.s32.totalorder %s48, 0
      %p432 = por %p430, %p431
      %s434 = sadd.s32 %s433, 1
      %p437 = scmp.eq.s32.totalorder %s42, 1
      %p438 = scmp.ne.s32.totalorder %s433, %s435
      %p439 = scmp.eq.s32.totalorder %s42, 0
      %p440 = por %p438, %p439
      %p441 = scmp.ne.s32.totalorder %s433, %s435
      %p442 = scmp.eq.s32.totalorder %s47, 1
      %p443 = por %p441, %p442
      %p444 = scmp.ne.s32.totalorder %s435, %s436
      %p445 = scmp.eq.s32.totalorder %s47, 0
      %p446 = por %p444, %p445
      %p447 = scmp.ne.s32.totalorder %s435, %s436
      %p448 = scmp.eq.s32.totalorder %s48, 1
      %p449 = por %p447, %p448
      %p451 = scmp.ne.s32.totalorder %s436, %s450
      %p452 = scmp.eq.s32.totalorder %s48, 0
      %p453 = por %p451, %p452
      %s455 = sadd.s32 %s454, 1
      %p458 = scmp.eq.s32.totalorder %s42, 1
      %p459 = scmp.ne.s32.totalorder %s454, %s456
      %p460 = scmp.eq.s32.totalorder %s42, 0
      %p461 = por %p459, %p460
      %p462 = scmp.ne.s32.totalorder %s454, %s456
      %p463 = scmp.eq.s32.totalorder %s47, 1
      %p464 = por %p462, %p463
      %p465 = scmp.ne.s32.totalorder %s456, %s457
      %p466 = scmp.eq.s32.totalorder %s47, 0
      %p467 = por %p465, %p466
      %p468 = scmp.ne.s32.totalorder %s456, %s457
      %p469 = scmp.eq.s32.totalorder %s48, 1
      %p470 = por %p468, %p469
      %p472 = scmp.ne.s32.totalorder %s457, %s471
      %p473 = scmp.eq.s32.totalorder %s48, 0
      %p474 = por %p472, %p473
      %s476 = sadd.s32 %s475, 1
      %p479 = scmp.eq.s32.totalorder %s42, 1
      %p480 = scmp.ne.s32.totalorder %s475, %s477
      %p481 = scmp.eq.s32.totalorder %s42, 0
      %p482 = por %p480, %p481
      %p483 = scmp.ne.s32.totalorder %s475, %s477
      %p484 = scmp.eq.s32.totalorder %s47, 1
      %p485 = por %p483, %p484
      %p486 = scmp.ne.s32.totalorder %s477, %s478
      %p487 = scmp.eq.s32.totalorder %s47, 0
      %p488 = por %p486, %p487
      %p489 = scmp.ne.s32.totalorder %s477, %s478
      %p490 = scmp.eq.s32.totalorder %s48, 1
      %p491 = por %p489, %p490
      %p493 = scmp.ne.s32.totalorder %s478, %s492
      %p494 = scmp.eq.s32.totalorder %s48, 0
      %p495 = por %p493, %p494
      %s497 = sadd.s32 %s496, 1
      %p500 = scmp.eq.s32.totalorder %s42, 1
      %p501 = scmp.ne.s32.totalorder %s496, %s498
      %p502 = scmp.eq.s32.totalorder %s42, 0
      %p503 = por %p501, %p502
      %p504 = scmp.ne.s32.totalorder %s496, %s498
      %p505 = scmp.eq.s32.totalorder %s47, 1
      %p506 = por %p504, %p505
      %p507 = scmp.ne.s32.totalorder %s498, %s499
      %p508 = scmp.eq.s32.totalorder %s47, 0
      %p509 = por %p507, %p508
      %p510 = scmp.ne.s32.totalorder %s498, %s499
      %p511 = scmp.eq.s32.totalorder %s48, 1
      %p512 = por %p510, %p511
      %p514 = scmp.ne.s32.totalorder %s499, %s513
      %p515 = scmp.eq.s32.totalorder %s48, 0
      %p516 = por %p514, %p515
      %s518 = sadd.s32 %s517, 1
      %p521 = scmp.eq.s32.totalorder %s42, 1
      %p522 = scmp.ne.s32.totalorder %s517, %s519
      %p523 = scmp.eq.s32.totalorder %s42, 0
      %p524 = por %p522, %p523
      %p525 = scmp.ne.s32.totalorder %s517, %s519
      %p526 = scmp.eq.s32.totalorder %s47, 1
      %p527 = por %p525, %p526
      %p528 = scmp.ne.s32.totalorder %s519, %s520
      %p529 = scmp.eq.s32.totalorder %s47, 0
      %p530 = por %p528, %p529
      %p531 = scmp.ne.s32.totalorder %s519, %s520
      %p532 = scmp.eq.s32.totalorder %s48, 1
      %p533 = por %p531, %p532
      %p535 = scmp.ne.s32.totalorder %s520, %s534
      %p536 = scmp.eq.s32.totalorder %s48, 0
      %p537 = por %p535, %p536
      %s539 = sadd.s32 %s538, 1
      %p542 = scmp.eq.s32.totalorder %s42, 1
      %p543 = scmp.ne.s32.totalorder %s538, %s540
      %p544 = scmp.eq.s32.totalorder %s42, 0
      %p545 = por %p543, %p544
      %p546 = scmp.ne.s32.totalorder %s538, %s540
      %p547 = scmp.eq.s32.totalorder %s47, 1
      %p548 = por %p546, %p547
      %p549 = scmp.ne.s32.totalorder %s540, %s541
      %p550 = scmp.eq.s32.totalorder %s47, 0
      %p551 = por %p549, %p550
      %p552 = scmp.ne.s32.totalorder %s540, %s541
      %p553 = scmp.eq.s32.totalorder %s48, 1
      %p554 = por %p552, %p553
      %p556 = scmp.ne.s32.totalorder %s541, %s555
      %p557 = scmp.eq.s32.totalorder %s48, 0
      %p558 = por %p556, %p557
      %s560 = sadd.s32 %s559, 1
      %p563 = scmp.eq.s32.totalorder %s42, 1
      %p564 = scmp.ne.s32.totalorder %s559, %s561
      %p565 = scmp.eq.s32.totalorder %s42, 0
      %p566 = por %p564, %p565
      %p567 = scmp.ne.s32.totalorder %s559, %s561
      %p568 = scmp.eq.s32.totalorder %s47, 1
      %p569 = por %p567, %p568
      %p570 = scmp.ne.s32.totalorder %s561, %s562
      %p571 = scmp.eq.s32.totalorder %s47, 0
      %p572 = por %p570, %p571
      %p573 = scmp.ne.s32.totalorder %s561, %s562
      %p574 = scmp.eq.s32.totalorder %s48, 1
      %p575 = por %p573, %p574
      %p577 = scmp.ne.s32.totalorder %s562, %s576
      %p578 = scmp.eq.s32.totalorder %s48, 0
      %p579 = por %p577, %p578
      %s580 = ssub.s32 %s42, %s49
      %p581 = scmp.eq.s32.totalorder %s580, 0
      %s583 = sadd.s32 %s582, 1
      %s584 = scalar_select %p581, %s582, %s583
      %p587 = pneg %p581
      %p588 = scmp.eq.s32.totalorder %s42, 1
      %p589 = por %p587, %p588
      %p590 = scmp.ne.s32.totalorder %s582, %s585
      %p591 = scmp.eq.s32.totalorder %s42, 0
      %p592 = por %p590, %p591
      %p593 = scmp.ne.s32.totalorder %s582, %s585
      %p594 = scmp.eq.s32.totalorder %s47, 1
      %p595 = por %p593, %p594
      %p596 = scmp.ne.s32.totalorder %s585, %s586
      %p597 = scmp.eq.s32.totalorder %s47, 0
      %p598 = por %p596, %p597
      %p599 = scmp.ne.s32.totalorder %s585, %s586
      %p600 = scmp.eq.s32.totalorder %s48, 1
      %p601 = por %p599, %p600
      %p603 = scmp.ne.s32.totalorder %s586, %s602
      %p604 = scmp.eq.s32.totalorder %s48, 0
      %p605 = por %p603, %p604
      %p606 = scmp.le.s32.totalorder 1, %s42
      %p607 = scmp.lt.s32.totalorder %s42, 3
      %p608 = pnand %p606, %p607
      %p609 = pneg %p608
      // Predicated region
      $region9: #{_lambda_.1} parent=5 // pred_check
        _
      $region10: #{_lambda_.1} parent=5 // pred_check_branch
        %611 = sbr.rel (%p608) target = $region12
      $region11: #{_lambda_.1} parent=5 // pred_region
        %s612 = ssub.s32 %s42, 1
        // Predicated region
        $region13: #{_lambda_.1} parent=11 // pred_check
          %p613 = pneg %p89
        $region14: #{_lambda_.1} parent=11 // pred_check_branch
          %615 = sbr.rel (%p613) target = $region16
        $region15: #{_lambda_.1} parent=11 // pred_region
          %s617 = ssub.s32 64, 64
          %618 = vsyncadd [#allocation3], %s617
          %s620 = sshll.u32 [#allocation2], 4
          %s621 = int_to_ptr.vmem [resolvable:$true] %s620
          %623 = dma.hbm_to_vmem [thread:$0]  %s1, 64, %s621, [#allocation3]
        $region16: #{_lambda_.1} parent=11 // pred_fallthru
          _
        // Predicated region
        $region17: #{_lambda_.1} parent=11 // pred_check
          %p624 = pneg %p110
        $region18: #{_lambda_.1} parent=11 // pred_check_branch
          %626 = sbr.rel (%p624) target = $region20
        $region19: #{_lambda_.1} parent=11 // pred_region
          %s628 = ssub.s32 896, 896
          %629 = vsyncadd [#allocation5], %s628
          %s630 = sshll.u32 [#allocation4], 4
          %s631 = int_to_ptr.vmem [resolvable:$true] %s630
          %636 = dma.hbm_to_vmem [thread:$0]  %s2, 896, %s631, [#allocation5], 128, 128, 8
        $region20: #{_lambda_.1} parent=11 // pred_fallthru
          _
        // Predicated region
        $region21: #{_lambda_.1} parent=11 // pred_check
          %p637 = pneg %p131
        $region22: #{_lambda_.1} parent=11 // pred_check_branch
          %639 = sbr.rel (%p637) target = $region24
        $region23: #{_lambda_.1} parent=11 // pred_region
          %s641 = ssub.s32 896, 896
          %642 = vsyncadd [#allocation5], %s641
          %s643 = sshll.u32 [#allocation6], 4
          %s644 = int_to_ptr.vmem [resolvable:$true] %s643
          %649 = dma.hbm_to_vmem [thread:$0]  %s3, 896, %s644, [#allocation5], 128, 128, 8
        $region24: #{_lambda_.1} parent=11 // pred_fallthru
          _
        // Predicated region
        $region25: #{_lambda_.1} parent=11 // pred_check
          %p650 = pneg %p152
        $region26: #{_lambda_.1} parent=11 // pred_check_branch
          %652 = sbr.rel (%p650) target = $region28
        $region27: #{_lambda_.1} parent=11 // pred_region
          %s654 = ssub.s32 896, 896
          %655 = vsyncadd [#allocation8], %s654
          %s656 = sshll.u32 [#allocation7], 4
          %s657 = int_to_ptr.vmem [resolvable:$true] %s656
          %662 = dma.hbm_to_vmem [thread:$0]  %s4, 896, %s657, [#allocation8], 128, 128, 8
        $region28: #{_lambda_.1} parent=11 // pred_fallthru
          _
        // Predicated region
        $region29: #{_lambda_.1} parent=11 // pred_check
          %p663 = pneg %p173
        $region30: #{_lambda_.1} parent=11 // pred_check_branch
          %665 = sbr.rel (%p663) target = $region32
        $region31: #{_lambda_.1} parent=11 // pred_region
          %s667 = ssub.s32 128, 128
          %668 = vsyncadd [#allocation8], %s667
          %s669 = sshll.u32 [#allocation9], 4
          %s670 = int_to_ptr.vmem [resolvable:$true] %s669
          %675 = dma.hbm_to_vmem [thread:$0]  %s5, 128, %s670, [#allocation8], 64, 64, 4
        $region32: #{_lambda_.1} parent=11 // pred_fallthru
          _
        // Predicated region
        $region33: #{_lambda_.1} parent=11 // pred_check
          %p676 = pneg %p194
        $region34: #{_lambda_.1} parent=11 // pred_check_branch
          %678 = sbr.rel (%p676) target = $region36
        $region35: #{_lambda_.1} parent=11 // pred_region
          %s680 = ssub.s32 256, 256
          %681 = vsyncadd [#allocation11], %s680
          %s682 = sshll.u32 [#allocation10], 4
          %s683 = int_to_ptr.vmem [resolvable:$true] %s682
          %688 = dma.hbm_to_vmem [thread:$0]  %s6, 256, %s683, [#allocation11], 128, 128, 8
        $region36: #{_lambda_.1} parent=11 // pred_fallthru
          _
        // Predicated region
        $region37: #{_lambda_.1} parent=11 // pred_check
          %p689 = pneg %p215
        $region38: #{_lambda_.1} parent=11 // pred_check_branch
          %691 = sbr.rel (%p689) target = $region40
        $region39: #{_lambda_.1} parent=11 // pred_region
          %s693 = ssub.s32 256, 256
          %694 = vsyncadd [#allocation11], %s693
          %s695 = sshll.u32 [#allocation12], 4
          %s696 = int_to_ptr.vmem [resolvable:$true] %s695
          %701 = dma.hbm_to_vmem [thread:$0]  %s7, 256, %s696, [#allocation11], 128, 128, 8
        $region40: #{_lambda_.1} parent=11 // pred_fallthru
          _
        // Predicated region
        $region41: #{_lambda_.1} parent=11 // pred_check
          %p702 = pneg %p236
        $region42: #{_lambda_.1} parent=11 // pred_check_branch
          %704 = sbr.rel (%p702) target = $region44
        $region43: #{_lambda_.1} parent=11 // pred_region
          _
        $region44: #{_lambda_.1} parent=11 // pred_fallthru
          _
        // Predicated region
        $region45: #{_lambda_.1} parent=11 // pred_check
          %p705 = pneg %p257
        $region46: #{_lambda_.1} parent=11 // pred_check_branch
          %707 = sbr.rel (%p705) target = $region48
        $region47: #{_lambda_.1} parent=11 // pred_region
          %s709 = ssub.s32 256, 256
          %710 = vsyncadd [#allocation14], %s709
          %s711 = sshll.u32 [#allocation13], 4
          %s712 = int_to_ptr.vmem [resolvable:$true] %s711
          %717 = dma.hbm_to_vmem [thread:$0]  %s9, 256, %s712, [#allocation14], 128, 128, 8
        $region48: #{_lambda_.1} parent=11 // pred_fallthru
          _
        // Predicated region
        $region49: #{_lambda_.1} parent=11 // pred_check
          %p718 = pneg %p278
        $region50: #{_lambda_.1} parent=11 // pred_check_branch
          %720 = sbr.rel (%p718) target = $region52
        $region51: #{_lambda_.1} parent=11 // pred_region
          %s722 = ssub.s32 256, 256
          %723 = vsyncadd [#allocation14], %s722
          %s724 = sshll.u32 [#allocation15], 4
          %s725 = int_to_ptr.vmem [resolvable:$true] %s724
          %730 = dma.hbm_to_vmem [thread:$0]  %s10, 256, %s725, [#allocation14], 128, 128, 8
        $region52: #{_lambda_.1} parent=11 // pred_fallthru
          _
        // Predicated region
        $region53: #{_lambda_.1} parent=11 // pred_check
          %p731 = pneg %p299
        $region54: #{_lambda_.1} parent=11 // pred_check_branch
          %733 = sbr.rel (%p731) target = $region56
        $region55: #{_lambda_.1} parent=11 // pred_region
          _
        $region56: #{_lambda_.1} parent=11 // pred_fallthru
          _
        // Predicated region
        $region57: #{_lambda_.1} parent=11 // pred_check
          %p734 = pneg %p320
        $region58: #{_lambda_.1} parent=11 // pred_check_branch
          %736 = sbr.rel (%p734) target = $region60
        $region59: #{_lambda_.1} parent=11 // pred_region
          %s738 = ssub.s32 256, 256
          %739 = vsyncadd [#allocation17], %s738
          %s740 = sshll.u32 [#allocation16], 4
          %s741 = int_to_ptr.vmem [resolvable:$true] %s740
          %746 = dma.hbm_to_vmem [thread:$0]  %s12, 256, %s741, [#allocation17], 128, 128, 8
        $region60: #{_lambda_.1} parent=11 // pred_fallthru
          _
        // Predicated region
        $region61: #{_lambda_.1} parent=11 // pred_check
          %p747 = pneg %p341
        $region62: #{_lambda_.1} parent=11 // pred_check_branch
          %749 = sbr.rel (%p747) target = $region64
        $region63: #{_lambda_.1} parent=11 // pred_region
          %s751 = ssub.s32 256, 256
          %752 = vsyncadd [#allocation17], %s751
          %s753 = sshll.u32 [#allocation18], 4
          %s754 = int_to_ptr.vmem [resolvable:$true] %s753
          %759 = dma.hbm_to_vmem [thread:$0]  %s13, 256, %s754, [#allocation17], 128, 128, 8
        $region64: #{_lambda_.1} parent=11 // pred_fallthru
          _
        // Predicated region
        $region65: #{_lambda_.1} parent=11 // pred_check
          %p760 = pneg %p362
        $region66: #{_lambda_.1} parent=11 // pred_check_branch
          %762 = sbr.rel (%p760) target = $region68
        $region67: #{_lambda_.1} parent=11 // pred_region
          _
        $region68: #{_lambda_.1} parent=11 // pred_fallthru
          _
        // Predicated region
        $region69: #{_lambda_.1} parent=11 // pred_check
          %p763 = pneg %p383
        $region70: #{_lambda_.1} parent=11 // pred_check_branch
          %765 = sbr.rel (%p763) target = $region72
        $region71: #{_lambda_.1} parent=11 // pred_region
          %s767 = ssub.s32 256, 256
          %768 = vsyncadd [#allocation20], %s767
          %s769 = sshll.u32 [#allocation19], 4
          %s770 = int_to_ptr.vmem [resolvable:$true] %s769
          %775 = dma.hbm_to_vmem [thread:$0]  %s15, 256, %s770, [#allocation20], 128, 128, 8
        $region72: #{_lambda_.1} parent=11 // pred_fallthru
          _
        // Predicated region
        $region73: #{_lambda_.1} parent=11 // pred_check
          %p776 = pneg %p404
        $region74: #{_lambda_.1} parent=11 // pred_check_branch
          %778 = sbr.rel (%p776) target = $region76
        $region75: #{_lambda_.1} parent=11 // pred_region
          %s780 = ssub.s32 256, 256
          %781 = vsyncadd [#allocation20], %s780
          %s782 = sshll.u32 [#allocation21], 4
          %s783 = int_to_ptr.vmem [resolvable:$true] %s782
          %788 = dma.hbm_to_vmem [thread:$0]  %s16, 256, %s783, [#allocation20], 128, 128, 8
        $region76: #{_lambda_.1} parent=11 // pred_fallthru
          _
        // Predicated region
        $region77: #{_lambda_.1} parent=11 // pred_check
          %p789 = pneg %p425
        $region78: #{_lambda_.1} parent=11 // pred_check_branch
          %791 = sbr.rel (%p789) target = $region80
        $region79: #{_lambda_.1} parent=11 // pred_region
          _
        $region80: #{_lambda_.1} parent=11 // pred_fallthru
          _
        // Predicated region
        $region81: #{_lambda_.1} parent=11 // pred_check
          %p792 = pneg %p446
        $region82: #{_lambda_.1} parent=11 // pred_check_branch
          %794 = sbr.rel (%p792) target = $region84
        $region83: #{_lambda_.1} parent=11 // pred_region
          %s796 = ssub.s32 256, 256
          %797 = vsyncadd [#allocation23], %s796
          %s798 = sshll.u32 [#allocation22], 4
          %s799 = int_to_ptr.vmem [resolvable:$true] %s798
          %804 = dma.hbm_to_vmem [thread:$0]  %s18, 256, %s799, [#allocation23], 128, 128, 8
        $region84: #{_lambda_.1} parent=11 // pred_fallthru
          _
        // Predicated region
        $region85: #{_lambda_.1} parent=11 // pred_check
          %p805 = pneg %p467
        $region86: #{_lambda_.1} parent=11 // pred_check_branch
          %807 = sbr.rel (%p805) target = $region88
        $region87: #{_lambda_.1} parent=11 // pred_region
          %s809 = ssub.s32 256, 256
          %810 = vsyncadd [#allocation23], %s809
          %s811 = sshll.u32 [#allocation24], 4
          %s812 = int_to_ptr.vmem [resolvable:$true] %s811
          %817 = dma.hbm_to_vmem [thread:$0]  %s19, 256, %s812, [#allocation23], 128, 128, 8
        $region88: #{_lambda_.1} parent=11 // pred_fallthru
          _
        // Predicated region
        $region89: #{_lambda_.1} parent=11 // pred_check
          %p818 = pneg %p488
        $region90: #{_lambda_.1} parent=11 // pred_check_branch
          %820 = sbr.rel (%p818) target = $region92
        $region91: #{_lambda_.1} parent=11 // pred_region
          %s822 = ssub.s32 448, 448
          %823 = vsyncadd [#allocation26], %s822
          %s824 = sshll.u32 [#allocation25], 4
          %s825 = int_to_ptr.vmem [resolvable:$true] %s824
          %830 = dma.hbm_to_vmem [thread:$0]  %s20, 448, %s825, [#allocation26], 64, 64, 4
        $region92: #{_lambda_.1} parent=11 // pred_fallthru
          _
        // Predicated region
        $region93: #{_lambda_.1} parent=11 // pred_check
          %p831 = pneg %p509
        $region94: #{_lambda_.1} parent=11 // pred_check_branch
          %833 = sbr.rel (%p831) target = $region96
        $region95: #{_lambda_.1} parent=11 // pred_region
          %s835 = ssub.s32 896, 896
          %836 = vsyncadd [#allocation26], %s835
          %s837 = sshll.u32 [#allocation27], 4
          %s838 = int_to_ptr.vmem [resolvable:$true] %s837
          %843 = dma.hbm_to_vmem [thread:$0]  %s21, 896, %s838, [#allocation26], 128, 128, 8
        $region96: #{_lambda_.1} parent=11 // pred_fallthru
          _
        // Predicated region
        $region97: #{_lambda_.1} parent=11 // pred_check
          %p844 = pneg %p530
        $region98: #{_lambda_.1} parent=11 // pred_check_branch
          %846 = sbr.rel (%p844) target = $region100
        $region99: #{_lambda_.1} parent=11 // pred_region
          %s848 = ssub.s32 896, 896
          %849 = vsyncadd [#allocation29], %s848
          %s850 = sshll.u32 [#allocation28], 4
          %s851 = int_to_ptr.vmem [resolvable:$true] %s850
          %856 = dma.hbm_to_vmem [thread:$0]  %s22, 896, %s851, [#allocation29], 128, 128, 8
        $region100: #{_lambda_.1} parent=11 // pred_fallthru
          _
        // Predicated region
        $region101: #{_lambda_.1} parent=11 // pred_check
          %p857 = pneg %p551
        $region102: #{_lambda_.1} parent=11 // pred_check_branch
          %859 = sbr.rel (%p857) target = $region104
        $region103: #{_lambda_.1} parent=11 // pred_region
          %s861 = ssub.s32 1920, 1920
          %862 = vsyncadd [#allocation29], %s861
          %s863 = sshll.u32 [#allocation30], 4
          %s864 = int_to_ptr.vmem [resolvable:$true] %s863
          %869 = dma.hbm_to_vmem [thread:$0]  %s23, 1920, %s864, [#allocation29], 192, 192, 12
        $region104: #{_lambda_.1} parent=11 // pred_fallthru
          _
        // Predicated region
        $region105: #{_lambda_.1} parent=11 // pred_check
          %p870 = pneg %p572
        $region106: #{_lambda_.1} parent=11 // pred_check_branch
          %872 = sbr.rel (%p870) target = $region108
        $region107: #{_lambda_.1} parent=11 // pred_region
          %s874 = ssub.s32 256, 256
          %875 = vsyncadd [#allocation32], %s874
          %s876 = sshll.u32 [#allocation31], 4
          %s877 = int_to_ptr.vmem [resolvable:$true] %s876
          %882 = dma.hbm_to_vmem [thread:$0]  %s24, 256, %s877, [#allocation32], 128, 128, 8
        $region108: #{_lambda_.1} parent=11 // pred_fallthru
          _
      $region12: #{_lambda_.1} parent=5 // pred_fallthru
        _
      %p883 = scmp.lt.s32.totalorder %s42, 2
      // Predicated region
      $region109: #{_lambda_.1} parent=5 // pred_check
        %p884 = pneg %p883
      $region110: #{_lambda_.1} parent=5 // pred_check_branch
        %886 = sbr.rel (%p884) target = $region112
      $region111: #{_lambda_.1} parent=5 // pred_region
        // Predicated region
        $region113: #{_lambda_.1} parent=111 // pred_check
          %p887 = pneg %p62
        $region114: #{_lambda_.1} parent=111 // pred_check_branch
          %889 = sbr.rel (%p887) target = $region116
        $region115: #{_lambda_.1} parent=111 // pred_region
          %p890 = scmp.lt.s32.totalorder %s42, 1
          %s891 = scalar_select %p890, %s42, 1
          %s892 = smul.addr %s891, 4
          %s893 = smul.addr %s892, 8
          %s894 = scalar_lea.vmem %s0, %s893
        $region116: #{_lambda_.1} parent=111 // pred_fallthru
          _
      $region112: #{_lambda_.1} parent=5 // pred_fallthru
        _
      %p895 = scmp.le.s32.totalorder 1, %s42
      %p896 = scmp.lt.s32.totalorder %s42, 3
      %p897 = pnand %p895, %p896
      %p898 = pneg %p897
      // Predicated region
      $region117: #{_lambda_.1} parent=5 // pred_check
        _
      $region118: #{_lambda_.1} parent=5 // pred_check_branch
        %900 = sbr.rel (%p897) target = $region120
      $region119: #{_lambda_.1} parent=5 // pred_region
        %s901 = ssub.s32 %s42, 1
        // Predicated region
        $region121: #{_lambda_.1} parent=119 // pred_check
          %p902 = pneg %p89
        $region122: #{_lambda_.1} parent=119 // pred_check_branch
          %904 = sbr.rel (%p902) target = $region124
        $region123: #{_lambda_.1} parent=119 // pred_region
          %905 = dma.done [#allocation3], 64
        $region124: #{_lambda_.1} parent=119 // pred_fallthru
          _
        // Predicated region
        $region125: #{_lambda_.1} parent=119 // pred_check
          %p906 = pneg %p110
        $region126: #{_lambda_.1} parent=119 // pred_check_branch
          %908 = sbr.rel (%p906) target = $region128
        $region127: #{_lambda_.1} parent=119 // pred_region
          %909 = dma.done [#allocation5], 896
        $region128: #{_lambda_.1} parent=119 // pred_fallthru
          _
        // Predicated region
        $region129: #{_lambda_.1} parent=119 // pred_check
          %p910 = pneg %p131
        $region130: #{_lambda_.1} parent=119 // pred_check_branch
          %912 = sbr.rel (%p910) target = $region132
        $region131: #{_lambda_.1} parent=119 // pred_region
          %913 = dma.done [#allocation5], 896
        $region132: #{_lambda_.1} parent=119 // pred_fallthru
          _
        // Predicated region
        $region133: #{_lambda_.1} parent=119 // pred_check
          %p914 = pneg %p152
        $region134: #{_lambda_.1} parent=119 // pred_check_branch
          %916 = sbr.rel (%p914) target = $region136
        $region135: #{_lambda_.1} parent=119 // pred_region
          %917 = dma.done [#allocation8], 896
        $region136: #{_lambda_.1} parent=119 // pred_fallthru
          _
        // Predicated region
        $region137: #{_lambda_.1} parent=119 // pred_check
          %p918 = pneg %p173
        $region138: #{_lambda_.1} parent=119 // pred_check_branch
          %920 = sbr.rel (%p918) target = $region140
        $region139: #{_lambda_.1} parent=119 // pred_region
          %921 = dma.done [#allocation8], 128
        $region140: #{_lambda_.1} parent=119 // pred_fallthru
          _
        // Predicated region
        $region141: #{_lambda_.1} parent=119 // pred_check
          %p922 = pneg %p194
        $region142: #{_lambda_.1} parent=119 // pred_check_branch
          %924 = sbr.rel (%p922) target = $region144
        $region143: #{_lambda_.1} parent=119 // pred_region
          %925 = dma.done [#allocation11], 256
        $region144: #{_lambda_.1} parent=119 // pred_fallthru
          _
        // Predicated region
        $region145: #{_lambda_.1} parent=119 // pred_check
          %p926 = pneg %p215
        $region146: #{_lambda_.1} parent=119 // pred_check_branch
          %928 = sbr.rel (%p926) target = $region148
        $region147: #{_lambda_.1} parent=119 // pred_region
          %929 = dma.done [#allocation11], 256
        $region148: #{_lambda_.1} parent=119 // pred_fallthru
          _
        // Predicated region
        $region149: #{_lambda_.1} parent=119 // pred_check
          %p930 = pneg %p257
        $region150: #{_lambda_.1} parent=119 // pred_check_branch
          %932 = sbr.rel (%p930) target = $region152
        $region151: #{_lambda_.1} parent=119 // pred_region
          %933 = dma.done [#allocation14], 256
        $region152: #{_lambda_.1} parent=119 // pred_fallthru
          _
        // Predicated region
        $region153: #{_lambda_.1} parent=119 // pred_check
          %p934 = pneg %p278
        $region154: #{_lambda_.1} parent=119 // pred_check_branch
          %936 = sbr.rel (%p934) target = $region156
        $region155: #{_lambda_.1} parent=119 // pred_region
          %937 = dma.done [#allocation14], 256
        $region156: #{_lambda_.1} parent=119 // pred_fallthru
          _
        // Predicated region
        $region157: #{_lambda_.1} parent=119 // pred_check
          %p938 = pneg %p320
        $region158: #{_lambda_.1} parent=119 // pred_check_branch
          %940 = sbr.rel (%p938) target = $region160
        $region159: #{_lambda_.1} parent=119 // pred_region
          %941 = dma.done [#allocation17], 256
        $region160: #{_lambda_.1} parent=119 // pred_fallthru
          _
        // Predicated region
        $region161: #{_lambda_.1} parent=119 // pred_check
          %p942 = pneg %p341
        $region162: #{_lambda_.1} parent=119 // pred_check_branch
          %944 = sbr.rel (%p942) target = $region164
        $region163: #{_lambda_.1} parent=119 // pred_region
          %945 = dma.done [#allocation17], 256
        $region164: #{_lambda_.1} parent=119 // pred_fallthru
          _
        // Predicated region
        $region165: #{_lambda_.1} parent=119 // pred_check
          %p946 = pneg %p383
        $region166: #{_lambda_.1} parent=119 // pred_check_branch
          %948 = sbr.rel (%p946) target = $region168
        $region167: #{_lambda_.1} parent=119 // pred_region
          %949 = dma.done [#allocation20], 256
        $region168: #{_lambda_.1} parent=119 // pred_fallthru
          _
        // Predicated region
        $region169: #{_lambda_.1} parent=119 // pred_check
          %p950 = pneg %p404
        $region170: #{_lambda_.1} parent=119 // pred_check_branch
          %952 = sbr.rel (%p950) target = $region172
        $region171: #{_lambda_.1} parent=119 // pred_region
          %953 = dma.done [#allocation20], 256
        $region172: #{_lambda_.1} parent=119 // pred_fallthru
          _
        // Predicated region
        $region173: #{_lambda_.1} parent=119 // pred_check
          %p954 = pneg %p446
        $region174: #{_lambda_.1} parent=119 // pred_check_branch
          %956 = sbr.rel (%p954) target = $region176
        $region175: #{_lambda_.1} parent=119 // pred_region
          %957 = dma.done [#allocation23], 256
        $region176: #{_lambda_.1} parent=119 // pred_fallthru
          _
        // Predicated region
        $region177: #{_lambda_.1} parent=119 // pred_check
          %p958 = pneg %p467
        $region178: #{_lambda_.1} parent=119 // pred_check_branch
          %960 = sbr.rel (%p958) target = $region180
        $region179: #{_lambda_.1} parent=119 // pred_region
          %961 = dma.done [#allocation23], 256
        $region180: #{_lambda_.1} parent=119 // pred_fallthru
          _
        // Predicated region
        $region181: #{_lambda_.1} parent=119 // pred_check
          %p962 = pneg %p488
        $region182: #{_lambda_.1} parent=119 // pred_check_branch
          %964 = sbr.rel (%p962) target = $region184
        $region183: #{_lambda_.1} parent=119 // pred_region
          %965 = dma.done [#allocation26], 448
        $region184: #{_lambda_.1} parent=119 // pred_fallthru
          _
        // Predicated region
        $region185: #{_lambda_.1} parent=119 // pred_check
          %p966 = pneg %p509
        $region186: #{_lambda_.1} parent=119 // pred_check_branch
          %968 = sbr.rel (%p966) target = $region188
        $region187: #{_lambda_.1} parent=119 // pred_region
          %969 = dma.done [#allocation26], 896
        $region188: #{_lambda_.1} parent=119 // pred_fallthru
          _
        // Predicated region
        $region189: #{_lambda_.1} parent=119 // pred_check
          %p970 = pneg %p530
        $region190: #{_lambda_.1} parent=119 // pred_check_branch
          %972 = sbr.rel (%p970) target = $region192
        $region191: #{_lambda_.1} parent=119 // pred_region
          %973 = dma.done [#allocation29], 896
        $region192: #{_lambda_.1} parent=119 // pred_fallthru
          _
        // Predicated region
        $region193: #{_lambda_.1} parent=119 // pred_check
          %p974 = pneg %p551
        $region194: #{_lambda_.1} parent=119 // pred_check_branch
          %976 = sbr.rel (%p974) target = $region196
        $region195: #{_lambda_.1} parent=119 // pred_region
          %977 = dma.done [#allocation29], 1920
        $region196: #{_lambda_.1} parent=119 // pred_fallthru
          _
        // Predicated region
        $region197: #{_lambda_.1} parent=119 // pred_check
          %p978 = pneg %p572
        $region198: #{_lambda_.1} parent=119 // pred_check_branch
          %980 = sbr.rel (%p978) target = $region200
        $region199: #{_lambda_.1} parent=119 // pred_region
          %981 = dma.done [#allocation32], 256
        $region200: #{_lambda_.1} parent=119 // pred_fallthru
          _
        %p982 = scmp.lt.s32.totalorder %s47, 1
        %s983 = scalar_select %p982, %s47, 1
        %s984 = smul.addr %s983, 4
        %s985 = smul.addr %s984, 8
        %s986 = scalar_lea.vmem %s0, %s985
        %p987 = pneg %p68
        %p988 = pneg %p65
        %p989 = pneg %p89
        %p990 = pneg %p86
        %p991 = pneg %p110
        %p992 = pneg %p107
        %p993 = pneg %p131
        %p994 = pneg %p128
        %p995 = pneg %p152
        %p996 = pneg %p149
        %p997 = pneg %p173
        %p998 = pneg %p170
        %p999 = pneg %p194
        %p1000 = pneg %p191
        %p1001 = pneg %p215
        %p1002 = pneg %p212
        %p1003 = pneg %p236
        %p1004 = pneg %p233
        %p1005 = pneg %p257
        %p1006 = pneg %p254
        %p1007 = pneg %p278
        %p1008 = pneg %p275
        %p1009 = pneg %p299
        %p1010 = pneg %p296
        %p1011 = pneg %p320
        %p1012 = pneg %p317
        %p1013 = pneg %p341
        %p1014 = pneg %p338
        %p1015 = pneg %p362
        %p1016 = pneg %p359
        %p1017 = pneg %p383
        %p1018 = pneg %p380
        %p1019 = pneg %p404
        %p1020 = pneg %p401
        %p1021 = pneg %p425
        %p1022 = pneg %p422
        %p1023 = pneg %p446
        %p1024 = pneg %p443
        %p1025 = pneg %p467
        %p1026 = pneg %p464
        %p1027 = pneg %p488
        %p1028 = pneg %p485
        %p1029 = pneg %p509
        %p1030 = pneg %p506
        %p1031 = pneg %p530
        %p1032 = pneg %p527
        %p1033 = pneg %p551
        %p1034 = pneg %p548
        %p1035 = pneg %p572
        %p1036 = pneg %p569
        %p1037 = pneg %p598
        %p1038 = pneg %p595
        %p1039 = scmp.lt.s32.totalorder %s47, 1
        %s1040 = scalar_select %p1039, %s47, 1
        %s1041 = smul.addr %s1040, 8
        %s1042 = smul.addr %s1041, 8
        %s1043 = scalar_lea.vmem %s25, %s1042
        %p1044 = scmp.lt.s32.totalorder %s47, 1
        %s1045 = scalar_select %p1044, %s47, 1
        %s1046 = smul.addr %s1045, 4
        %s1047 = smul.addr %s1046, 8
        %s1048 = scalar_lea.vmem %s0, %s1047
        %p1049 = scmp.lt.s32.totalorder %s47, 1
        %s1050 = scalar_select %p1049, %s47, 1
        %s1051 = smul.addr %s1050, 8
        %s1052 = smul.addr %s1051, 8
        %s1053 = scalar_lea.vmem %s25, %s1052
        %v1055 = vld [vmem:[#allocation2] sm:$0xf]
        %v1056 = vld [vmem:[%s1048] sm:$0xff]
        %v1057 = vld [vmem:[%s1048 + $0x8] sm:$0xff]
        %v1058 = vld [vmem:[%s1048 + $0x10] sm:$0xff]
        %v1059 = vld [vmem:[%s1048 + $0x18] sm:$0xff]
        %1060 = vrot.lane.b32.xlu0 %v1056, 42
        %v1061 = vpop.permute.xlu0 %1060
        %1062 = vrot.lane.b32.xlu0 %v1057, 42
        %v1063 = vpop.permute.xlu0 %1062
        %1064 = vrot.lane.b32.xlu0 %v1058, 42
        %v1065 = vpop.permute.xlu0 %1064
        %1066 = vrot.lane.b32.xlu0 %v1059, 42
        %v1067 = vpop.permute.xlu0 %1066
        %v1068 = vlaneseq
        %v1069 = vand.u32 %v1068, 127
        %vm1070 = vcmp.lt.s32.totalorder %v1069, 42
        %v1071 = vsel %vm1070, %v1065, %v1067
        %v1072 = vsel %vm1070, %v1063, %v1065
        %v1073 = vsel %vm1070, %v1061, %v1063
        %v1074 = vsel %vm1070, %v1067, %v1061
        %1075 = vrot.lane.b32.xlu0 %v1056, 41
        %v1076 = vpop.permute.xlu0 %1075
        %1077 = vrot.lane.b32.xlu0 %v1057, 41
        %v1078 = vpop.permute.xlu0 %1077
        %1079 = vrot.lane.b32.xlu0 %v1058, 41
        %v1080 = vpop.permute.xlu0 %1079
        %1081 = vrot.lane.b32.xlu0 %v1059, 41
        %v1082 = vpop.permute.xlu0 %1081
        %vm1083 = vcmp.lt.s32.totalorder %v1069, 41
        %v1084 = vsel %vm1083, %v1080, %v1082
        %v1085 = vsel %vm1083, %v1078, %v1080
        %v1086 = vsel %vm1083, %v1076, %v1078
        %v1087 = vsel %vm1083, %v1082, %v1076
        %1088 = vrot.lane.b32.xlu0 %v1056, 40
        %v1089 = vpop.permute.xlu0 %1088
        %1090 = vrot.lane.b32.xlu0 %v1057, 40
        %v1091 = vpop.permute.xlu0 %1090
        %1092 = vrot.lane.b32.xlu0 %v1058, 40
        %v1093 = vpop.permute.xlu0 %1092
        %1094 = vrot.lane.b32.xlu0 %v1059, 40
        %v1095 = vpop.permute.xlu0 %1094
        %vm1096 = vcmp.lt.s32.totalorder %v1069, 40
        %v1097 = vsel %vm1096, %v1093, %v1095
        %v1098 = vsel %vm1096, %v1091, %v1093
        %v1099 = vsel %vm1096, %v1089, %v1091
        %v1100 = vsel %vm1096, %v1095, %v1089
        %1101 = vrot.lane.b32.xlu0 %v1056, 39
        %v1102 = vpop.permute.xlu0 %1101
        %1103 = vrot.lane.b32.xlu0 %v1057, 39
        %v1104 = vpop.permute.xlu0 %1103
        %1105 = vrot.lane.b32.xlu0 %v1058, 39
        %v1106 = vpop.permute.xlu0 %1105
        %1107 = vrot.lane.b32.xlu0 %v1059, 39
        %v1108 = vpop.permute.xlu0 %1107
        %vm1109 = vcmp.lt.s32.totalorder %v1069, 39
        %v1110 = vsel %vm1109, %v1106, %v1108
        %v1111 = vsel %vm1109, %v1104, %v1106
        %v1112 = vsel %vm1109, %v1102, %v1104
        %v1113 = vsel %vm1109, %v1108, %v1102
        %1114 = vrot.lane.b32.xlu0 %v1056, 38
        %v1115 = vpop.permute.xlu0 %1114
        %1116 = vrot.lane.b32.xlu0 %v1057, 38
        %v1117 = vpop.permute.xlu0 %1116
        %1118 = vrot.lane.b32.xlu0 %v1058, 38
        %v1119 = vpop.permute.xlu0 %1118
        %1120 = vrot.lane.b32.xlu0 %v1059, 38
        %v1121 = vpop.permute.xlu0 %1120
        %vm1122 = vcmp.lt.s32.totalorder %v1069, 38
        %v1123 = vsel %vm1122, %v1119, %v1121
        %v1124 = vsel %vm1122, %v1117, %v1119
        %v1125 = vsel %vm1122, %v1115, %v1117
        %v1126 = vsel %vm1122, %v1121, %v1115
        %1127 = vrot.lane.b32.xlu0 %v1056, 22
        %v1128 = vpop.permute.xlu0 %1127
        %1129 = vrot.lane.b32.xlu0 %v1057, 22
        %v1130 = vpop.permute.xlu0 %1129
        %1131 = vrot.lane.b32.xlu0 %v1058, 22
        %v1132 = vpop.permute.xlu0 %1131
        %1133 = vrot.lane.b32.xlu0 %v1059, 22
        %v1134 = vpop.permute.xlu0 %1133
        %vm1135 = vcmp.lt.s32.totalorder %v1069, 22
        %v1136 = vsel %vm1135, %v1132, %v1134
        %v1137 = vsel %vm1135, %v1130, %v1132
        %v1138 = vsel %vm1135, %v1128, %v1130
        %v1139 = vsel %vm1135, %v1134, %v1128
        %1140 = vrot.lane.b32.xlu0 %v1056, 21
        %v1141 = vpop.permute.xlu0 %1140
        %1142 = vrot.lane.b32.xlu0 %v1057, 21
        %v1143 = vpop.permute.xlu0 %1142
        %1144 = vrot.lane.b32.xlu0 %v1058, 21
        %v1145 = vpop.permute.xlu0 %1144
        %1146 = vrot.lane.b32.xlu0 %v1059, 21
        %v1147 = vpop.permute.xlu0 %1146
        %vm1148 = vcmp.lt.s32.totalorder %v1069, 21
        %v1149 = vsel %vm1148, %v1145, %v1147
        %v1150 = vsel %vm1148, %v1143, %v1145
        %v1151 = vsel %vm1148, %v1141, %v1143
        %v1152 = vsel %vm1148, %v1147, %v1141
        %1153 = vrot.lane.b32.xlu0 %v1056, 20
        %v1154 = vpop.permute.xlu0 %1153
        %1155 = vrot.lane.b32.xlu0 %v1057, 20
        %v1156 = vpop.permute.xlu0 %1155
        %1157 = vrot.lane.b32.xlu0 %v1058, 20
        %v1158 = vpop.permute.xlu0 %1157
        %1159 = vrot.lane.b32.xlu0 %v1059, 20
        %v1160 = vpop.permute.xlu0 %1159
        %vm1161 = vcmp.lt.s32.totalorder %v1069, 20
        %v1162 = vsel %vm1161, %v1158, %v1160
        %v1163 = vsel %vm1161, %v1156, %v1158
        %v1164 = vsel %vm1161, %v1154, %v1156
        %v1165 = vsel %vm1161, %v1160, %v1154
        %1166 = vrot.lane.b32.xlu0 %v1056, 19
        %v1167 = vpop.permute.xlu0 %1166
        %1168 = vrot.lane.b32.xlu0 %v1057, 19
        %v1169 = vpop.permute.xlu0 %1168
        %1170 = vrot.lane.b32.xlu0 %v1058, 19
        %v1171 = vpop.permute.xlu0 %1170
        %1172 = vrot.lane.b32.xlu0 %v1059, 19
        %v1173 = vpop.permute.xlu0 %1172
        %vm1174 = vcmp.lt.s32.totalorder %v1069, 19
        %v1175 = vsel %vm1174, %v1171, %v1173
        %v1176 = vsel %vm1174, %v1169, %v1171
        %v1177 = vsel %vm1174, %v1167, %v1169
        %v1178 = vsel %vm1174, %v1173, %v1167
        %1179 = vrot.lane.b32.xlu0 %v1056, 18
        %v1180 = vpop.permute.xlu0 %1179
        %1181 = vrot.lane.b32.xlu0 %v1057, 18
        %v1182 = vpop.permute.xlu0 %1181
        %1183 = vrot.lane.b32.xlu0 %v1058, 18
        %v1184 = vpop.permute.xlu0 %1183
        %1185 = vrot.lane.b32.xlu0 %v1059, 18
        %v1186 = vpop.permute.xlu0 %1185
        %vm1187 = vcmp.lt.s32.totalorder %v1069, 18
        %v1188 = vsel %vm1187, %v1184, %v1186
        %v1189 = vsel %vm1187, %v1182, %v1184
        %v1190 = vsel %vm1187, %v1180, %v1182
        %v1191 = vsel %vm1187, %v1186, %v1180
        %1192 = vrot.lane.b32.xlu0 %v1056, 2
        %v1193 = vpop.permute.xlu0 %1192
        %1194 = vrot.lane.b32.xlu0 %v1057, 2
        %v1195 = vpop.permute.xlu0 %1194
        %1196 = vrot.lane.b32.xlu0 %v1058, 2
        %v1197 = vpop.permute.xlu0 %1196
        %1198 = vrot.lane.b32.xlu0 %v1059, 2
        %v1199 = vpop.permute.xlu0 %1198
        %vm1200 = vcmp.lt.s32.totalorder %v1069, 2
        %v1201 = vsel %vm1200, %v1197, %v1199
        %v1202 = vsel %vm1200, %v1195, %v1197
        %v1203 = vsel %vm1200, %v1193, %v1195
        %v1204 = vsel %vm1200, %v1199, %v1193
        %1205 = vrot.lane.b32.xlu0 %v1056, 1
        %v1206 = vpop.permute.xlu0 %1205
        %1207 = vrot.lane.b32.xlu0 %v1057, 1
        %v1208 = vpop.permute.xlu0 %1207
        %1209 = vrot.lane.b32.xlu0 %v1058, 1
        %v1210 = vpop.permute.xlu0 %1209
        %1211 = vrot.lane.b32.xlu0 %v1059, 1
        %v1212 = vpop.permute.xlu0 %1211
        %vm1213 = vcmp.lt.s32.totalorder %v1069, 1
        %v1214 = vsel %vm1213, %v1210, %v1212
        %v1215 = vsel %vm1213, %v1208, %v1210
        %v1216 = vsel %vm1213, %v1206, %v1208
        %v1217 = vsel %vm1213, %v1212, %v1206
        %1218 = vrot.lane.b32.xlu0 %v1056, 127
        %v1219 = vpop.permute.xlu0 %1218
        %1220 = vrot.lane.b32.xlu0 %v1057, 127
        %v1221 = vpop.permute.xlu0 %1220
        %1222 = vrot.lane.b32.xlu0 %v1058, 127
        %v1223 = vpop.permute.xlu0 %1222
        %1224 = vrot.lane.b32.xlu0 %v1059, 127
        %v1225 = vpop.permute.xlu0 %1224
        %vm1226 = vcmp.lt.s32.totalorder %v1069, 127
        %v1227 = vsel %vm1226, %v1223, %v1225
        %v1228 = vsel %vm1226, %v1221, %v1223
        %v1229 = vsel %vm1226, %v1219, %v1221
        %v1230 = vsel %vm1226, %v1225, %v1219
        %1231 = vrot.lane.b32.xlu0 %v1056, 126
        %v1232 = vpop.permute.xlu0 %1231
        %1233 = vrot.lane.b32.xlu0 %v1057, 126
        %v1234 = vpop.permute.xlu0 %1233
        %1235 = vrot.lane.b32.xlu0 %v1058, 126
        %v1236 = vpop.permute.xlu0 %1235
        %1237 = vrot.lane.b32.xlu0 %v1059, 126
        %v1238 = vpop.permute.xlu0 %1237
        %vm1239 = vcmp.lt.s32.totalorder %v1069, 126
        %v1240 = vsel %vm1239, %v1236, %v1238
        %v1241 = vsel %vm1239, %v1234, %v1236
        %v1242 = vsel %vm1239, %v1232, %v1234
        %v1243 = vsel %vm1239, %v1238, %v1232
        %1244 = vrot.lane.b32.xlu0 %v1056, 110
        %v1245 = vpop.permute.xlu0 %1244
        %1246 = vrot.lane.b32.xlu0 %v1057, 110
        %v1247 = vpop.permute.xlu0 %1246
        %1248 = vrot.lane.b32.xlu0 %v1058, 110
        %v1249 = vpop.permute.xlu0 %1248
        %1250 = vrot.lane.b32.xlu0 %v1059, 110
        %v1251 = vpop.permute.xlu0 %1250
        %vm1252 = vcmp.lt.s32.totalorder %v1069, 110
        %v1253 = vsel %vm1252, %v1249, %v1251
        %v1254 = vsel %vm1252, %v1247, %v1249
        %v1255 = vsel %vm1252, %v1245, %v1247
        %v1256 = vsel %vm1252, %v1251, %v1245
        %1257 = vrot.lane.b32.xlu0 %v1056, 109
        %v1258 = vpop.permute.xlu0 %1257
        %1259 = vrot.lane.b32.xlu0 %v1057, 109
        %v1260 = vpop.permute.xlu0 %1259
        %1261 = vrot.lane.b32.xlu0 %v1058, 109
        %v1262 = vpop.permute.xlu0 %1261
        %1263 = vrot.lane.b32.xlu0 %v1059, 109
        %v1264 = vpop.permute.xlu0 %1263
        %vm1265 = vcmp.lt.s32.totalorder %v1069, 109
        %v1266 = vsel %vm1265, %v1262, %v1264
        %v1267 = vsel %vm1265, %v1260, %v1262
        %v1268 = vsel %vm1265, %v1258, %v1260
        %v1269 = vsel %vm1265, %v1264, %v1258
        %1270 = vrot.lane.b32.xlu0 %v1056, 108
        %v1271 = vpop.permute.xlu0 %1270
        %1272 = vrot.lane.b32.xlu0 %v1057, 108
        %v1273 = vpop.permute.xlu0 %1272
        %1274 = vrot.lane.b32.xlu0 %v1058, 108
        %v1275 = vpop.permute.xlu0 %1274
        %1276 = vrot.lane.b32.xlu0 %v1059, 108
        %v1277 = vpop.permute.xlu0 %1276
        %vm1278 = vcmp.lt.s32.totalorder %v1069, 108
        %v1279 = vsel %vm1278, %v1275, %v1277
        %v1280 = vsel %vm1278, %v1273, %v1275
        %v1281 = vsel %vm1278, %v1271, %v1273
        %v1282 = vsel %vm1278, %v1277, %v1271
        %1283 = vrot.lane.b32.xlu0 %v1056, 107
        %v1284 = vpop.permute.xlu0 %1283
        %1285 = vrot.lane.b32.xlu0 %v1057, 107
        %v1286 = vpop.permute.xlu0 %1285
        %1287 = vrot.lane.b32.xlu0 %v1058, 107
        %v1288 = vpop.permute.xlu0 %1287
        %1289 = vrot.lane.b32.xlu0 %v1059, 107
        %v1290 = vpop.permute.xlu0 %1289
        %vm1291 = vcmp.lt.s32.totalorder %v1069, 107
        %v1292 = vsel %vm1291, %v1288, %v1290
        %v1293 = vsel %vm1291, %v1286, %v1288
        %v1294 = vsel %vm1291, %v1284, %v1286
        %v1295 = vsel %vm1291, %v1290, %v1284
        %1296 = vrot.lane.b32.xlu0 %v1056, 106
        %v1297 = vpop.permute.xlu0 %1296
        %1298 = vrot.lane.b32.xlu0 %v1057, 106
        %v1299 = vpop.permute.xlu0 %1298
        %1300 = vrot.lane.b32.xlu0 %v1058, 106
        %v1301 = vpop.permute.xlu0 %1300
        %1302 = vrot.lane.b32.xlu0 %v1059, 106
        %v1303 = vpop.permute.xlu0 %1302
        %vm1304 = vcmp.lt.s32.totalorder %v1069, 106
        %v1305 = vsel %vm1304, %v1301, %v1303
        %v1306 = vsel %vm1304, %v1299, %v1301
        %v1307 = vsel %vm1304, %v1297, %v1299
        %v1308 = vsel %vm1304, %v1303, %v1297
        %1309 = vrot.lane.b32.xlu0 %v1056, 90
        %v1310 = vpop.permute.xlu0 %1309
        %1311 = vrot.lane.b32.xlu0 %v1057, 90
        %v1312 = vpop.permute.xlu0 %1311
        %1313 = vrot.lane.b32.xlu0 %v1058, 90
        %v1314 = vpop.permute.xlu0 %1313
        %1315 = vrot.lane.b32.xlu0 %v1059, 90
        %v1316 = vpop.permute.xlu0 %1315
        %vm1317 = vcmp.lt.s32.totalorder %v1069, 90
        %v1318 = vsel %vm1317, %v1314, %v1316
        %v1319 = vsel %vm1317, %v1312, %v1314
        %v1320 = vsel %vm1317, %v1310, %v1312
        %v1321 = vsel %vm1317, %v1316, %v1310
        %1322 = vrot.lane.b32.xlu0 %v1056, 89
        %v1323 = vpop.permute.xlu0 %1322
        %1324 = vrot.lane.b32.xlu0 %v1057, 89
        %v1325 = vpop.permute.xlu0 %1324
        %1326 = vrot.lane.b32.xlu0 %v1058, 89
        %v1327 = vpop.permute.xlu0 %1326
        %1328 = vrot.lane.b32.xlu0 %v1059, 89
        %v1329 = vpop.permute.xlu0 %1328
        %vm1330 = vcmp.lt.s32.totalorder %v1069, 89
        %v1331 = vsel %vm1330, %v1327, %v1329
        %v1332 = vsel %vm1330, %v1325, %v1327
        %v1333 = vsel %vm1330, %v1323, %v1325
        %v1334 = vsel %vm1330, %v1329, %v1323
        %1335 = vrot.lane.b32.xlu0 %v1056, 88
        %v1336 = vpop.permute.xlu0 %1335
        %1337 = vrot.lane.b32.xlu0 %v1057, 88
        %v1338 = vpop.permute.xlu0 %1337
        %1339 = vrot.lane.b32.xlu0 %v1058, 88
        %v1340 = vpop.permute.xlu0 %1339
        %1341 = vrot.lane.b32.xlu0 %v1059, 88
        %v1342 = vpop.permute.xlu0 %1341
        %vm1343 = vcmp.lt.s32.totalorder %v1069, 88
        %v1344 = vsel %vm1343, %v1340, %v1342
        %v1345 = vsel %vm1343, %v1338, %v1340
        %v1346 = vsel %vm1343, %v1336, %v1338
        %v1347 = vsel %vm1343, %v1342, %v1336
        %1348 = vrot.lane.b32.xlu0 %v1056, 87
        %v1349 = vpop.permute.xlu0 %1348
        %1350 = vrot.lane.b32.xlu0 %v1057, 87
        %v1351 = vpop.permute.xlu0 %1350
        %1352 = vrot.lane.b32.xlu0 %v1058, 87
        %v1353 = vpop.permute.xlu0 %1352
        %1354 = vrot.lane.b32.xlu0 %v1059, 87
        %v1355 = vpop.permute.xlu0 %1354
        %vm1356 = vcmp.lt.s32.totalorder %v1069, 87
        %v1357 = vsel %vm1356, %v1353, %v1355
        %v1358 = vsel %vm1356, %v1351, %v1353
        %v1359 = vsel %vm1356, %v1349, %v1351
        %v1360 = vsel %vm1356, %v1355, %v1349
        %1361 = vrot.lane.b32.xlu0 %v1056, 86
        %v1362 = vpop.permute.xlu0 %1361
        %1363 = vrot.lane.b32.xlu0 %v1057, 86
        %v1364 = vpop.permute.xlu0 %1363
        %1365 = vrot.lane.b32.xlu0 %v1058, 86
        %v1366 = vpop.permute.xlu0 %1365
        %1367 = vrot.lane.b32.xlu0 %v1059, 86
        %v1368 = vpop.permute.xlu0 %1367
        %vm1369 = vcmp.lt.s32.totalorder %v1069, 86
        %v1370 = vsel %vm1369, %v1366, %v1368
        %v1371 = vsel %vm1369, %v1364, %v1366
        %v1372 = vsel %vm1369, %v1362, %v1364
        %v1373 = vsel %vm1369, %v1368, %v1362
        %v1374 = vld [vmem:[#allocation4] sm:$0xff]
        %v1375 = vld [vmem:[#allocation4 + $0x8] sm:$0xff]
        %v1376 = vld [vmem:[#allocation4 + $0x10] sm:$0xff]
        %v1377 = vld [vmem:[#allocation4 + $0x18] sm:$0xff]
        %v1378 = vld [vmem:[#allocation4 + $0x20] sm:$0xff]
        %v1379 = vld [vmem:[#allocation4 + $0x28] sm:$0xff]
        %v1380 = vld [vmem:[#allocation4 + $0x30] sm:$0xff]
        %v1381 = vpack.c.bf16 %v1087, %v1074
        %v1382 = vpack.c.bf16 %v1086, %v1073
        %v1383 = vpack.c.bf16 %v1085, %v1072
        %v1384 = vpack.c.bf16 %v1084, %v1071
        %v1385 = vpack.c.bf16 %v1113, %v1100
        %v1386 = vpack.c.bf16 %v1112, %v1099
        %v1387 = vpack.c.bf16 %v1111, %v1098
        %v1388 = vpack.c.bf16 %v1110, %v1097
        %v1389 = vpack.c.bf16 %v1139, %v1126
        %v1390 = vpack.c.bf16 %v1138, %v1125
        %v1391 = vpack.c.bf16 %v1137, %v1124
        %v1392 = vpack.c.bf16 %v1136, %v1123
        %v1393 = vpack.c.bf16 %v1165, %v1152
        %v1394 = vpack.c.bf16 %v1164, %v1151
        %v1395 = vpack.c.bf16 %v1163, %v1150
        %v1396 = vpack.c.bf16 %v1162, %v1149
        %v1397 = vpack.c.bf16 %v1191, %v1178
        %v1398 = vpack.c.bf16 %v1190, %v1177
        %v1399 = vpack.c.bf16 %v1189, %v1176
        %v1400 = vpack.c.bf16 %v1188, %v1175
        %v1401 = vpack.c.bf16 %v1217, %v1204
        %v1402 = vpack.c.bf16 %v1216, %v1203
        %v1403 = vpack.c.bf16 %v1215, %v1202
        %v1404 = vpack.c.bf16 %v1214, %v1201
        %v1405 = vpack.c.bf16 %v1229, %v1056
        %v1406 = vpack.c.bf16 %v1228, %v1057
        %v1407 = vpack.c.bf16 %v1227, %v1058
        %v1408 = vpack.c.bf16 %v1230, %v1059
        %v1409 = vpack.c.bf16 %v1255, %v1242
        %v1410 = vpack.c.bf16 %v1254, %v1241
        %v1411 = vpack.c.bf16 %v1253, %v1240
        %v1412 = vpack.c.bf16 %v1256, %v1243
        %v1413 = vpack.c.bf16 %v1281, %v1268
        %v1414 = vpack.c.bf16 %v1280, %v1267
        %v1415 = vpack.c.bf16 %v1279, %v1266
        %v1416 = vpack.c.bf16 %v1282, %v1269
        %v1417 = vpack.c.bf16 %v1307, %v1294
        %v1418 = vpack.c.bf16 %v1306, %v1293
        %v1419 = vpack.c.bf16 %v1305, %v1292
        %v1420 = vpack.c.bf16 %v1308, %v1295
        %v1421 = vpack.c.bf16 %v1333, %v1320
        %v1422 = vpack.c.bf16 %v1332, %v1319
        %v1423 = vpack.c.bf16 %v1331, %v1318
        %v1424 = vpack.c.bf16 %v1334, %v1321
        %v1425 = vpack.c.bf16 %v1359, %v1346
        %v1426 = vpack.c.bf16 %v1358, %v1345
        %v1427 = vpack.c.bf16 %v1357, %v1344
        %v1428 = vpack.c.bf16 %v1360, %v1347
        %v1429 = vpack.c.bf16 %v1372, %v1372
        %v1430 = vpack.c.bf16 %v1371, %v1371
        %v1431 = vpack.c.bf16 %v1370, %v1370
        %v1432 = vpack.c.bf16 %v1373, %v1373
        %v1433 = vld [vmem:[#allocation6] sm:$0xff]
        %v1434 = vld [vmem:[#allocation6 + $0x8] sm:$0xff]
        %v1435 = vld [vmem:[#allocation6 + $0x10] sm:$0xff]
        %v1436 = vld [vmem:[#allocation6 + $0x18] sm:$0xff]
        %v1437 = vld [vmem:[#allocation6 + $0x20] sm:$0xff]
        %v1438 = vld [vmem:[#allocation6 + $0x28] sm:$0xff]
        %v1439 = vld [vmem:[#allocation6 + $0x30] sm:$0xff]
        %1441 = vset.pattern.permute.xlu0 0
        %1442 = vperm.xlu0 %1441, %v1433
        %v1443 = vpop.permute.xlu0 %1442
        %1446 = vset.pattern.permute.xlu0 0
        %1447 = vperm.xlu0 %1446, %v1434
        %v1448 = vpop.permute.xlu0 %1447
        %1451 = vset.pattern.permute.xlu0 0
        %1452 = vperm.xlu0 %1451, %v1435
        %v1453 = vpop.permute.xlu0 %1452
        %1456 = vset.pattern.permute.xlu0 0
        %1457 = vperm.xlu0 %1456, %v1436
        %v1458 = vpop.permute.xlu0 %1457
        %1461 = vset.pattern.permute.xlu0 0
        %1462 = vperm.xlu0 %1461, %v1437
        %v1463 = vpop.permute.xlu0 %1462
        %1466 = vset.pattern.permute.xlu0 0
        %1467 = vperm.xlu0 %1466, %v1438
        %v1468 = vpop.permute.xlu0 %1467
        %1471 = vset.pattern.permute.xlu0 0
        %1472 = vperm.xlu0 %1471, %v1439
        %v1473 = vpop.permute.xlu0 %1472
        %v1482 = vunpack.c.l.b16 %v1374
        %v1483 = vunpack.c.h.b16 %v1374
        %v1484 = vunpack.c.l.b16 %v1375
        %v1485 = vunpack.c.h.b16 %v1375
        %v1486 = vunpack.c.l.b16 %v1376
        %v1487 = vunpack.c.h.b16 %v1376
        %v1488 = vunpack.c.l.b16 %v1377
        %v1489 = vunpack.c.h.b16 %v1377
        %v1490 = vunpack.c.l.b16 %v1378
        %v1491 = vunpack.c.h.b16 %v1378
        %v1492 = vunpack.c.l.b16 %v1379
        %v1493 = vunpack.c.h.b16 %v1379
        %v1494 = vunpack.c.l.b16 %v1380
        %v1495 = vunpack.c.h.b16 %v1380
        %v1496 = vpack.c.b16 %v1484, %v1482
        %v1497 = vpack.c.b16 %v1485, %v1483
        %v1498 = vpack.c.b16 %v1488, %v1486
        %v1499 = vpack.c.b16 %v1489, %v1487
        %v1500 = vpack.c.b16 %v1492, %v1490
        %v1501 = vpack.c.b16 %v1493, %v1491
        %v1502 = vpack.c.b16 %v1494, %v1494
        %v1503 = vpack.c.b16 %v1495, %v1495
        %vm1508 = vcmask 588800
        %v1510 = vsel %vm1508, %v1497, 0
        %v1513 = vsel %vm1508, %v1499, 0
        %v1516 = vsel %vm1508, %v1501, 0
        %v1519 = vsel %vm1508, %v1503, 0
        %vm1521 = vcmask 1043456
        %v1523 = vsel %vm1521, %v1429, 0
        %v1526 = vsel %vm1521, %v1430, 0
        %v1529 = vsel %vm1521, %v1431, 0
        %v1532 = vsel %vm1521, %v1432, 0
        %1534 = vmatprep.subr.bf16.mxu0 %v1382
        %1535 = vmatpush1.bf16.msra.mxu0 %v1381
        %1536 = vmatprep.subr.bf16.mxu0 %v1386
        %1537 = vmatpush1.bf16.msra.mxu0 %v1385
        %1538 = vmatprep.subr.bf16.mxu0 %v1390
        %1539 = vmatpush1.bf16.msra.mxu0 %v1389
        %1540 = vmatprep.subr.bf16.mxu0 %v1394
        %1541 = vmatpush1.bf16.msra.mxu0 %v1393
        %1542 = vmatprep.subr.bf16.mxu0 %v1398
        %1543 = vmatpush1.bf16.msra.mxu0 %v1397
        %1544 = vmatprep.subr.bf16.mxu0 %v1402
        %1545 = vmatpush1.bf16.msra.mxu0 %v1401
        %1546 = vmatprep.subr.bf16.mxu0 %v1406
        %1547 = vmatpush1.bf16.msra.mxu0 %v1405
        %1548 = vmatprep.subr.bf16.mxu0 %v1410
        %1549 = vmatpush1.bf16.msra.mxu0 %v1409
        %1550 = vmatprep.subr.bf16.mxu0 %v1414
        %1551 = vmatpush1.bf16.msra.mxu0 %v1413
        %1552 = vmatprep.subr.bf16.mxu0 %v1418
        %1553 = vmatpush1.bf16.msra.mxu0 %v1417
        %1554 = vmatprep.subr.bf16.mxu0 %v1422
        %1555 = vmatpush1.bf16.msra.mxu0 %v1421
        %1556 = vmatprep.subr.bf16.mxu0 %v1426
        %1557 = vmatpush1.bf16.msra.mxu0 %v1425
        %1558 = vmatprep.subr.bf16.mxu0 %v1526
        %1559 = vmatpush1.bf16.msra.mxu0 %v1523
        %1560 = vmatprep.subr.bf16.mxu0 0
        %1561 = vmatpush1.bf16.msra.mxu0 0
        %1562 = vmatprep.subr.bf16.mxu0 0
        %1563 = vmatpush1.bf16.msra.mxu0 0
        %1564 = vmatprep.subr.bf16.mxu0 0
        %1565 = vmatpush1.bf16.msra.mxu0 0
        %1566 = vmatprep.mubr.bf16.mxu0 %v1510
        %1567 = vmatmul.mubr.bf16.gmra.mrb[0].mxu0 %v1496
        %v1568 = vpop.f32.mrb[0].mxu0
        %v1569 = vadd.f32 %v1443, %v1568
        %v1570 = vpop.f32.mrb[0].mxu0
        %v1571 = vadd.f32 %v1443, %v1570
        %v1572 = vpop.f32.mrb[0].mxu0
        %v1573 = vadd.f32 %v1448, %v1572
        %v1574 = vpop.f32.mrb[0].mxu0
        %v1575 = vadd.f32 %v1448, %v1574
        %1576 = vmatprep.mubr.bf16.mxu0 %v1513
        %1577 = vmatmul.mubr.bf16.gmra.mrb[0].mxu0 %v1498
        %v1578 = vpop.f32.mrb[0].mxu0
        %v1579 = vadd.f32 %v1453, %v1578
        %v1580 = vpop.f32.mrb[0].mxu0
        %v1581 = vadd.f32 %v1453, %v1580
        %v1582 = vpop.f32.mrb[0].mxu0
        %v1583 = vadd.f32 %v1458, %v1582
        %v1584 = vpop.f32.mrb[0].mxu0
        %v1585 = vadd.f32 %v1458, %v1584
        %1586 = vmatprep.mubr.bf16.mxu0 %v1516
        %1587 = vmatmul.mubr.bf16.gmra.mrb[0].mxu0 %v1500
        %v1588 = vpop.f32.mrb[0].mxu0
        %v1589 = vadd.f32 %v1463, %v1588
        %v1590 = vpop.f32.mrb[0].mxu0
        %v1591 = vadd.f32 %v1463, %v1590
        %v1592 = vpop.f32.mrb[0].mxu0
        %v1593 = vadd.f32 %v1468, %v1592
        %v1594 = vpop.f32.mrb[0].mxu0
        %v1595 = vadd.f32 %v1468, %v1594
        %1596 = vmatprep.mubr.bf16.mxu0 %v1519
        %1597 = vmatmul.mubr.bf16.gmra.mrb[0].mxu0 %v1502
        %v1598 = vpop.f32.mrb[0].mxu0
        %v1599 = vadd.f32 %v1473, %v1598
        %v1600 = vpop.f32.mrb[0].mxu0
        %v1601 = vadd.f32 %v1473, %v1600
        %v1602 = vpop.f32.mrb[0].mxu0
        %v1603 = vpop.f32.mrb[0].mxu0
        %1604 = vdwg.mxu0
        %1605 = vmatprep.subr.bf16.mxu0 %v1384
        %1606 = vmatpush1.bf16.msra.mxu0 %v1383
        %1607 = vmatprep.subr.bf16.mxu0 %v1388
        %1608 = vmatpush1.bf16.msra.mxu0 %v1387
        %1609 = vmatprep.subr.bf16.mxu0 %v1392
        %1610 = vmatpush1.bf16.msra.mxu0 %v1391
        %1611 = vmatprep.subr.bf16.mxu0 %v1396
        %1612 = vmatpush1.bf16.msra.mxu0 %v1395
        %1613 = vmatprep.subr.bf16.mxu0 %v1400
        %1614 = vmatpush1.bf16.msra.mxu0 %v1399
        %1615 = vmatprep.subr.bf16.mxu0 %v1404
        %1616 = vmatpush1.bf16.msra.mxu0 %v1403
        %1617 = vmatprep.subr.bf16.mxu0 %v1408
        %1618 = vmatpush1.bf16.msra.mxu0 %v1407
        %1619 = vmatprep.subr.bf16.mxu0 %v1412
        %1620 = vmatpush1.bf16.msra.mxu0 %v1411
        %1621 = vmatprep.subr.bf16.mxu0 %v1416
        %1622 = vmatpush1.bf16.msra.mxu0 %v1415
        %1623 = vmatprep.subr.bf16.mxu0 %v1420
        %1624 = vmatpush1.bf16.msra.mxu0 %v1419
        %1625 = vmatprep.subr.bf16.mxu0 %v1424
        %1626 = vmatpush1.bf16.msra.mxu0 %v1423
        %1627 = vmatprep.subr.bf16.mxu0 %v1428
        %1628 = vmatpush1.bf16.msra.mxu0 %v1427
        %1629 = vmatprep.subr.bf16.mxu0 %v1532
        %1630 = vmatpush1.bf16.msra.mxu0 %v1529
        %1631 = vmatprep.subr.bf16.mxu0 0
        %1632 = vmatpush1.bf16.msra.mxu0 0
        %1633 = vmatprep.subr.bf16.mxu0 0
        %1634 = vmatpush1.bf16.msra.mxu0 0
        %1635 = vmatprep.subr.bf16.mxu0 0
        %1636 = vmatpush1.bf16.msra.mxu0 0
        %1637 = vmatprep.mubr.bf16.mxu0 %v1510
        %1638 = vmatmul.mubr.bf16.gmra.mrb[0].mxu0 %v1496
        %v1639 = vpop.f32.mrb[0].mxu0
        %v1640 = vadd.f32 %v1443, %v1639
        %v1641 = vpop.f32.mrb[0].mxu0
        %v1642 = vadd.f32 %v1443, %v1641
        %v1643 = vpop.f32.mrb[0].mxu0
        %v1644 = vadd.f32 %v1448, %v1643
        %v1645 = vpop.f32.mrb[0].mxu0
        %v1646 = vadd.f32 %v1448, %v1645
        %1647 = vmatprep.mubr.bf16.mxu0 %v1513
        %1648 = vmatmul.mubr.bf16.gmra.mrb[0].mxu0 %v1498
        %v1649 = vpop.f32.mrb[0].mxu0
        %v1650 = vadd.f32 %v1453, %v1649
        %v1651 = vpop.f32.mrb[0].mxu0
        %v1652 = vadd.f32 %v1453, %v1651
        %v1653 = vpop.f32.mrb[0].mxu0
        %v1654 = vadd.f32 %v1458, %v1653
        %v1655 = vpop.f32.mrb[0].mxu0
        %v1656 = vadd.f32 %v1458, %v1655
        %1657 = vmatprep.mubr.bf16.mxu0 %v1516
        %1658 = vmatmul.mubr.bf16.gmra.mrb[0].mxu0 %v1500
        %v1659 = vpop.f32.mrb[0].mxu0
        %v1660 = vadd.f32 %v1463, %v1659
        %v1661 = vpop.f32.mrb[0].mxu0
        %v1662 = vadd.f32 %v1463, %v1661
        %v1663 = vpop.f32.mrb[0].mxu0
        %v1664 = vadd.f32 %v1468, %v1663
        %v1665 = vpop.f32.mrb[0].mxu0
        %v1666 = vadd.f32 %v1468, %v1665
        %1667 = vmatprep.mubr.bf16.mxu0 %v1519
        %1668 = vmatmul.mubr.bf16.gmra.mrb[0].mxu0 %v1502
        %v1669 = vpop.f32.mrb[0].mxu0
        %v1670 = vadd.f32 %v1473, %v1669
        %v1671 = vpop.f32.mrb[0].mxu0
        %v1672 = vadd.f32 %v1473, %v1671
        %v1673 = vpop.f32.mrb[0].mxu0
        %v1674 = vpop.f32.mrb[0].mxu0
        %1675 = vdwg.mxu0
        %vm1676 = vcmp.ge.f32.partialorder %v1569, 0.0
        %vm1677 = vcmp.ge.f32.partialorder %v1571, 0.0
        %vm1678 = vcmp.ge.f32.partialorder %v1640, 0.0
        %vm1679 = vcmp.ge.f32.partialorder %v1642, 0.0
        %vm1680 = vcmp.ge.f32.partialorder %v1573, 0.0
        %vm1681 = vcmp.ge.f32.partialorder %v1575, 0.0
        %vm1682 = vcmp.ge.f32.partialorder %v1644, 0.0
        %vm1683 = vcmp.ge.f32.partialorder %v1646, 0.0
        %vm1684 = vcmp.ge.f32.partialorder %v1579, 0.0
        %vm1685 = vcmp.ge.f32.partialorder %v1581, 0.0
        %vm1686 = vcmp.ge.f32.partialorder %v1650, 0.0
        %vm1687 = vcmp.ge.f32.partialorder %v1652, 0.0
        %vm1688 = vcmp.ge.f32.partialorder %v1583, 0.0
        %vm1689 = vcmp.ge.f32.partialorder %v1585, 0.0
        %vm1690 = vcmp.ge.f32.partialorder %v1654, 0.0
        %vm1691 = vcmp.ge.f32.partialorder %v1656, 0.0
        %vm1692 = vcmp.ge.f32.partialorder %v1589, 0.0
        %vm1693 = vcmp.ge.f32.partialorder %v1591, 0.0
        %vm1694 = vcmp.ge.f32.partialorder %v1660, 0.0
        %vm1695 = vcmp.ge.f32.partialorder %v1662, 0.0
        %vm1696 = vcmp.ge.f32.partialorder %v1593, 0.0
        %vm1697 = vcmp.ge.f32.partialorder %v1595, 0.0
        %vm1698 = vcmp.ge.f32.partialorder %v1664, 0.0
        %vm1699 = vcmp.ge.f32.partialorder %v1666, 0.0
        %vm1700 = vcmp.ge.f32.partialorder %v1599, 0.0
        %vm1701 = vcmp.ge.f32.partialorder %v1601, 0.0
        %vm1702 = vcmp.ge.f32.partialorder %v1670, 0.0
        %vm1703 = vcmp.ge.f32.partialorder %v1672, 0.0
        %v1704 = vld [vmem:[#allocation7] sm:$0xff]
        %v1705 = vld [vmem:[#allocation7 + $0x8] sm:$0xff]
        %v1706 = vld [vmem:[#allocation7 + $0x10] sm:$0xff]
        %v1707 = vld [vmem:[#allocation7 + $0x18] sm:$0xff]
        %v1708 = vld [vmem:[#allocation7 + $0x20] sm:$0xff]
        %v1709 = vld [vmem:[#allocation7 + $0x28] sm:$0xff]
        %v1710 = vld [vmem:[#allocation7 + $0x30] sm:$0xff]
        %1712 = vset.pattern.permute.xlu0 0
        %1713 = vperm.xlu0 %1712, %v1704
        %v1714 = vpop.permute.xlu0 %1713
        %1717 = vset.pattern.permute.xlu0 0
        %1718 = vperm.xlu0 %1717, %v1705
        %v1719 = vpop.permute.xlu0 %1718
        %1722 = vset.pattern.permute.xlu0 0
        %1723 = vperm.xlu0 %1722, %v1706
        %v1724 = vpop.permute.xlu0 %1723
        %1727 = vset.pattern.permute.xlu0 0
        %1728 = vperm.xlu0 %1727, %v1707
        %v1729 = vpop.permute.xlu0 %1728
        %1732 = vset.pattern.permute.xlu0 0
        %1733 = vperm.xlu0 %1732, %v1708
        %v1734 = vpop.permute.xlu0 %1733
        %1737 = vset.pattern.permute.xlu0 0
        %1738 = vperm.xlu0 %1737, %v1709
        %v1739 = vpop.permute.xlu0 %1738
        %1742 = vset.pattern.permute.xlu0 0
        %1743 = vperm.xlu0 %1742, %v1710
        %v1744 = vpop.permute.xlu0 %1743
        %v1746 = vmul.f32 %v1714, %v1569
        %v1747 = vmul.f32 %v1714, %v1571
        %v1748 = vmul.f32 %v1714, %v1640
        %v1749 = vmul.f32 %v1714, %v1642
        %v1750 = vmul.f32 %v1719, %v1573
        %v1751 = vmul.f32 %v1719, %v1575
        %v1752 = vmul.f32 %v1719, %v1644
        %v1753 = vmul.f32 %v1719, %v1646
        %v1754 = vmul.f32 %v1724, %v1579
        %v1755 = vmul.f32 %v1724, %v1581
        %v1756 = vmul.f32 %v1724, %v1650
        %v1757 = vmul.f32 %v1724, %v1652
        %v1758 = vmul.f32 %v1729, %v1583
        %v1759 = vmul.f32 %v1729, %v1585
        %v1760 = vmul.f32 %v1729, %v1654
        %v1761 = vmul.f32 %v1729, %v1656
        %v1762 = vmul.f32 %v1734, %v1589
        %v1763 = vmul.f32 %v1734, %v1591
        %v1764 = vmul.f32 %v1734, %v1660
        %v1765 = vmul.f32 %v1734, %v1662
        %v1766 = vmul.f32 %v1739, %v1593
        %v1767 = vmul.f32 %v1739, %v1595
        %v1768 = vmul.f32 %v1739, %v1664
        %v1769 = vmul.f32 %v1739, %v1666
        %v1770 = vmul.f32 %v1744, %v1599
        %v1771 = vmul.f32 %v1744, %v1601
        %v1772 = vmul.f32 %v1744, %v1670
        %v1773 = vmul.f32 %v1744, %v1672
        %v1774 = vsel %vm1676, %v1569, %v1746
        %v1775 = vsel %vm1677, %v1571, %v1747
        %v1776 = vsel %vm1678, %v1640, %v1748
        %v1777 = vsel %vm1679, %v1642, %v1749
        %v1778 = vsel %vm1680, %v1573, %v1750
        %v1779 = vsel %vm1681, %v1575, %v1751
        %v1780 = vsel %vm1682, %v1644, %v1752
        %v1781 = vsel %vm1683, %v1646, %v1753
        %v1782 = vsel %vm1684, %v1579, %v1754
        %v1783 = vsel %vm1685, %v1581, %v1755
        %v1784 = vsel %vm1686, %v1650, %v1756
        %v1785 = vsel %vm1687, %v1652, %v1757
        %v1786 = vsel %vm1688, %v1583, %v1758
        %v1787 = vsel %vm1689, %v1585, %v1759
        %v1788 = vsel %vm1690, %v1654, %v1760
        %v1789 = vsel %vm1691, %v1656, %v1761
        %v1790 = vsel %vm1692, %v1589, %v1762
        %v1791 = vsel %vm1693, %v1591, %v1763
        %v1792 = vsel %vm1694, %v1660, %v1764
        %v1793 = vsel %vm1695, %v1662, %v1765
        %v1794 = vsel %vm1696, %v1593, %v1766
        %v1795 = vsel %vm1697, %v1595, %v1767
        %v1796 = vsel %vm1698, %v1664, %v1768
        %v1797 = vsel %vm1699, %v1666, %v1769
        %v1798 = vsel %vm1700, %v1599, %v1770
        %v1799 = vsel %vm1701, %v1601, %v1771
        %v1800 = vsel %vm1702, %v1670, %v1772
        %v1801 = vsel %vm1703, %v1672, %v1773
        %v1803 = vlaneseq
        %v1804 = vshrl.u32 %v1803, 7
        %v1805 = vsub.s32 0, %v1804
        %v1806 = vrot.slane %v1055, %v1805
        %v1807 = vlaneseq
        %v1808 = vshrl.u32 %v1807, 7
        %v1809 = vsub.s32 1, %v1808
        %v1810 = vrot.slane %v1055, %v1809
        %v1811 = vlaneseq
        %v1812 = vshrl.u32 %v1811, 7
        %v1813 = vsub.s32 2, %v1812
        %v1814 = vrot.slane %v1055, %v1813
        %v1815 = vlaneseq
        %v1816 = vshrl.u32 %v1815, 7
        %v1817 = vsub.s32 3, %v1816
        %v1818 = vrot.slane %v1055, %v1817
        %v1823 = vmul.f32 %v1806, %v1774
        %v1824 = vmul.f32 %v1810, %v1775
        %v1825 = vmul.f32 %v1814, %v1776
        %v1826 = vmul.f32 %v1818, %v1777
        %v1827 = vmul.f32 %v1806, %v1778
        %v1828 = vmul.f32 %v1810, %v1779
        %v1829 = vmul.f32 %v1814, %v1780
        %v1830 = vmul.f32 %v1818, %v1781
        %v1831 = vmul.f32 %v1806, %v1782
        %v1832 = vmul.f32 %v1810, %v1783
        %v1833 = vmul.f32 %v1814, %v1784
        %v1834 = vmul.f32 %v1818, %v1785
        %v1835 = vmul.f32 %v1806, %v1786
        %v1836 = vmul.f32 %v1810, %v1787
        %v1837 = vmul.f32 %v1814, %v1788
        %v1838 = vmul.f32 %v1818, %v1789
        %v1839 = vmul.f32 %v1806, %v1790
        %v1840 = vmul.f32 %v1810, %v1791
        %v1841 = vmul.f32 %v1814, %v1792
        %v1842 = vmul.f32 %v1818, %v1793
        %v1843 = vmul.f32 %v1806, %v1794
        %v1844 = vmul.f32 %v1810, %v1795
        %v1845 = vmul.f32 %v1814, %v1796
        %v1846 = vmul.f32 %v1818, %v1797
        %v1847 = vmul.f32 %v1806, %v1798
        %v1848 = vmul.f32 %v1810, %v1799
        %v1849 = vmul.f32 %v1814, %v1800
        %v1850 = vmul.f32 %v1818, %v1801
        %v1851 = vld [vmem:[#allocation9] sm:$0xf]
        %v1852 = vld [vmem:[#allocation9 + $0x4] sm:$0xf]
        %v1853 = vpack.c.bf16 %v1827, %v1823
        %v1854 = vpack.c.bf16 %v1828, %v1824
        %v1855 = vpack.c.bf16 %v1829, %v1825
        %v1856 = vpack.c.bf16 %v1830, %v1826
        %v1857 = vpack.c.bf16 %v1835, %v1831
        %v1858 = vpack.c.bf16 %v1836, %v1832
        %v1859 = vpack.c.bf16 %v1837, %v1833
        %v1860 = vpack.c.bf16 %v1838, %v1834
        %v1861 = vpack.c.bf16 %v1843, %v1839
        %v1862 = vpack.c.bf16 %v1844, %v1840
        %v1863 = vpack.c.bf16 %v1845, %v1841
        %v1864 = vpack.c.bf16 %v1846, %v1842
        %v1865 = vpack.c.bf16 %v1847, %v1847
        %v1866 = vpack.c.bf16 %v1848, %v1848
        %v1867 = vpack.c.bf16 %v1849, %v1849
        %v1868 = vpack.c.bf16 %v1850, %v1850
        %v1869 = vld [vmem:[#allocation10] sm:$0xff]
        %v1870 = vld [vmem:[#allocation10 + $0x8] sm:$0xff]
        %1872 = vset.pattern.permute.xlu0 0
        %1873 = vperm.xlu0 %1872, %v1869
        %v1874 = vpop.permute.xlu0 %1873
        %1877 = vset.pattern.permute.xlu0 0
        %1878 = vperm.xlu0 %1877, %v1870
        %v1879 = vpop.permute.xlu0 %1878
        %v1883 = vunpack.c.l.b16 %v1851
        %v1884 = vunpack.c.l.b16 %v1852
        %v1885 = vpack.c.b16 %v1884, %v1883
        %vm1886 = vcmask 457728
        %v1888 = vsel %vm1886, %v1885, 0
        %v1891 = vsel %vm1521, %v1865, 0
        %v1894 = vsel %vm1521, %v1866, 0
        %v1897 = vsel %vm1521, %v1867, 0
        %v1900 = vsel %vm1521, %v1868, 0
        %1902 = vmatprep.subr.bf16.mxu0 %v1854
        %1903 = vmatpush1.bf16.msra.mxu0 %v1853
        %1904 = vmatprep.subr.bf16.mxu0 %v1858
        %1905 = vmatpush1.bf16.msra.mxu0 %v1857
        %1906 = vmatprep.subr.bf16.mxu0 %v1862
        %1907 = vmatpush1.bf16.msra.mxu0 %v1861
        %1908 = vmatprep.subr.bf16.mxu0 %v1894
        %1909 = vmatpush1.bf16.msra.mxu0 %v1891
        %1910 = vmatprep.subr.bf16.mxu0 0
        %1911 = vmatpush1.bf16.msra.mxu0 0
        %1912 = vmatprep.subr.bf16.mxu0 0
        %1913 = vmatpush1.bf16.msra.mxu0 0
        %1914 = vmatprep.subr.bf16.mxu0 0
        %1915 = vmatpush1.bf16.msra.mxu0 0
        %1916 = vmatprep.subr.bf16.mxu0 0
        %1917 = vmatpush1.bf16.msra.mxu0 0
        %1918 = vmatprep.subr.bf16.mxu0 0
        %1919 = vmatpush1.bf16.msra.mxu0 0
        %1920 = vmatprep.subr.bf16.mxu0 0
        %1921 = vmatpush1.bf16.msra.mxu0 0
        %1922 = vmatprep.subr.bf16.mxu0 0
        %1923 = vmatpush1.bf16.msra.mxu0 0
        %1924 = vmatprep.subr.bf16.mxu0 0
        %1925 = vmatpush1.bf16.msra.mxu0 0
        %1926 = vmatprep.subr.bf16.mxu0 0
        %1927 = vmatpush1.bf16.msra.mxu0 0
        %1928 = vmatprep.subr.bf16.mxu0 0
        %1929 = vmatpush1.bf16.msra.mxu0 0
        %1930 = vmatprep.subr.bf16.mxu0 0
        %1931 = vmatpush1.bf16.msra.mxu0 0
        %1932 = vmatprep.subr.bf16.mxu0 0
        %1933 = vmatpush1.bf16.msra.mxu0 0
        %1934 = vmatprep.mubr.bf16.mxu0 0
        %1935 = vmatmul.mubr.bf16.gmra.mrb[0].mxu0 %v1888
        %v1936 = vpop.f32.mrb[0].mxu0
        %v1937 = vadd.f32 %v1874, %v1936
        %v1938 = vpop.f32.mrb[0].mxu0
        %v1939 = vadd.f32 %v1874, %v1938
        %v1940 = vpop.f32.mrb[0].mxu0
        %v1941 = vadd.f32 %v1879, %v1940
        %v1942 = vpop.f32.mrb[0].mxu0
        %v1943 = vadd.f32 %v1879, %v1942
        %1944 = vdwg.mxu0
        %1945 = vmatprep.subr.bf16.mxu0 %v1856
        %1946 = vmatpush1.bf16.msra.mxu0 %v1855
        %1947 = vmatprep.subr.bf16.mxu0 %v1860
        %1948 = vmatpush1.bf16.msra.mxu0 %v1859
        %1949 = vmatprep.subr.bf16.mxu0 %v1864
        %1950 = vmatpush1.bf16.msra.mxu0 %v1863
        %1951 = vmatprep.subr.bf16.mxu0 %v1900
        %1952 = vmatpush1.bf16.msra.mxu0 %v1897
        %1953 = vmatprep.subr.bf16.mxu0 0
        %1954 = vmatpush1.bf16.msra.mxu0 0
        %1955 = vmatprep.subr.bf16.mxu0 0
        %1956 = vmatpush1.bf16.msra.mxu0 0
        %1957 = vmatprep.subr.bf16.mxu0 0
        %1958 = vmatpush1.bf16.msra.mxu0 0
        %1959 = vmatprep.subr.bf16.mxu0 0
        %1960 = vmatpush1.bf16.msra.mxu0 0
        %1961 = vmatprep.subr.bf16.mxu0 0
        %1962 = vmatpush1.bf16.msra.mxu0 0
        %1963 = vmatprep.subr.bf16.mxu0 0
        %1964 = vmatpush1.bf16.msra.mxu0 0
        %1965 = vmatprep.subr.bf16.mxu0 0
        %1966 = vmatpush1.bf16.msra.mxu0 0
        %1967 = vmatprep.subr.bf16.mxu0 0
        %1968 = vmatpush1.bf16.msra.mxu0 0
        %1969 = vmatprep.subr.bf16.mxu0 0
        %1970 = vmatpush1.bf16.msra.mxu0 0
        %1971 = vmatprep.subr.bf16.mxu0 0
        %1972 = vmatpush1.bf16.msra.mxu0 0
        %1973 = vmatprep.subr.bf16.mxu0 0
        %1974 = vmatpush1.bf16.msra.mxu0 0
        %1975 = vmatprep.subr.bf16.mxu0 0
        %1976 = vmatpush1.bf16.msra.mxu0 0
        %1977 = vmatprep.mubr.bf16.mxu0 0
        %1978 = vmatmul.mubr.bf16.gmra.mrb[0].mxu0 %v1888
        %v1979 = vpop.f32.mrb[0].mxu0
        %v1980 = vadd.f32 %v1874, %v1979
        %v1981 = vpop.f32.mrb[0].mxu0
        %v1982 = vadd.f32 %v1874, %v1981
        %v1983 = vpop.f32.mrb[0].mxu0
        %v1984 = vadd.f32 %v1879, %v1983
        %v1985 = vpop.f32.mrb[0].mxu0
        %v1986 = vadd.f32 %v1879, %v1985
        %1987 = vdwg.mxu0
        %vm1988 = vcmp.ge.f32.partialorder %v1937, 0.0
        %vm1989 = vcmp.ge.f32.partialorder %v1939, 0.0
        %vm1990 = vcmp.ge.f32.partialorder %v1980, 0.0
        %vm1991 = vcmp.ge.f32.partialorder %v1982, 0.0
        %vm1992 = vcmp.ge.f32.partialorder %v1941, 0.0
        %vm1993 = vcmp.ge.f32.partialorder %v1943, 0.0
        %vm1994 = vcmp.ge.f32.partialorder %v1984, 0.0
        %vm1995 = vcmp.ge.f32.partialorder %v1986, 0.0
        %v1996 = vld [vmem:[#allocation12] sm:$0xff]
        %v1997 = vld [vmem:[#allocation12 + $0x8] sm:$0xff]
        %1999 = vset.pattern.permute.xlu0 0
        %2000 = vperm.xlu0 %1999, %v1996
        %v2001 = vpop.permute.xlu0 %2000
        %2004 = vset.pattern.permute.xlu0 0
        %2005 = vperm.xlu0 %2004, %v1997
        %v2006 = vpop.permute.xlu0 %2005
        %v2008 = vmul.f32 %v2001, %v1937
        %v2009 = vmul.f32 %v2001, %v1939
        %v2010 = vmul.f32 %v2001, %v1980
        %v2011 = vmul.f32 %v2001, %v1982
        %v2012 = vmul.f32 %v2006, %v1941
        %v2013 = vmul.f32 %v2006, %v1943
        %v2014 = vmul.f32 %v2006, %v1984
        %v2015 = vmul.f32 %v2006, %v1986
        %v2016 = vsel %vm1988, %v1937, %v2008
        %v2017 = vsel %vm1989, %v1939, %v2009
        %v2018 = vsel %vm1990, %v1980, %v2010
        %v2019 = vsel %vm1991, %v1982, %v2011
        %v2020 = vsel %vm1992, %v1941, %v2012
        %v2021 = vsel %vm1993, %v1943, %v2013
        %v2022 = vsel %vm1994, %v1984, %v2014
        %v2023 = vsel %vm1995, %v1986, %v2015
        %v2024 = vmul.f32 %v1806, %v2016
        %v2025 = vmul.f32 %v1810, %v2017
        %v2026 = vmul.f32 %v1814, %v2018
        %v2027 = vmul.f32 %v1818, %v2019
        %v2028 = vmul.f32 %v1806, %v2020
        %v2029 = vmul.f32 %v1810, %v2021
        %v2030 = vmul.f32 %v1814, %v2022
        %v2031 = vmul.f32 %v1818, %v2023
        %2032 = vrot.lane.b32.xlu0 %v2024, 21
        %v2033 = vpop.permute.xlu0 %2032
        %2034 = vrot.lane.b32.xlu0 %v2028, 21
        %v2035 = vpop.permute.xlu0 %2034
        %2036 = vrot.lane.b32.xlu0 %v2025, 21
        %v2037 = vpop.permute.xlu0 %2036
        %2038 = vrot.lane.b32.xlu0 %v2029, 21
        %v2039 = vpop.permute.xlu0 %2038
        %2040 = vrot.lane.b32.xlu0 %v2026, 21
        %v2041 = vpop.permute.xlu0 %2040
        %2042 = vrot.lane.b32.xlu0 %v2030, 21
        %v2043 = vpop.permute.xlu0 %2042
        %2044 = vrot.lane.b32.xlu0 %v2027, 21
        %v2045 = vpop.permute.xlu0 %2044
        %2046 = vrot.lane.b32.xlu0 %v2031, 21
        %v2047 = vpop.permute.xlu0 %2046
        %v2048 = vsel %vm1148, %v2041, %v2045
        %v2049 = vsel %vm1148, %v2043, %v2047
        %v2050 = vsel %vm1148, %v2037, %v2041
        %v2051 = vsel %vm1148, %v2039, %v2043
        %v2052 = vsel %vm1148, %v2033, %v2037
        %v2053 = vsel %vm1148, %v2035, %v2039
        %v2054 = vsel %vm1148, %v2045, %v2033
        %v2055 = vsel %vm1148, %v2047, %v2035
        %2056 = vrot.lane.b32.xlu0 %v2024, 20
        %v2057 = vpop.permute.xlu0 %2056
        %2058 = vrot.lane.b32.xlu0 %v2028, 20
        %v2059 = vpop.permute.xlu0 %2058
        %2060 = vrot.lane.b32.xlu0 %v2025, 20
        %v2061 = vpop.permute.xlu0 %2060
        %2062 = vrot.lane.b32.xlu0 %v2029, 20
        %v2063 = vpop.permute.xlu0 %2062
        %2064 = vrot.lane.b32.xlu0 %v2026, 20
        %v2065 = vpop.permute.xlu0 %2064
        %2066 = vrot.lane.b32.xlu0 %v2030, 20
        %v2067 = vpop.permute.xlu0 %2066
        %2068 = vrot.lane.b32.xlu0 %v2027, 20
        %v2069 = vpop.permute.xlu0 %2068
        %2070 = vrot.lane.b32.xlu0 %v2031, 20
        %v2071 = vpop.permute.xlu0 %2070
        %v2072 = vsel %vm1161, %v2065, %v2069
        %v2073 = vsel %vm1161, %v2067, %v2071
        %v2074 = vsel %vm1161, %v2061, %v2065
        %v2075 = vsel %vm1161, %v2063, %v2067
        %v2076 = vsel %vm1161, %v2057, %v2061
        %v2077 = vsel %vm1161, %v2059, %v2063
        %v2078 = vsel %vm1161, %v2069, %v2057
        %v2079 = vsel %vm1161, %v2071, %v2059
        %2080 = vrot.lane.b32.xlu0 %v2024, 19
        %v2081 = vpop.permute.xlu0 %2080
        %2082 = vrot.lane.b32.xlu0 %v2028, 19
        %v2083 = vpop.permute.xlu0 %2082
        %2084 = vrot.lane.b32.xlu0 %v2025, 19
        %v2085 = vpop.permute.xlu0 %2084
        %2086 = vrot.lane.b32.xlu0 %v2029, 19
        %v2087 = vpop.permute.xlu0 %2086
        %2088 = vrot.lane.b32.xlu0 %v2026, 19
        %v2089 = vpop.permute.xlu0 %2088
        %2090 = vrot.lane.b32.xlu0 %v2030, 19
        %v2091 = vpop.permute.xlu0 %2090
        %2092 = vrot.lane.b32.xlu0 %v2027, 19
        %v2093 = vpop.permute.xlu0 %2092
        %2094 = vrot.lane.b32.xlu0 %v2031, 19
        %v2095 = vpop.permute.xlu0 %2094
        %v2096 = vsel %vm1174, %v2089, %v2093
        %v2097 = vsel %vm1174, %v2091, %v2095
        %v2098 = vsel %vm1174, %v2085, %v2089
        %v2099 = vsel %vm1174, %v2087, %v2091
        %v2100 = vsel %vm1174, %v2081, %v2085
        %v2101 = vsel %vm1174, %v2083, %v2087
        %v2102 = vsel %vm1174, %v2093, %v2081
        %v2103 = vsel %vm1174, %v2095, %v2083
        %2104 = vrot.lane.b32.xlu0 %v2024, 1
        %v2105 = vpop.permute.xlu0 %2104
        %2106 = vrot.lane.b32.xlu0 %v2028, 1
        %v2107 = vpop.permute.xlu0 %2106
        %2108 = vrot.lane.b32.xlu0 %v2025, 1
        %v2109 = vpop.permute.xlu0 %2108
        %2110 = vrot.lane.b32.xlu0 %v2029, 1
        %v2111 = vpop.permute.xlu0 %2110
        %2112 = vrot.lane.b32.xlu0 %v2026, 1
        %v2113 = vpop.permute.xlu0 %2112
        %2114 = vrot.lane.b32.xlu0 %v2030, 1
        %v2115 = vpop.permute.xlu0 %2114
        %2116 = vrot.lane.b32.xlu0 %v2027, 1
        %v2117 = vpop.permute.xlu0 %2116
        %2118 = vrot.lane.b32.xlu0 %v2031, 1
        %v2119 = vpop.permute.xlu0 %2118
        %v2120 = vsel %vm1213, %v2113, %v2117
        %v2121 = vsel %vm1213, %v2115, %v2119
        %v2122 = vsel %vm1213, %v2109, %v2113
        %v2123 = vsel %vm1213, %v2111, %v2115
        %v2124 = vsel %vm1213, %v2105, %v2109
        %v2125 = vsel %vm1213, %v2107, %v2111
        %v2126 = vsel %vm1213, %v2117, %v2105
        %v2127 = vsel %vm1213, %v2119, %v2107
        %2128 = vrot.lane.b32.xlu0 %v2024, 127
        %v2129 = vpop.permute.xlu0 %2128
        %2130 = vrot.lane.b32.xlu0 %v2028, 127
        %v2131 = vpop.permute.xlu0 %2130
        %2132 = vrot.lane.b32.xlu0 %v2025, 127
        %v2133 = vpop.permute.xlu0 %2132
        %2134 = vrot.lane.b32.xlu0 %v2029, 127
        %v2135 = vpop.permute.xlu0 %2134
        %2136 = vrot.lane.b32.xlu0 %v2026, 127
        %v2137 = vpop.permute.xlu0 %2136
        %2138 = vrot.lane.b32.xlu0 %v2030, 127
        %v2139 = vpop.permute.xlu0 %2138
        %2140 = vrot.lane.b32.xlu0 %v2027, 127
        %v2141 = vpop.permute.xlu0 %2140
        %2142 = vrot.lane.b32.xlu0 %v2031, 127
        %v2143 = vpop.permute.xlu0 %2142
        %v2144 = vsel %vm1226, %v2137, %v2141
        %v2145 = vsel %vm1226, %v2139, %v2143
        %v2146 = vsel %vm1226, %v2133, %v2137
        %v2147 = vsel %vm1226, %v2135, %v2139
        %v2148 = vsel %vm1226, %v2129, %v2133
        %v2149 = vsel %vm1226, %v2131, %v2135
        %v2150 = vsel %vm1226, %v2141, %v2129
        %v2151 = vsel %vm1226, %v2143, %v2131
        %2152 = vrot.lane.b32.xlu0 %v2024, 109
        %v2153 = vpop.permute.xlu0 %2152
        %2154 = vrot.lane.b32.xlu0 %v2028, 109
        %v2155 = vpop.permute.xlu0 %2154
        %2156 = vrot.lane.b32.xlu0 %v2025, 109
        %v2157 = vpop.permute.xlu0 %2156
        %2158 = vrot.lane.b32.xlu0 %v2029, 109
        %v2159 = vpop.permute.xlu0 %2158
        %2160 = vrot.lane.b32.xlu0 %v2026, 109
        %v2161 = vpop.permute.xlu0 %2160
        %2162 = vrot.lane.b32.xlu0 %v2030, 109
        %v2163 = vpop.permute.xlu0 %2162
        %2164 = vrot.lane.b32.xlu0 %v2027, 109
        %v2165 = vpop.permute.xlu0 %2164
        %2166 = vrot.lane.b32.xlu0 %v2031, 109
        %v2167 = vpop.permute.xlu0 %2166
        %v2168 = vsel %vm1265, %v2161, %v2165
        %v2169 = vsel %vm1265, %v2163, %v2167
        %v2170 = vsel %vm1265, %v2157, %v2161
        %v2171 = vsel %vm1265, %v2159, %v2163
        %v2172 = vsel %vm1265, %v2153, %v2157
        %v2173 = vsel %vm1265, %v2155, %v2159
        %v2174 = vsel %vm1265, %v2165, %v2153
        %v2175 = vsel %vm1265, %v2167, %v2155
        %2176 = vrot.lane.b32.xlu0 %v2024, 108
        %v2177 = vpop.permute.xlu0 %2176
        %2178 = vrot.lane.b32.xlu0 %v2028, 108
        %v2179 = vpop.permute.xlu0 %2178
        %2180 = vrot.lane.b32.xlu0 %v2025, 108
        %v2181 = vpop.permute.xlu0 %2180
        %2182 = vrot.lane.b32.xlu0 %v2029, 108
        %v2183 = vpop.permute.xlu0 %2182
        %2184 = vrot.lane.b32.xlu0 %v2026, 108
        %v2185 = vpop.permute.xlu0 %2184
        %2186 = vrot.lane.b32.xlu0 %v2030, 108
        %v2187 = vpop.permute.xlu0 %2186
        %2188 = vrot.lane.b32.xlu0 %v2027, 108
        %v2189 = vpop.permute.xlu0 %2188
        %2190 = vrot.lane.b32.xlu0 %v2031, 108
        %v2191 = vpop.permute.xlu0 %2190
        %v2192 = vsel %vm1278, %v2185, %v2189
        %v2193 = vsel %vm1278, %v2187, %v2191
        %v2194 = vsel %vm1278, %v2181, %v2185
        %v2195 = vsel %vm1278, %v2183, %v2187
        %v2196 = vsel %vm1278, %v2177, %v2181
        %v2197 = vsel %vm1278, %v2179, %v2183
        %v2198 = vsel %vm1278, %v2189, %v2177
        %v2199 = vsel %vm1278, %v2191, %v2179
        %2200 = vrot.lane.b32.xlu0 %v2024, 107
        %v2201 = vpop.permute.xlu0 %2200
        %2202 = vrot.lane.b32.xlu0 %v2028, 107
        %v2203 = vpop.permute.xlu0 %2202
        %2204 = vrot.lane.b32.xlu0 %v2025, 107
        %v2205 = vpop.permute.xlu0 %2204
        %2206 = vrot.lane.b32.xlu0 %v2029, 107
        %v2207 = vpop.permute.xlu0 %2206
        %2208 = vrot.lane.b32.xlu0 %v2026, 107
        %v2209 = vpop.permute.xlu0 %2208
        %2210 = vrot.lane.b32.xlu0 %v2030, 107
        %v2211 = vpop.permute.xlu0 %2210
        %2212 = vrot.lane.b32.xlu0 %v2027, 107
        %v2213 = vpop.permute.xlu0 %2212
        %2214 = vrot.lane.b32.xlu0 %v2031, 107
        %v2215 = vpop.permute.xlu0 %2214
        %v2216 = vsel %vm1291, %v2209, %v2213
        %v2217 = vsel %vm1291, %v2211, %v2215
        %v2218 = vsel %vm1291, %v2205, %v2209
        %v2219 = vsel %vm1291, %v2207, %v2211
        %v2220 = vsel %vm1291, %v2201, %v2205
        %v2221 = vsel %vm1291, %v2203, %v2207
        %v2222 = vsel %vm1291, %v2213, %v2201
        %v2223 = vsel %vm1291, %v2215, %v2203
        %v2224 = vld [vmem:[%s8] sm:$0xff]
        %v2225 = vld [vmem:[%s8 + $0x8] sm:$0xff]
        %v2226 = vpack.c.bf16 %v2055, %v2054
        %v2227 = vpack.c.bf16 %v2053, %v2052
        %v2228 = vpack.c.bf16 %v2051, %v2050
        %v2229 = vpack.c.bf16 %v2049, %v2048
        %v2230 = vpack.c.bf16 %v2079, %v2078
        %v2231 = vpack.c.bf16 %v2077, %v2076
        %v2232 = vpack.c.bf16 %v2075, %v2074
        %v2233 = vpack.c.bf16 %v2073, %v2072
        %v2234 = vpack.c.bf16 %v2103, %v2102
        %v2235 = vpack.c.bf16 %v2101, %v2100
        %v2236 = vpack.c.bf16 %v2099, %v2098
        %v2237 = vpack.c.bf16 %v2097, %v2096
        %v2238 = vpack.c.bf16 %v2127, %v2126
        %v2239 = vpack.c.bf16 %v2125, %v2124
        %v2240 = vpack.c.bf16 %v2123, %v2122
        %v2241 = vpack.c.bf16 %v2121, %v2120
        %v2242 = vpack.c.bf16 %v2028, %v2024
        %v2243 = vpack.c.bf16 %v2029, %v2025
        %v2244 = vpack.c.bf16 %v2030, %v2026
        %v2245 = vpack.c.bf16 %v2031, %v2027
        %v2246 = vpack.c.bf16 %v2149, %v2148
        %v2247 = vpack.c.bf16 %v2147, %v2146
        %v2248 = vpack.c.bf16 %v2145, %v2144
        %v2249 = vpack.c.bf16 %v2151, %v2150
        %v2250 = vpack.c.bf16 %v2173, %v2172
        %v2251 = vpack.c.bf16 %v2171, %v2170
        %v2252 = vpack.c.bf16 %v2169, %v2168
        %v2253 = vpack.c.bf16 %v2175, %v2174
        %v2254 = vpack.c.bf16 %v2197, %v2196
        %v2255 = vpack.c.bf16 %v2195, %v2194
        %v2256 = vpack.c.bf16 %v2193, %v2192
        %v2257 = vpack.c.bf16 %v2199, %v2198
        %v2258 = vpack.c.bf16 %v2221, %v2220
        %v2259 = vpack.c.bf16 %v2219, %v2218
        %v2260 = vpack.c.bf16 %v2217, %v2216
        %v2261 = vpack.c.bf16 %v2223, %v2222
        %v2262 = vld [vmem:[#allocation13] sm:$0xff]
        %v2263 = vld [vmem:[#allocation13 + $0x8] sm:$0xff]
        %2265 = vset.pattern.permute.xlu0 0
        %2266 = vperm.xlu0 %2265, %v2262
        %v2267 = vpop.permute.xlu0 %2266
        %2270 = vset.pattern.permute.xlu0 0
        %2271 = vperm.xlu0 %2270, %v2263
        %v2272 = vpop.permute.xlu0 %2271
        %v2276 = vunpack.c.l.b16 %v2224
        %v2277 = vunpack.c.h.b16 %v2224
        %v2278 = vunpack.c.l.b16 %v2225
        %v2279 = vunpack.c.h.b16 %v2225
        %v2280 = vpack.c.b16 %v2278, %v2276
        %v2281 = vpack.c.b16 %v2279, %v2277
        %vm2283 = vcmask 130048
        %v2285 = vsel %vm2283, %v2281, 0
        %2287 = vmatprep.subr.bf16.mxu0 %v2227
        %2288 = vmatpush1.bf16.msra.mxu0 %v2226
        %2289 = vmatprep.subr.bf16.mxu0 %v2231
        %2290 = vmatpush1.bf16.msra.mxu0 %v2230
        %2291 = vmatprep.subr.bf16.mxu0 %v2235
        %2292 = vmatpush1.bf16.msra.mxu0 %v2234
        %2293 = vmatprep.subr.bf16.mxu0 %v2239
        %2294 = vmatpush1.bf16.msra.mxu0 %v2238
        %2295 = vmatprep.subr.bf16.mxu0 %v2243
        %2296 = vmatpush1.bf16.msra.mxu0 %v2242
        %2297 = vmatprep.subr.bf16.mxu0 %v2247
        %2298 = vmatpush1.bf16.msra.mxu0 %v2246
        %2299 = vmatprep.subr.bf16.mxu0 %v2251
        %2300 = vmatpush1.bf16.msra.mxu0 %v2250
        %2301 = vmatprep.subr.bf16.mxu0 %v2255
        %2302 = vmatpush1.bf16.msra.mxu0 %v2254
        %2303 = vmatprep.subr.bf16.mxu0 %v2259
        %2304 = vmatpush1.bf16.msra.mxu0 %v2258
        %2305 = vmatprep.subr.bf16.mxu0 0
        %2306 = vmatpush1.bf16.msra.mxu0 0
        %2307 = vmatprep.subr.bf16.mxu0 0
        %2308 = vmatpush1.bf16.msra.mxu0 0
        %2309 = vmatprep.subr.bf16.mxu0 0
        %2310 = vmatpush1.bf16.msra.mxu0 0
        %2311 = vmatprep.subr.bf16.mxu0 0
        %2312 = vmatpush1.bf16.msra.mxu0 0
        %2313 = vmatprep.subr.bf16.mxu0 0
        %2314 = vmatpush1.bf16.msra.mxu0 0
        %2315 = vmatprep.subr.bf16.mxu0 0
        %2316 = vmatpush1.bf16.msra.mxu0 0
        %2317 = vmatprep.subr.bf16.mxu0 0
        %2318 = vmatpush1.bf16.msra.mxu0 0
        %2319 = vmatprep.mubr.bf16.mxu0 %v2285
        %2320 = vmatmul.mubr.bf16.gmra.mrb[0].mxu0 %v2280
        %v2321 = vpop.f32.mrb[0].mxu0
        %v2322 = vadd.f32 %v2267, %v2321
        %v2323 = vpop.f32.mrb[0].mxu0
        %v2324 = vadd.f32 %v2267, %v2323
        %v2325 = vpop.f32.mrb[0].mxu0
        %v2326 = vadd.f32 %v2272, %v2325
        %v2327 = vpop.f32.mrb[0].mxu0
        %v2328 = vadd.f32 %v2272, %v2327
        %2329 = vdwg.mxu0
        %2330 = vmatprep.subr.bf16.mxu0 %v2229
        %2331 = vmatpush1.bf16.msra.mxu0 %v2228
        %2332 = vmatprep.subr.bf16.mxu0 %v2233
        %2333 = vmatpush1.bf16.msra.mxu0 %v2232
        %2334 = vmatprep.subr.bf16.mxu0 %v2237
        %2335 = vmatpush1.bf16.msra.mxu0 %v2236
        %2336 = vmatprep.subr.bf16.mxu0 %v2241
        %2337 = vmatpush1.bf16.msra.mxu0 %v2240
        %2338 = vmatprep.subr.bf16.mxu0 %v2245
        %2339 = vmatpush1.bf16.msra.mxu0 %v2244
        %2340 = vmatprep.subr.bf16.mxu0 %v2249
        %2341 = vmatpush1.bf16.msra.mxu0 %v2248
        %2342 = vmatprep.subr.bf16.mxu0 %v2253
        %2343 = vmatpush1.bf16.msra.mxu0 %v2252
        %2344 = vmatprep.subr.bf16.mxu0 %v2257
        %2345 = vmatpush1.bf16.msra.mxu0 %v2256
        %2346 = vmatprep.subr.bf16.mxu0 %v2261
        %2347 = vmatpush1.bf16.msra.mxu0 %v2260
        %2348 = vmatprep.subr.bf16.mxu0 0
        %2349 = vmatpush1.bf16.msra.mxu0 0
        %2350 = vmatprep.subr.bf16.mxu0 0
        %2351 = vmatpush1.bf16.msra.mxu0 0
        %2352 = vmatprep.subr.bf16.mxu0 0
        %2353 = vmatpush1.bf16.msra.mxu0 0
        %2354 = vmatprep.subr.bf16.mxu0 0
        %2355 = vmatpush1.bf16.msra.mxu0 0
        %2356 = vmatprep.subr.bf16.mxu0 0
        %2357 = vmatpush1.bf16.msra.mxu0 0
        %2358 = vmatprep.subr.bf16.mxu0 0
        %2359 = vmatpush1.bf16.msra.mxu0 0
        %2360 = vmatprep.subr.bf16.mxu0 0
        %2361 = vmatpush1.bf16.msra.mxu0 0
        %2362 = vmatprep.mubr.bf16.mxu0 %v2285
        %2363 = vmatmul.mubr.bf16.gmra.mrb[0].mxu0 %v2280
        %v2364 = vpop.f32.mrb[0].mxu0
        %v2365 = vadd.f32 %v2267, %v2364
        %v2366 = vpop.f32.mrb[0].mxu0
        %v2367 = vadd.f32 %v2267, %v2366
        %v2368 = vpop.f32.mrb[0].mxu0
        %v2369 = vadd.f32 %v2272, %v2368
        %v2370 = vpop.f32.mrb[0].mxu0
        %v2371 = vadd.f32 %v2272, %v2370
        %2372 = vdwg.mxu0
        %vm2373 = vcmp.ge.f32.partialorder %v2322, 0.0
        %vm2374 = vcmp.ge.f32.partialorder %v2324, 0.0
        %vm2375 = vcmp.ge.f32.partialorder %v2365, 0.0
        %vm2376 = vcmp.ge.f32.partialorder %v2367, 0.0
        %vm2377 = vcmp.ge.f32.partialorder %v2326, 0.0
        %vm2378 = vcmp.ge.f32.partialorder %v2328, 0.0
        %vm2379 = vcmp.ge.f32.partialorder %v2369, 0.0
        %vm2380 = vcmp.ge.f32.partialorder %v2371, 0.0
        %v2381 = vld [vmem:[#allocation15] sm:$0xff]
        %v2382 = vld [vmem:[#allocation15 + $0x8] sm:$0xff]
        %2384 = vset.pattern.permute.xlu0 0
        %2385 = vperm.xlu0 %2384, %v2381
        %v2386 = vpop.permute.xlu0 %2385
        %2389 = vset.pattern.permute.xlu0 0
        %2390 = vperm.xlu0 %2389, %v2382
        %v2391 = vpop.permute.xlu0 %2390
        %v2393 = vmul.f32 %v2386, %v2322
        %v2394 = vmul.f32 %v2386, %v2324
        %v2395 = vmul.f32 %v2386, %v2365
        %v2396 = vmul.f32 %v2386, %v2367
        %v2397 = vmul.f32 %v2391, %v2326
        %v2398 = vmul.f32 %v2391, %v2328
        %v2399 = vmul.f32 %v2391, %v2369
        %v2400 = vmul.f32 %v2391, %v2371
        %v2401 = vsel %vm2373, %v2322, %v2393
        %v2402 = vsel %vm2374, %v2324, %v2394
        %v2403 = vsel %vm2375, %v2365, %v2395
        %v2404 = vsel %vm2376, %v2367, %v2396
        %v2405 = vsel %vm2377, %v2326, %v2397
        %v2406 = vsel %vm2378, %v2328, %v2398
        %v2407 = vsel %vm2379, %v2369, %v2399
        %v2408 = vsel %vm2380, %v2371, %v2400
        %v2409 = vmul.f32 %v1806, %v2401
        %v2410 = vmul.f32 %v1810, %v2402
        %v2411 = vmul.f32 %v1814, %v2403
        %v2412 = vmul.f32 %v1818, %v2404
        %v2413 = vmul.f32 %v1806, %v2405
        %v2414 = vmul.f32 %v1810, %v2406
        %v2415 = vmul.f32 %v1814, %v2407
        %v2416 = vmul.f32 %v1818, %v2408
        %2417 = vrot.lane.b32.xlu0 %v2409, 21
        %v2418 = vpop.permute.xlu0 %2417
        %2419 = vrot.lane.b32.xlu0 %v2413, 21
        %v2420 = vpop.permute.xlu0 %2419
        %2421 = vrot.lane.b32.xlu0 %v2410, 21
        %v2422 = vpop.permute.xlu0 %2421
        %2423 = vrot.lane.b32.xlu0 %v2414, 21
        %v2424 = vpop.permute.xlu0 %2423
        %2425 = vrot.lane.b32.xlu0 %v2411, 21
        %v2426 = vpop.permute.xlu0 %2425
        %2427 = vrot.lane.b32.xlu0 %v2415, 21
        %v2428 = vpop.permute.xlu0 %2427
        %2429 = vrot.lane.b32.xlu0 %v2412, 21
        %v2430 = vpop.permute.xlu0 %2429
        %2431 = vrot.lane.b32.xlu0 %v2416, 21
        %v2432 = vpop.permute.xlu0 %2431
        %v2433 = vsel %vm1148, %v2426, %v2430
        %v2434 = vsel %vm1148, %v2428, %v2432
        %v2435 = vsel %vm1148, %v2422, %v2426
        %v2436 = vsel %vm1148, %v2424, %v2428
        %v2437 = vsel %vm1148, %v2418, %v2422
        %v2438 = vsel %vm1148, %v2420, %v2424
        %v2439 = vsel %vm1148, %v2430, %v2418
        %v2440 = vsel %vm1148, %v2432, %v2420
        %2441 = vrot.lane.b32.xlu0 %v2409, 20
        %v2442 = vpop.permute.xlu0 %2441
        %2443 = vrot.lane.b32.xlu0 %v2413, 20
        %v2444 = vpop.permute.xlu0 %2443
        %2445 = vrot.lane.b32.xlu0 %v2410, 20
        %v2446 = vpop.permute.xlu0 %2445
        %2447 = vrot.lane.b32.xlu0 %v2414, 20
        %v2448 = vpop.permute.xlu0 %2447
        %2449 = vrot.lane.b32.xlu0 %v2411, 20
        %v2450 = vpop.permute.xlu0 %2449
        %2451 = vrot.lane.b32.xlu0 %v2415, 20
        %v2452 = vpop.permute.xlu0 %2451
        %2453 = vrot.lane.b32.xlu0 %v2412, 20
        %v2454 = vpop.permute.xlu0 %2453
        %2455 = vrot.lane.b32.xlu0 %v2416, 20
        %v2456 = vpop.permute.xlu0 %2455
        %v2457 = vsel %vm1161, %v2450, %v2454
        %v2458 = vsel %vm1161, %v2452, %v2456
        %v2459 = vsel %vm1161, %v2446, %v2450
        %v2460 = vsel %vm1161, %v2448, %v2452
        %v2461 = vsel %vm1161, %v2442, %v2446
        %v2462 = vsel %vm1161, %v2444, %v2448
        %v2463 = vsel %vm1161, %v2454, %v2442
        %v2464 = vsel %vm1161, %v2456, %v2444
        %2465 = vrot.lane.b32.xlu0 %v2409, 19
        %v2466 = vpop.permute.xlu0 %2465
        %2467 = vrot.lane.b32.xlu0 %v2413, 19
        %v2468 = vpop.permute.xlu0 %2467
        %2469 = vrot.lane.b32.xlu0 %v2410, 19
        %v2470 = vpop.permute.xlu0 %2469
        %2471 = vrot.lane.b32.xlu0 %v2414, 19
        %v2472 = vpop.permute.xlu0 %2471
        %2473 = vrot.lane.b32.xlu0 %v2411, 19
        %v2474 = vpop.permute.xlu0 %2473
        %2475 = vrot.lane.b32.xlu0 %v2415, 19
        %v2476 = vpop.permute.xlu0 %2475
        %2477 = vrot.lane.b32.xlu0 %v2412, 19
        %v2478 = vpop.permute.xlu0 %2477
        %2479 = vrot.lane.b32.xlu0 %v2416, 19
        %v2480 = vpop.permute.xlu0 %2479
        %v2481 = vsel %vm1174, %v2474, %v2478
        %v2482 = vsel %vm1174, %v2476, %v2480
        %v2483 = vsel %vm1174, %v2470, %v2474
        %v2484 = vsel %vm1174, %v2472, %v2476
        %v2485 = vsel %vm1174, %v2466, %v2470
        %v2486 = vsel %vm1174, %v2468, %v2472
        %v2487 = vsel %vm1174, %v2478, %v2466
        %v2488 = vsel %vm1174, %v2480, %v2468
        %2489 = vrot.lane.b32.xlu0 %v2409, 1
        %v2490 = vpop.permute.xlu0 %2489
        %2491 = vrot.lane.b32.xlu0 %v2413, 1
        %v2492 = vpop.permute.xlu0 %2491
        %2493 = vrot.lane.b32.xlu0 %v2410, 1
        %v2494 = vpop.permute.xlu0 %2493
        %2495 = vrot.lane.b32.xlu0 %v2414, 1
        %v2496 = vpop.permute.xlu0 %2495
        %2497 = vrot.lane.b32.xlu0 %v2411, 1
        %v2498 = vpop.permute.xlu0 %2497
        %2499 = vrot.lane.b32.xlu0 %v2415, 1
        %v2500 = vpop.permute.xlu0 %2499
        %2501 = vrot.lane.b32.xlu0 %v2412, 1
        %v2502 = vpop.permute.xlu0 %2501
        %2503 = vrot.lane.b32.xlu0 %v2416, 1
        %v2504 = vpop.permute.xlu0 %2503
        %v2505 = vsel %vm1213, %v2498, %v2502
        %v2506 = vsel %vm1213, %v2500, %v2504
        %v2507 = vsel %vm1213, %v2494, %v2498
        %v2508 = vsel %vm1213, %v2496, %v2500
        %v2509 = vsel %vm1213, %v2490, %v2494
        %v2510 = vsel %vm1213, %v2492, %v2496
        %v2511 = vsel %vm1213, %v2502, %v2490
        %v2512 = vsel %vm1213, %v2504, %v2492
        %2513 = vrot.lane.b32.xlu0 %v2409, 127
        %v2514 = vpop.permute.xlu0 %2513
        %2515 = vrot.lane.b32.xlu0 %v2413, 127
        %v2516 = vpop.permute.xlu0 %2515
        %2517 = vrot.lane.b32.xlu0 %v2410, 127
        %v2518 = vpop.permute.xlu0 %2517
        %2519 = vrot.lane.b32.xlu0 %v2414, 127
        %v2520 = vpop.permute.xlu0 %2519
        %2521 = vrot.lane.b32.xlu0 %v2411, 127
        %v2522 = vpop.permute.xlu0 %2521
        %2523 = vrot.lane.b32.xlu0 %v2415, 127
        %v2524 = vpop.permute.xlu0 %2523
        %2525 = vrot.lane.b32.xlu0 %v2412, 127
        %v2526 = vpop.permute.xlu0 %2525
        %2527 = vrot.lane.b32.xlu0 %v2416, 127
        %v2528 = vpop.permute.xlu0 %2527
        %v2529 = vsel %vm1226, %v2522, %v2526
        %v2530 = vsel %vm1226, %v2524, %v2528
        %v2531 = vsel %vm1226, %v2518, %v2522
        %v2532 = vsel %vm1226, %v2520, %v2524
        %v2533 = vsel %vm1226, %v2514, %v2518
        %v2534 = vsel %vm1226, %v2516, %v2520
        %v2535 = vsel %vm1226, %v2526, %v2514
        %v2536 = vsel %vm1226, %v2528, %v2516
        %2537 = vrot.lane.b32.xlu0 %v2409, 109
        %v2538 = vpop.permute.xlu0 %2537
        %2539 = vrot.lane.b32.xlu0 %v2413, 109
        %v2540 = vpop.permute.xlu0 %2539
        %2541 = vrot.lane.b32.xlu0 %v2410, 109
        %v2542 = vpop.permute.xlu0 %2541
        %2543 = vrot.lane.b32.xlu0 %v2414, 109
        %v2544 = vpop.permute.xlu0 %2543
        %2545 = vrot.lane.b32.xlu0 %v2411, 109
        %v2546 = vpop.permute.xlu0 %2545
        %2547 = vrot.lane.b32.xlu0 %v2415, 109
        %v2548 = vpop.permute.xlu0 %2547
        %2549 = vrot.lane.b32.xlu0 %v2412, 109
        %v2550 = vpop.permute.xlu0 %2549
        %2551 = vrot.lane.b32.xlu0 %v2416, 109
        %v2552 = vpop.permute.xlu0 %2551
        %v2553 = vsel %vm1265, %v2546, %v2550
        %v2554 = vsel %vm1265, %v2548, %v2552
        %v2555 = vsel %vm1265, %v2542, %v2546
        %v2556 = vsel %vm1265, %v2544, %v2548
        %v2557 = vsel %vm1265, %v2538, %v2542
        %v2558 = vsel %vm1265, %v2540, %v2544
        %v2559 = vsel %vm1265, %v2550, %v2538
        %v2560 = vsel %vm1265, %v2552, %v2540
        %2561 = vrot.lane.b32.xlu0 %v2409, 108
        %v2562 = vpop.permute.xlu0 %2561
        %2563 = vrot.lane.b32.xlu0 %v2413, 108
        %v2564 = vpop.permute.xlu0 %2563
        %2565 = vrot.lane.b32.xlu0 %v2410, 108
        %v2566 = vpop.permute.xlu0 %2565
        %2567 = vrot.lane.b32.xlu0 %v2414, 108
        %v2568 = vpop.permute.xlu0 %2567
        %2569 = vrot.lane.b32.xlu0 %v2411, 108
        %v2570 = vpop.permute.xlu0 %2569
        %2571 = vrot.lane.b32.xlu0 %v2415, 108
        %v2572 = vpop.permute.xlu0 %2571
        %2573 = vrot.lane.b32.xlu0 %v2412, 108
        %v2574 = vpop.permute.xlu0 %2573
        %2575 = vrot.lane.b32.xlu0 %v2416, 108
        %v2576 = vpop.permute.xlu0 %2575
        %v2577 = vsel %vm1278, %v2570, %v2574
        %v2578 = vsel %vm1278, %v2572, %v2576
        %v2579 = vsel %vm1278, %v2566, %v2570
        %v2580 = vsel %vm1278, %v2568, %v2572
        %v2581 = vsel %vm1278, %v2562, %v2566
        %v2582 = vsel %vm1278, %v2564, %v2568
        %v2583 = vsel %vm1278, %v2574, %v2562
        %v2584 = vsel %vm1278, %v2576, %v2564
        %2585 = vrot.lane.b32.xlu0 %v2409, 107
        %v2586 = vpop.permute.xlu0 %2585
        %2587 = vrot.lane.b32.xlu0 %v2413, 107
        %v2588 = vpop.permute.xlu0 %2587
        %2589 = vrot.lane.b32.xlu0 %v2410, 107
        %v2590 = vpop.permute.xlu0 %2589
        %2591 = vrot.lane.b32.xlu0 %v2414, 107
        %v2592 = vpop.permute.xlu0 %2591
        %2593 = vrot.lane.b32.xlu0 %v2411, 107
        %v2594 = vpop.permute.xlu0 %2593
        %2595 = vrot.lane.b32.xlu0 %v2415, 107
        %v2596 = vpop.permute.xlu0 %2595
        %2597 = vrot.lane.b32.xlu0 %v2412, 107
        %v2598 = vpop.permute.xlu0 %2597
        %2599 = vrot.lane.b32.xlu0 %v2416, 107
        %v2600 = vpop.permute.xlu0 %2599
        %v2601 = vsel %vm1291, %v2594, %v2598
        %v2602 = vsel %vm1291, %v2596, %v2600
        %v2603 = vsel %vm1291, %v2590, %v2594
        %v2604 = vsel %vm1291, %v2592, %v2596
        %v2605 = vsel %vm1291, %v2586, %v2590
        %v2606 = vsel %vm1291, %v2588, %v2592
        %v2607 = vsel %vm1291, %v2598, %v2586
        %v2608 = vsel %vm1291, %v2600, %v2588
        %v2609 = vld [vmem:[%s11] sm:$0xff]
        %v2610 = vld [vmem:[%s11 + $0x8] sm:$0xff]
        %v2611 = vpack.c.bf16 %v2440, %v2439
        %v2612 = vpack.c.bf16 %v2438, %v2437
        %v2613 = vpack.c.bf16 %v2436, %v2435
        %v2614 = vpack.c.bf16 %v2434, %v2433
        %v2615 = vpack.c.bf16 %v2464, %v2463
        %v2616 = vpack.c.bf16 %v2462, %v2461
        %v2617 = vpack.c.bf16 %v2460, %v2459
        %v2618 = vpack.c.bf16 %v2458, %v2457
        %v2619 = vpack.c.bf16 %v2488, %v2487
        %v2620 = vpack.c.bf16 %v2486, %v2485
        %v2621 = vpack.c.bf16 %v2484, %v2483
        %v2622 = vpack.c.bf16 %v2482, %v2481
        %v2623 = vpack.c.bf16 %v2512, %v2511
        %v2624 = vpack.c.bf16 %v2510, %v2509
        %v2625 = vpack.c.bf16 %v2508, %v2507
        %v2626 = vpack.c.bf16 %v2506, %v2505
        %v2627 = vpack.c.bf16 %v2413, %v2409
        %v2628 = vpack.c.bf16 %v2414, %v2410
        %v2629 = vpack.c.bf16 %v2415, %v2411
        %v2630 = vpack.c.bf16 %v2416, %v2412
        %v2631 = vpack.c.bf16 %v2534, %v2533
        %v2632 = vpack.c.bf16 %v2532, %v2531
        %v2633 = vpack.c.bf16 %v2530, %v2529
        %v2634 = vpack.c.bf16 %v2536, %v2535
        %v2635 = vpack.c.bf16 %v2558, %v2557
        %v2636 = vpack.c.bf16 %v2556, %v2555
        %v2637 = vpack.c.bf16 %v2554, %v2553
        %v2638 = vpack.c.bf16 %v2560, %v2559
        %v2639 = vpack.c.bf16 %v2582, %v2581
        %v2640 = vpack.c.bf16 %v2580, %v2579
        %v2641 = vpack.c.bf16 %v2578, %v2577
        %v2642 = vpack.c.bf16 %v2584, %v2583
        %v2643 = vpack.c.bf16 %v2606, %v2605
        %v2644 = vpack.c.bf16 %v2604, %v2603
        %v2645 = vpack.c.bf16 %v2602, %v2601
        %v2646 = vpack.c.bf16 %v2608, %v2607
        %v2647 = vld [vmem:[#allocation16] sm:$0xff]
        %v2648 = vld [vmem:[#allocation16 + $0x8] sm:$0xff]
        %2650 = vset.pattern.permute.xlu0 0
        %2651 = vperm.xlu0 %2650, %v2647
        %v2652 = vpop.permute.xlu0 %2651
        %2655 = vset.pattern.permute.xlu0 0
        %2656 = vperm.xlu0 %2655, %v2648
        %v2657 = vpop.permute.xlu0 %2656
        %v2661 = vunpack.c.l.b16 %v2609
        %v2662 = vunpack.c.h.b16 %v2609
        %v2663 = vunpack.c.l.b16 %v2610
        %v2664 = vunpack.c.h.b16 %v2610
        %v2665 = vpack.c.b16 %v2663, %v2661
        %v2666 = vpack.c.b16 %v2664, %v2662
        %v2669 = vsel %vm2283, %v2666, 0
        %2671 = vmatprep.subr.bf16.mxu0 %v2612
        %2672 = vmatpush1.bf16.msra.mxu0 %v2611
        %2673 = vmatprep.subr.bf16.mxu0 %v2616
        %2674 = vmatpush1.bf16.msra.mxu0 %v2615
        %2675 = vmatprep.subr.bf16.mxu0 %v2620
        %2676 = vmatpush1.bf16.msra.mxu0 %v2619
        %2677 = vmatprep.subr.bf16.mxu0 %v2624
        %2678 = vmatpush1.bf16.msra.mxu0 %v2623
        %2679 = vmatprep.subr.bf16.mxu0 %v2628
        %2680 = vmatpush1.bf16.msra.mxu0 %v2627
        %2681 = vmatprep.subr.bf16.mxu0 %v2632
        %2682 = vmatpush1.bf16.msra.mxu0 %v2631
        %2683 = vmatprep.subr.bf16.mxu0 %v2636
        %2684 = vmatpush1.bf16.msra.mxu0 %v2635
        %2685 = vmatprep.subr.bf16.mxu0 %v2640
        %2686 = vmatpush1.bf16.msra.mxu0 %v2639
        %2687 = vmatprep.subr.bf16.mxu0 %v2644
        %2688 = vmatpush1.bf16.msra.mxu0 %v2643
        %2689 = vmatprep.subr.bf16.mxu0 0
        %2690 = vmatpush1.bf16.msra.mxu0 0
        %2691 = vmatprep.subr.bf16.mxu0 0
        %2692 = vmatpush1.bf16.msra.mxu0 0
        %2693 = vmatprep.subr.bf16.mxu0 0
        %2694 = vmatpush1.bf16.msra.mxu0 0
        %2695 = vmatprep.subr.bf16.mxu0 0
        %2696 = vmatpush1.bf16.msra.mxu0 0
        %2697 = vmatprep.subr.bf16.mxu0 0
        %2698 = vmatpush1.bf16.msra.mxu0 0
        %2699 = vmatprep.subr.bf16.mxu0 0
        %2700 = vmatpush1.bf16.msra.mxu0 0
        %2701 = vmatprep.subr.bf16.mxu0 0
        %2702 = vmatpush1.bf16.msra.mxu0 0
        %2703 = vmatprep.mubr.bf16.mxu0 %v2669
        %2704 = vmatmul.mubr.bf16.gmra.mrb[0].mxu0 %v2665
        %v2705 = vpop.f32.mrb[0].mxu0
        %v2706 = vadd.f32 %v2652, %v2705
        %v2707 = vpop.f32.mrb[0].mxu0
        %v2708 = vadd.f32 %v2652, %v2707
        %v2709 = vpop.f32.mrb[0].mxu0
        %v2710 = vadd.f32 %v2657, %v2709
        %v2711 = vpop.f32.mrb[0].mxu0
        %v2712 = vadd.f32 %v2657, %v2711
        %2713 = vdwg.mxu0
        %2714 = vmatprep.subr.bf16.mxu0 %v2614
        %2715 = vmatpush1.bf16.msra.mxu0 %v2613
        %2716 = vmatprep.subr.bf16.mxu0 %v2618
        %2717 = vmatpush1.bf16.msra.mxu0 %v2617
        %2718 = vmatprep.subr.bf16.mxu0 %v2622
        %2719 = vmatpush1.bf16.msra.mxu0 %v2621
        %2720 = vmatprep.subr.bf16.mxu0 %v2626
        %2721 = vmatpush1.bf16.msra.mxu0 %v2625
        %2722 = vmatprep.subr.bf16.mxu0 %v2630
        %2723 = vmatpush1.bf16.msra.mxu0 %v2629
        %2724 = vmatprep.subr.bf16.mxu0 %v2634
        %2725 = vmatpush1.bf16.msra.mxu0 %v2633
        %2726 = vmatprep.subr.bf16.mxu0 %v2638
        %2727 = vmatpush1.bf16.msra.mxu0 %v2637
        %2728 = vmatprep.subr.bf16.mxu0 %v2642
        %2729 = vmatpush1.bf16.msra.mxu0 %v2641
        %2730 = vmatprep.subr.bf16.mxu0 %v2646
        %2731 = vmatpush1.bf16.msra.mxu0 %v2645
        %2732 = vmatprep.subr.bf16.mxu0 0
        %2733 = vmatpush1.bf16.msra.mxu0 0
        %2734 = vmatprep.subr.bf16.mxu0 0
        %2735 = vmatpush1.bf16.msra.mxu0 0
        %2736 = vmatprep.subr.bf16.mxu0 0
        %2737 = vmatpush1.bf16.msra.mxu0 0
        %2738 = vmatprep.subr.bf16.mxu0 0
        %2739 = vmatpush1.bf16.msra.mxu0 0
        %2740 = vmatprep.subr.bf16.mxu0 0
        %2741 = vmatpush1.bf16.msra.mxu0 0
        %2742 = vmatprep.subr.bf16.mxu0 0
        %2743 = vmatpush1.bf16.msra.mxu0 0
        %2744 = vmatprep.subr.bf16.mxu0 0
        %2745 = vmatpush1.bf16.msra.mxu0 0
        %2746 = vmatprep.mubr.bf16.mxu0 %v2669
        %2747 = vmatmul.mubr.bf16.gmra.mrb[0].mxu0 %v2665
        %v2748 = vpop.f32.mrb[0].mxu0
        %v2749 = vadd.f32 %v2652, %v2748
        %v2750 = vpop.f32.mrb[0].mxu0
        %v2751 = vadd.f32 %v2652, %v2750
        %v2752 = vpop.f32.mrb[0].mxu0
        %v2753 = vadd.f32 %v2657, %v2752
        %v2754 = vpop.f32.mrb[0].mxu0
        %v2755 = vadd.f32 %v2657, %v2754
        %2756 = vdwg.mxu0
        %vm2757 = vcmp.ge.f32.partialorder %v2706, 0.0
        %vm2758 = vcmp.ge.f32.partialorder %v2708, 0.0
        %vm2759 = vcmp.ge.f32.partialorder %v2749, 0.0
        %vm2760 = vcmp.ge.f32.partialorder %v2751, 0.0
        %vm2761 = vcmp.ge.f32.partialorder %v2710, 0.0
        %vm2762 = vcmp.ge.f32.partialorder %v2712, 0.0
        %vm2763 = vcmp.ge.f32.partialorder %v2753, 0.0
        %vm2764 = vcmp.ge.f32.partialorder %v2755, 0.0
        %v2765 = vld [vmem:[#allocation18] sm:$0xff]
        %v2766 = vld [vmem:[#allocation18 + $0x8] sm:$0xff]
        %2768 = vset.pattern.permute.xlu0 0
        %2769 = vperm.xlu0 %2768, %v2765
        %v2770 = vpop.permute.xlu0 %2769
        %2773 = vset.pattern.permute.xlu0 0
        %2774 = vperm.xlu0 %2773, %v2766
        %v2775 = vpop.permute.xlu0 %2774
        %v2777 = vmul.f32 %v2770, %v2706
        %v2778 = vmul.f32 %v2770, %v2708
        %v2779 = vmul.f32 %v2770, %v2749
        %v2780 = vmul.f32 %v2770, %v2751
        %v2781 = vmul.f32 %v2775, %v2710
        %v2782 = vmul.f32 %v2775, %v2712
        %v2783 = vmul.f32 %v2775, %v2753
        %v2784 = vmul.f32 %v2775, %v2755
        %v2785 = vsel %vm2757, %v2706, %v2777
        %v2786 = vsel %vm2758, %v2708, %v2778
        %v2787 = vsel %vm2759, %v2749, %v2779
        %v2788 = vsel %vm2760, %v2751, %v2780
        %v2789 = vsel %vm2761, %v2710, %v2781
        %v2790 = vsel %vm2762, %v2712, %v2782
        %v2791 = vsel %vm2763, %v2753, %v2783
        %v2792 = vsel %vm2764, %v2755, %v2784
        %v2793 = vmul.f32 %v1806, %v2785
        %v2794 = vmul.f32 %v1810, %v2786
        %v2795 = vmul.f32 %v1814, %v2787
        %v2796 = vmul.f32 %v1818, %v2788
        %v2797 = vmul.f32 %v1806, %v2789
        %v2798 = vmul.f32 %v1810, %v2790
        %v2799 = vmul.f32 %v1814, %v2791
        %v2800 = vmul.f32 %v1818, %v2792
        %2801 = vrot.lane.b32.xlu0 %v2793, 21
        %v2802 = vpop.permute.xlu0 %2801
        %2803 = vrot.lane.b32.xlu0 %v2797, 21
        %v2804 = vpop.permute.xlu0 %2803
        %2805 = vrot.lane.b32.xlu0 %v2794, 21
        %v2806 = vpop.permute.xlu0 %2805
        %2807 = vrot.lane.b32.xlu0 %v2798, 21
        %v2808 = vpop.permute.xlu0 %2807
        %2809 = vrot.lane.b32.xlu0 %v2795, 21
        %v2810 = vpop.permute.xlu0 %2809
        %2811 = vrot.lane.b32.xlu0 %v2799, 21
        %v2812 = vpop.permute.xlu0 %2811
        %2813 = vrot.lane.b32.xlu0 %v2796, 21
        %v2814 = vpop.permute.xlu0 %2813
        %2815 = vrot.lane.b32.xlu0 %v2800, 21
        %v2816 = vpop.permute.xlu0 %2815
        %v2817 = vsel %vm1148, %v2810, %v2814
        %v2818 = vsel %vm1148, %v2812, %v2816
        %v2819 = vsel %vm1148, %v2806, %v2810
        %v2820 = vsel %vm1148, %v2808, %v2812
        %v2821 = vsel %vm1148, %v2802, %v2806
        %v2822 = vsel %vm1148, %v2804, %v2808
        %v2823 = vsel %vm1148, %v2814, %v2802
        %v2824 = vsel %vm1148, %v2816, %v2804
        %2825 = vrot.lane.b32.xlu0 %v2793, 20
        %v2826 = vpop.permute.xlu0 %2825
        %2827 = vrot.lane.b32.xlu0 %v2797, 20
        %v2828 = vpop.permute.xlu0 %2827
        %2829 = vrot.lane.b32.xlu0 %v2794, 20
        %v2830 = vpop.permute.xlu0 %2829
        %2831 = vrot.lane.b32.xlu0 %v2798, 20
        %v2832 = vpop.permute.xlu0 %2831
        %2833 = vrot.lane.b32.xlu0 %v2795, 20
        %v2834 = vpop.permute.xlu0 %2833
        %2835 = vrot.lane.b32.xlu0 %v2799, 20
        %v2836 = vpop.permute.xlu0 %2835
        %2837 = vrot.lane.b32.xlu0 %v2796, 20
        %v2838 = vpop.permute.xlu0 %2837
        %2839 = vrot.lane.b32.xlu0 %v2800, 20
        %v2840 = vpop.permute.xlu0 %2839
        %v2841 = vsel %vm1161, %v2834, %v2838
        %v2842 = vsel %vm1161, %v2836, %v2840
        %v2843 = vsel %vm1161, %v2830, %v2834
        %v2844 = vsel %vm1161, %v2832, %v2836
        %v2845 = vsel %vm1161, %v2826, %v2830
        %v2846 = vsel %vm1161, %v2828, %v2832
        %v2847 = vsel %vm1161, %v2838, %v2826
        %v2848 = vsel %vm1161, %v2840, %v2828
        %2849 = vrot.lane.b32.xlu0 %v2793, 19
        %v2850 = vpop.permute.xlu0 %2849
        %2851 = vrot.lane.b32.xlu0 %v2797, 19
        %v2852 = vpop.permute.xlu0 %2851
        %2853 = vrot.lane.b32.xlu0 %v2794, 19
        %v2854 = vpop.permute.xlu0 %2853
        %2855 = vrot.lane.b32.xlu0 %v2798, 19
        %v2856 = vpop.permute.xlu0 %2855
        %2857 = vrot.lane.b32.xlu0 %v2795, 19
        %v2858 = vpop.permute.xlu0 %2857
        %2859 = vrot.lane.b32.xlu0 %v2799, 19
        %v2860 = vpop.permute.xlu0 %2859
        %2861 = vrot.lane.b32.xlu0 %v2796, 19
        %v2862 = vpop.permute.xlu0 %2861
        %2863 = vrot.lane.b32.xlu0 %v2800, 19
        %v2864 = vpop.permute.xlu0 %2863
        %v2865 = vsel %vm1174, %v2858, %v2862
        %v2866 = vsel %vm1174, %v2860, %v2864
        %v2867 = vsel %vm1174, %v2854, %v2858
        %v2868 = vsel %vm1174, %v2856, %v2860
        %v2869 = vsel %vm1174, %v2850, %v2854
        %v2870 = vsel %vm1174, %v2852, %v2856
        %v2871 = vsel %vm1174, %v2862, %v2850
        %v2872 = vsel %vm1174, %v2864, %v2852
        %2873 = vrot.lane.b32.xlu0 %v2793, 1
        %v2874 = vpop.permute.xlu0 %2873
        %2875 = vrot.lane.b32.xlu0 %v2797, 1
        %v2876 = vpop.permute.xlu0 %2875
        %2877 = vrot.lane.b32.xlu0 %v2794, 1
        %v2878 = vpop.permute.xlu0 %2877
        %2879 = vrot.lane.b32.xlu0 %v2798, 1
        %v2880 = vpop.permute.xlu0 %2879
        %2881 = vrot.lane.b32.xlu0 %v2795, 1
        %v2882 = vpop.permute.xlu0 %2881
        %2883 = vrot.lane.b32.xlu0 %v2799, 1
        %v2884 = vpop.permute.xlu0 %2883
        %2885 = vrot.lane.b32.xlu0 %v2796, 1
        %v2886 = vpop.permute.xlu0 %2885
        %2887 = vrot.lane.b32.xlu0 %v2800, 1
        %v2888 = vpop.permute.xlu0 %2887
        %v2889 = vsel %vm1213, %v2882, %v2886
        %v2890 = vsel %vm1213, %v2884, %v2888
        %v2891 = vsel %vm1213, %v2878, %v2882
        %v2892 = vsel %vm1213, %v2880, %v2884
        %v2893 = vsel %vm1213, %v2874, %v2878
        %v2894 = vsel %vm1213, %v2876, %v2880
        %v2895 = vsel %vm1213, %v2886, %v2874
        %v2896 = vsel %vm1213, %v2888, %v2876
        %2897 = vrot.lane.b32.xlu0 %v2793, 127
        %v2898 = vpop.permute.xlu0 %2897
        %2899 = vrot.lane.b32.xlu0 %v2797, 127
        %v2900 = vpop.permute.xlu0 %2899
        %2901 = vrot.lane.b32.xlu0 %v2794, 127
        %v2902 = vpop.permute.xlu0 %2901
        %2903 = vrot.lane.b32.xlu0 %v2798, 127
        %v2904 = vpop.permute.xlu0 %2903
        %2905 = vrot.lane.b32.xlu0 %v2795, 127
        %v2906 = vpop.permute.xlu0 %2905
        %2907 = vrot.lane.b32.xlu0 %v2799, 127
        %v2908 = vpop.permute.xlu0 %2907
        %2909 = vrot.lane.b32.xlu0 %v2796, 127
        %v2910 = vpop.permute.xlu0 %2909
        %2911 = vrot.lane.b32.xlu0 %v2800, 127
        %v2912 = vpop.permute.xlu0 %2911
        %v2913 = vsel %vm1226, %v2906, %v2910
        %v2914 = vsel %vm1226, %v2908, %v2912
        %v2915 = vsel %vm1226, %v2902, %v2906
        %v2916 = vsel %vm1226, %v2904, %v2908
        %v2917 = vsel %vm1226, %v2898, %v2902
        %v2918 = vsel %vm1226, %v2900, %v2904
        %v2919 = vsel %vm1226, %v2910, %v2898
        %v2920 = vsel %vm1226, %v2912, %v2900
        %2921 = vrot.lane.b32.xlu0 %v2793, 109
        %v2922 = vpop.permute.xlu0 %2921
        %2923 = vrot.lane.b32.xlu0 %v2797, 109
        %v2924 = vpop.permute.xlu0 %2923
        %2925 = vrot.lane.b32.xlu0 %v2794, 109
        %v2926 = vpop.permute.xlu0 %2925
        %2927 = vrot.lane.b32.xlu0 %v2798, 109
        %v2928 = vpop.permute.xlu0 %2927
        %2929 = vrot.lane.b32.xlu0 %v2795, 109
        %v2930 = vpop.permute.xlu0 %2929
        %2931 = vrot.lane.b32.xlu0 %v2799, 109
        %v2932 = vpop.permute.xlu0 %2931
        %2933 = vrot.lane.b32.xlu0 %v2796, 109
        %v2934 = vpop.permute.xlu0 %2933
        %2935 = vrot.lane.b32.xlu0 %v2800, 109
        %v2936 = vpop.permute.xlu0 %2935
        %v2937 = vsel %vm1265, %v2930, %v2934
        %v2938 = vsel %vm1265, %v2932, %v2936
        %v2939 = vsel %vm1265, %v2926, %v2930
        %v2940 = vsel %vm1265, %v2928, %v2932
        %v2941 = vsel %vm1265, %v2922, %v2926
        %v2942 = vsel %vm1265, %v2924, %v2928
        %v2943 = vsel %vm1265, %v2934, %v2922
        %v2944 = vsel %vm1265, %v2936, %v2924
        %2945 = vrot.lane.b32.xlu0 %v2793, 108
        %v2946 = vpop.permute.xlu0 %2945
        %2947 = vrot.lane.b32.xlu0 %v2797, 108
        %v2948 = vpop.permute.xlu0 %2947
        %2949 = vrot.lane.b32.xlu0 %v2794, 108
        %v2950 = vpop.permute.xlu0 %2949
        %2951 = vrot.lane.b32.xlu0 %v2798, 108
        %v2952 = vpop.permute.xlu0 %2951
        %2953 = vrot.lane.b32.xlu0 %v2795, 108
        %v2954 = vpop.permute.xlu0 %2953
        %2955 = vrot.lane.b32.xlu0 %v2799, 108
        %v2956 = vpop.permute.xlu0 %2955
        %2957 = vrot.lane.b32.xlu0 %v2796, 108
        %v2958 = vpop.permute.xlu0 %2957
        %2959 = vrot.lane.b32.xlu0 %v2800, 108
        %v2960 = vpop.permute.xlu0 %2959
        %v2961 = vsel %vm1278, %v2954, %v2958
        %v2962 = vsel %vm1278, %v2956, %v2960
        %v2963 = vsel %vm1278, %v2950, %v2954
        %v2964 = vsel %vm1278, %v2952, %v2956
        %v2965 = vsel %vm1278, %v2946, %v2950
        %v2966 = vsel %vm1278, %v2948, %v2952
        %v2967 = vsel %vm1278, %v2958, %v2946
        %v2968 = vsel %vm1278, %v2960, %v2948
        %2969 = vrot.lane.b32.xlu0 %v2793, 107
        %v2970 = vpop.permute.xlu0 %2969
        %2971 = vrot.lane.b32.xlu0 %v2797, 107
        %v2972 = vpop.permute.xlu0 %2971
        %2973 = vrot.lane.b32.xlu0 %v2794, 107
        %v2974 = vpop.permute.xlu0 %2973
        %2975 = vrot.lane.b32.xlu0 %v2798, 107
        %v2976 = vpop.permute.xlu0 %2975
        %2977 = vrot.lane.b32.xlu0 %v2795, 107
        %v2978 = vpop.permute.xlu0 %2977
        %2979 = vrot.lane.b32.xlu0 %v2799, 107
        %v2980 = vpop.permute.xlu0 %2979
        %2981 = vrot.lane.b32.xlu0 %v2796, 107
        %v2982 = vpop.permute.xlu0 %2981
        %2983 = vrot.lane.b32.xlu0 %v2800, 107
        %v2984 = vpop.permute.xlu0 %2983
        %v2985 = vsel %vm1291, %v2978, %v2982
        %v2986 = vsel %vm1291, %v2980, %v2984
        %v2987 = vsel %vm1291, %v2974, %v2978
        %v2988 = vsel %vm1291, %v2976, %v2980
        %v2989 = vsel %vm1291, %v2970, %v2974
        %v2990 = vsel %vm1291, %v2972, %v2976
        %v2991 = vsel %vm1291, %v2982, %v2970
        %v2992 = vsel %vm1291, %v2984, %v2972
        %v2993 = vld [vmem:[%s14] sm:$0xff]
        %v2994 = vld [vmem:[%s14 + $0x8] sm:$0xff]
        %v2995 = vpack.c.bf16 %v2824, %v2823
        %v2996 = vpack.c.bf16 %v2822, %v2821
        %v2997 = vpack.c.bf16 %v2820, %v2819
        %v2998 = vpack.c.bf16 %v2818, %v2817
        %v2999 = vpack.c.bf16 %v2848, %v2847
        %v3000 = vpack.c.bf16 %v2846, %v2845
        %v3001 = vpack.c.bf16 %v2844, %v2843
        %v3002 = vpack.c.bf16 %v2842, %v2841
        %v3003 = vpack.c.bf16 %v2872, %v2871
        %v3004 = vpack.c.bf16 %v2870, %v2869
        %v3005 = vpack.c.bf16 %v2868, %v2867
        %v3006 = vpack.c.bf16 %v2866, %v2865
        %v3007 = vpack.c.bf16 %v2896, %v2895
        %v3008 = vpack.c.bf16 %v2894, %v2893
        %v3009 = vpack.c.bf16 %v2892, %v2891
        %v3010 = vpack.c.bf16 %v2890, %v2889
        %v3011 = vpack.c.bf16 %v2797, %v2793
        %v3012 = vpack.c.bf16 %v2798, %v2794
        %v3013 = vpack.c.bf16 %v2799, %v2795
        %v3014 = vpack.c.bf16 %v2800, %v2796
        %v3015 = vpack.c.bf16 %v2918, %v2917
        %v3016 = vpack.c.bf16 %v2916, %v2915
        %v3017 = vpack.c.bf16 %v2914, %v2913
        %v3018 = vpack.c.bf16 %v2920, %v2919
        %v3019 = vpack.c.bf16 %v2942, %v2941
        %v3020 = vpack.c.bf16 %v2940, %v2939
        %v3021 = vpack.c.bf16 %v2938, %v2937
        %v3022 = vpack.c.bf16 %v2944, %v2943
        %v3023 = vpack.c.bf16 %v2966, %v2965
        %v3024 = vpack.c.bf16 %v2964, %v2963
        %v3025 = vpack.c.bf16 %v2962, %v2961
        %v3026 = vpack.c.bf16 %v2968, %v2967
        %v3027 = vpack.c.bf16 %v2990, %v2989
        %v3028 = vpack.c.bf16 %v2988, %v2987
        %v3029 = vpack.c.bf16 %v2986, %v2985
        %v3030 = vpack.c.bf16 %v2992, %v2991
        %v3031 = vld [vmem:[#allocation19] sm:$0xff]
        %v3032 = vld [vmem:[#allocation19 + $0x8] sm:$0xff]
        %3034 = vset.pattern.permute.xlu0 0
        %3035 = vperm.xlu0 %3034, %v3031
        %v3036 = vpop.permute.xlu0 %3035
        %3039 = vset.pattern.permute.xlu0 0
        %3040 = vperm.xlu0 %3039, %v3032
        %v3041 = vpop.permute.xlu0 %3040
        %v3045 = vunpack.c.l.b16 %v2993
        %v3046 = vunpack.c.h.b16 %v2993
        %v3047 = vunpack.c.l.b16 %v2994
        %v3048 = vunpack.c.h.b16 %v2994
        %v3049 = vpack.c.b16 %v3047, %v3045
        %v3050 = vpack.c.b16 %v3048, %v3046
        %v3053 = vsel %vm2283, %v3050, 0
        %3055 = vmatprep.subr.bf16.mxu0 %v2996
        %3056 = vmatpush1.bf16.msra.mxu0 %v2995
        %3057 = vmatprep.subr.bf16.mxu0 %v3000
        %3058 = vmatpush1.bf16.msra.mxu0 %v2999
        %3059 = vmatprep.subr.bf16.mxu0 %v3004
        %3060 = vmatpush1.bf16.msra.mxu0 %v3003
        %3061 = vmatprep.subr.bf16.mxu0 %v3008
        %3062 = vmatpush1.bf16.msra.mxu0 %v3007
        %3063 = vmatprep.subr.bf16.mxu0 %v3012
        %3064 = vmatpush1.bf16.msra.mxu0 %v3011
        %3065 = vmatprep.subr.bf16.mxu0 %v3016
        %3066 = vmatpush1.bf16.msra.mxu0 %v3015
        %3067 = vmatprep.subr.bf16.mxu0 %v3020
        %3068 = vmatpush1.bf16.msra.mxu0 %v3019
        %3069 = vmatprep.subr.bf16.mxu0 %v3024
        %3070 = vmatpush1.bf16.msra.mxu0 %v3023
        %3071 = vmatprep.subr.bf16.mxu0 %v3028
        %3072 = vmatpush1.bf16.msra.mxu0 %v3027
        %3073 = vmatprep.subr.bf16.mxu0 0
        %3074 = vmatpush1.bf16.msra.mxu0 0
        %3075 = vmatprep.subr.bf16.mxu0 0
        %3076 = vmatpush1.bf16.msra.mxu0 0
        %3077 = vmatprep.subr.bf16.mxu0 0
        %3078 = vmatpush1.bf16.msra.mxu0 0
        %3079 = vmatprep.subr.bf16.mxu0 0
        %3080 = vmatpush1.bf16.msra.mxu0 0
        %3081 = vmatprep.subr.bf16.mxu0 0
        %3082 = vmatpush1.bf16.msra.mxu0 0
        %3083 = vmatprep.subr.bf16.mxu0 0
        %3084 = vmatpush1.bf16.msra.mxu0 0
        %3085 = vmatprep.subr.bf16.mxu0 0
        %3086 = vmatpush1.bf16.msra.mxu0 0
        %3087 = vmatprep.mubr.bf16.mxu0 %v3053
        %3088 = vmatmul.mubr.bf16.gmra.mrb[0].mxu0 %v3049
        %v3089 = vpop.f32.mrb[0].mxu0
        %v3090 = vadd.f32 %v3036, %v3089
        %v3091 = vpop.f32.mrb[0].mxu0
        %v3092 = vadd.f32 %v3036, %v3091
        %v3093 = vpop.f32.mrb[0].mxu0
        %v3094 = vadd.f32 %v3041, %v3093
        %v3095 = vpop.f32.mrb[0].mxu0
        %v3096 = vadd.f32 %v3041, %v3095
        %3097 = vdwg.mxu0
        %3098 = vmatprep.subr.bf16.mxu0 %v2998
        %3099 = vmatpush1.bf16.msra.mxu0 %v2997
        %3100 = vmatprep.subr.bf16.mxu0 %v3002
        %3101 = vmatpush1.bf16.msra.mxu0 %v3001
        %3102 = vmatprep.subr.bf16.mxu0 %v3006
        %3103 = vmatpush1.bf16.msra.mxu0 %v3005
        %3104 = vmatprep.subr.bf16.mxu0 %v3010
        %3105 = vmatpush1.bf16.msra.mxu0 %v3009
        %3106 = vmatprep.subr.bf16.mxu0 %v3014
        %3107 = vmatpush1.bf16.msra.mxu0 %v3013
        %3108 = vmatprep.subr.bf16.mxu0 %v3018
        %3109 = vmatpush1.bf16.msra.mxu0 %v3017
        %3110 = vmatprep.subr.bf16.mxu0 %v3022
        %3111 = vmatpush1.bf16.msra.mxu0 %v3021
        %3112 = vmatprep.subr.bf16.mxu0 %v3026
        %3113 = vmatpush1.bf16.msra.mxu0 %v3025
        %3114 = vmatprep.subr.bf16.mxu0 %v3030
        %3115 = vmatpush1.bf16.msra.mxu0 %v3029
        %3116 = vmatprep.subr.bf16.mxu0 0
        %3117 = vmatpush1.bf16.msra.mxu0 0
        %3118 = vmatprep.subr.bf16.mxu0 0
        %3119 = vmatpush1.bf16.msra.mxu0 0
        %3120 = vmatprep.subr.bf16.mxu0 0
        %3121 = vmatpush1.bf16.msra.mxu0 0
        %3122 = vmatprep.subr.bf16.mxu0 0
        %3123 = vmatpush1.bf16.msra.mxu0 0
        %3124 = vmatprep.subr.bf16.mxu0 0
        %3125 = vmatpush1.bf16.msra.mxu0 0
        %3126 = vmatprep.subr.bf16.mxu0 0
        %3127 = vmatpush1.bf16.msra.mxu0 0
        %3128 = vmatprep.subr.bf16.mxu0 0
        %3129 = vmatpush1.bf16.msra.mxu0 0
        %3130 = vmatprep.mubr.bf16.mxu0 %v3053
        %3131 = vmatmul.mubr.bf16.gmra.mrb[0].mxu0 %v3049
        %v3132 = vpop.f32.mrb[0].mxu0
        %v3133 = vadd.f32 %v3036, %v3132
        %v3134 = vpop.f32.mrb[0].mxu0
        %v3135 = vadd.f32 %v3036, %v3134
        %v3136 = vpop.f32.mrb[0].mxu0
        %v3137 = vadd.f32 %v3041, %v3136
        %v3138 = vpop.f32.mrb[0].mxu0
        %v3139 = vadd.f32 %v3041, %v3138
        %3140 = vdwg.mxu0
        %vm3141 = vcmp.ge.f32.partialorder %v3090, 0.0
        %vm3142 = vcmp.ge.f32.partialorder %v3092, 0.0
        %vm3143 = vcmp.ge.f32.partialorder %v3133, 0.0
        %vm3144 = vcmp.ge.f32.partialorder %v3135, 0.0
        %vm3145 = vcmp.ge.f32.partialorder %v3094, 0.0
        %vm3146 = vcmp.ge.f32.partialorder %v3096, 0.0
        %vm3147 = vcmp.ge.f32.partialorder %v3137, 0.0
        %vm3148 = vcmp.ge.f32.partialorder %v3139, 0.0
        %v3149 = vld [vmem:[#allocation21] sm:$0xff]
        %v3150 = vld [vmem:[#allocation21 + $0x8] sm:$0xff]
        %3152 = vset.pattern.permute.xlu0 0
        %3153 = vperm.xlu0 %3152, %v3149
        %v3154 = vpop.permute.xlu0 %3153
        %3157 = vset.pattern.permute.xlu0 0
        %3158 = vperm.xlu0 %3157, %v3150
        %v3159 = vpop.permute.xlu0 %3158
        %v3161 = vmul.f32 %v3154, %v3090
        %v3162 = vmul.f32 %v3154, %v3092
        %v3163 = vmul.f32 %v3154, %v3133
        %v3164 = vmul.f32 %v3154, %v3135
        %v3165 = vmul.f32 %v3159, %v3094
        %v3166 = vmul.f32 %v3159, %v3096
        %v3167 = vmul.f32 %v3159, %v3137
        %v3168 = vmul.f32 %v3159, %v3139
        %v3169 = vsel %vm3141, %v3090, %v3161
        %v3170 = vsel %vm3142, %v3092, %v3162
        %v3171 = vsel %vm3143, %v3133, %v3163
        %v3172 = vsel %vm3144, %v3135, %v3164
        %v3173 = vsel %vm3145, %v3094, %v3165
        %v3174 = vsel %vm3146, %v3096, %v3166
        %v3175 = vsel %vm3147, %v3137, %v3167
        %v3176 = vsel %vm3148, %v3139, %v3168
        %v3177 = vmul.f32 %v1806, %v3169
        %v3178 = vmul.f32 %v1810, %v3170
        %v3179 = vmul.f32 %v1814, %v3171
        %v3180 = vmul.f32 %v1818, %v3172
        %v3181 = vmul.f32 %v1806, %v3173
        %v3182 = vmul.f32 %v1810, %v3174
        %v3183 = vmul.f32 %v1814, %v3175
        %v3184 = vmul.f32 %v1818, %v3176
        %3185 = vrot.lane.b32.xlu0 %v3177, 21
        %v3186 = vpop.permute.xlu0 %3185
        %3187 = vrot.lane.b32.xlu0 %v3181, 21
        %v3188 = vpop.permute.xlu0 %3187
        %3189 = vrot.lane.b32.xlu0 %v3178, 21
        %v3190 = vpop.permute.xlu0 %3189
        %3191 = vrot.lane.b32.xlu0 %v3182, 21
        %v3192 = vpop.permute.xlu0 %3191
        %3193 = vrot.lane.b32.xlu0 %v3179, 21
        %v3194 = vpop.permute.xlu0 %3193
        %3195 = vrot.lane.b32.xlu0 %v3183, 21
        %v3196 = vpop.permute.xlu0 %3195
        %3197 = vrot.lane.b32.xlu0 %v3180, 21
        %v3198 = vpop.permute.xlu0 %3197
        %3199 = vrot.lane.b32.xlu0 %v3184, 21
        %v3200 = vpop.permute.xlu0 %3199
        %v3201 = vsel %vm1148, %v3194, %v3198
        %v3202 = vsel %vm1148, %v3196, %v3200
        %v3203 = vsel %vm1148, %v3190, %v3194
        %v3204 = vsel %vm1148, %v3192, %v3196
        %v3205 = vsel %vm1148, %v3186, %v3190
        %v3206 = vsel %vm1148, %v3188, %v3192
        %v3207 = vsel %vm1148, %v3198, %v3186
        %v3208 = vsel %vm1148, %v3200, %v3188
        %3209 = vrot.lane.b32.xlu0 %v3177, 20
        %v3210 = vpop.permute.xlu0 %3209
        %3211 = vrot.lane.b32.xlu0 %v3181, 20
        %v3212 = vpop.permute.xlu0 %3211
        %3213 = vrot.lane.b32.xlu0 %v3178, 20
        %v3214 = vpop.permute.xlu0 %3213
        %3215 = vrot.lane.b32.xlu0 %v3182, 20
        %v3216 = vpop.permute.xlu0 %3215
        %3217 = vrot.lane.b32.xlu0 %v3179, 20
        %v3218 = vpop.permute.xlu0 %3217
        %3219 = vrot.lane.b32.xlu0 %v3183, 20
        %v3220 = vpop.permute.xlu0 %3219
        %3221 = vrot.lane.b32.xlu0 %v3180, 20
        %v3222 = vpop.permute.xlu0 %3221
        %3223 = vrot.lane.b32.xlu0 %v3184, 20
        %v3224 = vpop.permute.xlu0 %3223
        %v3225 = vsel %vm1161, %v3218, %v3222
        %v3226 = vsel %vm1161, %v3220, %v3224
        %v3227 = vsel %vm1161, %v3214, %v3218
        %v3228 = vsel %vm1161, %v3216, %v3220
        %v3229 = vsel %vm1161, %v3210, %v3214
        %v3230 = vsel %vm1161, %v3212, %v3216
        %v3231 = vsel %vm1161, %v3222, %v3210
        %v3232 = vsel %vm1161, %v3224, %v3212
        %3233 = vrot.lane.b32.xlu0 %v3177, 19
        %v3234 = vpop.permute.xlu0 %3233
        %3235 = vrot.lane.b32.xlu0 %v3181, 19
        %v3236 = vpop.permute.xlu0 %3235
        %3237 = vrot.lane.b32.xlu0 %v3178, 19
        %v3238 = vpop.permute.xlu0 %3237
        %3239 = vrot.lane.b32.xlu0 %v3182, 19
        %v3240 = vpop.permute.xlu0 %3239
        %3241 = vrot.lane.b32.xlu0 %v3179, 19
        %v3242 = vpop.permute.xlu0 %3241
        %3243 = vrot.lane.b32.xlu0 %v3183, 19
        %v3244 = vpop.permute.xlu0 %3243
        %3245 = vrot.lane.b32.xlu0 %v3180, 19
        %v3246 = vpop.permute.xlu0 %3245
        %3247 = vrot.lane.b32.xlu0 %v3184, 19
        %v3248 = vpop.permute.xlu0 %3247
        %v3249 = vsel %vm1174, %v3242, %v3246
        %v3250 = vsel %vm1174, %v3244, %v3248
        %v3251 = vsel %vm1174, %v3238, %v3242
        %v3252 = vsel %vm1174, %v3240, %v3244
        %v3253 = vsel %vm1174, %v3234, %v3238
        %v3254 = vsel %vm1174, %v3236, %v3240
        %v3255 = vsel %vm1174, %v3246, %v3234
        %v3256 = vsel %vm1174, %v3248, %v3236
        %3257 = vrot.lane.b32.xlu0 %v3177, 1
        %v3258 = vpop.permute.xlu0 %3257
        %3259 = vrot.lane.b32.xlu0 %v3181, 1
        %v3260 = vpop.permute.xlu0 %3259
        %3261 = vrot.lane.b32.xlu0 %v3178, 1
        %v3262 = vpop.permute.xlu0 %3261
        %3263 = vrot.lane.b32.xlu0 %v3182, 1
        %v3264 = vpop.permute.xlu0 %3263
        %3265 = vrot.lane.b32.xlu0 %v3179, 1
        %v3266 = vpop.permute.xlu0 %3265
        %3267 = vrot.lane.b32.xlu0 %v3183, 1
        %v3268 = vpop.permute.xlu0 %3267
        %3269 = vrot.lane.b32.xlu0 %v3180, 1
        %v3270 = vpop.permute.xlu0 %3269
        %3271 = vrot.lane.b32.xlu0 %v3184, 1
        %v3272 = vpop.permute.xlu0 %3271
        %v3273 = vsel %vm1213, %v3266, %v3270
        %v3274 = vsel %vm1213, %v3268, %v3272
        %v3275 = vsel %vm1213, %v3262, %v3266
        %v3276 = vsel %vm1213, %v3264, %v3268
        %v3277 = vsel %vm1213, %v3258, %v3262
        %v3278 = vsel %vm1213, %v3260, %v3264
        %v3279 = vsel %vm1213, %v3270, %v3258
        %v3280 = vsel %vm1213, %v3272, %v3260
        %3281 = vrot.lane.b32.xlu0 %v3177, 127
        %v3282 = vpop.permute.xlu0 %3281
        %3283 = vrot.lane.b32.xlu0 %v3181, 127
        %v3284 = vpop.permute.xlu0 %3283
        %3285 = vrot.lane.b32.xlu0 %v3178, 127
        %v3286 = vpop.permute.xlu0 %3285
        %3287 = vrot.lane.b32.xlu0 %v3182, 127
        %v3288 = vpop.permute.xlu0 %3287
        %3289 = vrot.lane.b32.xlu0 %v3179, 127
        %v3290 = vpop.permute.xlu0 %3289
        %3291 = vrot.lane.b32.xlu0 %v3183, 127
        %v3292 = vpop.permute.xlu0 %3291
        %3293 = vrot.lane.b32.xlu0 %v3180, 127
        %v3294 = vpop.permute.xlu0 %3293
        %3295 = vrot.lane.b32.xlu0 %v3184, 127
        %v3296 = vpop.permute.xlu0 %3295
        %v3297 = vsel %vm1226, %v3290, %v3294
        %v3298 = vsel %vm1226, %v3292, %v3296
        %v3299 = vsel %vm1226, %v3286, %v3290
        %v3300 = vsel %vm1226, %v3288, %v3292
        %v3301 = vsel %vm1226, %v3282, %v3286
        %v3302 = vsel %vm1226, %v3284, %v3288
        %v3303 = vsel %vm1226, %v3294, %v3282
        %v3304 = vsel %vm1226, %v3296, %v3284
        %3305 = vrot.lane.b32.xlu0 %v3177, 109
        %v3306 = vpop.permute.xlu0 %3305
        %3307 = vrot.lane.b32.xlu0 %v3181, 109
        %v3308 = vpop.permute.xlu0 %3307
        %3309 = vrot.lane.b32.xlu0 %v3178, 109
        %v3310 = vpop.permute.xlu0 %3309
        %3311 = vrot.lane.b32.xlu0 %v3182, 109
        %v3312 = vpop.permute.xlu0 %3311
        %3313 = vrot.lane.b32.xlu0 %v3179, 109
        %v3314 = vpop.permute.xlu0 %3313
        %3315 = vrot.lane.b32.xlu0 %v3183, 109
        %v3316 = vpop.permute.xlu0 %3315
        %3317 = vrot.lane.b32.xlu0 %v3180, 109
        %v3318 = vpop.permute.xlu0 %3317
        %3319 = vrot.lane.b32.xlu0 %v3184, 109
        %v3320 = vpop.permute.xlu0 %3319
        %v3321 = vsel %vm1265, %v3314, %v3318
        %v3322 = vsel %vm1265, %v3316, %v3320
        %v3323 = vsel %vm1265, %v3310, %v3314
        %v3324 = vsel %vm1265, %v3312, %v3316
        %v3325 = vsel %vm1265, %v3306, %v3310
        %v3326 = vsel %vm1265, %v3308, %v3312
        %v3327 = vsel %vm1265, %v3318, %v3306
        %v3328 = vsel %vm1265, %v3320, %v3308
        %3329 = vrot.lane.b32.xlu0 %v3177, 108
        %v3330 = vpop.permute.xlu0 %3329
        %3331 = vrot.lane.b32.xlu0 %v3181, 108
        %v3332 = vpop.permute.xlu0 %3331
        %3333 = vrot.lane.b32.xlu0 %v3178, 108
        %v3334 = vpop.permute.xlu0 %3333
        %3335 = vrot.lane.b32.xlu0 %v3182, 108
        %v3336 = vpop.permute.xlu0 %3335
        %3337 = vrot.lane.b32.xlu0 %v3179, 108
        %v3338 = vpop.permute.xlu0 %3337
        %3339 = vrot.lane.b32.xlu0 %v3183, 108
        %v3340 = vpop.permute.xlu0 %3339
        %3341 = vrot.lane.b32.xlu0 %v3180, 108
        %v3342 = vpop.permute.xlu0 %3341
        %3343 = vrot.lane.b32.xlu0 %v3184, 108
        %v3344 = vpop.permute.xlu0 %3343
        %v3345 = vsel %vm1278, %v3338, %v3342
        %v3346 = vsel %vm1278, %v3340, %v3344
        %v3347 = vsel %vm1278, %v3334, %v3338
        %v3348 = vsel %vm1278, %v3336, %v3340
        %v3349 = vsel %vm1278, %v3330, %v3334
        %v3350 = vsel %vm1278, %v3332, %v3336
        %v3351 = vsel %vm1278, %v3342, %v3330
        %v3352 = vsel %vm1278, %v3344, %v3332
        %3353 = vrot.lane.b32.xlu0 %v3177, 107
        %v3354 = vpop.permute.xlu0 %3353
        %3355 = vrot.lane.b32.xlu0 %v3181, 107
        %v3356 = vpop.permute.xlu0 %3355
        %3357 = vrot.lane.b32.xlu0 %v3178, 107
        %v3358 = vpop.permute.xlu0 %3357
        %3359 = vrot.lane.b32.xlu0 %v3182, 107
        %v3360 = vpop.permute.xlu0 %3359
        %3361 = vrot.lane.b32.xlu0 %v3179, 107
        %v3362 = vpop.permute.xlu0 %3361
        %3363 = vrot.lane.b32.xlu0 %v3183, 107
        %v3364 = vpop.permute.xlu0 %3363
        %3365 = vrot.lane.b32.xlu0 %v3180, 107
        %v3366 = vpop.permute.xlu0 %3365
        %3367 = vrot.lane.b32.xlu0 %v3184, 107
        %v3368 = vpop.permute.xlu0 %3367
        %v3369 = vsel %vm1291, %v3362, %v3366
        %v3370 = vsel %vm1291, %v3364, %v3368
        %v3371 = vsel %vm1291, %v3358, %v3362
        %v3372 = vsel %vm1291, %v3360, %v3364
        %v3373 = vsel %vm1291, %v3354, %v3358
        %v3374 = vsel %vm1291, %v3356, %v3360
        %v3375 = vsel %vm1291, %v3366, %v3354
        %v3376 = vsel %vm1291, %v3368, %v3356
        %v3377 = vld [vmem:[%s17] sm:$0xff]
        %v3378 = vld [vmem:[%s17 + $0x8] sm:$0xff]
        %v3379 = vpack.c.bf16 %v3208, %v3207
        %v3380 = vpack.c.bf16 %v3206, %v3205
        %v3381 = vpack.c.bf16 %v3204, %v3203
        %v3382 = vpack.c.bf16 %v3202, %v3201
        %v3383 = vpack.c.bf16 %v3232, %v3231
        %v3384 = vpack.c.bf16 %v3230, %v3229
        %v3385 = vpack.c.bf16 %v3228, %v3227
        %v3386 = vpack.c.bf16 %v3226, %v3225
        %v3387 = vpack.c.bf16 %v3256, %v3255
        %v3388 = vpack.c.bf16 %v3254, %v3253
        %v3389 = vpack.c.bf16 %v3252, %v3251
        %v3390 = vpack.c.bf16 %v3250, %v3249
        %v3391 = vpack.c.bf16 %v3280, %v3279
        %v3392 = vpack.c.bf16 %v3278, %v3277
        %v3393 = vpack.c.bf16 %v3276, %v3275
        %v3394 = vpack.c.bf16 %v3274, %v3273
        %v3395 = vpack.c.bf16 %v3181, %v3177
        %v3396 = vpack.c.bf16 %v3182, %v3178
        %v3397 = vpack.c.bf16 %v3183, %v3179
        %v3398 = vpack.c.bf16 %v3184, %v3180
        %v3399 = vpack.c.bf16 %v3302, %v3301
        %v3400 = vpack.c.bf16 %v3300, %v3299
        %v3401 = vpack.c.bf16 %v3298, %v3297
        %v3402 = vpack.c.bf16 %v3304, %v3303
        %v3403 = vpack.c.bf16 %v3326, %v3325
        %v3404 = vpack.c.bf16 %v3324, %v3323
        %v3405 = vpack.c.bf16 %v3322, %v3321
        %v3406 = vpack.c.bf16 %v3328, %v3327
        %v3407 = vpack.c.bf16 %v3350, %v3349
        %v3408 = vpack.c.bf16 %v3348, %v3347
        %v3409 = vpack.c.bf16 %v3346, %v3345
        %v3410 = vpack.c.bf16 %v3352, %v3351
        %v3411 = vpack.c.bf16 %v3374, %v3373
        %v3412 = vpack.c.bf16 %v3372, %v3371
        %v3413 = vpack.c.bf16 %v3370, %v3369
        %v3414 = vpack.c.bf16 %v3376, %v3375
        %v3415 = vld [vmem:[#allocation22] sm:$0xff]
        %v3416 = vld [vmem:[#allocation22 + $0x8] sm:$0xff]
        %3418 = vset.pattern.permute.xlu0 0
        %3419 = vperm.xlu0 %3418, %v3415
        %v3420 = vpop.permute.xlu0 %3419
        %3423 = vset.pattern.permute.xlu0 0
        %3424 = vperm.xlu0 %3423, %v3416
        %v3425 = vpop.permute.xlu0 %3424
        %v3429 = vunpack.c.l.b16 %v3377
        %v3430 = vunpack.c.h.b16 %v3377
        %v3431 = vunpack.c.l.b16 %v3378
        %v3432 = vunpack.c.h.b16 %v3378
        %v3433 = vpack.c.b16 %v3431, %v3429
        %v3434 = vpack.c.b16 %v3432, %v3430
        %v3437 = vsel %vm2283, %v3434, 0
        %3439 = vmatprep.subr.bf16.mxu0 %v3380
        %3440 = vmatpush1.bf16.msra.mxu0 %v3379
        %3441 = vmatprep.subr.bf16.mxu0 %v3384
        %3442 = vmatpush1.bf16.msra.mxu0 %v3383
        %3443 = vmatprep.subr.bf16.mxu0 %v3388
        %3444 = vmatpush1.bf16.msra.mxu0 %v3387
        %3445 = vmatprep.subr.bf16.mxu0 %v3392
        %3446 = vmatpush1.bf16.msra.mxu0 %v3391
        %3447 = vmatprep.subr.bf16.mxu0 %v3396
        %3448 = vmatpush1.bf16.msra.mxu0 %v3395
        %3449 = vmatprep.subr.bf16.mxu0 %v3400
        %3450 = vmatpush1.bf16.msra.mxu0 %v3399
        %3451 = vmatprep.subr.bf16.mxu0 %v3404
        %3452 = vmatpush1.bf16.msra.mxu0 %v3403
        %3453 = vmatprep.subr.bf16.mxu0 %v3408
        %3454 = vmatpush1.bf16.msra.mxu0 %v3407
        %3455 = vmatprep.subr.bf16.mxu0 %v3412
        %3456 = vmatpush1.bf16.msra.mxu0 %v3411
        %3457 = vmatprep.subr.bf16.mxu0 0
        %3458 = vmatpush1.bf16.msra.mxu0 0
        %3459 = vmatprep.subr.bf16.mxu0 0
        %3460 = vmatpush1.bf16.msra.mxu0 0
        %3461 = vmatprep.subr.bf16.mxu0 0
        %3462 = vmatpush1.bf16.msra.mxu0 0
        %3463 = vmatprep.subr.bf16.mxu0 0
        %3464 = vmatpush1.bf16.msra.mxu0 0
        %3465 = vmatprep.subr.bf16.mxu0 0
        %3466 = vmatpush1.bf16.msra.mxu0 0
        %3467 = vmatprep.subr.bf16.mxu0 0
        %3468 = vmatpush1.bf16.msra.mxu0 0
        %3469 = vmatprep.subr.bf16.mxu0 0
        %3470 = vmatpush1.bf16.msra.mxu0 0
        %3471 = vmatprep.mubr.bf16.mxu0 %v3437
        %3472 = vmatmul.mubr.bf16.gmra.mrb[0].mxu0 %v3433
        %v3473 = vpop.f32.mrb[0].mxu0
        %v3474 = vadd.f32 %v3420, %v3473
        %v3475 = vpop.f32.mrb[0].mxu0
        %v3476 = vadd.f32 %v3420, %v3475
        %v3477 = vpop.f32.mrb[0].mxu0
        %v3478 = vadd.f32 %v3425, %v3477
        %v3479 = vpop.f32.mrb[0].mxu0
        %v3480 = vadd.f32 %v3425, %v3479
        %3481 = vdwg.mxu0
        %3482 = vmatprep.subr.bf16.mxu0 %v3382
        %3483 = vmatpush1.bf16.msra.mxu0 %v3381
        %3484 = vmatprep.subr.bf16.mxu0 %v3386
        %3485 = vmatpush1.bf16.msra.mxu0 %v3385
        %3486 = vmatprep.subr.bf16.mxu0 %v3390
        %3487 = vmatpush1.bf16.msra.mxu0 %v3389
        %3488 = vmatprep.subr.bf16.mxu0 %v3394
        %3489 = vmatpush1.bf16.msra.mxu0 %v3393
        %3490 = vmatprep.subr.bf16.mxu0 %v3398
        %3491 = vmatpush1.bf16.msra.mxu0 %v3397
        %3492 = vmatprep.subr.bf16.mxu0 %v3402
        %3493 = vmatpush1.bf16.msra.mxu0 %v3401
        %3494 = vmatprep.subr.bf16.mxu0 %v3406
        %3495 = vmatpush1.bf16.msra.mxu0 %v3405
        %3496 = vmatprep.subr.bf16.mxu0 %v3410
        %3497 = vmatpush1.bf16.msra.mxu0 %v3409
        %3498 = vmatprep.subr.bf16.mxu0 %v3414
        %3499 = vmatpush1.bf16.msra.mxu0 %v3413
        %3500 = vmatprep.subr.bf16.mxu0 0
        %3501 = vmatpush1.bf16.msra.mxu0 0
        %3502 = vmatprep.subr.bf16.mxu0 0
        %3503 = vmatpush1.bf16.msra.mxu0 0
        %3504 = vmatprep.subr.bf16.mxu0 0
        %3505 = vmatpush1.bf16.msra.mxu0 0
        %3506 = vmatprep.subr.bf16.mxu0 0
        %3507 = vmatpush1.bf16.msra.mxu0 0
        %3508 = vmatprep.subr.bf16.mxu0 0
        %3509 = vmatpush1.bf16.msra.mxu0 0
        %3510 = vmatprep.subr.bf16.mxu0 0
        %3511 = vmatpush1.bf16.msra.mxu0 0
        %3512 = vmatprep.subr.bf16.mxu0 0
        %3513 = vmatpush1.bf16.msra.mxu0 0
        %3514 = vmatprep.mubr.bf16.mxu0 %v3437
        %3515 = vmatmul.mubr.bf16.gmra.mrb[0].mxu0 %v3433
        %v3516 = vpop.f32.mrb[0].mxu0
        %v3517 = vadd.f32 %v3420, %v3516
        %v3518 = vpop.f32.mrb[0].mxu0
        %v3519 = vadd.f32 %v3420, %v3518
        %v3520 = vpop.f32.mrb[0].mxu0
        %v3521 = vadd.f32 %v3425, %v3520
        %v3522 = vpop.f32.mrb[0].mxu0
        %v3523 = vadd.f32 %v3425, %v3522
        %3524 = vdwg.mxu0
        %vm3525 = vcmp.ge.f32.partialorder %v3474, 0.0
        %vm3526 = vcmp.ge.f32.partialorder %v3476, 0.0
        %vm3527 = vcmp.ge.f32.partialorder %v3517, 0.0
        %vm3528 = vcmp.ge.f32.partialorder %v3519, 0.0
        %vm3529 = vcmp.ge.f32.partialorder %v3478, 0.0
        %vm3530 = vcmp.ge.f32.partialorder %v3480, 0.0
        %vm3531 = vcmp.ge.f32.partialorder %v3521, 0.0
        %vm3532 = vcmp.ge.f32.partialorder %v3523, 0.0
        %v3533 = vld [vmem:[#allocation24] sm:$0xff]
        %v3534 = vld [vmem:[#allocation24 + $0x8] sm:$0xff]
        %3536 = vset.pattern.permute.xlu0 0
        %3537 = vperm.xlu0 %3536, %v3533
        %v3538 = vpop.permute.xlu0 %3537
        %3541 = vset.pattern.permute.xlu0 0
        %3542 = vperm.xlu0 %3541, %v3534
        %v3543 = vpop.permute.xlu0 %3542
        %v3545 = vmul.f32 %v3538, %v3474
        %v3546 = vmul.f32 %v3538, %v3476
        %v3547 = vmul.f32 %v3538, %v3517
        %v3548 = vmul.f32 %v3538, %v3519
        %v3549 = vmul.f32 %v3543, %v3478
        %v3550 = vmul.f32 %v3543, %v3480
        %v3551 = vmul.f32 %v3543, %v3521
        %v3552 = vmul.f32 %v3543, %v3523
        %v3553 = vsel %vm3525, %v3474, %v3545
        %v3554 = vsel %vm3526, %v3476, %v3546
        %v3555 = vsel %vm3527, %v3517, %v3547
        %v3556 = vsel %vm3528, %v3519, %v3548
        %v3557 = vsel %vm3529, %v3478, %v3549
        %v3558 = vsel %vm3530, %v3480, %v3550
        %v3559 = vsel %vm3531, %v3521, %v3551
        %v3560 = vsel %vm3532, %v3523, %v3552
        %v3561 = vmul.f32 %v1806, %v3553
        %v3562 = vmul.f32 %v1810, %v3554
        %v3563 = vmul.f32 %v1814, %v3555
        %v3564 = vmul.f32 %v1818, %v3556
        %v3565 = vmul.f32 %v1806, %v3557
        %v3566 = vmul.f32 %v1810, %v3558
        %v3567 = vmul.f32 %v1814, %v3559
        %v3568 = vmul.f32 %v1818, %v3560
        %v3569 = vld [vmem:[#allocation25] sm:$0xf]
        %v3570 = vld [vmem:[#allocation25 + $0x4] sm:$0xf]
        %v3571 = vld [vmem:[#allocation25 + $0x8] sm:$0xf]
        %v3572 = vld [vmem:[#allocation25 + $0xc] sm:$0xf]
        %v3573 = vld [vmem:[#allocation25 + $0x10] sm:$0xf]
        %v3574 = vld [vmem:[#allocation25 + $0x14] sm:$0xf]
        %v3575 = vld [vmem:[#allocation25 + $0x18] sm:$0xf]
        %v3576 = vpack.c.bf16 %v3565, %v3561
        %v3577 = vpack.c.bf16 %v3566, %v3562
        %v3578 = vpack.c.bf16 %v3567, %v3563
        %v3579 = vpack.c.bf16 %v3568, %v3564
        %v3580 = vld [vmem:[#allocation27] sm:$0xff]
        %v3581 = vld [vmem:[#allocation27 + $0x8] sm:$0xff]
        %v3582 = vld [vmem:[#allocation27 + $0x10] sm:$0xff]
        %v3583 = vld [vmem:[#allocation27 + $0x18] sm:$0xff]
        %v3584 = vld [vmem:[#allocation27 + $0x20] sm:$0xff]
        %v3585 = vld [vmem:[#allocation27 + $0x28] sm:$0xff]
        %v3586 = vld [vmem:[#allocation27 + $0x30] sm:$0xff]
        %3588 = vset.pattern.permute.xlu0 0
        %3589 = vperm.xlu0 %3588, %v3580
        %v3590 = vpop.permute.xlu0 %3589
        %3593 = vset.pattern.permute.xlu0 0
        %3594 = vperm.xlu0 %3593, %v3581
        %v3595 = vpop.permute.xlu0 %3594
        %3598 = vset.pattern.permute.xlu0 0
        %3599 = vperm.xlu0 %3598, %v3582
        %v3600 = vpop.permute.xlu0 %3599
        %3603 = vset.pattern.permute.xlu0 0
        %3604 = vperm.xlu0 %3603, %v3583
        %v3605 = vpop.permute.xlu0 %3604
        %3608 = vset.pattern.permute.xlu0 0
        %3609 = vperm.xlu0 %3608, %v3584
        %v3610 = vpop.permute.xlu0 %3609
        %3613 = vset.pattern.permute.xlu0 0
        %3614 = vperm.xlu0 %3613, %v3585
        %v3615 = vpop.permute.xlu0 %3614
        %3618 = vset.pattern.permute.xlu0 0
        %3619 = vperm.xlu0 %3618, %v3586
        %v3620 = vpop.permute.xlu0 %3619
        %v3629 = vunpack.c.l.b16 %v3569
        %v3630 = vunpack.c.l.b16 %v3570
        %v3631 = vunpack.c.l.b16 %v3571
        %v3632 = vunpack.c.l.b16 %v3572
        %v3633 = vunpack.c.l.b16 %v3573
        %v3634 = vunpack.c.l.b16 %v3574
        %v3635 = vunpack.c.l.b16 %v3575
        %v3636 = vpack.c.b16 %v3630, %v3629
        %v3637 = vpack.c.b16 %v3632, %v3631
        %v3638 = vpack.c.b16 %v3634, %v3633
        %v3639 = vpack.c.b16 %v3635, %v3635
        %v3641 = vsel %vm2283, %v3636, 0
        %v3644 = vsel %vm2283, %v3637, 0
        %v3647 = vsel %vm2283, %v3638, 0
        %v3650 = vsel %vm2283, %v3639, 0
        %3652 = vmatprep.subr.bf16.mxu0 %v3577
        %3653 = vmatpush1.bf16.msra.mxu0 %v3576
        %3654 = vmatprep.subr.bf16.mxu0 0
        %3655 = vmatpush1.bf16.msra.mxu0 0
        %3656 = vmatprep.subr.bf16.mxu0 0
        %3657 = vmatpush1.bf16.msra.mxu0 0
        %3658 = vmatprep.subr.bf16.mxu0 0
        %3659 = vmatpush1.bf16.msra.mxu0 0
        %3660 = vmatprep.subr.bf16.mxu0 0
        %3661 = vmatpush1.bf16.msra.mxu0 0
        %3662 = vmatprep.subr.bf16.mxu0 0
        %3663 = vmatpush1.bf16.msra.mxu0 0
        %3664 = vmatprep.subr.bf16.mxu0 0
        %3665 = vmatpush1.bf16.msra.mxu0 0
        %3666 = vmatprep.subr.bf16.mxu0 0
        %3667 = vmatpush1.bf16.msra.mxu0 0
        %3668 = vmatprep.subr.bf16.mxu0 0
        %3669 = vmatpush1.bf16.msra.mxu0 0
        %3670 = vmatprep.subr.bf16.mxu0 0
        %3671 = vmatpush1.bf16.msra.mxu0 0
        %3672 = vmatprep.subr.bf16.mxu0 0
        %3673 = vmatpush1.bf16.msra.mxu0 0
        %3674 = vmatprep.subr.bf16.mxu0 0
        %3675 = vmatpush1.bf16.msra.mxu0 0
        %3676 = vmatprep.subr.bf16.mxu0 0
        %3677 = vmatpush1.bf16.msra.mxu0 0
        %3678 = vmatprep.subr.bf16.mxu0 0
        %3679 = vmatpush1.bf16.msra.mxu0 0
        %3680 = vmatprep.subr.bf16.mxu0 0
        %3681 = vmatpush1.bf16.msra.mxu0 0
        %3682 = vmatprep.subr.bf16.mxu0 0
        %3683 = vmatpush1.bf16.msra.mxu0 0
        %3684 = vmatprep.mubr.bf16.mxu0 0
        %3685 = vmatmul.mubr.bf16.gmra.mrb[0].mxu0 %v3641
        %v3686 = vpop.f32.mrb[0].mxu0
        %v3687 = vadd.f32 %v3590, %v3686
        %v3688 = vpop.f32.mrb[0].mxu0
        %v3689 = vadd.f32 %v3590, %v3688
        %v3690 = vpop.f32.mrb[0].mxu0
        %v3691 = vadd.f32 %v3595, %v3690
        %v3692 = vpop.f32.mrb[0].mxu0
        %v3693 = vadd.f32 %v3595, %v3692
        %3694 = vmatprep.mubr.bf16.mxu0 0
        %3695 = vmatmul.mubr.bf16.gmra.mrb[0].mxu0 %v3644
        %v3696 = vpop.f32.mrb[0].mxu0
        %v3697 = vadd.f32 %v3600, %v3696
        %v3698 = vpop.f32.mrb[0].mxu0
        %v3699 = vadd.f32 %v3600, %v3698
        %v3700 = vpop.f32.mrb[0].mxu0
        %v3701 = vadd.f32 %v3605, %v3700
        %v3702 = vpop.f32.mrb[0].mxu0
        %v3703 = vadd.f32 %v3605, %v3702
        %3704 = vmatprep.mubr.bf16.mxu0 0
        %3705 = vmatmul.mubr.bf16.gmra.mrb[0].mxu0 %v3647
        %v3706 = vpop.f32.mrb[0].mxu0
        %v3707 = vadd.f32 %v3610, %v3706
        %v3708 = vpop.f32.mrb[0].mxu0
        %v3709 = vadd.f32 %v3610, %v3708
        %v3710 = vpop.f32.mrb[0].mxu0
        %v3711 = vadd.f32 %v3615, %v3710
        %v3712 = vpop.f32.mrb[0].mxu0
        %v3713 = vadd.f32 %v3615, %v3712
        %3714 = vmatprep.mubr.bf16.mxu0 0
        %3715 = vmatmul.mubr.bf16.gmra.mrb[0].mxu0 %v3650
        %v3716 = vpop.f32.mrb[0].mxu0
        %v3717 = vadd.f32 %v3620, %v3716
        %v3718 = vpop.f32.mrb[0].mxu0
        %v3719 = vadd.f32 %v3620, %v3718
        %v3720 = vpop.f32.mrb[0].mxu0
        %v3721 = vpop.f32.mrb[0].mxu0
        %3722 = vdwg.mxu0
        %3723 = vmatprep.subr.bf16.mxu0 %v3579
        %3724 = vmatpush1.bf16.msra.mxu0 %v3578
        %3725 = vmatprep.subr.bf16.mxu0 0
        %3726 = vmatpush1.bf16.msra.mxu0 0
        %3727 = vmatprep.subr.bf16.mxu0 0
        %3728 = vmatpush1.bf16.msra.mxu0 0
        %3729 = vmatprep.subr.bf16.mxu0 0
        %3730 = vmatpush1.bf16.msra.mxu0 0
        %3731 = vmatprep.subr.bf16.mxu0 0
        %3732 = vmatpush1.bf16.msra.mxu0 0
        %3733 = vmatprep.subr.bf16.mxu0 0
        %3734 = vmatpush1.bf16.msra.mxu0 0
        %3735 = vmatprep.subr.bf16.mxu0 0
        %3736 = vmatpush1.bf16.msra.mxu0 0
        %3737 = vmatprep.subr.bf16.mxu0 0
        %3738 = vmatpush1.bf16.msra.mxu0 0
        %3739 = vmatprep.subr.bf16.mxu0 0
        %3740 = vmatpush1.bf16.msra.mxu0 0
        %3741 = vmatprep.subr.bf16.mxu0 0
        %3742 = vmatpush1.bf16.msra.mxu0 0
        %3743 = vmatprep.subr.bf16.mxu0 0
        %3744 = vmatpush1.bf16.msra.mxu0 0
        %3745 = vmatprep.subr.bf16.mxu0 0
        %3746 = vmatpush1.bf16.msra.mxu0 0
        %3747 = vmatprep.subr.bf16.mxu0 0
        %3748 = vmatpush1.bf16.msra.mxu0 0
        %3749 = vmatprep.subr.bf16.mxu0 0
        %3750 = vmatpush1.bf16.msra.mxu0 0
        %3751 = vmatprep.subr.bf16.mxu0 0
        %3752 = vmatpush1.bf16.msra.mxu0 0
        %3753 = vmatprep.subr.bf16.mxu0 0
        %3754 = vmatpush1.bf16.msra.mxu0 0
        %3755 = vmatprep.mubr.bf16.mxu0 0
        %3756 = vmatmul.mubr.bf16.gmra.mrb[0].mxu0 %v3641
        %v3757 = vpop.f32.mrb[0].mxu0
        %v3758 = vadd.f32 %v3590, %v3757
        %v3759 = vpop.f32.mrb[0].mxu0
        %v3760 = vadd.f32 %v3590, %v3759
        %v3761 = vpop.f32.mrb[0].mxu0
        %v3762 = vadd.f32 %v3595, %v3761
        %v3763 = vpop.f32.mrb[0].mxu0
        %v3764 = vadd.f32 %v3595, %v3763
        %3765 = vmatprep.mubr.bf16.mxu0 0
        %3766 = vmatmul.mubr.bf16.gmra.mrb[0].mxu0 %v3644
        %v3767 = vpop.f32.mrb[0].mxu0
        %v3768 = vadd.f32 %v3600, %v3767
        %v3769 = vpop.f32.mrb[0].mxu0
        %v3770 = vadd.f32 %v3600, %v3769
        %v3771 = vpop.f32.mrb[0].mxu0
        %v3772 = vadd.f32 %v3605, %v3771
        %v3773 = vpop.f32.mrb[0].mxu0
        %v3774 = vadd.f32 %v3605, %v3773
        %3775 = vmatprep.mubr.bf16.mxu0 0
        %3776 = vmatmul.mubr.bf16.gmra.mrb[0].mxu0 %v3647
        %v3777 = vpop.f32.mrb[0].mxu0
        %v3778 = vadd.f32 %v3610, %v3777
        %v3779 = vpop.f32.mrb[0].mxu0
        %v3780 = vadd.f32 %v3610, %v3779
        %v3781 = vpop.f32.mrb[0].mxu0
        %v3782 = vadd.f32 %v3615, %v3781
        %v3783 = vpop.f32.mrb[0].mxu0
        %v3784 = vadd.f32 %v3615, %v3783
        %3785 = vmatprep.mubr.bf16.mxu0 0
        %3786 = vmatmul.mubr.bf16.gmra.mrb[0].mxu0 %v3650
        %v3787 = vpop.f32.mrb[0].mxu0
        %v3788 = vadd.f32 %v3620, %v3787
        %v3789 = vpop.f32.mrb[0].mxu0
        %v3790 = vadd.f32 %v3620, %v3789
        %v3791 = vpop.f32.mrb[0].mxu0
        %v3792 = vpop.f32.mrb[0].mxu0
        %3793 = vdwg.mxu0
        %vm3794 = vcmp.ge.f32.partialorder %v3687, 0.0
        %vm3795 = vcmp.ge.f32.partialorder %v3689, 0.0
        %vm3796 = vcmp.ge.f32.partialorder %v3758, 0.0
        %vm3797 = vcmp.ge.f32.partialorder %v3760, 0.0
        %vm3798 = vcmp.ge.f32.partialorder %v3691, 0.0
        %vm3799 = vcmp.ge.f32.partialorder %v3693, 0.0
        %vm3800 = vcmp.ge.f32.partialorder %v3762, 0.0
        %vm3801 = vcmp.ge.f32.partialorder %v3764, 0.0
        %vm3802 = vcmp.ge.f32.partialorder %v3697, 0.0
        %vm3803 = vcmp.ge.f32.partialorder %v3699, 0.0
        %vm3804 = vcmp.ge.f32.partialorder %v3768, 0.0
        %vm3805 = vcmp.ge.f32.partialorder %v3770, 0.0
        %vm3806 = vcmp.ge.f32.partialorder %v3701, 0.0
        %vm3807 = vcmp.ge.f32.partialorder %v3703, 0.0
        %vm3808 = vcmp.ge.f32.partialorder %v3772, 0.0
        %vm3809 = vcmp.ge.f32.partialorder %v3774, 0.0
        %vm3810 = vcmp.ge.f32.partialorder %v3707, 0.0
        %vm3811 = vcmp.ge.f32.partialorder %v3709, 0.0
        %vm3812 = vcmp.ge.f32.partialorder %v3778, 0.0
        %vm3813 = vcmp.ge.f32.partialorder %v3780, 0.0
        %vm3814 = vcmp.ge.f32.partialorder %v3711, 0.0
        %vm3815 = vcmp.ge.f32.partialorder %v3713, 0.0
        %vm3816 = vcmp.ge.f32.partialorder %v3782, 0.0
        %vm3817 = vcmp.ge.f32.partialorder %v3784, 0.0
        %vm3818 = vcmp.ge.f32.partialorder %v3717, 0.0
        %vm3819 = vcmp.ge.f32.partialorder %v3719, 0.0
        %vm3820 = vcmp.ge.f32.partialorder %v3788, 0.0
        %vm3821 = vcmp.ge.f32.partialorder %v3790, 0.0
        %v3822 = vld [vmem:[#allocation28] sm:$0xff]
        %v3823 = vld [vmem:[#allocation28 + $0x8] sm:$0xff]
        %v3824 = vld [vmem:[#allocation28 + $0x10] sm:$0xff]
        %v3825 = vld [vmem:[#allocation28 + $0x18] sm:$0xff]
        %v3826 = vld [vmem:[#allocation28 + $0x20] sm:$0xff]
        %v3827 = vld [vmem:[#allocation28 + $0x28] sm:$0xff]
        %v3828 = vld [vmem:[#allocation28 + $0x30] sm:$0xff]
        %3830 = vset.pattern.permute.xlu0 0
        %3831 = vperm.xlu0 %3830, %v3822
        %v3832 = vpop.permute.xlu0 %3831
        %3835 = vset.pattern.permute.xlu0 0
        %3836 = vperm.xlu0 %3835, %v3823
        %v3837 = vpop.permute.xlu0 %3836
        %3840 = vset.pattern.permute.xlu0 0
        %3841 = vperm.xlu0 %3840, %v3824
        %v3842 = vpop.permute.xlu0 %3841
        %3845 = vset.pattern.permute.xlu0 0
        %3846 = vperm.xlu0 %3845, %v3825
        %v3847 = vpop.permute.xlu0 %3846
        %3850 = vset.pattern.permute.xlu0 0
        %3851 = vperm.xlu0 %3850, %v3826
        %v3852 = vpop.permute.xlu0 %3851
        %3855 = vset.pattern.permute.xlu0 0
        %3856 = vperm.xlu0 %3855, %v3827
        %v3857 = vpop.permute.xlu0 %3856
        %3860 = vset.pattern.permute.xlu0 0
        %3861 = vperm.xlu0 %3860, %v3828
        %v3862 = vpop.permute.xlu0 %3861
        %v3864 = vmul.f32 %v3832, %v3687
        %v3865 = vmul.f32 %v3832, %v3689
        %v3866 = vmul.f32 %v3832, %v3758
        %v3867 = vmul.f32 %v3832, %v3760
        %v3868 = vmul.f32 %v3837, %v3691
        %v3869 = vmul.f32 %v3837, %v3693
        %v3870 = vmul.f32 %v3837, %v3762
        %v3871 = vmul.f32 %v3837, %v3764
        %v3872 = vmul.f32 %v3842, %v3697
        %v3873 = vmul.f32 %v3842, %v3699
        %v3874 = vmul.f32 %v3842, %v3768
        %v3875 = vmul.f32 %v3842, %v3770
        %v3876 = vmul.f32 %v3847, %v3701
        %v3877 = vmul.f32 %v3847, %v3703
        %v3878 = vmul.f32 %v3847, %v3772
        %v3879 = vmul.f32 %v3847, %v3774
        %v3880 = vmul.f32 %v3852, %v3707
        %v3881 = vmul.f32 %v3852, %v3709
        %v3882 = vmul.f32 %v3852, %v3778
        %v3883 = vmul.f32 %v3852, %v3780
        %v3884 = vmul.f32 %v3857, %v3711
        %v3885 = vmul.f32 %v3857, %v3713
        %v3886 = vmul.f32 %v3857, %v3782
        %v3887 = vmul.f32 %v3857, %v3784
        %v3888 = vmul.f32 %v3862, %v3717
        %v3889 = vmul.f32 %v3862, %v3719
        %v3890 = vmul.f32 %v3862, %v3788
        %v3891 = vmul.f32 %v3862, %v3790
        %v3892 = vsel %vm3794, %v3687, %v3864
        %v3893 = vsel %vm3795, %v3689, %v3865
        %v3894 = vsel %vm3796, %v3758, %v3866
        %v3895 = vsel %vm3797, %v3760, %v3867
        %v3896 = vsel %vm3798, %v3691, %v3868
        %v3897 = vsel %vm3799, %v3693, %v3869
        %v3898 = vsel %vm3800, %v3762, %v3870
        %v3899 = vsel %vm3801, %v3764, %v3871
        %v3900 = vsel %vm3802, %v3697, %v3872
        %v3901 = vsel %vm3803, %v3699, %v3873
        %v3902 = vsel %vm3804, %v3768, %v3874
        %v3903 = vsel %vm3805, %v3770, %v3875
        %v3904 = vsel %vm3806, %v3701, %v3876
        %v3905 = vsel %vm3807, %v3703, %v3877
        %v3906 = vsel %vm3808, %v3772, %v3878
        %v3907 = vsel %vm3809, %v3774, %v3879
        %v3908 = vsel %vm3810, %v3707, %v3880
        %v3909 = vsel %vm3811, %v3709, %v3881
        %v3910 = vsel %vm3812, %v3778, %v3882
        %v3911 = vsel %vm3813, %v3780, %v3883
        %v3912 = vsel %vm3814, %v3711, %v3884
        %v3913 = vsel %vm3815, %v3713, %v3885
        %v3914 = vsel %vm3816, %v3782, %v3886
        %v3915 = vsel %vm3817, %v3784, %v3887
        %v3916 = vsel %vm3818, %v3717, %v3888
        %v3917 = vsel %vm3819, %v3719, %v3889
        %v3918 = vsel %vm3820, %v3788, %v3890
        %v3919 = vsel %vm3821, %v3790, %v3891
        %v3920 = vmul.f32 %v1806, %v3892
        %v3921 = vmul.f32 %v1810, %v3893
        %v3922 = vmul.f32 %v1814, %v3894
        %v3923 = vmul.f32 %v1818, %v3895
        %v3924 = vmul.f32 %v1806, %v3896
        %v3925 = vmul.f32 %v1810, %v3897
        %v3926 = vmul.f32 %v1814, %v3898
        %v3927 = vmul.f32 %v1818, %v3899
        %v3928 = vmul.f32 %v1806, %v3900
        %v3929 = vmul.f32 %v1810, %v3901
        %v3930 = vmul.f32 %v1814, %v3902
        %v3931 = vmul.f32 %v1818, %v3903
        %v3932 = vmul.f32 %v1806, %v3904
        %v3933 = vmul.f32 %v1810, %v3905
        %v3934 = vmul.f32 %v1814, %v3906
        %v3935 = vmul.f32 %v1818, %v3907
        %v3936 = vmul.f32 %v1806, %v3908
        %v3937 = vmul.f32 %v1810, %v3909
        %v3938 = vmul.f32 %v1814, %v3910
        %v3939 = vmul.f32 %v1818, %v3911
        %v3940 = vmul.f32 %v1806, %v3912
        %v3941 = vmul.f32 %v1810, %v3913
        %v3942 = vmul.f32 %v1814, %v3914
        %v3943 = vmul.f32 %v1818, %v3915
        %v3944 = vmul.f32 %v1806, %v3916
        %v3945 = vmul.f32 %v1810, %v3917
        %v3946 = vmul.f32 %v1814, %v3918
        %v3947 = vmul.f32 %v1818, %v3919
        %3948 = vrot.lane.b32.xlu0 %v3920, 86
        %v3949 = vpop.permute.xlu0 %3948
        %3950 = vrot.lane.b32.xlu0 %v3924, 86
        %v3951 = vpop.permute.xlu0 %3950
        %3952 = vrot.lane.b32.xlu0 %v3928, 86
        %v3953 = vpop.permute.xlu0 %3952
        %3954 = vrot.lane.b32.xlu0 %v3932, 86
        %v3955 = vpop.permute.xlu0 %3954
        %3956 = vrot.lane.b32.xlu0 %v3936, 86
        %v3957 = vpop.permute.xlu0 %3956
        %3958 = vrot.lane.b32.xlu0 %v3940, 86
        %v3959 = vpop.permute.xlu0 %3958
        %3960 = vrot.lane.b32.xlu0 %v3944, 86
        %v3961 = vpop.permute.xlu0 %3960
        %3962 = vrot.lane.b32.xlu0 %v3921, 86
        %v3963 = vpop.permute.xlu0 %3962
        %3964 = vrot.lane.b32.xlu0 %v3925, 86
        %v3965 = vpop.permute.xlu0 %3964
        %3966 = vrot.lane.b32.xlu0 %v3929, 86
        %v3967 = vpop.permute.xlu0 %3966
        %3968 = vrot.lane.b32.xlu0 %v3933, 86
        %v3969 = vpop.permute.xlu0 %3968
        %3970 = vrot.lane.b32.xlu0 %v3937, 86
        %v3971 = vpop.permute.xlu0 %3970
        %3972 = vrot.lane.b32.xlu0 %v3941, 86
        %v3973 = vpop.permute.xlu0 %3972
        %3974 = vrot.lane.b32.xlu0 %v3945, 86
        %v3975 = vpop.permute.xlu0 %3974
        %3976 = vrot.lane.b32.xlu0 %v3922, 86
        %v3977 = vpop.permute.xlu0 %3976
        %3978 = vrot.lane.b32.xlu0 %v3926, 86
        %v3979 = vpop.permute.xlu0 %3978
        %3980 = vrot.lane.b32.xlu0 %v3930, 86
        %v3981 = vpop.permute.xlu0 %3980
        %3982 = vrot.lane.b32.xlu0 %v3934, 86
        %v3983 = vpop.permute.xlu0 %3982
        %3984 = vrot.lane.b32.xlu0 %v3938, 86
        %v3985 = vpop.permute.xlu0 %3984
        %3986 = vrot.lane.b32.xlu0 %v3942, 86
        %v3987 = vpop.permute.xlu0 %3986
        %3988 = vrot.lane.b32.xlu0 %v3946, 86
        %v3989 = vpop.permute.xlu0 %3988
        %3990 = vrot.lane.b32.xlu0 %v3923, 86
        %v3991 = vpop.permute.xlu0 %3990
        %3992 = vrot.lane.b32.xlu0 %v3927, 86
        %v3993 = vpop.permute.xlu0 %3992
        %3994 = vrot.lane.b32.xlu0 %v3931, 86
        %v3995 = vpop.permute.xlu0 %3994
        %3996 = vrot.lane.b32.xlu0 %v3935, 86
        %v3997 = vpop.permute.xlu0 %3996
        %3998 = vrot.lane.b32.xlu0 %v3939, 86
        %v3999 = vpop.permute.xlu0 %3998
        %4000 = vrot.lane.b32.xlu0 %v3943, 86
        %v4001 = vpop.permute.xlu0 %4000
        %4002 = vrot.lane.b32.xlu0 %v3947, 86
        %v4003 = vpop.permute.xlu0 %4002
        %v4004 = vsel %vm1369, %v3977, %v3991
        %v4005 = vsel %vm1369, %v3979, %v3993
        %v4006 = vsel %vm1369, %v3981, %v3995
        %v4007 = vsel %vm1369, %v3983, %v3997
        %v4008 = vsel %vm1369, %v3985, %v3999
        %v4009 = vsel %vm1369, %v3987, %v4001
        %v4010 = vsel %vm1369, %v3989, %v4003
        %v4011 = vsel %vm1369, %v3963, %v3977
        %v4012 = vsel %vm1369, %v3965, %v3979
        %v4013 = vsel %vm1369, %v3967, %v3981
        %v4014 = vsel %vm1369, %v3969, %v3983
        %v4015 = vsel %vm1369, %v3971, %v3985
        %v4016 = vsel %vm1369, %v3973, %v3987
        %v4017 = vsel %vm1369, %v3975, %v3989
        %v4018 = vsel %vm1369, %v3949, %v3963
        %v4019 = vsel %vm1369, %v3951, %v3965
        %v4020 = vsel %vm1369, %v3953, %v3967
        %v4021 = vsel %vm1369, %v3955, %v3969
        %v4022 = vsel %vm1369, %v3957, %v3971
        %v4023 = vsel %vm1369, %v3959, %v3973
        %v4024 = vsel %vm1369, %v3961, %v3975
        %v4025 = vsel %vm1369, %v3991, %v3949
        %v4026 = vsel %vm1369, %v3993, %v3951
        %v4027 = vsel %vm1369, %v3995, %v3953
        %v4028 = vsel %vm1369, %v3997, %v3955
        %v4029 = vsel %vm1369, %v3999, %v3957
        %v4030 = vsel %vm1369, %v4001, %v3959
        %v4031 = vsel %vm1369, %v4003, %v3961
        %4032 = vrot.lane.b32.xlu0 %v3920, 87
        %v4033 = vpop.permute.xlu0 %4032
        %4034 = vrot.lane.b32.xlu0 %v3924, 87
        %v4035 = vpop.permute.xlu0 %4034
        %4036 = vrot.lane.b32.xlu0 %v3928, 87
        %v4037 = vpop.permute.xlu0 %4036
        %4038 = vrot.lane.b32.xlu0 %v3932, 87
        %v4039 = vpop.permute.xlu0 %4038
        %4040 = vrot.lane.b32.xlu0 %v3936, 87
        %v4041 = vpop.permute.xlu0 %4040
        %4042 = vrot.lane.b32.xlu0 %v3940, 87
        %v4043 = vpop.permute.xlu0 %4042
        %4044 = vrot.lane.b32.xlu0 %v3944, 87
        %v4045 = vpop.permute.xlu0 %4044
        %4046 = vrot.lane.b32.xlu0 %v3921, 87
        %v4047 = vpop.permute.xlu0 %4046
        %4048 = vrot.lane.b32.xlu0 %v3925, 87
        %v4049 = vpop.permute.xlu0 %4048
        %4050 = vrot.lane.b32.xlu0 %v3929, 87
        %v4051 = vpop.permute.xlu0 %4050
        %4052 = vrot.lane.b32.xlu0 %v3933, 87
        %v4053 = vpop.permute.xlu0 %4052
        %4054 = vrot.lane.b32.xlu0 %v3937, 87
        %v4055 = vpop.permute.xlu0 %4054
        %4056 = vrot.lane.b32.xlu0 %v3941, 87
        %v4057 = vpop.permute.xlu0 %4056
        %4058 = vrot.lane.b32.xlu0 %v3945, 87
        %v4059 = vpop.permute.xlu0 %4058
        %4060 = vrot.lane.b32.xlu0 %v3922, 87
        %v4061 = vpop.permute.xlu0 %4060
        %4062 = vrot.lane.b32.xlu0 %v3926, 87
        %v4063 = vpop.permute.xlu0 %4062
        %4064 = vrot.lane.b32.xlu0 %v3930, 87
        %v4065 = vpop.permute.xlu0 %4064
        %4066 = vrot.lane.b32.xlu0 %v3934, 87
        %v4067 = vpop.permute.xlu0 %4066
        %4068 = vrot.lane.b32.xlu0 %v3938, 87
        %v4069 = vpop.permute.xlu0 %4068
        %4070 = vrot.lane.b32.xlu0 %v3942, 87
        %v4071 = vpop.permute.xlu0 %4070
        %4072 = vrot.lane.b32.xlu0 %v3946, 87
        %v4073 = vpop.permute.xlu0 %4072
        %4074 = vrot.lane.b32.xlu0 %v3923, 87
        %v4075 = vpop.permute.xlu0 %4074
        %4076 = vrot.lane.b32.xlu0 %v3927, 87
        %v4077 = vpop.permute.xlu0 %4076
        %4078 = vrot.lane.b32.xlu0 %v3931, 87
        %v4079 = vpop.permute.xlu0 %4078
        %4080 = vrot.lane.b32.xlu0 %v3935, 87
        %v4081 = vpop.permute.xlu0 %4080
        %4082 = vrot.lane.b32.xlu0 %v3939, 87
        %v4083 = vpop.permute.xlu0 %4082
        %4084 = vrot.lane.b32.xlu0 %v3943, 87
        %v4085 = vpop.permute.xlu0 %4084
        %4086 = vrot.lane.b32.xlu0 %v3947, 87
        %v4087 = vpop.permute.xlu0 %4086
        %v4088 = vsel %vm1356, %v4061, %v4075
        %v4089 = vsel %vm1356, %v4063, %v4077
        %v4090 = vsel %vm1356, %v4065, %v4079
        %v4091 = vsel %vm1356, %v4067, %v4081
        %v4092 = vsel %vm1356, %v4069, %v4083
        %v4093 = vsel %vm1356, %v4071, %v4085
        %v4094 = vsel %vm1356, %v4073, %v4087
        %v4095 = vsel %vm1356, %v4047, %v4061
        %v4096 = vsel %vm1356, %v4049, %v4063
        %v4097 = vsel %vm1356, %v4051, %v4065
        %v4098 = vsel %vm1356, %v4053, %v4067
        %v4099 = vsel %vm1356, %v4055, %v4069
        %v4100 = vsel %vm1356, %v4057, %v4071
        %v4101 = vsel %vm1356, %v4059, %v4073
        %v4102 = vsel %vm1356, %v4033, %v4047
        %v4103 = vsel %vm1356, %v4035, %v4049
        %v4104 = vsel %vm1356, %v4037, %v4051
        %v4105 = vsel %vm1356, %v4039, %v4053
        %v4106 = vsel %vm1356, %v4041, %v4055
        %v4107 = vsel %vm1356, %v4043, %v4057
        %v4108 = vsel %vm1356, %v4045, %v4059
        %v4109 = vsel %vm1356, %v4075, %v4033
        %v4110 = vsel %vm1356, %v4077, %v4035
        %v4111 = vsel %vm1356, %v4079, %v4037
        %v4112 = vsel %vm1356, %v4081, %v4039
        %v4113 = vsel %vm1356, %v4083, %v4041
        %v4114 = vsel %vm1356, %v4085, %v4043
        %v4115 = vsel %vm1356, %v4087, %v4045
        %4116 = vrot.lane.b32.xlu0 %v3920, 88
        %v4117 = vpop.permute.xlu0 %4116
        %4118 = vrot.lane.b32.xlu0 %v3924, 88
        %v4119 = vpop.permute.xlu0 %4118
        %4120 = vrot.lane.b32.xlu0 %v3928, 88
        %v4121 = vpop.permute.xlu0 %4120
        %4122 = vrot.lane.b32.xlu0 %v3932, 88
        %v4123 = vpop.permute.xlu0 %4122
        %4124 = vrot.lane.b32.xlu0 %v3936, 88
        %v4125 = vpop.permute.xlu0 %4124
        %4126 = vrot.lane.b32.xlu0 %v3940, 88
        %v4127 = vpop.permute.xlu0 %4126
        %4128 = vrot.lane.b32.xlu0 %v3944, 88
        %v4129 = vpop.permute.xlu0 %4128
        %4130 = vrot.lane.b32.xlu0 %v3921, 88
        %v4131 = vpop.permute.xlu0 %4130
        %4132 = vrot.lane.b32.xlu0 %v3925, 88
        %v4133 = vpop.permute.xlu0 %4132
        %4134 = vrot.lane.b32.xlu0 %v3929, 88
        %v4135 = vpop.permute.xlu0 %4134
        %4136 = vrot.lane.b32.xlu0 %v3933, 88
        %v4137 = vpop.permute.xlu0 %4136
        %4138 = vrot.lane.b32.xlu0 %v3937, 88
        %v4139 = vpop.permute.xlu0 %4138
        %4140 = vrot.lane.b32.xlu0 %v3941, 88
        %v4141 = vpop.permute.xlu0 %4140
        %4142 = vrot.lane.b32.xlu0 %v3945, 88
        %v4143 = vpop.permute.xlu0 %4142
        %4144 = vrot.lane.b32.xlu0 %v3922, 88
        %v4145 = vpop.permute.xlu0 %4144
        %4146 = vrot.lane.b32.xlu0 %v3926, 88
        %v4147 = vpop.permute.xlu0 %4146
        %4148 = vrot.lane.b32.xlu0 %v3930, 88
        %v4149 = vpop.permute.xlu0 %4148
        %4150 = vrot.lane.b32.xlu0 %v3934, 88
        %v4151 = vpop.permute.xlu0 %4150
        %4152 = vrot.lane.b32.xlu0 %v3938, 88
        %v4153 = vpop.permute.xlu0 %4152
        %4154 = vrot.lane.b32.xlu0 %v3942, 88
        %v4155 = vpop.permute.xlu0 %4154
        %4156 = vrot.lane.b32.xlu0 %v3946, 88
        %v4157 = vpop.permute.xlu0 %4156
        %4158 = vrot.lane.b32.xlu0 %v3923, 88
        %v4159 = vpop.permute.xlu0 %4158
        %4160 = vrot.lane.b32.xlu0 %v3927, 88
        %v4161 = vpop.permute.xlu0 %4160
        %4162 = vrot.lane.b32.xlu0 %v3931, 88
        %v4163 = vpop.permute.xlu0 %4162
        %4164 = vrot.lane.b32.xlu0 %v3935, 88
        %v4165 = vpop.permute.xlu0 %4164
        %4166 = vrot.lane.b32.xlu0 %v3939, 88
        %v4167 = vpop.permute.xlu0 %4166
        %4168 = vrot.lane.b32.xlu0 %v3943, 88
        %v4169 = vpop.permute.xlu0 %4168
        %4170 = vrot.lane.b32.xlu0 %v3947, 88
        %v4171 = vpop.permute.xlu0 %4170
        %v4172 = vsel %vm1343, %v4145, %v4159
        %v4173 = vsel %vm1343, %v4147, %v4161
        %v4174 = vsel %vm1343, %v4149, %v4163
        %v4175 = vsel %vm1343, %v4151, %v4165
        %v4176 = vsel %vm1343, %v4153, %v4167
        %v4177 = vsel %vm1343, %v4155, %v4169
        %v4178 = vsel %vm1343, %v4157, %v4171
        %v4179 = vsel %vm1343, %v4131, %v4145
        %v4180 = vsel %vm1343, %v4133, %v4147
        %v4181 = vsel %vm1343, %v4135, %v4149
        %v4182 = vsel %vm1343, %v4137, %v4151
        %v4183 = vsel %vm1343, %v4139, %v4153
        %v4184 = vsel %vm1343, %v4141, %v4155
        %v4185 = vsel %vm1343, %v4143, %v4157
        %v4186 = vsel %vm1343, %v4117, %v4131
        %v4187 = vsel %vm1343, %v4119, %v4133
        %v4188 = vsel %vm1343, %v4121, %v4135
        %v4189 = vsel %vm1343, %v4123, %v4137
        %v4190 = vsel %vm1343, %v4125, %v4139
        %v4191 = vsel %vm1343, %v4127, %v4141
        %v4192 = vsel %vm1343, %v4129, %v4143
        %v4193 = vsel %vm1343, %v4159, %v4117
        %v4194 = vsel %vm1343, %v4161, %v4119
        %v4195 = vsel %vm1343, %v4163, %v4121
        %v4196 = vsel %vm1343, %v4165, %v4123
        %v4197 = vsel %vm1343, %v4167, %v4125
        %v4198 = vsel %vm1343, %v4169, %v4127
        %v4199 = vsel %vm1343, %v4171, %v4129
        %4200 = vrot.lane.b32.xlu0 %v3920, 89
        %v4201 = vpop.permute.xlu0 %4200
        %4202 = vrot.lane.b32.xlu0 %v3924, 89
        %v4203 = vpop.permute.xlu0 %4202
        %4204 = vrot.lane.b32.xlu0 %v3928, 89
        %v4205 = vpop.permute.xlu0 %4204
        %4206 = vrot.lane.b32.xlu0 %v3932, 89
        %v4207 = vpop.permute.xlu0 %4206
        %4208 = vrot.lane.b32.xlu0 %v3936, 89
        %v4209 = vpop.permute.xlu0 %4208
        %4210 = vrot.lane.b32.xlu0 %v3940, 89
        %v4211 = vpop.permute.xlu0 %4210
        %4212 = vrot.lane.b32.xlu0 %v3944, 89
        %v4213 = vpop.permute.xlu0 %4212
        %4214 = vrot.lane.b32.xlu0 %v3921, 89
        %v4215 = vpop.permute.xlu0 %4214
        %4216 = vrot.lane.b32.xlu0 %v3925, 89
        %v4217 = vpop.permute.xlu0 %4216
        %4218 = vrot.lane.b32.xlu0 %v3929, 89
        %v4219 = vpop.permute.xlu0 %4218
        %4220 = vrot.lane.b32.xlu0 %v3933, 89
        %v4221 = vpop.permute.xlu0 %4220
        %4222 = vrot.lane.b32.xlu0 %v3937, 89
        %v4223 = vpop.permute.xlu0 %4222
        %4224 = vrot.lane.b32.xlu0 %v3941, 89
        %v4225 = vpop.permute.xlu0 %4224
        %4226 = vrot.lane.b32.xlu0 %v3945, 89
        %v4227 = vpop.permute.xlu0 %4226
        %4228 = vrot.lane.b32.xlu0 %v3922, 89
        %v4229 = vpop.permute.xlu0 %4228
        %4230 = vrot.lane.b32.xlu0 %v3926, 89
        %v4231 = vpop.permute.xlu0 %4230
        %4232 = vrot.lane.b32.xlu0 %v3930, 89
        %v4233 = vpop.permute.xlu0 %4232
        %4234 = vrot.lane.b32.xlu0 %v3934, 89
        %v4235 = vpop.permute.xlu0 %4234
        %4236 = vrot.lane.b32.xlu0 %v3938, 89
        %v4237 = vpop.permute.xlu0 %4236
        %4238 = vrot.lane.b32.xlu0 %v3942, 89
        %v4239 = vpop.permute.xlu0 %4238
        %4240 = vrot.lane.b32.xlu0 %v3946, 89
        %v4241 = vpop.permute.xlu0 %4240
        %4242 = vrot.lane.b32.xlu0 %v3923, 89
        %v4243 = vpop.permute.xlu0 %4242
        %4244 = vrot.lane.b32.xlu0 %v3927, 89
        %v4245 = vpop.permute.xlu0 %4244
        %4246 = vrot.lane.b32.xlu0 %v3931, 89
        %v4247 = vpop.permute.xlu0 %4246
        %4248 = vrot.lane.b32.xlu0 %v3935, 89
        %v4249 = vpop.permute.xlu0 %4248
        %4250 = vrot.lane.b32.xlu0 %v3939, 89
        %v4251 = vpop.permute.xlu0 %4250
        %4252 = vrot.lane.b32.xlu0 %v3943, 89
        %v4253 = vpop.permute.xlu0 %4252
        %4254 = vrot.lane.b32.xlu0 %v3947, 89
        %v4255 = vpop.permute.xlu0 %4254
        %v4256 = vsel %vm1330, %v4229, %v4243
        %v4257 = vsel %vm1330, %v4231, %v4245
        %v4258 = vsel %vm1330, %v4233, %v4247
        %v4259 = vsel %vm1330, %v4235, %v4249
        %v4260 = vsel %vm1330, %v4237, %v4251
        %v4261 = vsel %vm1330, %v4239, %v4253
        %v4262 = vsel %vm1330, %v4241, %v4255
        %v4263 = vsel %vm1330, %v4215, %v4229
        %v4264 = vsel %vm1330, %v4217, %v4231
        %v4265 = vsel %vm1330, %v4219, %v4233
        %v4266 = vsel %vm1330, %v4221, %v4235
        %v4267 = vsel %vm1330, %v4223, %v4237
        %v4268 = vsel %vm1330, %v4225, %v4239
        %v4269 = vsel %vm1330, %v4227, %v4241
        %v4270 = vsel %vm1330, %v4201, %v4215
        %v4271 = vsel %vm1330, %v4203, %v4217
        %v4272 = vsel %vm1330, %v4205, %v4219
        %v4273 = vsel %vm1330, %v4207, %v4221
        %v4274 = vsel %vm1330, %v4209, %v4223
        %v4275 = vsel %vm1330, %v4211, %v4225
        %v4276 = vsel %vm1330, %v4213, %v4227
        %v4277 = vsel %vm1330, %v4243, %v4201
        %v4278 = vsel %vm1330, %v4245, %v4203
        %v4279 = vsel %vm1330, %v4247, %v4205
        %v4280 = vsel %vm1330, %v4249, %v4207
        %v4281 = vsel %vm1330, %v4251, %v4209
        %v4282 = vsel %vm1330, %v4253, %v4211
        %v4283 = vsel %vm1330, %v4255, %v4213
        %4284 = vrot.lane.b32.xlu0 %v3920, 90
        %v4285 = vpop.permute.xlu0 %4284
        %4286 = vrot.lane.b32.xlu0 %v3924, 90
        %v4287 = vpop.permute.xlu0 %4286
        %4288 = vrot.lane.b32.xlu0 %v3928, 90
        %v4289 = vpop.permute.xlu0 %4288
        %4290 = vrot.lane.b32.xlu0 %v3932, 90
        %v4291 = vpop.permute.xlu0 %4290
        %4292 = vrot.lane.b32.xlu0 %v3936, 90
        %v4293 = vpop.permute.xlu0 %4292
        %4294 = vrot.lane.b32.xlu0 %v3940, 90
        %v4295 = vpop.permute.xlu0 %4294
        %4296 = vrot.lane.b32.xlu0 %v3944, 90
        %v4297 = vpop.permute.xlu0 %4296
        %4298 = vrot.lane.b32.xlu0 %v3921, 90
        %v4299 = vpop.permute.xlu0 %4298
        %4300 = vrot.lane.b32.xlu0 %v3925, 90
        %v4301 = vpop.permute.xlu0 %4300
        %4302 = vrot.lane.b32.xlu0 %v3929, 90
        %v4303 = vpop.permute.xlu0 %4302
        %4304 = vrot.lane.b32.xlu0 %v3933, 90
        %v4305 = vpop.permute.xlu0 %4304
        %4306 = vrot.lane.b32.xlu0 %v3937, 90
        %v4307 = vpop.permute.xlu0 %4306
        %4308 = vrot.lane.b32.xlu0 %v3941, 90
        %v4309 = vpop.permute.xlu0 %4308
        %4310 = vrot.lane.b32.xlu0 %v3945, 90
        %v4311 = vpop.permute.xlu0 %4310
        %4312 = vrot.lane.b32.xlu0 %v3922, 90
        %v4313 = vpop.permute.xlu0 %4312
        %4314 = vrot.lane.b32.xlu0 %v3926, 90
        %v4315 = vpop.permute.xlu0 %4314
        %4316 = vrot.lane.b32.xlu0 %v3930, 90
        %v4317 = vpop.permute.xlu0 %4316
        %4318 = vrot.lane.b32.xlu0 %v3934, 90
        %v4319 = vpop.permute.xlu0 %4318
        %4320 = vrot.lane.b32.xlu0 %v3938, 90
        %v4321 = vpop.permute.xlu0 %4320
        %4322 = vrot.lane.b32.xlu0 %v3942, 90
        %v4323 = vpop.permute.xlu0 %4322
        %4324 = vrot.lane.b32.xlu0 %v3946, 90
        %v4325 = vpop.permute.xlu0 %4324
        %4326 = vrot.lane.b32.xlu0 %v3923, 90
        %v4327 = vpop.permute.xlu0 %4326
        %4328 = vrot.lane.b32.xlu0 %v3927, 90
        %v4329 = vpop.permute.xlu0 %4328
        %4330 = vrot.lane.b32.xlu0 %v3931, 90
        %v4331 = vpop.permute.xlu0 %4330
        %4332 = vrot.lane.b32.xlu0 %v3935, 90
        %v4333 = vpop.permute.xlu0 %4332
        %4334 = vrot.lane.b32.xlu0 %v3939, 90
        %v4335 = vpop.permute.xlu0 %4334
        %4336 = vrot.lane.b32.xlu0 %v3943, 90
        %v4337 = vpop.permute.xlu0 %4336
        %4338 = vrot.lane.b32.xlu0 %v3947, 90
        %v4339 = vpop.permute.xlu0 %4338
        %v4340 = vsel %vm1317, %v4313, %v4327
        %v4341 = vsel %vm1317, %v4315, %v4329
        %v4342 = vsel %vm1317, %v4317, %v4331
        %v4343 = vsel %vm1317, %v4319, %v4333
        %v4344 = vsel %vm1317, %v4321, %v4335
        %v4345 = vsel %vm1317, %v4323, %v4337
        %v4346 = vsel %vm1317, %v4325, %v4339
        %v4347 = vsel %vm1317, %v4299, %v4313
        %v4348 = vsel %vm1317, %v4301, %v4315
        %v4349 = vsel %vm1317, %v4303, %v4317
        %v4350 = vsel %vm1317, %v4305, %v4319
        %v4351 = vsel %vm1317, %v4307, %v4321
        %v4352 = vsel %vm1317, %v4309, %v4323
        %v4353 = vsel %vm1317, %v4311, %v4325
        %v4354 = vsel %vm1317, %v4285, %v4299
        %v4355 = vsel %vm1317, %v4287, %v4301
        %v4356 = vsel %vm1317, %v4289, %v4303
        %v4357 = vsel %vm1317, %v4291, %v4305
        %v4358 = vsel %vm1317, %v4293, %v4307
        %v4359 = vsel %vm1317, %v4295, %v4309
        %v4360 = vsel %vm1317, %v4297, %v4311
        %v4361 = vsel %vm1317, %v4327, %v4285
        %v4362 = vsel %vm1317, %v4329, %v4287
        %v4363 = vsel %vm1317, %v4331, %v4289
        %v4364 = vsel %vm1317, %v4333, %v4291
        %v4365 = vsel %vm1317, %v4335, %v4293
        %v4366 = vsel %vm1317, %v4337, %v4295
        %v4367 = vsel %vm1317, %v4339, %v4297
        %v4368 = vpack.c.bf16 %v4019, %v4018
        %v4369 = vpack.c.bf16 %v4012, %v4011
        %v4370 = vpack.c.bf16 %v4005, %v4004
        %v4371 = vpack.c.bf16 %v4026, %v4025
        %v4372 = vpack.c.bf16 %v4021, %v4020
        %v4373 = vpack.c.bf16 %v4014, %v4013
        %v4374 = vpack.c.bf16 %v4007, %v4006
        %v4375 = vpack.c.bf16 %v4028, %v4027
        %v4376 = vpack.c.bf16 %v4023, %v4022
        %v4377 = vpack.c.bf16 %v4016, %v4015
        %v4378 = vpack.c.bf16 %v4009, %v4008
        %v4379 = vpack.c.bf16 %v4030, %v4029
        %v4380 = vpack.c.bf16 %v4102, %v4024
        %v4381 = vpack.c.bf16 %v4095, %v4017
        %v4382 = vpack.c.bf16 %v4088, %v4010
        %v4383 = vpack.c.bf16 %v4109, %v4031
        %v4384 = vpack.c.bf16 %v4104, %v4103
        %v4385 = vpack.c.bf16 %v4097, %v4096
        %v4386 = vpack.c.bf16 %v4090, %v4089
        %v4387 = vpack.c.bf16 %v4111, %v4110
        %v4388 = vpack.c.bf16 %v4106, %v4105
        %v4389 = vpack.c.bf16 %v4099, %v4098
        %v4390 = vpack.c.bf16 %v4092, %v4091
        %v4391 = vpack.c.bf16 %v4113, %v4112
        %v4392 = vpack.c.bf16 %v4108, %v4107
        %v4393 = vpack.c.bf16 %v4101, %v4100
        %v4394 = vpack.c.bf16 %v4094, %v4093
        %v4395 = vpack.c.bf16 %v4115, %v4114
        %v4396 = vpack.c.bf16 %v4187, %v4186
        %v4397 = vpack.c.bf16 %v4180, %v4179
        %v4398 = vpack.c.bf16 %v4173, %v4172
        %v4399 = vpack.c.bf16 %v4194, %v4193
        %v4400 = vpack.c.bf16 %v4189, %v4188
        %v4401 = vpack.c.bf16 %v4182, %v4181
        %v4402 = vpack.c.bf16 %v4175, %v4174
        %v4403 = vpack.c.bf16 %v4196, %v4195
        %v4404 = vpack.c.bf16 %v4191, %v4190
        %v4405 = vpack.c.bf16 %v4184, %v4183
        %v4406 = vpack.c.bf16 %v4177, %v4176
        %v4407 = vpack.c.bf16 %v4198, %v4197
        %v4408 = vpack.c.bf16 %v4270, %v4192
        %v4409 = vpack.c.bf16 %v4263, %v4185
        %v4410 = vpack.c.bf16 %v4256, %v4178
        %v4411 = vpack.c.bf16 %v4277, %v4199
        %v4412 = vpack.c.bf16 %v4272, %v4271
        %v4413 = vpack.c.bf16 %v4265, %v4264
        %v4414 = vpack.c.bf16 %v4258, %v4257
        %v4415 = vpack.c.bf16 %v4279, %v4278
        %v4416 = vpack.c.bf16 %v4274, %v4273
        %v4417 = vpack.c.bf16 %v4267, %v4266
        %v4418 = vpack.c.bf16 %v4260, %v4259
        %v4419 = vpack.c.bf16 %v4281, %v4280
        %v4420 = vpack.c.bf16 %v4276, %v4275
        %v4421 = vpack.c.bf16 %v4269, %v4268
        %v4422 = vpack.c.bf16 %v4262, %v4261
        %v4423 = vpack.c.bf16 %v4283, %v4282
        %v4424 = vpack.c.bf16 %v4355, %v4354
        %v4425 = vpack.c.bf16 %v4348, %v4347
        %v4426 = vpack.c.bf16 %v4341, %v4340
        %v4427 = vpack.c.bf16 %v4362, %v4361
        %v4428 = vpack.c.bf16 %v4357, %v4356
        %v4429 = vpack.c.bf16 %v4350, %v4349
        %v4430 = vpack.c.bf16 %v4343, %v4342
        %v4431 = vpack.c.bf16 %v4364, %v4363
        %v4432 = vpack.c.bf16 %v4359, %v4358
        %v4433 = vpack.c.bf16 %v4352, %v4351
        %v4434 = vpack.c.bf16 %v4345, %v4344
        %v4435 = vpack.c.bf16 %v4366, %v4365
        %v4436 = vpack.c.bf16 %v4360, %v4360
        %v4437 = vpack.c.bf16 %v4353, %v4353
        %v4438 = vpack.c.bf16 %v4346, %v4346
        %v4439 = vpack.c.bf16 %v4367, %v4367
        %v4440 = vld [vmem:[#allocation30] sm:$0xff]
        %v4441 = vld [vmem:[#allocation30 + $0x8] sm:$0xf]
        %v4442 = vld [vmem:[#allocation30 + $0xc] sm:$0x33]
        %v4443 = vld [vmem:[#allocation30 + $0x14] sm:$0x3]
        %4444 = vrot.lane.b32.xlu0 %v3920, 106
        %v4445 = vpop.permute.xlu0 %4444
        %4446 = vrot.lane.b32.xlu0 %v3924, 106
        %v4447 = vpop.permute.xlu0 %4446
        %4448 = vrot.lane.b32.xlu0 %v3928, 106
        %v4449 = vpop.permute.xlu0 %4448
        %4450 = vrot.lane.b32.xlu0 %v3932, 106
        %v4451 = vpop.permute.xlu0 %4450
        %4452 = vrot.lane.b32.xlu0 %v3936, 106
        %v4453 = vpop.permute.xlu0 %4452
        %4454 = vrot.lane.b32.xlu0 %v3940, 106
        %v4455 = vpop.permute.xlu0 %4454
        %4456 = vrot.lane.b32.xlu0 %v3944, 106
        %v4457 = vpop.permute.xlu0 %4456
        %4458 = vrot.lane.b32.xlu0 %v3921, 106
        %v4459 = vpop.permute.xlu0 %4458
        %4460 = vrot.lane.b32.xlu0 %v3925, 106
        %v4461 = vpop.permute.xlu0 %4460
        %4462 = vrot.lane.b32.xlu0 %v3929, 106
        %v4463 = vpop.permute.xlu0 %4462
        %4464 = vrot.lane.b32.xlu0 %v3933, 106
        %v4465 = vpop.permute.xlu0 %4464
        %4466 = vrot.lane.b32.xlu0 %v3937, 106
        %v4467 = vpop.permute.xlu0 %4466
        %4468 = vrot.lane.b32.xlu0 %v3941, 106
        %v4469 = vpop.permute.xlu0 %4468
        %4470 = vrot.lane.b32.xlu0 %v3945, 106
        %v4471 = vpop.permute.xlu0 %4470
        %4472 = vrot.lane.b32.xlu0 %v3922, 106
        %v4473 = vpop.permute.xlu0 %4472
        %4474 = vrot.lane.b32.xlu0 %v3926, 106
        %v4475 = vpop.permute.xlu0 %4474
        %4476 = vrot.lane.b32.xlu0 %v3930, 106
        %v4477 = vpop.permute.xlu0 %4476
        %4478 = vrot.lane.b32.xlu0 %v3934, 106
        %v4479 = vpop.permute.xlu0 %4478
        %4480 = vrot.lane.b32.xlu0 %v3938, 106
        %v4481 = vpop.permute.xlu0 %4480
        %4482 = vrot.lane.b32.xlu0 %v3942, 106
        %v4483 = vpop.permute.xlu0 %4482
        %4484 = vrot.lane.b32.xlu0 %v3946, 106
        %v4485 = vpop.permute.xlu0 %4484
        %4486 = vrot.lane.b32.xlu0 %v3923, 106
        %v4487 = vpop.permute.xlu0 %4486
        %4488 = vrot.lane.b32.xlu0 %v3927, 106
        %v4489 = vpop.permute.xlu0 %4488
        %4490 = vrot.lane.b32.xlu0 %v3931, 106
        %v4491 = vpop.permute.xlu0 %4490
        %4492 = vrot.lane.b32.xlu0 %v3935, 106
        %v4493 = vpop.permute.xlu0 %4492
        %4494 = vrot.lane.b32.xlu0 %v3939, 106
        %v4495 = vpop.permute.xlu0 %4494
        %4496 = vrot.lane.b32.xlu0 %v3943, 106
        %v4497 = vpop.permute.xlu0 %4496
        %4498 = vrot.lane.b32.xlu0 %v3947, 106
        %v4499 = vpop.permute.xlu0 %4498
        %v4500 = vsel %vm1304, %v4473, %v4487
        %v4501 = vsel %vm1304, %v4475, %v4489
        %v4502 = vsel %vm1304, %v4477, %v4491
        %v4503 = vsel %vm1304, %v4479, %v4493
        %v4504 = vsel %vm1304, %v4481, %v4495
        %v4505 = vsel %vm1304, %v4483, %v4497
        %v4506 = vsel %vm1304, %v4485, %v4499
        %v4507 = vsel %vm1304, %v4459, %v4473
        %v4508 = vsel %vm1304, %v4461, %v4475
        %v4509 = vsel %vm1304, %v4463, %v4477
        %v4510 = vsel %vm1304, %v4465, %v4479
        %v4511 = vsel %vm1304, %v4467, %v4481
        %v4512 = vsel %vm1304, %v4469, %v4483
        %v4513 = vsel %vm1304, %v4471, %v4485
        %v4514 = vsel %vm1304, %v4445, %v4459
        %v4515 = vsel %vm1304, %v4447, %v4461
        %v4516 = vsel %vm1304, %v4449, %v4463
        %v4517 = vsel %vm1304, %v4451, %v4465
        %v4518 = vsel %vm1304, %v4453, %v4467
        %v4519 = vsel %vm1304, %v4455, %v4469
        %v4520 = vsel %vm1304, %v4457, %v4471
        %v4521 = vsel %vm1304, %v4487, %v4445
        %v4522 = vsel %vm1304, %v4489, %v4447
        %v4523 = vsel %vm1304, %v4491, %v4449
        %v4524 = vsel %vm1304, %v4493, %v4451
        %v4525 = vsel %vm1304, %v4495, %v4453
        %v4526 = vsel %vm1304, %v4497, %v4455
        %v4527 = vsel %vm1304, %v4499, %v4457
        %4528 = vrot.lane.b32.xlu0 %v3920, 107
        %v4529 = vpop.permute.xlu0 %4528
        %4530 = vrot.lane.b32.xlu0 %v3924, 107
        %v4531 = vpop.permute.xlu0 %4530
        %4532 = vrot.lane.b32.xlu0 %v3928, 107
        %v4533 = vpop.permute.xlu0 %4532
        %4534 = vrot.lane.b32.xlu0 %v3932, 107
        %v4535 = vpop.permute.xlu0 %4534
        %4536 = vrot.lane.b32.xlu0 %v3936, 107
        %v4537 = vpop.permute.xlu0 %4536
        %4538 = vrot.lane.b32.xlu0 %v3940, 107
        %v4539 = vpop.permute.xlu0 %4538
        %4540 = vrot.lane.b32.xlu0 %v3944, 107
        %v4541 = vpop.permute.xlu0 %4540
        %4542 = vrot.lane.b32.xlu0 %v3921, 107
        %v4543 = vpop.permute.xlu0 %4542
        %4544 = vrot.lane.b32.xlu0 %v3925, 107
        %v4545 = vpop.permute.xlu0 %4544
        %4546 = vrot.lane.b32.xlu0 %v3929, 107
        %v4547 = vpop.permute.xlu0 %4546
        %4548 = vrot.lane.b32.xlu0 %v3933, 107
        %v4549 = vpop.permute.xlu0 %4548
        %4550 = vrot.lane.b32.xlu0 %v3937, 107
        %v4551 = vpop.permute.xlu0 %4550
        %4552 = vrot.lane.b32.xlu0 %v3941, 107
        %v4553 = vpop.permute.xlu0 %4552
        %4554 = vrot.lane.b32.xlu0 %v3945, 107
        %v4555 = vpop.permute.xlu0 %4554
        %4556 = vrot.lane.b32.xlu0 %v3922, 107
        %v4557 = vpop.permute.xlu0 %4556
        %4558 = vrot.lane.b32.xlu0 %v3926, 107
        %v4559 = vpop.permute.xlu0 %4558
        %4560 = vrot.lane.b32.xlu0 %v3930, 107
        %v4561 = vpop.permute.xlu0 %4560
        %4562 = vrot.lane.b32.xlu0 %v3934, 107
        %v4563 = vpop.permute.xlu0 %4562
        %4564 = vrot.lane.b32.xlu0 %v3938, 107
        %v4565 = vpop.permute.xlu0 %4564
        %4566 = vrot.lane.b32.xlu0 %v3942, 107
        %v4567 = vpop.permute.xlu0 %4566
        %4568 = vrot.lane.b32.xlu0 %v3946, 107
        %v4569 = vpop.permute.xlu0 %4568
        %4570 = vrot.lane.b32.xlu0 %v3923, 107
        %v4571 = vpop.permute.xlu0 %4570
        %4572 = vrot.lane.b32.xlu0 %v3927, 107
        %v4573 = vpop.permute.xlu0 %4572
        %4574 = vrot.lane.b32.xlu0 %v3931, 107
        %v4575 = vpop.permute.xlu0 %4574
        %4576 = vrot.lane.b32.xlu0 %v3935, 107
        %v4577 = vpop.permute.xlu0 %4576
        %4578 = vrot.lane.b32.xlu0 %v3939, 107
        %v4579 = vpop.permute.xlu0 %4578
        %4580 = vrot.lane.b32.xlu0 %v3943, 107
        %v4581 = vpop.permute.xlu0 %4580
        %4582 = vrot.lane.b32.xlu0 %v3947, 107
        %v4583 = vpop.permute.xlu0 %4582
        %v4584 = vsel %vm1291, %v4557, %v4571
        %v4585 = vsel %vm1291, %v4559, %v4573
        %v4586 = vsel %vm1291, %v4561, %v4575
        %v4587 = vsel %vm1291, %v4563, %v4577
        %v4588 = vsel %vm1291, %v4565, %v4579
        %v4589 = vsel %vm1291, %v4567, %v4581
        %v4590 = vsel %vm1291, %v4569, %v4583
        %v4591 = vsel %vm1291, %v4543, %v4557
        %v4592 = vsel %vm1291, %v4545, %v4559
        %v4593 = vsel %vm1291, %v4547, %v4561
        %v4594 = vsel %vm1291, %v4549, %v4563
        %v4595 = vsel %vm1291, %v4551, %v4565
        %v4596 = vsel %vm1291, %v4553, %v4567
        %v4597 = vsel %vm1291, %v4555, %v4569
        %v4598 = vsel %vm1291, %v4529, %v4543
        %v4599 = vsel %vm1291, %v4531, %v4545
        %v4600 = vsel %vm1291, %v4533, %v4547
        %v4601 = vsel %vm1291, %v4535, %v4549
        %v4602 = vsel %vm1291, %v4537, %v4551
        %v4603 = vsel %vm1291, %v4539, %v4553
        %v4604 = vsel %vm1291, %v4541, %v4555
        %v4605 = vsel %vm1291, %v4571, %v4529
        %v4606 = vsel %vm1291, %v4573, %v4531
        %v4607 = vsel %vm1291, %v4575, %v4533
        %v4608 = vsel %vm1291, %v4577, %v4535
        %v4609 = vsel %vm1291, %v4579, %v4537
        %v4610 = vsel %vm1291, %v4581, %v4539
        %v4611 = vsel %vm1291, %v4583, %v4541
        %4612 = vrot.lane.b32.xlu0 %v3920, 108
        %v4613 = vpop.permute.xlu0 %4612
        %4614 = vrot.lane.b32.xlu0 %v3924, 108
        %v4615 = vpop.permute.xlu0 %4614
        %4616 = vrot.lane.b32.xlu0 %v3928, 108
        %v4617 = vpop.permute.xlu0 %4616
        %4618 = vrot.lane.b32.xlu0 %v3932, 108
        %v4619 = vpop.permute.xlu0 %4618
        %4620 = vrot.lane.b32.xlu0 %v3936, 108
        %v4621 = vpop.permute.xlu0 %4620
        %4622 = vrot.lane.b32.xlu0 %v3940, 108
        %v4623 = vpop.permute.xlu0 %4622
        %4624 = vrot.lane.b32.xlu0 %v3944, 108
        %v4625 = vpop.permute.xlu0 %4624
        %4626 = vrot.lane.b32.xlu0 %v3921, 108
        %v4627 = vpop.permute.xlu0 %4626
        %4628 = vrot.lane.b32.xlu0 %v3925, 108
        %v4629 = vpop.permute.xlu0 %4628
        %4630 = vrot.lane.b32.xlu0 %v3929, 108
        %v4631 = vpop.permute.xlu0 %4630
        %4632 = vrot.lane.b32.xlu0 %v3933, 108
        %v4633 = vpop.permute.xlu0 %4632
        %4634 = vrot.lane.b32.xlu0 %v3937, 108
        %v4635 = vpop.permute.xlu0 %4634
        %4636 = vrot.lane.b32.xlu0 %v3941, 108
        %v4637 = vpop.permute.xlu0 %4636
        %4638 = vrot.lane.b32.xlu0 %v3945, 108
        %v4639 = vpop.permute.xlu0 %4638
        %4640 = vrot.lane.b32.xlu0 %v3922, 108
        %v4641 = vpop.permute.xlu0 %4640
        %4642 = vrot.lane.b32.xlu0 %v3926, 108
        %v4643 = vpop.permute.xlu0 %4642
        %4644 = vrot.lane.b32.xlu0 %v3930, 108
        %v4645 = vpop.permute.xlu0 %4644
        %4646 = vrot.lane.b32.xlu0 %v3934, 108
        %v4647 = vpop.permute.xlu0 %4646
        %4648 = vrot.lane.b32.xlu0 %v3938, 108
        %v4649 = vpop.permute.xlu0 %4648
        %4650 = vrot.lane.b32.xlu0 %v3942, 108
        %v4651 = vpop.permute.xlu0 %4650
        %4652 = vrot.lane.b32.xlu0 %v3946, 108
        %v4653 = vpop.permute.xlu0 %4652
        %4654 = vrot.lane.b32.xlu0 %v3923, 108
        %v4655 = vpop.permute.xlu0 %4654
        %4656 = vrot.lane.b32.xlu0 %v3927, 108
        %v4657 = vpop.permute.xlu0 %4656
        %4658 = vrot.lane.b32.xlu0 %v3931, 108
        %v4659 = vpop.permute.xlu0 %4658
        %4660 = vrot.lane.b32.xlu0 %v3935, 108
        %v4661 = vpop.permute.xlu0 %4660
        %4662 = vrot.lane.b32.xlu0 %v3939, 108
        %v4663 = vpop.permute.xlu0 %4662
        %4664 = vrot.lane.b32.xlu0 %v3943, 108
        %v4665 = vpop.permute.xlu0 %4664
        %4666 = vrot.lane.b32.xlu0 %v3947, 108
        %v4667 = vpop.permute.xlu0 %4666
        %v4668 = vsel %vm1278, %v4641, %v4655
        %v4669 = vsel %vm1278, %v4643, %v4657
        %v4670 = vsel %vm1278, %v4645, %v4659
        %v4671 = vsel %vm1278, %v4647, %v4661
        %v4672 = vsel %vm1278, %v4649, %v4663
        %v4673 = vsel %vm1278, %v4651, %v4665
        %v4674 = vsel %vm1278, %v4653, %v4667
        %v4675 = vsel %vm1278, %v4627, %v4641
        %v4676 = vsel %vm1278, %v4629, %v4643
        %v4677 = vsel %vm1278, %v4631, %v4645
        %v4678 = vsel %vm1278, %v4633, %v4647
        %v4679 = vsel %vm1278, %v4635, %v4649
        %v4680 = vsel %vm1278, %v4637, %v4651
        %v4681 = vsel %vm1278, %v4639, %v4653
        %v4682 = vsel %vm1278, %v4613, %v4627
        %v4683 = vsel %vm1278, %v4615, %v4629
        %v4684 = vsel %vm1278, %v4617, %v4631
        %v4685 = vsel %vm1278, %v4619, %v4633
        %v4686 = vsel %vm1278, %v4621, %v4635
        %v4687 = vsel %vm1278, %v4623, %v4637
        %v4688 = vsel %vm1278, %v4625, %v4639
        %v4689 = vsel %vm1278, %v4655, %v4613
        %v4690 = vsel %vm1278, %v4657, %v4615
        %v4691 = vsel %vm1278, %v4659, %v4617
        %v4692 = vsel %vm1278, %v4661, %v4619
        %v4693 = vsel %vm1278, %v4663, %v4621
        %v4694 = vsel %vm1278, %v4665, %v4623
        %v4695 = vsel %vm1278, %v4667, %v4625
        %4696 = vrot.lane.b32.xlu0 %v3920, 109
        %v4697 = vpop.permute.xlu0 %4696
        %4698 = vrot.lane.b32.xlu0 %v3924, 109
        %v4699 = vpop.permute.xlu0 %4698
        %4700 = vrot.lane.b32.xlu0 %v3928, 109
        %v4701 = vpop.permute.xlu0 %4700
        %4702 = vrot.lane.b32.xlu0 %v3932, 109
        %v4703 = vpop.permute.xlu0 %4702
        %4704 = vrot.lane.b32.xlu0 %v3936, 109
        %v4705 = vpop.permute.xlu0 %4704
        %4706 = vrot.lane.b32.xlu0 %v3940, 109
        %v4707 = vpop.permute.xlu0 %4706
        %4708 = vrot.lane.b32.xlu0 %v3944, 109
        %v4709 = vpop.permute.xlu0 %4708
        %4710 = vrot.lane.b32.xlu0 %v3921, 109
        %v4711 = vpop.permute.xlu0 %4710
        %4712 = vrot.lane.b32.xlu0 %v3925, 109
        %v4713 = vpop.permute.xlu0 %4712
        %4714 = vrot.lane.b32.xlu0 %v3929, 109
        %v4715 = vpop.permute.xlu0 %4714
        %4716 = vrot.lane.b32.xlu0 %v3933, 109
        %v4717 = vpop.permute.xlu0 %4716
        %4718 = vrot.lane.b32.xlu0 %v3937, 109
        %v4719 = vpop.permute.xlu0 %4718
        %4720 = vrot.lane.b32.xlu0 %v3941, 109
        %v4721 = vpop.permute.xlu0 %4720
        %4722 = vrot.lane.b32.xlu0 %v3945, 109
        %v4723 = vpop.permute.xlu0 %4722
        %4724 = vrot.lane.b32.xlu0 %v3922, 109
        %v4725 = vpop.permute.xlu0 %4724
        %4726 = vrot.lane.b32.xlu0 %v3926, 109
        %v4727 = vpop.permute.xlu0 %4726
        %4728 = vrot.lane.b32.xlu0 %v3930, 109
        %v4729 = vpop.permute.xlu0 %4728
        %4730 = vrot.lane.b32.xlu0 %v3934, 109
        %v4731 = vpop.permute.xlu0 %4730
        %4732 = vrot.lane.b32.xlu0 %v3938, 109
        %v4733 = vpop.permute.xlu0 %4732
        %4734 = vrot.lane.b32.xlu0 %v3942, 109
        %v4735 = vpop.permute.xlu0 %4734
        %4736 = vrot.lane.b32.xlu0 %v3946, 109
        %v4737 = vpop.permute.xlu0 %4736
        %4738 = vrot.lane.b32.xlu0 %v3923, 109
        %v4739 = vpop.permute.xlu0 %4738
        %4740 = vrot.lane.b32.xlu0 %v3927, 109
        %v4741 = vpop.permute.xlu0 %4740
        %4742 = vrot.lane.b32.xlu0 %v3931, 109
        %v4743 = vpop.permute.xlu0 %4742
        %4744 = vrot.lane.b32.xlu0 %v3935, 109
        %v4745 = vpop.permute.xlu0 %4744
        %4746 = vrot.lane.b32.xlu0 %v3939, 109
        %v4747 = vpop.permute.xlu0 %4746
        %4748 = vrot.lane.b32.xlu0 %v3943, 109
        %v4749 = vpop.permute.xlu0 %4748
        %4750 = vrot.lane.b32.xlu0 %v3947, 109
        %v4751 = vpop.permute.xlu0 %4750
        %v4752 = vsel %vm1265, %v4725, %v4739
        %v4753 = vsel %vm1265, %v4727, %v4741
        %v4754 = vsel %vm1265, %v4729, %v4743
        %v4755 = vsel %vm1265, %v4731, %v4745
        %v4756 = vsel %vm1265, %v4733, %v4747
        %v4757 = vsel %vm1265, %v4735, %v4749
        %v4758 = vsel %vm1265, %v4737, %v4751
        %v4759 = vsel %vm1265, %v4711, %v4725
        %v4760 = vsel %vm1265, %v4713, %v4727
        %v4761 = vsel %vm1265, %v4715, %v4729
        %v4762 = vsel %vm1265, %v4717, %v4731
        %v4763 = vsel %vm1265, %v4719, %v4733
        %v4764 = vsel %vm1265, %v4721, %v4735
        %v4765 = vsel %vm1265, %v4723, %v4737
        %v4766 = vsel %vm1265, %v4697, %v4711
        %v4767 = vsel %vm1265, %v4699, %v4713
        %v4768 = vsel %vm1265, %v4701, %v4715
        %v4769 = vsel %vm1265, %v4703, %v4717
        %v4770 = vsel %vm1265, %v4705, %v4719
        %v4771 = vsel %vm1265, %v4707, %v4721
        %v4772 = vsel %vm1265, %v4709, %v4723
        %v4773 = vsel %vm1265, %v4739, %v4697
        %v4774 = vsel %vm1265, %v4741, %v4699
        %v4775 = vsel %vm1265, %v4743, %v4701
        %v4776 = vsel %vm1265, %v4745, %v4703
        %v4777 = vsel %vm1265, %v4747, %v4705
        %v4778 = vsel %vm1265, %v4749, %v4707
        %v4779 = vsel %vm1265, %v4751, %v4709
        %4780 = vrot.lane.b32.xlu0 %v3920, 110
        %v4781 = vpop.permute.xlu0 %4780
        %4782 = vrot.lane.b32.xlu0 %v3924, 110
        %v4783 = vpop.permute.xlu0 %4782
        %4784 = vrot.lane.b32.xlu0 %v3928, 110
        %v4785 = vpop.permute.xlu0 %4784
        %4786 = vrot.lane.b32.xlu0 %v3932, 110
        %v4787 = vpop.permute.xlu0 %4786
        %4788 = vrot.lane.b32.xlu0 %v3936, 110
        %v4789 = vpop.permute.xlu0 %4788
        %4790 = vrot.lane.b32.xlu0 %v3940, 110
        %v4791 = vpop.permute.xlu0 %4790
        %4792 = vrot.lane.b32.xlu0 %v3944, 110
        %v4793 = vpop.permute.xlu0 %4792
        %4794 = vrot.lane.b32.xlu0 %v3921, 110
        %v4795 = vpop.permute.xlu0 %4794
        %4796 = vrot.lane.b32.xlu0 %v3925, 110
        %v4797 = vpop.permute.xlu0 %4796
        %4798 = vrot.lane.b32.xlu0 %v3929, 110
        %v4799 = vpop.permute.xlu0 %4798
        %4800 = vrot.lane.b32.xlu0 %v3933, 110
        %v4801 = vpop.permute.xlu0 %4800
        %4802 = vrot.lane.b32.xlu0 %v3937, 110
        %v4803 = vpop.permute.xlu0 %4802
        %4804 = vrot.lane.b32.xlu0 %v3941, 110
        %v4805 = vpop.permute.xlu0 %4804
        %4806 = vrot.lane.b32.xlu0 %v3945, 110
        %v4807 = vpop.permute.xlu0 %4806
        %4808 = vrot.lane.b32.xlu0 %v3922, 110
        %v4809 = vpop.permute.xlu0 %4808
        %4810 = vrot.lane.b32.xlu0 %v3926, 110
        %v4811 = vpop.permute.xlu0 %4810
        %4812 = vrot.lane.b32.xlu0 %v3930, 110
        %v4813 = vpop.permute.xlu0 %4812
        %4814 = vrot.lane.b32.xlu0 %v3934, 110
        %v4815 = vpop.permute.xlu0 %4814
        %4816 = vrot.lane.b32.xlu0 %v3938, 110
        %v4817 = vpop.permute.xlu0 %4816
        %4818 = vrot.lane.b32.xlu0 %v3942, 110
        %v4819 = vpop.permute.xlu0 %4818
        %4820 = vrot.lane.b32.xlu0 %v3946, 110
        %v4821 = vpop.permute.xlu0 %4820
        %4822 = vrot.lane.b32.xlu0 %v3923, 110
        %v4823 = vpop.permute.xlu0 %4822
        %4824 = vrot.lane.b32.xlu0 %v3927, 110
        %v4825 = vpop.permute.xlu0 %4824
        %4826 = vrot.lane.b32.xlu0 %v3931, 110
        %v4827 = vpop.permute.xlu0 %4826
        %4828 = vrot.lane.b32.xlu0 %v3935, 110
        %v4829 = vpop.permute.xlu0 %4828
        %4830 = vrot.lane.b32.xlu0 %v3939, 110
        %v4831 = vpop.permute.xlu0 %4830
        %4832 = vrot.lane.b32.xlu0 %v3943, 110
        %v4833 = vpop.permute.xlu0 %4832
        %4834 = vrot.lane.b32.xlu0 %v3947, 110
        %v4835 = vpop.permute.xlu0 %4834
        %v4836 = vsel %vm1252, %v4809, %v4823
        %v4837 = vsel %vm1252, %v4811, %v4825
        %v4838 = vsel %vm1252, %v4813, %v4827
        %v4839 = vsel %vm1252, %v4815, %v4829
        %v4840 = vsel %vm1252, %v4817, %v4831
        %v4841 = vsel %vm1252, %v4819, %v4833
        %v4842 = vsel %vm1252, %v4821, %v4835
        %v4843 = vsel %vm1252, %v4795, %v4809
        %v4844 = vsel %vm1252, %v4797, %v4811
        %v4845 = vsel %vm1252, %v4799, %v4813
        %v4846 = vsel %vm1252, %v4801, %v4815
        %v4847 = vsel %vm1252, %v4803, %v4817
        %v4848 = vsel %vm1252, %v4805, %v4819
        %v4849 = vsel %vm1252, %v4807, %v4821
        %v4850 = vsel %vm1252, %v4781, %v4795
        %v4851 = vsel %vm1252, %v4783, %v4797
        %v4852 = vsel %vm1252, %v4785, %v4799
        %v4853 = vsel %vm1252, %v4787, %v4801
        %v4854 = vsel %vm1252, %v4789, %v4803
        %v4855 = vsel %vm1252, %v4791, %v4805
        %v4856 = vsel %vm1252, %v4793, %v4807
        %v4857 = vsel %vm1252, %v4823, %v4781
        %v4858 = vsel %vm1252, %v4825, %v4783
        %v4859 = vsel %vm1252, %v4827, %v4785
        %v4860 = vsel %vm1252, %v4829, %v4787
        %v4861 = vsel %vm1252, %v4831, %v4789
        %v4862 = vsel %vm1252, %v4833, %v4791
        %v4863 = vsel %vm1252, %v4835, %v4793
        %v4864 = vpack.c.bf16 %v4515, %v4514
        %v4865 = vpack.c.bf16 %v4508, %v4507
        %v4866 = vpack.c.bf16 %v4501, %v4500
        %v4867 = vpack.c.bf16 %v4522, %v4521
        %v4868 = vpack.c.bf16 %v4517, %v4516
        %v4869 = vpack.c.bf16 %v4510, %v4509
        %v4870 = vpack.c.bf16 %v4503, %v4502
        %v4871 = vpack.c.bf16 %v4524, %v4523
        %v4872 = vpack.c.bf16 %v4519, %v4518
        %v4873 = vpack.c.bf16 %v4512, %v4511
        %v4874 = vpack.c.bf16 %v4505, %v4504
        %v4875 = vpack.c.bf16 %v4526, %v4525
        %v4876 = vpack.c.bf16 %v4598, %v4520
        %v4877 = vpack.c.bf16 %v4591, %v4513
        %v4878 = vpack.c.bf16 %v4584, %v4506
        %v4879 = vpack.c.bf16 %v4605, %v4527
        %v4880 = vpack.c.bf16 %v4600, %v4599
        %v4881 = vpack.c.bf16 %v4593, %v4592
        %v4882 = vpack.c.bf16 %v4586, %v4585
        %v4883 = vpack.c.bf16 %v4607, %v4606
        %v4884 = vpack.c.bf16 %v4602, %v4601
        %v4885 = vpack.c.bf16 %v4595, %v4594
        %v4886 = vpack.c.bf16 %v4588, %v4587
        %v4887 = vpack.c.bf16 %v4609, %v4608
        %v4888 = vpack.c.bf16 %v4604, %v4603
        %v4889 = vpack.c.bf16 %v4597, %v4596
        %v4890 = vpack.c.bf16 %v4590, %v4589
        %v4891 = vpack.c.bf16 %v4611, %v4610
        %v4892 = vpack.c.bf16 %v4683, %v4682
        %v4893 = vpack.c.bf16 %v4676, %v4675
        %v4894 = vpack.c.bf16 %v4669, %v4668
        %v4895 = vpack.c.bf16 %v4690, %v4689
        %v4896 = vpack.c.bf16 %v4685, %v4684
        %v4897 = vpack.c.bf16 %v4678, %v4677
        %v4898 = vpack.c.bf16 %v4671, %v4670
        %v4899 = vpack.c.bf16 %v4692, %v4691
        %v4900 = vpack.c.bf16 %v4687, %v4686
        %v4901 = vpack.c.bf16 %v4680, %v4679
        %v4902 = vpack.c.bf16 %v4673, %v4672
        %v4903 = vpack.c.bf16 %v4694, %v4693
        %v4904 = vpack.c.bf16 %v4766, %v4688
        %v4905 = vpack.c.bf16 %v4759, %v4681
        %v4906 = vpack.c.bf16 %v4752, %v4674
        %v4907 = vpack.c.bf16 %v4773, %v4695
        %v4908 = vpack.c.bf16 %v4768, %v4767
        %v4909 = vpack.c.bf16 %v4761, %v4760
        %v4910 = vpack.c.bf16 %v4754, %v4753
        %v4911 = vpack.c.bf16 %v4775, %v4774
        %v4912 = vpack.c.bf16 %v4770, %v4769
        %v4913 = vpack.c.bf16 %v4763, %v4762
        %v4914 = vpack.c.bf16 %v4756, %v4755
        %v4915 = vpack.c.bf16 %v4777, %v4776
        %v4916 = vpack.c.bf16 %v4772, %v4771
        %v4917 = vpack.c.bf16 %v4765, %v4764
        %v4918 = vpack.c.bf16 %v4758, %v4757
        %v4919 = vpack.c.bf16 %v4779, %v4778
        %v4920 = vpack.c.bf16 %v4851, %v4850
        %v4921 = vpack.c.bf16 %v4844, %v4843
        %v4922 = vpack.c.bf16 %v4837, %v4836
        %v4923 = vpack.c.bf16 %v4858, %v4857
        %v4924 = vpack.c.bf16 %v4853, %v4852
        %v4925 = vpack.c.bf16 %v4846, %v4845
        %v4926 = vpack.c.bf16 %v4839, %v4838
        %v4927 = vpack.c.bf16 %v4860, %v4859
        %v4928 = vpack.c.bf16 %v4855, %v4854
        %v4929 = vpack.c.bf16 %v4848, %v4847
        %v4930 = vpack.c.bf16 %v4841, %v4840
        %v4931 = vpack.c.bf16 %v4862, %v4861
        %v4932 = vpack.c.bf16 %v4856, %v4856
        %v4933 = vpack.c.bf16 %v4849, %v4849
        %v4934 = vpack.c.bf16 %v4842, %v4842
        %v4935 = vpack.c.bf16 %v4863, %v4863
        %s4936 = scalar_lea.vmem [#allocation30], 24
        %v4937 = vld [vmem:[%s4936] sm:$0xff]
        %v4938 = vld [vmem:[%s4936 + $0x8] sm:$0xf]
        %v4939 = vld [vmem:[%s4936 + $0xc] sm:$0x33]
        %v4940 = vld [vmem:[%s4936 + $0x14] sm:$0x3]
        %v4945 = vunpack.c.l.b16 %v4937
        %v4946 = vunpack.c.h.b16 %v4937
        %v4947 = vunpack.c.l.b16 %v4938
        %v4948 = vunpack.c.l.b16 %v4939
        %v4949 = vunpack.c.h.b16 %v4939
        %v4950 = vunpack.c.l.b16 %v4940
        %v4951 = vpack.c.b16 %v4948, %v4945
        %v4952 = vpack.c.b16 %v4949, %v4946
        %v4953 = vpack.c.b16 %v4950, %v4947
        %vm4956 = vcmask 195584
        %v4958 = vsel %vm4956, %v4953, 0
        %v4961 = vsel %vm1521, %v4932, 0
        %v4964 = vsel %vm1521, %v4933, 0
        %v4967 = vsel %vm1521, %v4934, 0
        %v4970 = vsel %vm1521, %v4935, 0
        %4972 = vmatprep.subr.bf16.mxu0 %v4865
        %4973 = vmatpush1.bf16.msra.mxu0 %v4864
        %4974 = vmatprep.subr.bf16.mxu0 %v4869
        %4975 = vmatpush1.bf16.msra.mxu0 %v4868
        %4976 = vmatprep.subr.bf16.mxu0 %v4873
        %4977 = vmatpush1.bf16.msra.mxu0 %v4872
        %4978 = vmatprep.subr.bf16.mxu0 %v4877
        %4979 = vmatpush1.bf16.msra.mxu0 %v4876
        %4980 = vmatprep.subr.bf16.mxu0 %v4881
        %4981 = vmatpush1.bf16.msra.mxu0 %v4880
        %4982 = vmatprep.subr.bf16.mxu0 %v4885
        %4983 = vmatpush1.bf16.msra.mxu0 %v4884
        %4984 = vmatprep.subr.bf16.mxu0 %v4889
        %4985 = vmatpush1.bf16.msra.mxu0 %v4888
        %4986 = vmatprep.subr.bf16.mxu0 %v4893
        %4987 = vmatpush1.bf16.msra.mxu0 %v4892
        %4988 = vmatprep.subr.bf16.mxu0 %v4897
        %4989 = vmatpush1.bf16.msra.mxu0 %v4896
        %4990 = vmatprep.subr.bf16.mxu0 %v4901
        %4991 = vmatpush1.bf16.msra.mxu0 %v4900
        %4992 = vmatprep.subr.bf16.mxu0 %v4905
        %4993 = vmatpush1.bf16.msra.mxu0 %v4904
        %4994 = vmatprep.subr.bf16.mxu0 %v4909
        %4995 = vmatpush1.bf16.msra.mxu0 %v4908
        %4996 = vmatprep.subr.bf16.mxu0 %v4913
        %4997 = vmatpush1.bf16.msra.mxu0 %v4912
        %4998 = vmatprep.subr.bf16.mxu0 %v4917
        %4999 = vmatpush1.bf16.msra.mxu0 %v4916
        %5000 = vmatprep.subr.bf16.mxu0 %v4921
        %5001 = vmatpush1.bf16.msra.mxu0 %v4920
        %5002 = vmatprep.subr.bf16.mxu0 %v4925
        %5003 = vmatpush1.bf16.msra.mxu0 %v4924
        %5004 = vmatprep.mubr.bf16.mxu0 %v4952
        %5005 = vmatmul.mubr.bf16.gmra.mrb[0].mxu0 %v4951
        %v5006 = vpop.f32.mrb[0].mxu0
        %v5007 = vadd.f32 0.0, %v5006
        %v5008 = vpop.f32.mrb[0].mxu0
        %v5009 = vadd.f32 0.0, %v5008
        %v5010 = vpop.f32.mrb[0].mxu0
        %v5011 = vadd.f32 0.0, %v5010
        %v5012 = vpop.f32.mrb[0].mxu0
        %v5013 = vadd.f32 0.0, %v5012
        %5014 = vdwg.mxu0
        %5015 = vmatprep.subr.bf16.mxu0 %v4929
        %5016 = vmatpush1.bf16.msra.mxu0 %v4928
        %5017 = vmatprep.subr.bf16.mxu0 %v4964
        %5018 = vmatpush1.bf16.msra.mxu0 %v4961
        %5019 = vmatprep.subr.bf16.mxu0 0
        %5020 = vmatpush1.bf16.msra.mxu0 0
        %5021 = vmatprep.subr.bf16.mxu0 0
        %5022 = vmatpush1.bf16.msra.mxu0 0
        %5023 = vmatprep.subr.bf16.mxu0 0
        %5024 = vmatpush1.bf16.msra.mxu0 0
        %5025 = vmatprep.subr.bf16.mxu0 0
        %5026 = vmatpush1.bf16.msra.mxu0 0
        %5027 = vmatprep.subr.bf16.mxu0 0
        %5028 = vmatpush1.bf16.msra.mxu0 0
        %5029 = vmatprep.subr.bf16.mxu0 0
        %5030 = vmatpush1.bf16.msra.mxu0 0
        %5031 = vmatprep.subr.bf16.mxu0 0
        %5032 = vmatpush1.bf16.msra.mxu0 0
        %5033 = vmatprep.subr.bf16.mxu0 0
        %5034 = vmatpush1.bf16.msra.mxu0 0
        %5035 = vmatprep.subr.bf16.mxu0 0
        %5036 = vmatpush1.bf16.msra.mxu0 0
        %5037 = vmatprep.subr.bf16.mxu0 0
        %5038 = vmatpush1.bf16.msra.mxu0 0
        %5039 = vmatprep.subr.bf16.mxu0 0
        %5040 = vmatpush1.bf16.msra.mxu0 0
        %5041 = vmatprep.subr.bf16.mxu0 0
        %5042 = vmatpush1.bf16.msra.mxu0 0
        %5043 = vmatprep.subr.bf16.mxu0 0
        %5044 = vmatpush1.bf16.msra.mxu0 0
        %5045 = vmatprep.subr.bf16.mxu0 0
        %5046 = vmatpush1.bf16.msra.mxu0 0
        %5047 = vmatprep.mubr.bf16.mxu0 0
        %5048 = vmatmul.mubr.bf16.gmra.mrb[0].mxu0 %v4958
        %v5049 = vpop.f32.mrb[0].mxu0
        %v5050 = vadd.f32 %v5007, %v5049
        %v5051 = vpop.f32.mrb[0].mxu0
        %v5052 = vadd.f32 %v5009, %v5051
        %v5053 = vpop.f32.mrb[0].mxu0
        %v5054 = vadd.f32 %v5011, %v5053
        %v5055 = vpop.f32.mrb[0].mxu0
        %v5056 = vadd.f32 %v5013, %v5055
        %5057 = vdwg.mxu0
        %5058 = vmatprep.subr.bf16.mxu0 %v4867
        %5059 = vmatpush1.bf16.msra.mxu0 %v4866
        %5060 = vmatprep.subr.bf16.mxu0 %v4871
        %5061 = vmatpush1.bf16.msra.mxu0 %v4870
        %5062 = vmatprep.subr.bf16.mxu0 %v4875
        %5063 = vmatpush1.bf16.msra.mxu0 %v4874
        %5064 = vmatprep.subr.bf16.mxu0 %v4879
        %5065 = vmatpush1.bf16.msra.mxu0 %v4878
        %5066 = vmatprep.subr.bf16.mxu0 %v4883
        %5067 = vmatpush1.bf16.msra.mxu0 %v4882
        %5068 = vmatprep.subr.bf16.mxu0 %v4887
        %5069 = vmatpush1.bf16.msra.mxu0 %v4886
        %5070 = vmatprep.subr.bf16.mxu0 %v4891
        %5071 = vmatpush1.bf16.msra.mxu0 %v4890
        %5072 = vmatprep.subr.bf16.mxu0 %v4895
        %5073 = vmatpush1.bf16.msra.mxu0 %v4894
        %5074 = vmatprep.subr.bf16.mxu0 %v4899
        %5075 = vmatpush1.bf16.msra.mxu0 %v4898
        %5076 = vmatprep.subr.bf16.mxu0 %v4903
        %5077 = vmatpush1.bf16.msra.mxu0 %v4902
        %5078 = vmatprep.subr.bf16.mxu0 %v4907
        %5079 = vmatpush1.bf16.msra.mxu0 %v4906
        %5080 = vmatprep.subr.bf16.mxu0 %v4911
        %5081 = vmatpush1.bf16.msra.mxu0 %v4910
        %5082 = vmatprep.subr.bf16.mxu0 %v4915
        %5083 = vmatpush1.bf16.msra.mxu0 %v4914
        %5084 = vmatprep.subr.bf16.mxu0 %v4919
        %5085 = vmatpush1.bf16.msra.mxu0 %v4918
        %5086 = vmatprep.subr.bf16.mxu0 %v4923
        %5087 = vmatpush1.bf16.msra.mxu0 %v4922
        %5088 = vmatprep.subr.bf16.mxu0 %v4927
        %5089 = vmatpush1.bf16.msra.mxu0 %v4926
        %5090 = vmatprep.mubr.bf16.mxu0 %v4952
        %5091 = vmatmul.mubr.bf16.gmra.mrb[0].mxu0 %v4951
        %v5092 = vpop.f32.mrb[0].mxu0
        %v5093 = vadd.f32 0.0, %v5092
        %v5094 = vpop.f32.mrb[0].mxu0
        %v5095 = vadd.f32 0.0, %v5094
        %v5096 = vpop.f32.mrb[0].mxu0
        %v5097 = vadd.f32 0.0, %v5096
        %v5098 = vpop.f32.mrb[0].mxu0
        %v5099 = vadd.f32 0.0, %v5098
        %5100 = vdwg.mxu0
        %5101 = vmatprep.subr.bf16.mxu0 %v4931
        %5102 = vmatpush1.bf16.msra.mxu0 %v4930
        %5103 = vmatprep.subr.bf16.mxu0 %v4970
        %5104 = vmatpush1.bf16.msra.mxu0 %v4967
        %5105 = vmatprep.subr.bf16.mxu0 0
        %5106 = vmatpush1.bf16.msra.mxu0 0
        %5107 = vmatprep.subr.bf16.mxu0 0
        %5108 = vmatpush1.bf16.msra.mxu0 0
        %5109 = vmatprep.subr.bf16.mxu0 0
        %5110 = vmatpush1.bf16.msra.mxu0 0
        %5111 = vmatprep.subr.bf16.mxu0 0
        %5112 = vmatpush1.bf16.msra.mxu0 0
        %5113 = vmatprep.subr.bf16.mxu0 0
        %5114 = vmatpush1.bf16.msra.mxu0 0
        %5115 = vmatprep.subr.bf16.mxu0 0
        %5116 = vmatpush1.bf16.msra.mxu0 0
        %5117 = vmatprep.subr.bf16.mxu0 0
        %5118 = vmatpush1.bf16.msra.mxu0 0
        %5119 = vmatprep.subr.bf16.mxu0 0
        %5120 = vmatpush1.bf16.msra.mxu0 0
        %5121 = vmatprep.subr.bf16.mxu0 0
        %5122 = vmatpush1.bf16.msra.mxu0 0
        %5123 = vmatprep.subr.bf16.mxu0 0
        %5124 = vmatpush1.bf16.msra.mxu0 0
        %5125 = vmatprep.subr.bf16.mxu0 0
        %5126 = vmatpush1.bf16.msra.mxu0 0
        %5127 = vmatprep.subr.bf16.mxu0 0
        %5128 = vmatpush1.bf16.msra.mxu0 0
        %5129 = vmatprep.subr.bf16.mxu0 0
        %5130 = vmatpush1.bf16.msra.mxu0 0
        %5131 = vmatprep.subr.bf16.mxu0 0
        %5132 = vmatpush1.bf16.msra.mxu0 0
        %5133 = vmatprep.mubr.bf16.mxu0 0
        %5134 = vmatmul.mubr.bf16.gmra.mrb[0].mxu0 %v4958
        %v5135 = vpop.f32.mrb[0].mxu0
        %v5136 = vadd.f32 %v5093, %v5135
        %v5137 = vpop.f32.mrb[0].mxu0
        %v5138 = vadd.f32 %v5095, %v5137
        %v5139 = vpop.f32.mrb[0].mxu0
        %v5140 = vadd.f32 %v5097, %v5139
        %v5141 = vpop.f32.mrb[0].mxu0
        %v5142 = vadd.f32 %v5099, %v5141
        %5143 = vdwg.mxu0
        %v5148 = vunpack.c.l.b16 %v4440
        %v5149 = vunpack.c.h.b16 %v4440
        %v5150 = vunpack.c.l.b16 %v4441
        %v5151 = vunpack.c.l.b16 %v4442
        %v5152 = vunpack.c.h.b16 %v4442
        %v5153 = vunpack.c.l.b16 %v4443
        %v5154 = vpack.c.b16 %v5151, %v5148
        %v5155 = vpack.c.b16 %v5152, %v5149
        %v5156 = vpack.c.b16 %v5153, %v5150
        %v5160 = vsel %vm4956, %v5156, 0
        %v5163 = vsel %vm1521, %v4436, 0
        %v5166 = vsel %vm1521, %v4437, 0
        %v5169 = vsel %vm1521, %v4438, 0
        %v5172 = vsel %vm1521, %v4439, 0
        %5174 = vmatprep.subr.bf16.mxu0 %v4369
        %5175 = vmatpush1.bf16.msra.mxu0 %v4368
        %5176 = vmatprep.subr.bf16.mxu0 %v4373
        %5177 = vmatpush1.bf16.msra.mxu0 %v4372
        %5178 = vmatprep.subr.bf16.mxu0 %v4377
        %5179 = vmatpush1.bf16.msra.mxu0 %v4376
        %5180 = vmatprep.subr.bf16.mxu0 %v4381
        %5181 = vmatpush1.bf16.msra.mxu0 %v4380
        %5182 = vmatprep.subr.bf16.mxu0 %v4385
        %5183 = vmatpush1.bf16.msra.mxu0 %v4384
        %5184 = vmatprep.subr.bf16.mxu0 %v4389
        %5185 = vmatpush1.bf16.msra.mxu0 %v4388
        %5186 = vmatprep.subr.bf16.mxu0 %v4393
        %5187 = vmatpush1.bf16.msra.mxu0 %v4392
        %5188 = vmatprep.subr.bf16.mxu0 %v4397
        %5189 = vmatpush1.bf16.msra.mxu0 %v4396
        %5190 = vmatprep.subr.bf16.mxu0 %v4401
        %5191 = vmatpush1.bf16.msra.mxu0 %v4400
        %5192 = vmatprep.subr.bf16.mxu0 %v4405
        %5193 = vmatpush1.bf16.msra.mxu0 %v4404
        %5194 = vmatprep.subr.bf16.mxu0 %v4409
        %5195 = vmatpush1.bf16.msra.mxu0 %v4408
        %5196 = vmatprep.subr.bf16.mxu0 %v4413
        %5197 = vmatpush1.bf16.msra.mxu0 %v4412
        %5198 = vmatprep.subr.bf16.mxu0 %v4417
        %5199 = vmatpush1.bf16.msra.mxu0 %v4416
        %5200 = vmatprep.subr.bf16.mxu0 %v4421
        %5201 = vmatpush1.bf16.msra.mxu0 %v4420
        %5202 = vmatprep.subr.bf16.mxu0 %v4425
        %5203 = vmatpush1.bf16.msra.mxu0 %v4424
        %5204 = vmatprep.subr.bf16.mxu0 %v4429
        %5205 = vmatpush1.bf16.msra.mxu0 %v4428
        %5206 = vmatprep.mubr.bf16.mxu0 %v5155
        %5207 = vmatmul.mubr.bf16.gmra.mrb[0].mxu0 %v5154
        %v5208 = vpop.f32.mrb[0].mxu0
        %v5209 = vadd.f32 %v5050, %v5208
        %v5210 = vpop.f32.mrb[0].mxu0
        %v5211 = vadd.f32 %v5052, %v5210
        %v5212 = vpop.f32.mrb[0].mxu0
        %v5213 = vadd.f32 %v5054, %v5212
        %v5214 = vpop.f32.mrb[0].mxu0
        %v5215 = vadd.f32 %v5056, %v5214
        %5216 = vdwg.mxu0
        %5217 = vmatprep.subr.bf16.mxu0 %v4433
        %5218 = vmatpush1.bf16.msra.mxu0 %v4432
        %5219 = vmatprep.subr.bf16.mxu0 %v5166
        %5220 = vmatpush1.bf16.msra.mxu0 %v5163
        %5221 = vmatprep.subr.bf16.mxu0 0
        %5222 = vmatpush1.bf16.msra.mxu0 0
        %5223 = vmatprep.subr.bf16.mxu0 0
        %5224 = vmatpush1.bf16.msra.mxu0 0
        %5225 = vmatprep.subr.bf16.mxu0 0
        %5226 = vmatpush1.bf16.msra.mxu0 0
        %5227 = vmatprep.subr.bf16.mxu0 0
        %5228 = vmatpush1.bf16.msra.mxu0 0
        %5229 = vmatprep.subr.bf16.mxu0 0
        %5230 = vmatpush1.bf16.msra.mxu0 0
        %5231 = vmatprep.subr.bf16.mxu0 0
        %5232 = vmatpush1.bf16.msra.mxu0 0
        %5233 = vmatprep.subr.bf16.mxu0 0
        %5234 = vmatpush1.bf16.msra.mxu0 0
        %5235 = vmatprep.subr.bf16.mxu0 0
        %5236 = vmatpush1.bf16.msra.mxu0 0
        %5237 = vmatprep.subr.bf16.mxu0 0
        %5238 = vmatpush1.bf16.msra.mxu0 0
        %5239 = vmatprep.subr.bf16.mxu0 0
        %5240 = vmatpush1.bf16.msra.mxu0 0
        %5241 = vmatprep.subr.bf16.mxu0 0
        %5242 = vmatpush1.bf16.msra.mxu0 0
        %5243 = vmatprep.subr.bf16.mxu0 0
        %5244 = vmatpush1.bf16.msra.mxu0 0
        %5245 = vmatprep.subr.bf16.mxu0 0
        %5246 = vmatpush1.bf16.msra.mxu0 0
        %5247 = vmatprep.subr.bf16.mxu0 0
        %5248 = vmatpush1.bf16.msra.mxu0 0
        %5249 = vmatprep.mubr.bf16.mxu0 0
        %5250 = vmatmul.mubr.bf16.gmra.mrb[0].mxu0 %v5160
        %v5251 = vpop.f32.mrb[0].mxu0
        %v5252 = vadd.f32 %v5209, %v5251
        %v5253 = vpop.f32.mrb[0].mxu0
        %v5254 = vadd.f32 %v5211, %v5253
        %v5255 = vpop.f32.mrb[0].mxu0
        %v5256 = vadd.f32 %v5213, %v5255
        %v5257 = vpop.f32.mrb[0].mxu0
        %v5258 = vadd.f32 %v5215, %v5257
        %5259 = vdwg.mxu0
        %5260 = vmatprep.subr.bf16.mxu0 %v4371
        %5261 = vmatpush1.bf16.msra.mxu0 %v4370
        %5262 = vmatprep.subr.bf16.mxu0 %v4375
        %5263 = vmatpush1.bf16.msra.mxu0 %v4374
        %5264 = vmatprep.subr.bf16.mxu0 %v4379
        %5265 = vmatpush1.bf16.msra.mxu0 %v4378
        %5266 = vmatprep.subr.bf16.mxu0 %v4383
        %5267 = vmatpush1.bf16.msra.mxu0 %v4382
        %5268 = vmatprep.subr.bf16.mxu0 %v4387
        %5269 = vmatpush1.bf16.msra.mxu0 %v4386
        %5270 = vmatprep.subr.bf16.mxu0 %v4391
        %5271 = vmatpush1.bf16.msra.mxu0 %v4390
        %5272 = vmatprep.subr.bf16.mxu0 %v4395
        %5273 = vmatpush1.bf16.msra.mxu0 %v4394
        %5274 = vmatprep.subr.bf16.mxu0 %v4399
        %5275 = vmatpush1.bf16.msra.mxu0 %v4398
        %5276 = vmatprep.subr.bf16.mxu0 %v4403
        %5277 = vmatpush1.bf16.msra.mxu0 %v4402
        %5278 = vmatprep.subr.bf16.mxu0 %v4407
        %5279 = vmatpush1.bf16.msra.mxu0 %v4406
        %5280 = vmatprep.subr.bf16.mxu0 %v4411
        %5281 = vmatpush1.bf16.msra.mxu0 %v4410
        %5282 = vmatprep.subr.bf16.mxu0 %v4415
        %5283 = vmatpush1.bf16.msra.mxu0 %v4414
        %5284 = vmatprep.subr.bf16.mxu0 %v4419
        %5285 = vmatpush1.bf16.msra.mxu0 %v4418
        %5286 = vmatprep.subr.bf16.mxu0 %v4423
        %5287 = vmatpush1.bf16.msra.mxu0 %v4422
        %5288 = vmatprep.subr.bf16.mxu0 %v4427
        %5289 = vmatpush1.bf16.msra.mxu0 %v4426
        %5290 = vmatprep.subr.bf16.mxu0 %v4431
        %5291 = vmatpush1.bf16.msra.mxu0 %v4430
        %5292 = vmatprep.mubr.bf16.mxu0 %v5155
        %5293 = vmatmul.mubr.bf16.gmra.mrb[0].mxu0 %v5154
        %v5294 = vpop.f32.mrb[0].mxu0
        %v5295 = vadd.f32 %v5136, %v5294
        %v5296 = vpop.f32.mrb[0].mxu0
        %v5297 = vadd.f32 %v5138, %v5296
        %v5298 = vpop.f32.mrb[0].mxu0
        %v5299 = vadd.f32 %v5140, %v5298
        %v5300 = vpop.f32.mrb[0].mxu0
        %v5301 = vadd.f32 %v5142, %v5300
        %5302 = vdwg.mxu0
        %5303 = vmatprep.subr.bf16.mxu0 %v4435
        %5304 = vmatpush1.bf16.msra.mxu0 %v4434
        %5305 = vmatprep.subr.bf16.mxu0 %v5172
        %5306 = vmatpush1.bf16.msra.mxu0 %v5169
        %5307 = vmatprep.subr.bf16.mxu0 0
        %5308 = vmatpush1.bf16.msra.mxu0 0
        %5309 = vmatprep.subr.bf16.mxu0 0
        %5310 = vmatpush1.bf16.msra.mxu0 0
        %5311 = vmatprep.subr.bf16.mxu0 0
        %5312 = vmatpush1.bf16.msra.mxu0 0
        %5313 = vmatprep.subr.bf16.mxu0 0
        %5314 = vmatpush1.bf16.msra.mxu0 0
        %5315 = vmatprep.subr.bf16.mxu0 0
        %5316 = vmatpush1.bf16.msra.mxu0 0
        %5317 = vmatprep.subr.bf16.mxu0 0
        %5318 = vmatpush1.bf16.msra.mxu0 0
        %5319 = vmatprep.subr.bf16.mxu0 0
        %5320 = vmatpush1.bf16.msra.mxu0 0
        %5321 = vmatprep.subr.bf16.mxu0 0
        %5322 = vmatpush1.bf16.msra.mxu0 0
        %5323 = vmatprep.subr.bf16.mxu0 0
        %5324 = vmatpush1.bf16.msra.mxu0 0
        %5325 = vmatprep.subr.bf16.mxu0 0
        %5326 = vmatpush1.bf16.msra.mxu0 0
        %5327 = vmatprep.subr.bf16.mxu0 0
        %5328 = vmatpush1.bf16.msra.mxu0 0
        %5329 = vmatprep.subr.bf16.mxu0 0
        %5330 = vmatpush1.bf16.msra.mxu0 0
        %5331 = vmatprep.subr.bf16.mxu0 0
        %5332 = vmatpush1.bf16.msra.mxu0 0
        %5333 = vmatprep.subr.bf16.mxu0 0
        %5334 = vmatpush1.bf16.msra.mxu0 0
        %5335 = vmatprep.mubr.bf16.mxu0 0
        %5336 = vmatmul.mubr.bf16.gmra.mrb[0].mxu0 %v5160
        %v5337 = vpop.f32.mrb[0].mxu0
        %v5338 = vadd.f32 %v5295, %v5337
        %v5339 = vpop.f32.mrb[0].mxu0
        %v5340 = vadd.f32 %v5297, %v5339
        %v5341 = vpop.f32.mrb[0].mxu0
        %v5342 = vadd.f32 %v5299, %v5341
        %v5343 = vpop.f32.mrb[0].mxu0
        %v5344 = vadd.f32 %v5301, %v5343
        %5345 = vdwg.mxu0
        %5346 = vrot.lane.b32.xlu0 %v3920, 126
        %v5347 = vpop.permute.xlu0 %5346
        %5348 = vrot.lane.b32.xlu0 %v3924, 126
        %v5349 = vpop.permute.xlu0 %5348
        %5350 = vrot.lane.b32.xlu0 %v3928, 126
        %v5351 = vpop.permute.xlu0 %5350
        %5352 = vrot.lane.b32.xlu0 %v3932, 126
        %v5353 = vpop.permute.xlu0 %5352
        %5354 = vrot.lane.b32.xlu0 %v3936, 126
        %v5355 = vpop.permute.xlu0 %5354
        %5356 = vrot.lane.b32.xlu0 %v3940, 126
        %v5357 = vpop.permute.xlu0 %5356
        %5358 = vrot.lane.b32.xlu0 %v3944, 126
        %v5359 = vpop.permute.xlu0 %5358
        %5360 = vrot.lane.b32.xlu0 %v3921, 126
        %v5361 = vpop.permute.xlu0 %5360
        %5362 = vrot.lane.b32.xlu0 %v3925, 126
        %v5363 = vpop.permute.xlu0 %5362
        %5364 = vrot.lane.b32.xlu0 %v3929, 126
        %v5365 = vpop.permute.xlu0 %5364
        %5366 = vrot.lane.b32.xlu0 %v3933, 126
        %v5367 = vpop.permute.xlu0 %5366
        %5368 = vrot.lane.b32.xlu0 %v3937, 126
        %v5369 = vpop.permute.xlu0 %5368
        %5370 = vrot.lane.b32.xlu0 %v3941, 126
        %v5371 = vpop.permute.xlu0 %5370
        %5372 = vrot.lane.b32.xlu0 %v3945, 126
        %v5373 = vpop.permute.xlu0 %5372
        %5374 = vrot.lane.b32.xlu0 %v3922, 126
        %v5375 = vpop.permute.xlu0 %5374
        %5376 = vrot.lane.b32.xlu0 %v3926, 126
        %v5377 = vpop.permute.xlu0 %5376
        %5378 = vrot.lane.b32.xlu0 %v3930, 126
        %v5379 = vpop.permute.xlu0 %5378
        %5380 = vrot.lane.b32.xlu0 %v3934, 126
        %v5381 = vpop.permute.xlu0 %5380
        %5382 = vrot.lane.b32.xlu0 %v3938, 126
        %v5383 = vpop.permute.xlu0 %5382
        %5384 = vrot.lane.b32.xlu0 %v3942, 126
        %v5385 = vpop.permute.xlu0 %5384
        %5386 = vrot.lane.b32.xlu0 %v3946, 126
        %v5387 = vpop.permute.xlu0 %5386
        %5388 = vrot.lane.b32.xlu0 %v3923, 126
        %v5389 = vpop.permute.xlu0 %5388
        %5390 = vrot.lane.b32.xlu0 %v3927, 126
        %v5391 = vpop.permute.xlu0 %5390
        %5392 = vrot.lane.b32.xlu0 %v3931, 126
        %v5393 = vpop.permute.xlu0 %5392
        %5394 = vrot.lane.b32.xlu0 %v3935, 126
        %v5395 = vpop.permute.xlu0 %5394
        %5396 = vrot.lane.b32.xlu0 %v3939, 126
        %v5397 = vpop.permute.xlu0 %5396
        %5398 = vrot.lane.b32.xlu0 %v3943, 126
        %v5399 = vpop.permute.xlu0 %5398
        %5400 = vrot.lane.b32.xlu0 %v3947, 126
        %v5401 = vpop.permute.xlu0 %5400
        %v5402 = vsel %vm1239, %v5375, %v5389
        %v5403 = vsel %vm1239, %v5377, %v5391
        %v5404 = vsel %vm1239, %v5379, %v5393
        %v5405 = vsel %vm1239, %v5381, %v5395
        %v5406 = vsel %vm1239, %v5383, %v5397
        %v5407 = vsel %vm1239, %v5385, %v5399
        %v5408 = vsel %vm1239, %v5387, %v5401
        %v5409 = vsel %vm1239, %v5361, %v5375
        %v5410 = vsel %vm1239, %v5363, %v5377
        %v5411 = vsel %vm1239, %v5365, %v5379
        %v5412 = vsel %vm1239, %v5367, %v5381
        %v5413 = vsel %vm1239, %v5369, %v5383
        %v5414 = vsel %vm1239, %v5371, %v5385
        %v5415 = vsel %vm1239, %v5373, %v5387
        %v5416 = vsel %vm1239, %v5347, %v5361
        %v5417 = vsel %vm1239, %v5349, %v5363
        %v5418 = vsel %vm1239, %v5351, %v5365
        %v5419 = vsel %vm1239, %v5353, %v5367
        %v5420 = vsel %vm1239, %v5355, %v5369
        %v5421 = vsel %vm1239, %v5357, %v5371
        %v5422 = vsel %vm1239, %v5359, %v5373
        %v5423 = vsel %vm1239, %v5389, %v5347
        %v5424 = vsel %vm1239, %v5391, %v5349
        %v5425 = vsel %vm1239, %v5393, %v5351
        %v5426 = vsel %vm1239, %v5395, %v5353
        %v5427 = vsel %vm1239, %v5397, %v5355
        %v5428 = vsel %vm1239, %v5399, %v5357
        %v5429 = vsel %vm1239, %v5401, %v5359
        %5430 = vrot.lane.b32.xlu0 %v3920, 127
        %v5431 = vpop.permute.xlu0 %5430
        %5432 = vrot.lane.b32.xlu0 %v3924, 127
        %v5433 = vpop.permute.xlu0 %5432
        %5434 = vrot.lane.b32.xlu0 %v3928, 127
        %v5435 = vpop.permute.xlu0 %5434
        %5436 = vrot.lane.b32.xlu0 %v3932, 127
        %v5437 = vpop.permute.xlu0 %5436
        %5438 = vrot.lane.b32.xlu0 %v3936, 127
        %v5439 = vpop.permute.xlu0 %5438
        %5440 = vrot.lane.b32.xlu0 %v3940, 127
        %v5441 = vpop.permute.xlu0 %5440
        %5442 = vrot.lane.b32.xlu0 %v3944, 127
        %v5443 = vpop.permute.xlu0 %5442
        %5444 = vrot.lane.b32.xlu0 %v3921, 127
        %v5445 = vpop.permute.xlu0 %5444
        %5446 = vrot.lane.b32.xlu0 %v3925, 127
        %v5447 = vpop.permute.xlu0 %5446
        %5448 = vrot.lane.b32.xlu0 %v3929, 127
        %v5449 = vpop.permute.xlu0 %5448
        %5450 = vrot.lane.b32.xlu0 %v3933, 127
        %v5451 = vpop.permute.xlu0 %5450
        %5452 = vrot.lane.b32.xlu0 %v3937, 127
        %v5453 = vpop.permute.xlu0 %5452
        %5454 = vrot.lane.b32.xlu0 %v3941, 127
        %v5455 = vpop.permute.xlu0 %5454
        %5456 = vrot.lane.b32.xlu0 %v3945, 127
        %v5457 = vpop.permute.xlu0 %5456
        %5458 = vrot.lane.b32.xlu0 %v3922, 127
        %v5459 = vpop.permute.xlu0 %5458
        %5460 = vrot.lane.b32.xlu0 %v3926, 127
        %v5461 = vpop.permute.xlu0 %5460
        %5462 = vrot.lane.b32.xlu0 %v3930, 127
        %v5463 = vpop.permute.xlu0 %5462
        %5464 = vrot.lane.b32.xlu0 %v3934, 127
        %v5465 = vpop.permute.xlu0 %5464
        %5466 = vrot.lane.b32.xlu0 %v3938, 127
        %v5467 = vpop.permute.xlu0 %5466
        %5468 = vrot.lane.b32.xlu0 %v3942, 127
        %v5469 = vpop.permute.xlu0 %5468
        %5470 = vrot.lane.b32.xlu0 %v3946, 127
        %v5471 = vpop.permute.xlu0 %5470
        %5472 = vrot.lane.b32.xlu0 %v3923, 127
        %v5473 = vpop.permute.xlu0 %5472
        %5474 = vrot.lane.b32.xlu0 %v3927, 127
        %v5475 = vpop.permute.xlu0 %5474
        %5476 = vrot.lane.b32.xlu0 %v3931, 127
        %v5477 = vpop.permute.xlu0 %5476
        %5478 = vrot.lane.b32.xlu0 %v3935, 127
        %v5479 = vpop.permute.xlu0 %5478
        %5480 = vrot.lane.b32.xlu0 %v3939, 127
        %v5481 = vpop.permute.xlu0 %5480
        %5482 = vrot.lane.b32.xlu0 %v3943, 127
        %v5483 = vpop.permute.xlu0 %5482
        %5484 = vrot.lane.b32.xlu0 %v3947, 127
        %v5485 = vpop.permute.xlu0 %5484
        %v5486 = vsel %vm1226, %v5459, %v5473
        %v5487 = vsel %vm1226, %v5461, %v5475
        %v5488 = vsel %vm1226, %v5463, %v5477
        %v5489 = vsel %vm1226, %v5465, %v5479
        %v5490 = vsel %vm1226, %v5467, %v5481
        %v5491 = vsel %vm1226, %v5469, %v5483
        %v5492 = vsel %vm1226, %v5471, %v5485
        %v5493 = vsel %vm1226, %v5445, %v5459
        %v5494 = vsel %vm1226, %v5447, %v5461
        %v5495 = vsel %vm1226, %v5449, %v5463
        %v5496 = vsel %vm1226, %v5451, %v5465
        %v5497 = vsel %vm1226, %v5453, %v5467
        %v5498 = vsel %vm1226, %v5455, %v5469
        %v5499 = vsel %vm1226, %v5457, %v5471
        %v5500 = vsel %vm1226, %v5431, %v5445
        %v5501 = vsel %vm1226, %v5433, %v5447
        %v5502 = vsel %vm1226, %v5435, %v5449
        %v5503 = vsel %vm1226, %v5437, %v5451
        %v5504 = vsel %vm1226, %v5439, %v5453
        %v5505 = vsel %vm1226, %v5441, %v5455
        %v5506 = vsel %vm1226, %v5443, %v5457
        %v5507 = vsel %vm1226, %v5473, %v5431
        %v5508 = vsel %vm1226, %v5475, %v5433
        %v5509 = vsel %vm1226, %v5477, %v5435
        %v5510 = vsel %vm1226, %v5479, %v5437
        %v5511 = vsel %vm1226, %v5481, %v5439
        %v5512 = vsel %vm1226, %v5483, %v5441
        %v5513 = vsel %vm1226, %v5485, %v5443
        %5514 = vrot.lane.b32.xlu0 %v3920, 1
        %v5515 = vpop.permute.xlu0 %5514
        %5516 = vrot.lane.b32.xlu0 %v3924, 1
        %v5517 = vpop.permute.xlu0 %5516
        %5518 = vrot.lane.b32.xlu0 %v3928, 1
        %v5519 = vpop.permute.xlu0 %5518
        %5520 = vrot.lane.b32.xlu0 %v3932, 1
        %v5521 = vpop.permute.xlu0 %5520
        %5522 = vrot.lane.b32.xlu0 %v3936, 1
        %v5523 = vpop.permute.xlu0 %5522
        %5524 = vrot.lane.b32.xlu0 %v3940, 1
        %v5525 = vpop.permute.xlu0 %5524
        %5526 = vrot.lane.b32.xlu0 %v3944, 1
        %v5527 = vpop.permute.xlu0 %5526
        %5528 = vrot.lane.b32.xlu0 %v3921, 1
        %v5529 = vpop.permute.xlu0 %5528
        %5530 = vrot.lane.b32.xlu0 %v3925, 1
        %v5531 = vpop.permute.xlu0 %5530
        %5532 = vrot.lane.b32.xlu0 %v3929, 1
        %v5533 = vpop.permute.xlu0 %5532
        %5534 = vrot.lane.b32.xlu0 %v3933, 1
        %v5535 = vpop.permute.xlu0 %5534
        %5536 = vrot.lane.b32.xlu0 %v3937, 1
        %v5537 = vpop.permute.xlu0 %5536
        %5538 = vrot.lane.b32.xlu0 %v3941, 1
        %v5539 = vpop.permute.xlu0 %5538
        %5540 = vrot.lane.b32.xlu0 %v3945, 1
        %v5541 = vpop.permute.xlu0 %5540
        %5542 = vrot.lane.b32.xlu0 %v3922, 1
        %v5543 = vpop.permute.xlu0 %5542
        %5544 = vrot.lane.b32.xlu0 %v3926, 1
        %v5545 = vpop.permute.xlu0 %5544
        %5546 = vrot.lane.b32.xlu0 %v3930, 1
        %v5547 = vpop.permute.xlu0 %5546
        %5548 = vrot.lane.b32.xlu0 %v3934, 1
        %v5549 = vpop.permute.xlu0 %5548
        %5550 = vrot.lane.b32.xlu0 %v3938, 1
        %v5551 = vpop.permute.xlu0 %5550
        %5552 = vrot.lane.b32.xlu0 %v3942, 1
        %v5553 = vpop.permute.xlu0 %5552
        %5554 = vrot.lane.b32.xlu0 %v3946, 1
        %v5555 = vpop.permute.xlu0 %5554
        %5556 = vrot.lane.b32.xlu0 %v3923, 1
        %v5557 = vpop.permute.xlu0 %5556
        %5558 = vrot.lane.b32.xlu0 %v3927, 1
        %v5559 = vpop.permute.xlu0 %5558
        %5560 = vrot.lane.b32.xlu0 %v3931, 1
        %v5561 = vpop.permute.xlu0 %5560
        %5562 = vrot.lane.b32.xlu0 %v3935, 1
        %v5563 = vpop.permute.xlu0 %5562
        %5564 = vrot.lane.b32.xlu0 %v3939, 1
        %v5565 = vpop.permute.xlu0 %5564
        %5566 = vrot.lane.b32.xlu0 %v3943, 1
        %v5567 = vpop.permute.xlu0 %5566
        %5568 = vrot.lane.b32.xlu0 %v3947, 1
        %v5569 = vpop.permute.xlu0 %5568
        %v5570 = vsel %vm1213, %v5543, %v5557
        %v5571 = vsel %vm1213, %v5545, %v5559
        %v5572 = vsel %vm1213, %v5547, %v5561
        %v5573 = vsel %vm1213, %v5549, %v5563
        %v5574 = vsel %vm1213, %v5551, %v5565
        %v5575 = vsel %vm1213, %v5553, %v5567
        %v5576 = vsel %vm1213, %v5555, %v5569
        %v5577 = vsel %vm1213, %v5529, %v5543
        %v5578 = vsel %vm1213, %v5531, %v5545
        %v5579 = vsel %vm1213, %v5533, %v5547
        %v5580 = vsel %vm1213, %v5535, %v5549
        %v5581 = vsel %vm1213, %v5537, %v5551
        %v5582 = vsel %vm1213, %v5539, %v5553
        %v5583 = vsel %vm1213, %v5541, %v5555
        %v5584 = vsel %vm1213, %v5515, %v5529
        %v5585 = vsel %vm1213, %v5517, %v5531
        %v5586 = vsel %vm1213, %v5519, %v5533
        %v5587 = vsel %vm1213, %v5521, %v5535
        %v5588 = vsel %vm1213, %v5523, %v5537
        %v5589 = vsel %vm1213, %v5525, %v5539
        %v5590 = vsel %vm1213, %v5527, %v5541
        %v5591 = vsel %vm1213, %v5557, %v5515
        %v5592 = vsel %vm1213, %v5559, %v5517
        %v5593 = vsel %vm1213, %v5561, %v5519
        %v5594 = vsel %vm1213, %v5563, %v5521
        %v5595 = vsel %vm1213, %v5565, %v5523
        %v5596 = vsel %vm1213, %v5567, %v5525
        %v5597 = vsel %vm1213, %v5569, %v5527
        %5598 = vrot.lane.b32.xlu0 %v3920, 2
        %v5599 = vpop.permute.xlu0 %5598
        %5600 = vrot.lane.b32.xlu0 %v3924, 2
        %v5601 = vpop.permute.xlu0 %5600
        %5602 = vrot.lane.b32.xlu0 %v3928, 2
        %v5603 = vpop.permute.xlu0 %5602
        %5604 = vrot.lane.b32.xlu0 %v3932, 2
        %v5605 = vpop.permute.xlu0 %5604
        %5606 = vrot.lane.b32.xlu0 %v3936, 2
        %v5607 = vpop.permute.xlu0 %5606
        %5608 = vrot.lane.b32.xlu0 %v3940, 2
        %v5609 = vpop.permute.xlu0 %5608
        %5610 = vrot.lane.b32.xlu0 %v3944, 2
        %v5611 = vpop.permute.xlu0 %5610
        %5612 = vrot.lane.b32.xlu0 %v3921, 2
        %v5613 = vpop.permute.xlu0 %5612
        %5614 = vrot.lane.b32.xlu0 %v3925, 2
        %v5615 = vpop.permute.xlu0 %5614
        %5616 = vrot.lane.b32.xlu0 %v3929, 2
        %v5617 = vpop.permute.xlu0 %5616
        %5618 = vrot.lane.b32.xlu0 %v3933, 2
        %v5619 = vpop.permute.xlu0 %5618
        %5620 = vrot.lane.b32.xlu0 %v3937, 2
        %v5621 = vpop.permute.xlu0 %5620
        %5622 = vrot.lane.b32.xlu0 %v3941, 2
        %v5623 = vpop.permute.xlu0 %5622
        %5624 = vrot.lane.b32.xlu0 %v3945, 2
        %v5625 = vpop.permute.xlu0 %5624
        %5626 = vrot.lane.b32.xlu0 %v3922, 2
        %v5627 = vpop.permute.xlu0 %5626
        %5628 = vrot.lane.b32.xlu0 %v3926, 2
        %v5629 = vpop.permute.xlu0 %5628
        %5630 = vrot.lane.b32.xlu0 %v3930, 2
        %v5631 = vpop.permute.xlu0 %5630
        %5632 = vrot.lane.b32.xlu0 %v3934, 2
        %v5633 = vpop.permute.xlu0 %5632
        %5634 = vrot.lane.b32.xlu0 %v3938, 2
        %v5635 = vpop.permute.xlu0 %5634
        %5636 = vrot.lane.b32.xlu0 %v3942, 2
        %v5637 = vpop.permute.xlu0 %5636
        %5638 = vrot.lane.b32.xlu0 %v3946, 2
        %v5639 = vpop.permute.xlu0 %5638
        %5640 = vrot.lane.b32.xlu0 %v3923, 2
        %v5641 = vpop.permute.xlu0 %5640
        %5642 = vrot.lane.b32.xlu0 %v3927, 2
        %v5643 = vpop.permute.xlu0 %5642
        %5644 = vrot.lane.b32.xlu0 %v3931, 2
        %v5645 = vpop.permute.xlu0 %5644
        %5646 = vrot.lane.b32.xlu0 %v3935, 2
        %v5647 = vpop.permute.xlu0 %5646
        %5648 = vrot.lane.b32.xlu0 %v3939, 2
        %v5649 = vpop.permute.xlu0 %5648
        %5650 = vrot.lane.b32.xlu0 %v3943, 2
        %v5651 = vpop.permute.xlu0 %5650
        %5652 = vrot.lane.b32.xlu0 %v3947, 2
        %v5653 = vpop.permute.xlu0 %5652
        %v5654 = vsel %vm1200, %v5627, %v5641
        %v5655 = vsel %vm1200, %v5629, %v5643
        %v5656 = vsel %vm1200, %v5631, %v5645
        %v5657 = vsel %vm1200, %v5633, %v5647
        %v5658 = vsel %vm1200, %v5635, %v5649
        %v5659 = vsel %vm1200, %v5637, %v5651
        %v5660 = vsel %vm1200, %v5639, %v5653
        %v5661 = vsel %vm1200, %v5613, %v5627
        %v5662 = vsel %vm1200, %v5615, %v5629
        %v5663 = vsel %vm1200, %v5617, %v5631
        %v5664 = vsel %vm1200, %v5619, %v5633
        %v5665 = vsel %vm1200, %v5621, %v5635
        %v5666 = vsel %vm1200, %v5623, %v5637
        %v5667 = vsel %vm1200, %v5625, %v5639
        %v5668 = vsel %vm1200, %v5599, %v5613
        %v5669 = vsel %vm1200, %v5601, %v5615
        %v5670 = vsel %vm1200, %v5603, %v5617
        %v5671 = vsel %vm1200, %v5605, %v5619
        %v5672 = vsel %vm1200, %v5607, %v5621
        %v5673 = vsel %vm1200, %v5609, %v5623
        %v5674 = vsel %vm1200, %v5611, %v5625
        %v5675 = vsel %vm1200, %v5641, %v5599
        %v5676 = vsel %vm1200, %v5643, %v5601
        %v5677 = vsel %vm1200, %v5645, %v5603
        %v5678 = vsel %vm1200, %v5647, %v5605
        %v5679 = vsel %vm1200, %v5649, %v5607
        %v5680 = vsel %vm1200, %v5651, %v5609
        %v5681 = vsel %vm1200, %v5653, %v5611
        %v5682 = vpack.c.bf16 %v5417, %v5416
        %v5683 = vpack.c.bf16 %v5410, %v5409
        %v5684 = vpack.c.bf16 %v5403, %v5402
        %v5685 = vpack.c.bf16 %v5424, %v5423
        %v5686 = vpack.c.bf16 %v5419, %v5418
        %v5687 = vpack.c.bf16 %v5412, %v5411
        %v5688 = vpack.c.bf16 %v5405, %v5404
        %v5689 = vpack.c.bf16 %v5426, %v5425
        %v5690 = vpack.c.bf16 %v5421, %v5420
        %v5691 = vpack.c.bf16 %v5414, %v5413
        %v5692 = vpack.c.bf16 %v5407, %v5406
        %v5693 = vpack.c.bf16 %v5428, %v5427
        %v5694 = vpack.c.bf16 %v5500, %v5422
        %v5695 = vpack.c.bf16 %v5493, %v5415
        %v5696 = vpack.c.bf16 %v5486, %v5408
        %v5697 = vpack.c.bf16 %v5507, %v5429
        %v5698 = vpack.c.bf16 %v5502, %v5501
        %v5699 = vpack.c.bf16 %v5495, %v5494
        %v5700 = vpack.c.bf16 %v5488, %v5487
        %v5701 = vpack.c.bf16 %v5509, %v5508
        %v5702 = vpack.c.bf16 %v5504, %v5503
        %v5703 = vpack.c.bf16 %v5497, %v5496
        %v5704 = vpack.c.bf16 %v5490, %v5489
        %v5705 = vpack.c.bf16 %v5511, %v5510
        %v5706 = vpack.c.bf16 %v5506, %v5505
        %v5707 = vpack.c.bf16 %v5499, %v5498
        %v5708 = vpack.c.bf16 %v5492, %v5491
        %v5709 = vpack.c.bf16 %v5513, %v5512
        %v5710 = vpack.c.bf16 %v3924, %v3920
        %v5711 = vpack.c.bf16 %v3925, %v3921
        %v5712 = vpack.c.bf16 %v3926, %v3922
        %v5713 = vpack.c.bf16 %v3927, %v3923
        %v5714 = vpack.c.bf16 %v3932, %v3928
        %v5715 = vpack.c.bf16 %v3933, %v3929
        %v5716 = vpack.c.bf16 %v3934, %v3930
        %v5717 = vpack.c.bf16 %v3935, %v3931
        %v5718 = vpack.c.bf16 %v3940, %v3936
        %v5719 = vpack.c.bf16 %v3941, %v3937
        %v5720 = vpack.c.bf16 %v3942, %v3938
        %v5721 = vpack.c.bf16 %v3943, %v3939
        %v5722 = vpack.c.bf16 %v5591, %v3944
        %v5723 = vpack.c.bf16 %v5584, %v3945
        %v5724 = vpack.c.bf16 %v5577, %v3946
        %v5725 = vpack.c.bf16 %v5570, %v3947
        %v5726 = vpack.c.bf16 %v5593, %v5592
        %v5727 = vpack.c.bf16 %v5586, %v5585
        %v5728 = vpack.c.bf16 %v5579, %v5578
        %v5729 = vpack.c.bf16 %v5572, %v5571
        %v5730 = vpack.c.bf16 %v5595, %v5594
        %v5731 = vpack.c.bf16 %v5588, %v5587
        %v5732 = vpack.c.bf16 %v5581, %v5580
        %v5733 = vpack.c.bf16 %v5574, %v5573
        %v5734 = vpack.c.bf16 %v5597, %v5596
        %v5735 = vpack.c.bf16 %v5590, %v5589
        %v5736 = vpack.c.bf16 %v5583, %v5582
        %v5737 = vpack.c.bf16 %v5576, %v5575
        %v5738 = vpack.c.bf16 %v5676, %v5675
        %v5739 = vpack.c.bf16 %v5669, %v5668
        %v5740 = vpack.c.bf16 %v5662, %v5661
        %v5741 = vpack.c.bf16 %v5655, %v5654
        %v5742 = vpack.c.bf16 %v5678, %v5677
        %v5743 = vpack.c.bf16 %v5671, %v5670
        %v5744 = vpack.c.bf16 %v5664, %v5663
        %v5745 = vpack.c.bf16 %v5657, %v5656
        %v5746 = vpack.c.bf16 %v5680, %v5679
        %v5747 = vpack.c.bf16 %v5673, %v5672
        %v5748 = vpack.c.bf16 %v5666, %v5665
        %v5749 = vpack.c.bf16 %v5659, %v5658
        %v5750 = vpack.c.bf16 %v5681, %v5681
        %v5751 = vpack.c.bf16 %v5674, %v5674
        %v5752 = vpack.c.bf16 %v5667, %v5667
        %v5753 = vpack.c.bf16 %v5660, %v5660
        %s5754 = scalar_lea.vmem [#allocation30], 48
        %v5755 = vld [vmem:[%s5754] sm:$0xff]
        %v5756 = vld [vmem:[%s5754 + $0x8] sm:$0xf]
        %v5757 = vld [vmem:[%s5754 + $0xc] sm:$0x33]
        %v5758 = vld [vmem:[%s5754 + $0x14] sm:$0x3]
        %v5763 = vunpack.c.l.b16 %v5755
        %v5764 = vunpack.c.h.b16 %v5755
        %v5765 = vunpack.c.l.b16 %v5756
        %v5766 = vunpack.c.l.b16 %v5757
        %v5767 = vunpack.c.h.b16 %v5757
        %v5768 = vunpack.c.l.b16 %v5758
        %v5769 = vpack.c.b16 %v5766, %v5763
        %v5770 = vpack.c.b16 %v5767, %v5764
        %v5771 = vpack.c.b16 %v5768, %v5765
        %v5775 = vsel %vm4956, %v5771, 0
        %v5778 = vsel %vm1521, %v5750, 0
        %v5781 = vsel %vm1521, %v5751, 0
        %v5784 = vsel %vm1521, %v5752, 0
        %v5787 = vsel %vm1521, %v5753, 0
        %5789 = vmatprep.subr.bf16.mxu0 %v5683
        %5790 = vmatpush1.bf16.msra.mxu0 %v5682
        %5791 = vmatprep.subr.bf16.mxu0 %v5687
        %5792 = vmatpush1.bf16.msra.mxu0 %v5686
        %5793 = vmatprep.subr.bf16.mxu0 %v5691
        %5794 = vmatpush1.bf16.msra.mxu0 %v5690
        %5795 = vmatprep.subr.bf16.mxu0 %v5695
        %5796 = vmatpush1.bf16.msra.mxu0 %v5694
        %5797 = vmatprep.subr.bf16.mxu0 %v5699
        %5798 = vmatpush1.bf16.msra.mxu0 %v5698
        %5799 = vmatprep.subr.bf16.mxu0 %v5703
        %5800 = vmatpush1.bf16.msra.mxu0 %v5702
        %5801 = vmatprep.subr.bf16.mxu0 %v5707
        %5802 = vmatpush1.bf16.msra.mxu0 %v5706
        %5803 = vmatprep.subr.bf16.mxu0 %v5711
        %5804 = vmatpush1.bf16.msra.mxu0 %v5710
        %5805 = vmatprep.subr.bf16.mxu0 %v5715
        %5806 = vmatpush1.bf16.msra.mxu0 %v5714
        %5807 = vmatprep.subr.bf16.mxu0 %v5719
        %5808 = vmatpush1.bf16.msra.mxu0 %v5718
        %5809 = vmatprep.subr.bf16.mxu0 %v5723
        %5810 = vmatpush1.bf16.msra.mxu0 %v5722
        %5811 = vmatprep.subr.bf16.mxu0 %v5727
        %5812 = vmatpush1.bf16.msra.mxu0 %v5726
        %5813 = vmatprep.subr.bf16.mxu0 %v5731
        %5814 = vmatpush1.bf16.msra.mxu0 %v5730
        %5815 = vmatprep.subr.bf16.mxu0 %v5735
        %5816 = vmatpush1.bf16.msra.mxu0 %v5734
        %5817 = vmatprep.subr.bf16.mxu0 %v5739
        %5818 = vmatpush1.bf16.msra.mxu0 %v5738
        %5819 = vmatprep.subr.bf16.mxu0 %v5743
        %5820 = vmatpush1.bf16.msra.mxu0 %v5742
        %5821 = vmatprep.mubr.bf16.mxu0 %v5770
        %5822 = vmatmul.mubr.bf16.gmra.mrb[0].mxu0 %v5769
        %v5823 = vpop.f32.mrb[0].mxu0
        %v5824 = vadd.f32 0.0, %v5823
        %v5825 = vpop.f32.mrb[0].mxu0
        %v5826 = vadd.f32 0.0, %v5825
        %v5827 = vpop.f32.mrb[0].mxu0
        %v5828 = vadd.f32 0.0, %v5827
        %v5829 = vpop.f32.mrb[0].mxu0
        %v5830 = vadd.f32 0.0, %v5829
        %5831 = vdwg.mxu0
        %5832 = vmatprep.subr.bf16.mxu0 %v5747
        %5833 = vmatpush1.bf16.msra.mxu0 %v5746
        %5834 = vmatprep.subr.bf16.mxu0 %v5781
        %5835 = vmatpush1.bf16.msra.mxu0 %v5778
        %5836 = vmatprep.subr.bf16.mxu0 0
        %5837 = vmatpush1.bf16.msra.mxu0 0
        %5838 = vmatprep.subr.bf16.mxu0 0
        %5839 = vmatpush1.bf16.msra.mxu0 0
        %5840 = vmatprep.subr.bf16.mxu0 0
        %5841 = vmatpush1.bf16.msra.mxu0 0
        %5842 = vmatprep.subr.bf16.mxu0 0
        %5843 = vmatpush1.bf16.msra.mxu0 0
        %5844 = vmatprep.subr.bf16.mxu0 0
        %5845 = vmatpush1.bf16.msra.mxu0 0
        %5846 = vmatprep.subr.bf16.mxu0 0
        %5847 = vmatpush1.bf16.msra.mxu0 0
        %5848 = vmatprep.subr.bf16.mxu0 0
        %5849 = vmatpush1.bf16.msra.mxu0 0
        %5850 = vmatprep.subr.bf16.mxu0 0
        %5851 = vmatpush1.bf16.msra.mxu0 0
        %5852 = vmatprep.subr.bf16.mxu0 0
        %5853 = vmatpush1.bf16.msra.mxu0 0
        %5854 = vmatprep.subr.bf16.mxu0 0
        %5855 = vmatpush1.bf16.msra.mxu0 0
        %5856 = vmatprep.subr.bf16.mxu0 0
        %5857 = vmatpush1.bf16.msra.mxu0 0
        %5858 = vmatprep.subr.bf16.mxu0 0
        %5859 = vmatpush1.bf16.msra.mxu0 0
        %5860 = vmatprep.subr.bf16.mxu0 0
        %5861 = vmatpush1.bf16.msra.mxu0 0
        %5862 = vmatprep.subr.bf16.mxu0 0
        %5863 = vmatpush1.bf16.msra.mxu0 0
        %5864 = vmatprep.mubr.bf16.mxu0 0
        %5865 = vmatmul.mubr.bf16.gmra.mrb[0].mxu0 %v5775
        %v5866 = vpop.f32.mrb[0].mxu0
        %v5867 = vadd.f32 %v5824, %v5866
        %v5868 = vpop.f32.mrb[0].mxu0
        %v5869 = vadd.f32 %v5826, %v5868
        %v5870 = vpop.f32.mrb[0].mxu0
        %v5871 = vadd.f32 %v5828, %v5870
        %v5872 = vpop.f32.mrb[0].mxu0
        %v5873 = vadd.f32 %v5830, %v5872
        %5874 = vdwg.mxu0
        %5875 = vmatprep.subr.bf16.mxu0 %v5685
        %5876 = vmatpush1.bf16.msra.mxu0 %v5684
        %5877 = vmatprep.subr.bf16.mxu0 %v5689
        %5878 = vmatpush1.bf16.msra.mxu0 %v5688
        %5879 = vmatprep.subr.bf16.mxu0 %v5693
        %5880 = vmatpush1.bf16.msra.mxu0 %v5692
        %5881 = vmatprep.subr.bf16.mxu0 %v5697
        %5882 = vmatpush1.bf16.msra.mxu0 %v5696
        %5883 = vmatprep.subr.bf16.mxu0 %v5701
        %5884 = vmatpush1.bf16.msra.mxu0 %v5700
        %5885 = vmatprep.subr.bf16.mxu0 %v5705
        %5886 = vmatpush1.bf16.msra.mxu0 %v5704
        %5887 = vmatprep.subr.bf16.mxu0 %v5709
        %5888 = vmatpush1.bf16.msra.mxu0 %v5708
        %5889 = vmatprep.subr.bf16.mxu0 %v5713
        %5890 = vmatpush1.bf16.msra.mxu0 %v5712
        %5891 = vmatprep.subr.bf16.mxu0 %v5717
        %5892 = vmatpush1.bf16.msra.mxu0 %v5716
        %5893 = vmatprep.subr.bf16.mxu0 %v5721
        %5894 = vmatpush1.bf16.msra.mxu0 %v5720
        %5895 = vmatprep.subr.bf16.mxu0 %v5725
        %5896 = vmatpush1.bf16.msra.mxu0 %v5724
        %5897 = vmatprep.subr.bf16.mxu0 %v5729
        %5898 = vmatpush1.bf16.msra.mxu0 %v5728
        %5899 = vmatprep.subr.bf16.mxu0 %v5733
        %5900 = vmatpush1.bf16.msra.mxu0 %v5732
        %5901 = vmatprep.subr.bf16.mxu0 %v5737
        %5902 = vmatpush1.bf16.msra.mxu0 %v5736
        %5903 = vmatprep.subr.bf16.mxu0 %v5741
        %5904 = vmatpush1.bf16.msra.mxu0 %v5740
        %5905 = vmatprep.subr.bf16.mxu0 %v5745
        %5906 = vmatpush1.bf16.msra.mxu0 %v5744
        %5907 = vmatprep.mubr.bf16.mxu0 %v5770
        %5908 = vmatmul.mubr.bf16.gmra.mrb[0].mxu0 %v5769
        %v5909 = vpop.f32.mrb[0].mxu0
        %v5910 = vadd.f32 0.0, %v5909
        %v5911 = vpop.f32.mrb[0].mxu0
        %v5912 = vadd.f32 0.0, %v5911
        %v5913 = vpop.f32.mrb[0].mxu0
        %v5914 = vadd.f32 0.0, %v5913
        %v5915 = vpop.f32.mrb[0].mxu0
        %v5916 = vadd.f32 0.0, %v5915
        %5917 = vdwg.mxu0
        %5918 = vmatprep.subr.bf16.mxu0 %v5749
        %5919 = vmatpush1.bf16.msra.mxu0 %v5748
        %5920 = vmatprep.subr.bf16.mxu0 %v5787
        %5921 = vmatpush1.bf16.msra.mxu0 %v5784
        %5922 = vmatprep.subr.bf16.mxu0 0
        %5923 = vmatpush1.bf16.msra.mxu0 0
        %5924 = vmatprep.subr.bf16.mxu0 0
        %5925 = vmatpush1.bf16.msra.mxu0 0
        %5926 = vmatprep.subr.bf16.mxu0 0
        %5927 = vmatpush1.bf16.msra.mxu0 0
        %5928 = vmatprep.subr.bf16.mxu0 0
        %5929 = vmatpush1.bf16.msra.mxu0 0
        %5930 = vmatprep.subr.bf16.mxu0 0
        %5931 = vmatpush1.bf16.msra.mxu0 0
        %5932 = vmatprep.subr.bf16.mxu0 0
        %5933 = vmatpush1.bf16.msra.mxu0 0
        %5934 = vmatprep.subr.bf16.mxu0 0
        %5935 = vmatpush1.bf16.msra.mxu0 0
        %5936 = vmatprep.subr.bf16.mxu0 0
        %5937 = vmatpush1.bf16.msra.mxu0 0
        %5938 = vmatprep.subr.bf16.mxu0 0
        %5939 = vmatpush1.bf16.msra.mxu0 0
        %5940 = vmatprep.subr.bf16.mxu0 0
        %5941 = vmatpush1.bf16.msra.mxu0 0
        %5942 = vmatprep.subr.bf16.mxu0 0
        %5943 = vmatpush1.bf16.msra.mxu0 0
        %5944 = vmatprep.subr.bf16.mxu0 0
        %5945 = vmatpush1.bf16.msra.mxu0 0
        %5946 = vmatprep.subr.bf16.mxu0 0
        %5947 = vmatpush1.bf16.msra.mxu0 0
        %5948 = vmatprep.subr.bf16.mxu0 0
        %5949 = vmatpush1.bf16.msra.mxu0 0
        %5950 = vmatprep.mubr.bf16.mxu0 0
        %5951 = vmatmul.mubr.bf16.gmra.mrb[0].mxu0 %v5775
        %v5952 = vpop.f32.mrb[0].mxu0
        %v5953 = vadd.f32 %v5910, %v5952
        %v5954 = vpop.f32.mrb[0].mxu0
        %v5955 = vadd.f32 %v5912, %v5954
        %v5956 = vpop.f32.mrb[0].mxu0
        %v5957 = vadd.f32 %v5914, %v5956
        %v5958 = vpop.f32.mrb[0].mxu0
        %v5959 = vadd.f32 %v5916, %v5958
        %5960 = vdwg.mxu0
        %v5961 = vadd.f32 %v5252, %v5867
        %v5962 = vadd.f32 %v5254, %v5869
        %v5963 = vadd.f32 %v5338, %v5953
        %v5964 = vadd.f32 %v5340, %v5955
        %v5965 = vadd.f32 %v5256, %v5871
        %v5966 = vadd.f32 %v5258, %v5873
        %v5967 = vadd.f32 %v5342, %v5957
        %v5968 = vadd.f32 %v5344, %v5959
        %5969 = vrot.lane.b32.xlu0 %v3920, 18
        %v5970 = vpop.permute.xlu0 %5969
        %5971 = vrot.lane.b32.xlu0 %v3924, 18
        %v5972 = vpop.permute.xlu0 %5971
        %5973 = vrot.lane.b32.xlu0 %v3928, 18
        %v5974 = vpop.permute.xlu0 %5973
        %5975 = vrot.lane.b32.xlu0 %v3932, 18
        %v5976 = vpop.permute.xlu0 %5975
        %5977 = vrot.lane.b32.xlu0 %v3936, 18
        %v5978 = vpop.permute.xlu0 %5977
        %5979 = vrot.lane.b32.xlu0 %v3940, 18
        %v5980 = vpop.permute.xlu0 %5979
        %5981 = vrot.lane.b32.xlu0 %v3944, 18
        %v5982 = vpop.permute.xlu0 %5981
        %5983 = vrot.lane.b32.xlu0 %v3921, 18
        %v5984 = vpop.permute.xlu0 %5983
        %5985 = vrot.lane.b32.xlu0 %v3925, 18
        %v5986 = vpop.permute.xlu0 %5985
        %5987 = vrot.lane.b32.xlu0 %v3929, 18
        %v5988 = vpop.permute.xlu0 %5987
        %5989 = vrot.lane.b32.xlu0 %v3933, 18
        %v5990 = vpop.permute.xlu0 %5989
        %5991 = vrot.lane.b32.xlu0 %v3937, 18
        %v5992 = vpop.permute.xlu0 %5991
        %5993 = vrot.lane.b32.xlu0 %v3941, 18
        %v5994 = vpop.permute.xlu0 %5993
        %5995 = vrot.lane.b32.xlu0 %v3945, 18
        %v5996 = vpop.permute.xlu0 %5995
        %5997 = vrot.lane.b32.xlu0 %v3922, 18
        %v5998 = vpop.permute.xlu0 %5997
        %5999 = vrot.lane.b32.xlu0 %v3926, 18
        %v6000 = vpop.permute.xlu0 %5999
        %6001 = vrot.lane.b32.xlu0 %v3930, 18
        %v6002 = vpop.permute.xlu0 %6001
        %6003 = vrot.lane.b32.xlu0 %v3934, 18
        %v6004 = vpop.permute.xlu0 %6003
        %6005 = vrot.lane.b32.xlu0 %v3938, 18
        %v6006 = vpop.permute.xlu0 %6005
        %6007 = vrot.lane.b32.xlu0 %v3942, 18
        %v6008 = vpop.permute.xlu0 %6007
        %6009 = vrot.lane.b32.xlu0 %v3946, 18
        %v6010 = vpop.permute.xlu0 %6009
        %6011 = vrot.lane.b32.xlu0 %v3923, 18
        %v6012 = vpop.permute.xlu0 %6011
        %6013 = vrot.lane.b32.xlu0 %v3927, 18
        %v6014 = vpop.permute.xlu0 %6013
        %6015 = vrot.lane.b32.xlu0 %v3931, 18
        %v6016 = vpop.permute.xlu0 %6015
        %6017 = vrot.lane.b32.xlu0 %v3935, 18
        %v6018 = vpop.permute.xlu0 %6017
        %6019 = vrot.lane.b32.xlu0 %v3939, 18
        %v6020 = vpop.permute.xlu0 %6019
        %6021 = vrot.lane.b32.xlu0 %v3943, 18
        %v6022 = vpop.permute.xlu0 %6021
        %6023 = vrot.lane.b32.xlu0 %v3947, 18
        %v6024 = vpop.permute.xlu0 %6023
        %v6025 = vsel %vm1187, %v5998, %v6012
        %v6026 = vsel %vm1187, %v6000, %v6014
        %v6027 = vsel %vm1187, %v6002, %v6016
        %v6028 = vsel %vm1187, %v6004, %v6018
        %v6029 = vsel %vm1187, %v6006, %v6020
        %v6030 = vsel %vm1187, %v6008, %v6022
        %v6031 = vsel %vm1187, %v6010, %v6024
        %v6032 = vsel %vm1187, %v5984, %v5998
        %v6033 = vsel %vm1187, %v5986, %v6000
        %v6034 = vsel %vm1187, %v5988, %v6002
        %v6035 = vsel %vm1187, %v5990, %v6004
        %v6036 = vsel %vm1187, %v5992, %v6006
        %v6037 = vsel %vm1187, %v5994, %v6008
        %v6038 = vsel %vm1187, %v5996, %v6010
        %v6039 = vsel %vm1187, %v5970, %v5984
        %v6040 = vsel %vm1187, %v5972, %v5986
        %v6041 = vsel %vm1187, %v5974, %v5988
        %v6042 = vsel %vm1187, %v5976, %v5990
        %v6043 = vsel %vm1187, %v5978, %v5992
        %v6044 = vsel %vm1187, %v5980, %v5994
        %v6045 = vsel %vm1187, %v5982, %v5996
        %v6046 = vsel %vm1187, %v6012, %v5970
        %v6047 = vsel %vm1187, %v6014, %v5972
        %v6048 = vsel %vm1187, %v6016, %v5974
        %v6049 = vsel %vm1187, %v6018, %v5976
        %v6050 = vsel %vm1187, %v6020, %v5978
        %v6051 = vsel %vm1187, %v6022, %v5980
        %v6052 = vsel %vm1187, %v6024, %v5982
        %6053 = vrot.lane.b32.xlu0 %v3920, 19
        %v6054 = vpop.permute.xlu0 %6053
        %6055 = vrot.lane.b32.xlu0 %v3924, 19
        %v6056 = vpop.permute.xlu0 %6055
        %6057 = vrot.lane.b32.xlu0 %v3928, 19
        %v6058 = vpop.permute.xlu0 %6057
        %6059 = vrot.lane.b32.xlu0 %v3932, 19
        %v6060 = vpop.permute.xlu0 %6059
        %6061 = vrot.lane.b32.xlu0 %v3936, 19
        %v6062 = vpop.permute.xlu0 %6061
        %6063 = vrot.lane.b32.xlu0 %v3940, 19
        %v6064 = vpop.permute.xlu0 %6063
        %6065 = vrot.lane.b32.xlu0 %v3944, 19
        %v6066 = vpop.permute.xlu0 %6065
        %6067 = vrot.lane.b32.xlu0 %v3921, 19
        %v6068 = vpop.permute.xlu0 %6067
        %6069 = vrot.lane.b32.xlu0 %v3925, 19
        %v6070 = vpop.permute.xlu0 %6069
        %6071 = vrot.lane.b32.xlu0 %v3929, 19
        %v6072 = vpop.permute.xlu0 %6071
        %6073 = vrot.lane.b32.xlu0 %v3933, 19
        %v6074 = vpop.permute.xlu0 %6073
        %6075 = vrot.lane.b32.xlu0 %v3937, 19
        %v6076 = vpop.permute.xlu0 %6075
        %6077 = vrot.lane.b32.xlu0 %v3941, 19
        %v6078 = vpop.permute.xlu0 %6077
        %6079 = vrot.lane.b32.xlu0 %v3945, 19
        %v6080 = vpop.permute.xlu0 %6079
        %6081 = vrot.lane.b32.xlu0 %v3922, 19
        %v6082 = vpop.permute.xlu0 %6081
        %6083 = vrot.lane.b32.xlu0 %v3926, 19
        %v6084 = vpop.permute.xlu0 %6083
        %6085 = vrot.lane.b32.xlu0 %v3930, 19
        %v6086 = vpop.permute.xlu0 %6085
        %6087 = vrot.lane.b32.xlu0 %v3934, 19
        %v6088 = vpop.permute.xlu0 %6087
        %6089 = vrot.lane.b32.xlu0 %v3938, 19
        %v6090 = vpop.permute.xlu0 %6089
        %6091 = vrot.lane.b32.xlu0 %v3942, 19
        %v6092 = vpop.permute.xlu0 %6091
        %6093 = vrot.lane.b32.xlu0 %v3946, 19
        %v6094 = vpop.permute.xlu0 %6093
        %6095 = vrot.lane.b32.xlu0 %v3923, 19
        %v6096 = vpop.permute.xlu0 %6095
        %6097 = vrot.lane.b32.xlu0 %v3927, 19
        %v6098 = vpop.permute.xlu0 %6097
        %6099 = vrot.lane.b32.xlu0 %v3931, 19
        %v6100 = vpop.permute.xlu0 %6099
        %6101 = vrot.lane.b32.xlu0 %v3935, 19
        %v6102 = vpop.permute.xlu0 %6101
        %6103 = vrot.lane.b32.xlu0 %v3939, 19
        %v6104 = vpop.permute.xlu0 %6103
        %6105 = vrot.lane.b32.xlu0 %v3943, 19
        %v6106 = vpop.permute.xlu0 %6105
        %6107 = vrot.lane.b32.xlu0 %v3947, 19
        %v6108 = vpop.permute.xlu0 %6107
        %v6109 = vsel %vm1174, %v6082, %v6096
        %v6110 = vsel %vm1174, %v6084, %v6098
        %v6111 = vsel %vm1174, %v6086, %v6100
        %v6112 = vsel %vm1174, %v6088, %v6102
        %v6113 = vsel %vm1174, %v6090, %v6104
        %v6114 = vsel %vm1174, %v6092, %v6106
        %v6115 = vsel %vm1174, %v6094, %v6108
        %v6116 = vsel %vm1174, %v6068, %v6082
        %v6117 = vsel %vm1174, %v6070, %v6084
        %v6118 = vsel %vm1174, %v6072, %v6086
        %v6119 = vsel %vm1174, %v6074, %v6088
        %v6120 = vsel %vm1174, %v6076, %v6090
        %v6121 = vsel %vm1174, %v6078, %v6092
        %v6122 = vsel %vm1174, %v6080, %v6094
        %v6123 = vsel %vm1174, %v6054, %v6068
        %v6124 = vsel %vm1174, %v6056, %v6070
        %v6125 = vsel %vm1174, %v6058, %v6072
        %v6126 = vsel %vm1174, %v6060, %v6074
        %v6127 = vsel %vm1174, %v6062, %v6076
        %v6128 = vsel %vm1174, %v6064, %v6078
        %v6129 = vsel %vm1174, %v6066, %v6080
        %v6130 = vsel %vm1174, %v6096, %v6054
        %v6131 = vsel %vm1174, %v6098, %v6056
        %v6132 = vsel %vm1174, %v6100, %v6058
        %v6133 = vsel %vm1174, %v6102, %v6060
        %v6134 = vsel %vm1174, %v6104, %v6062
        %v6135 = vsel %vm1174, %v6106, %v6064
        %v6136 = vsel %vm1174, %v6108, %v6066
        %6137 = vrot.lane.b32.xlu0 %v3920, 20
        %v6138 = vpop.permute.xlu0 %6137
        %6139 = vrot.lane.b32.xlu0 %v3924, 20
        %v6140 = vpop.permute.xlu0 %6139
        %6141 = vrot.lane.b32.xlu0 %v3928, 20
        %v6142 = vpop.permute.xlu0 %6141
        %6143 = vrot.lane.b32.xlu0 %v3932, 20
        %v6144 = vpop.permute.xlu0 %6143
        %6145 = vrot.lane.b32.xlu0 %v3936, 20
        %v6146 = vpop.permute.xlu0 %6145
        %6147 = vrot.lane.b32.xlu0 %v3940, 20
        %v6148 = vpop.permute.xlu0 %6147
        %6149 = vrot.lane.b32.xlu0 %v3944, 20
        %v6150 = vpop.permute.xlu0 %6149
        %6151 = vrot.lane.b32.xlu0 %v3921, 20
        %v6152 = vpop.permute.xlu0 %6151
        %6153 = vrot.lane.b32.xlu0 %v3925, 20
        %v6154 = vpop.permute.xlu0 %6153
        %6155 = vrot.lane.b32.xlu0 %v3929, 20
        %v6156 = vpop.permute.xlu0 %6155
        %6157 = vrot.lane.b32.xlu0 %v3933, 20
        %v6158 = vpop.permute.xlu0 %6157
        %6159 = vrot.lane.b32.xlu0 %v3937, 20
        %v6160 = vpop.permute.xlu0 %6159
        %6161 = vrot.lane.b32.xlu0 %v3941, 20
        %v6162 = vpop.permute.xlu0 %6161
        %6163 = vrot.lane.b32.xlu0 %v3945, 20
        %v6164 = vpop.permute.xlu0 %6163
        %6165 = vrot.lane.b32.xlu0 %v3922, 20
        %v6166 = vpop.permute.xlu0 %6165
        %6167 = vrot.lane.b32.xlu0 %v3926, 20
        %v6168 = vpop.permute.xlu0 %6167
        %6169 = vrot.lane.b32.xlu0 %v3930, 20
        %v6170 = vpop.permute.xlu0 %6169
        %6171 = vrot.lane.b32.xlu0 %v3934, 20
        %v6172 = vpop.permute.xlu0 %6171
        %6173 = vrot.lane.b32.xlu0 %v3938, 20
        %v6174 = vpop.permute.xlu0 %6173
        %6175 = vrot.lane.b32.xlu0 %v3942, 20
        %v6176 = vpop.permute.xlu0 %6175
        %6177 = vrot.lane.b32.xlu0 %v3946, 20
        %v6178 = vpop.permute.xlu0 %6177
        %6179 = vrot.lane.b32.xlu0 %v3923, 20
        %v6180 = vpop.permute.xlu0 %6179
        %6181 = vrot.lane.b32.xlu0 %v3927, 20
        %v6182 = vpop.permute.xlu0 %6181
        %6183 = vrot.lane.b32.xlu0 %v3931, 20
        %v6184 = vpop.permute.xlu0 %6183
        %6185 = vrot.lane.b32.xlu0 %v3935, 20
        %v6186 = vpop.permute.xlu0 %6185
        %6187 = vrot.lane.b32.xlu0 %v3939, 20
        %v6188 = vpop.permute.xlu0 %6187
        %6189 = vrot.lane.b32.xlu0 %v3943, 20
        %v6190 = vpop.permute.xlu0 %6189
        %6191 = vrot.lane.b32.xlu0 %v3947, 20
        %v6192 = vpop.permute.xlu0 %6191
        %v6193 = vsel %vm1161, %v6166, %v6180
        %v6194 = vsel %vm1161, %v6168, %v6182
        %v6195 = vsel %vm1161, %v6170, %v6184
        %v6196 = vsel %vm1161, %v6172, %v6186
        %v6197 = vsel %vm1161, %v6174, %v6188
        %v6198 = vsel %vm1161, %v6176, %v6190
        %v6199 = vsel %vm1161, %v6178, %v6192
        %v6200 = vsel %vm1161, %v6152, %v6166
        %v6201 = vsel %vm1161, %v6154, %v6168
        %v6202 = vsel %vm1161, %v6156, %v6170
        %v6203 = vsel %vm1161, %v6158, %v6172
        %v6204 = vsel %vm1161, %v6160, %v6174
        %v6205 = vsel %vm1161, %v6162, %v6176
        %v6206 = vsel %vm1161, %v6164, %v6178
        %v6207 = vsel %vm1161, %v6138, %v6152
        %v6208 = vsel %vm1161, %v6140, %v6154
        %v6209 = vsel %vm1161, %v6142, %v6156
        %v6210 = vsel %vm1161, %v6144, %v6158
        %v6211 = vsel %vm1161, %v6146, %v6160
        %v6212 = vsel %vm1161, %v6148, %v6162
        %v6213 = vsel %vm1161, %v6150, %v6164
        %v6214 = vsel %vm1161, %v6180, %v6138
        %v6215 = vsel %vm1161, %v6182, %v6140
        %v6216 = vsel %vm1161, %v6184, %v6142
        %v6217 = vsel %vm1161, %v6186, %v6144
        %v6218 = vsel %vm1161, %v6188, %v6146
        %v6219 = vsel %vm1161, %v6190, %v6148
        %v6220 = vsel %vm1161, %v6192, %v6150
        %6221 = vrot.lane.b32.xlu0 %v3920, 21
        %v6222 = vpop.permute.xlu0 %6221
        %6223 = vrot.lane.b32.xlu0 %v3924, 21
        %v6224 = vpop.permute.xlu0 %6223
        %6225 = vrot.lane.b32.xlu0 %v3928, 21
        %v6226 = vpop.permute.xlu0 %6225
        %6227 = vrot.lane.b32.xlu0 %v3932, 21
        %v6228 = vpop.permute.xlu0 %6227
        %6229 = vrot.lane.b32.xlu0 %v3936, 21
        %v6230 = vpop.permute.xlu0 %6229
        %6231 = vrot.lane.b32.xlu0 %v3940, 21
        %v6232 = vpop.permute.xlu0 %6231
        %6233 = vrot.lane.b32.xlu0 %v3944, 21
        %v6234 = vpop.permute.xlu0 %6233
        %6235 = vrot.lane.b32.xlu0 %v3921, 21
        %v6236 = vpop.permute.xlu0 %6235
        %6237 = vrot.lane.b32.xlu0 %v3925, 21
        %v6238 = vpop.permute.xlu0 %6237
        %6239 = vrot.lane.b32.xlu0 %v3929, 21
        %v6240 = vpop.permute.xlu0 %6239
        %6241 = vrot.lane.b32.xlu0 %v3933, 21
        %v6242 = vpop.permute.xlu0 %6241
        %6243 = vrot.lane.b32.xlu0 %v3937, 21
        %v6244 = vpop.permute.xlu0 %6243
        %6245 = vrot.lane.b32.xlu0 %v3941, 21
        %v6246 = vpop.permute.xlu0 %6245
        %6247 = vrot.lane.b32.xlu0 %v3945, 21
        %v6248 = vpop.permute.xlu0 %6247
        %6249 = vrot.lane.b32.xlu0 %v3922, 21
        %v6250 = vpop.permute.xlu0 %6249
        %6251 = vrot.lane.b32.xlu0 %v3926, 21
        %v6252 = vpop.permute.xlu0 %6251
        %6253 = vrot.lane.b32.xlu0 %v3930, 21
        %v6254 = vpop.permute.xlu0 %6253
        %6255 = vrot.lane.b32.xlu0 %v3934, 21
        %v6256 = vpop.permute.xlu0 %6255
        %6257 = vrot.lane.b32.xlu0 %v3938, 21
        %v6258 = vpop.permute.xlu0 %6257
        %6259 = vrot.lane.b32.xlu0 %v3942, 21
        %v6260 = vpop.permute.xlu0 %6259
        %6261 = vrot.lane.b32.xlu0 %v3946, 21
        %v6262 = vpop.permute.xlu0 %6261
        %6263 = vrot.lane.b32.xlu0 %v3923, 21
        %v6264 = vpop.permute.xlu0 %6263
        %6265 = vrot.lane.b32.xlu0 %v3927, 21
        %v6266 = vpop.permute.xlu0 %6265
        %6267 = vrot.lane.b32.xlu0 %v3931, 21
        %v6268 = vpop.permute.xlu0 %6267
        %6269 = vrot.lane.b32.xlu0 %v3935, 21
        %v6270 = vpop.permute.xlu0 %6269
        %6271 = vrot.lane.b32.xlu0 %v3939, 21
        %v6272 = vpop.permute.xlu0 %6271
        %6273 = vrot.lane.b32.xlu0 %v3943, 21
        %v6274 = vpop.permute.xlu0 %6273
        %6275 = vrot.lane.b32.xlu0 %v3947, 21
        %v6276 = vpop.permute.xlu0 %6275
        %v6277 = vsel %vm1148, %v6250, %v6264
        %v6278 = vsel %vm1148, %v6252, %v6266
        %v6279 = vsel %vm1148, %v6254, %v6268
        %v6280 = vsel %vm1148, %v6256, %v6270
        %v6281 = vsel %vm1148, %v6258, %v6272
        %v6282 = vsel %vm1148, %v6260, %v6274
        %v6283 = vsel %vm1148, %v6262, %v6276
        %v6284 = vsel %vm1148, %v6236, %v6250
        %v6285 = vsel %vm1148, %v6238, %v6252
        %v6286 = vsel %vm1148, %v6240, %v6254
        %v6287 = vsel %vm1148, %v6242, %v6256
        %v6288 = vsel %vm1148, %v6244, %v6258
        %v6289 = vsel %vm1148, %v6246, %v6260
        %v6290 = vsel %vm1148, %v6248, %v6262
        %v6291 = vsel %vm1148, %v6222, %v6236
        %v6292 = vsel %vm1148, %v6224, %v6238
        %v6293 = vsel %vm1148, %v6226, %v6240
        %v6294 = vsel %vm1148, %v6228, %v6242
        %v6295 = vsel %vm1148, %v6230, %v6244
        %v6296 = vsel %vm1148, %v6232, %v6246
        %v6297 = vsel %vm1148, %v6234, %v6248
        %v6298 = vsel %vm1148, %v6264, %v6222
        %v6299 = vsel %vm1148, %v6266, %v6224
        %v6300 = vsel %vm1148, %v6268, %v6226
        %v6301 = vsel %vm1148, %v6270, %v6228
        %v6302 = vsel %vm1148, %v6272, %v6230
        %v6303 = vsel %vm1148, %v6274, %v6232
        %v6304 = vsel %vm1148, %v6276, %v6234
        %6305 = vrot.lane.b32.xlu0 %v3920, 22
        %v6306 = vpop.permute.xlu0 %6305
        %6307 = vrot.lane.b32.xlu0 %v3924, 22
        %v6308 = vpop.permute.xlu0 %6307
        %6309 = vrot.lane.b32.xlu0 %v3928, 22
        %v6310 = vpop.permute.xlu0 %6309
        %6311 = vrot.lane.b32.xlu0 %v3932, 22
        %v6312 = vpop.permute.xlu0 %6311
        %6313 = vrot.lane.b32.xlu0 %v3936, 22
        %v6314 = vpop.permute.xlu0 %6313
        %6315 = vrot.lane.b32.xlu0 %v3940, 22
        %v6316 = vpop.permute.xlu0 %6315
        %6317 = vrot.lane.b32.xlu0 %v3944, 22
        %v6318 = vpop.permute.xlu0 %6317
        %6319 = vrot.lane.b32.xlu0 %v3921, 22
        %v6320 = vpop.permute.xlu0 %6319
        %6321 = vrot.lane.b32.xlu0 %v3925, 22
        %v6322 = vpop.permute.xlu0 %6321
        %6323 = vrot.lane.b32.xlu0 %v3929, 22
        %v6324 = vpop.permute.xlu0 %6323
        %6325 = vrot.lane.b32.xlu0 %v3933, 22
        %v6326 = vpop.permute.xlu0 %6325
        %6327 = vrot.lane.b32.xlu0 %v3937, 22
        %v6328 = vpop.permute.xlu0 %6327
        %6329 = vrot.lane.b32.xlu0 %v3941, 22
        %v6330 = vpop.permute.xlu0 %6329
        %6331 = vrot.lane.b32.xlu0 %v3945, 22
        %v6332 = vpop.permute.xlu0 %6331
        %6333 = vrot.lane.b32.xlu0 %v3922, 22
        %v6334 = vpop.permute.xlu0 %6333
        %6335 = vrot.lane.b32.xlu0 %v3926, 22
        %v6336 = vpop.permute.xlu0 %6335
        %6337 = vrot.lane.b32.xlu0 %v3930, 22
        %v6338 = vpop.permute.xlu0 %6337
        %6339 = vrot.lane.b32.xlu0 %v3934, 22
        %v6340 = vpop.permute.xlu0 %6339
        %6341 = vrot.lane.b32.xlu0 %v3938, 22
        %v6342 = vpop.permute.xlu0 %6341
        %6343 = vrot.lane.b32.xlu0 %v3942, 22
        %v6344 = vpop.permute.xlu0 %6343
        %6345 = vrot.lane.b32.xlu0 %v3946, 22
        %v6346 = vpop.permute.xlu0 %6345
        %6347 = vrot.lane.b32.xlu0 %v3923, 22
        %v6348 = vpop.permute.xlu0 %6347
        %6349 = vrot.lane.b32.xlu0 %v3927, 22
        %v6350 = vpop.permute.xlu0 %6349
        %6351 = vrot.lane.b32.xlu0 %v3931, 22
        %v6352 = vpop.permute.xlu0 %6351
        %6353 = vrot.lane.b32.xlu0 %v3935, 22
        %v6354 = vpop.permute.xlu0 %6353
        %6355 = vrot.lane.b32.xlu0 %v3939, 22
        %v6356 = vpop.permute.xlu0 %6355
        %6357 = vrot.lane.b32.xlu0 %v3943, 22
        %v6358 = vpop.permute.xlu0 %6357
        %6359 = vrot.lane.b32.xlu0 %v3947, 22
        %v6360 = vpop.permute.xlu0 %6359
        %v6361 = vsel %vm1135, %v6334, %v6348
        %v6362 = vsel %vm1135, %v6336, %v6350
        %v6363 = vsel %vm1135, %v6338, %v6352
        %v6364 = vsel %vm1135, %v6340, %v6354
        %v6365 = vsel %vm1135, %v6342, %v6356
        %v6366 = vsel %vm1135, %v6344, %v6358
        %v6367 = vsel %vm1135, %v6346, %v6360
        %v6368 = vsel %vm1135, %v6320, %v6334
        %v6369 = vsel %vm1135, %v6322, %v6336
        %v6370 = vsel %vm1135, %v6324, %v6338
        %v6371 = vsel %vm1135, %v6326, %v6340
        %v6372 = vsel %vm1135, %v6328, %v6342
        %v6373 = vsel %vm1135, %v6330, %v6344
        %v6374 = vsel %vm1135, %v6332, %v6346
        %v6375 = vsel %vm1135, %v6306, %v6320
        %v6376 = vsel %vm1135, %v6308, %v6322
        %v6377 = vsel %vm1135, %v6310, %v6324
        %v6378 = vsel %vm1135, %v6312, %v6326
        %v6379 = vsel %vm1135, %v6314, %v6328
        %v6380 = vsel %vm1135, %v6316, %v6330
        %v6381 = vsel %vm1135, %v6318, %v6332
        %v6382 = vsel %vm1135, %v6348, %v6306
        %v6383 = vsel %vm1135, %v6350, %v6308
        %v6384 = vsel %vm1135, %v6352, %v6310
        %v6385 = vsel %vm1135, %v6354, %v6312
        %v6386 = vsel %vm1135, %v6356, %v6314
        %v6387 = vsel %vm1135, %v6358, %v6316
        %v6388 = vsel %vm1135, %v6360, %v6318
        %v6389 = vpack.c.bf16 %v6047, %v6046
        %v6390 = vpack.c.bf16 %v6040, %v6039
        %v6391 = vpack.c.bf16 %v6033, %v6032
        %v6392 = vpack.c.bf16 %v6026, %v6025
        %v6393 = vpack.c.bf16 %v6049, %v6048
        %v6394 = vpack.c.bf16 %v6042, %v6041
        %v6395 = vpack.c.bf16 %v6035, %v6034
        %v6396 = vpack.c.bf16 %v6028, %v6027
        %v6397 = vpack.c.bf16 %v6051, %v6050
        %v6398 = vpack.c.bf16 %v6044, %v6043
        %v6399 = vpack.c.bf16 %v6037, %v6036
        %v6400 = vpack.c.bf16 %v6030, %v6029
        %v6401 = vpack.c.bf16 %v6130, %v6052
        %v6402 = vpack.c.bf16 %v6123, %v6045
        %v6403 = vpack.c.bf16 %v6116, %v6038
        %v6404 = vpack.c.bf16 %v6109, %v6031
        %v6405 = vpack.c.bf16 %v6132, %v6131
        %v6406 = vpack.c.bf16 %v6125, %v6124
        %v6407 = vpack.c.bf16 %v6118, %v6117
        %v6408 = vpack.c.bf16 %v6111, %v6110
        %v6409 = vpack.c.bf16 %v6134, %v6133
        %v6410 = vpack.c.bf16 %v6127, %v6126
        %v6411 = vpack.c.bf16 %v6120, %v6119
        %v6412 = vpack.c.bf16 %v6113, %v6112
        %v6413 = vpack.c.bf16 %v6136, %v6135
        %v6414 = vpack.c.bf16 %v6129, %v6128
        %v6415 = vpack.c.bf16 %v6122, %v6121
        %v6416 = vpack.c.bf16 %v6115, %v6114
        %v6417 = vpack.c.bf16 %v6215, %v6214
        %v6418 = vpack.c.bf16 %v6208, %v6207
        %v6419 = vpack.c.bf16 %v6201, %v6200
        %v6420 = vpack.c.bf16 %v6194, %v6193
        %v6421 = vpack.c.bf16 %v6217, %v6216
        %v6422 = vpack.c.bf16 %v6210, %v6209
        %v6423 = vpack.c.bf16 %v6203, %v6202
        %v6424 = vpack.c.bf16 %v6196, %v6195
        %v6425 = vpack.c.bf16 %v6219, %v6218
        %v6426 = vpack.c.bf16 %v6212, %v6211
        %v6427 = vpack.c.bf16 %v6205, %v6204
        %v6428 = vpack.c.bf16 %v6198, %v6197
        %v6429 = vpack.c.bf16 %v6298, %v6220
        %v6430 = vpack.c.bf16 %v6291, %v6213
        %v6431 = vpack.c.bf16 %v6284, %v6206
        %v6432 = vpack.c.bf16 %v6277, %v6199
        %v6433 = vpack.c.bf16 %v6300, %v6299
        %v6434 = vpack.c.bf16 %v6293, %v6292
        %v6435 = vpack.c.bf16 %v6286, %v6285
        %v6436 = vpack.c.bf16 %v6279, %v6278
        %v6437 = vpack.c.bf16 %v6302, %v6301
        %v6438 = vpack.c.bf16 %v6295, %v6294
        %v6439 = vpack.c.bf16 %v6288, %v6287
        %v6440 = vpack.c.bf16 %v6281, %v6280
        %v6441 = vpack.c.bf16 %v6304, %v6303
        %v6442 = vpack.c.bf16 %v6297, %v6296
        %v6443 = vpack.c.bf16 %v6290, %v6289
        %v6444 = vpack.c.bf16 %v6283, %v6282
        %v6445 = vpack.c.bf16 %v6383, %v6382
        %v6446 = vpack.c.bf16 %v6376, %v6375
        %v6447 = vpack.c.bf16 %v6369, %v6368
        %v6448 = vpack.c.bf16 %v6362, %v6361
        %v6449 = vpack.c.bf16 %v6385, %v6384
        %v6450 = vpack.c.bf16 %v6378, %v6377
        %v6451 = vpack.c.bf16 %v6371, %v6370
        %v6452 = vpack.c.bf16 %v6364, %v6363
        %v6453 = vpack.c.bf16 %v6387, %v6386
        %v6454 = vpack.c.bf16 %v6380, %v6379
        %v6455 = vpack.c.bf16 %v6373, %v6372
        %v6456 = vpack.c.bf16 %v6366, %v6365
        %v6457 = vpack.c.bf16 %v6388, %v6388
        %v6458 = vpack.c.bf16 %v6381, %v6381
        %v6459 = vpack.c.bf16 %v6374, %v6374
        %v6460 = vpack.c.bf16 %v6367, %v6367
        %s6461 = scalar_lea.vmem [#allocation30], 72
        %v6462 = vld [vmem:[%s6461] sm:$0xff]
        %v6463 = vld [vmem:[%s6461 + $0x8] sm:$0xf]
        %v6464 = vld [vmem:[%s6461 + $0xc] sm:$0x33]
        %v6465 = vld [vmem:[%s6461 + $0x14] sm:$0x3]
        %v6470 = vunpack.c.l.b16 %v6462
        %v6471 = vunpack.c.h.b16 %v6462
        %v6472 = vunpack.c.l.b16 %v6463
        %v6473 = vunpack.c.l.b16 %v6464
        %v6474 = vunpack.c.h.b16 %v6464
        %v6475 = vunpack.c.l.b16 %v6465
        %v6476 = vpack.c.b16 %v6473, %v6470
        %v6477 = vpack.c.b16 %v6474, %v6471
        %v6478 = vpack.c.b16 %v6475, %v6472
        %v6482 = vsel %vm4956, %v6478, 0
        %v6485 = vsel %vm1521, %v6457, 0
        %v6488 = vsel %vm1521, %v6458, 0
        %v6491 = vsel %vm1521, %v6459, 0
        %v6494 = vsel %vm1521, %v6460, 0
        %6496 = vmatprep.subr.bf16.mxu0 %v6390
        %6497 = vmatpush1.bf16.msra.mxu0 %v6389
        %6498 = vmatprep.subr.bf16.mxu0 %v6394
        %6499 = vmatpush1.bf16.msra.mxu0 %v6393
        %6500 = vmatprep.subr.bf16.mxu0 %v6398
        %6501 = vmatpush1.bf16.msra.mxu0 %v6397
        %6502 = vmatprep.subr.bf16.mxu0 %v6402
        %6503 = vmatpush1.bf16.msra.mxu0 %v6401
        %6504 = vmatprep.subr.bf16.mxu0 %v6406
        %6505 = vmatpush1.bf16.msra.mxu0 %v6405
        %6506 = vmatprep.subr.bf16.mxu0 %v6410
        %6507 = vmatpush1.bf16.msra.mxu0 %v6409
        %6508 = vmatprep.subr.bf16.mxu0 %v6414
        %6509 = vmatpush1.bf16.msra.mxu0 %v6413
        %6510 = vmatprep.subr.bf16.mxu0 %v6418
        %6511 = vmatpush1.bf16.msra.mxu0 %v6417
        %6512 = vmatprep.subr.bf16.mxu0 %v6422
        %6513 = vmatpush1.bf16.msra.mxu0 %v6421
        %6514 = vmatprep.subr.bf16.mxu0 %v6426
        %6515 = vmatpush1.bf16.msra.mxu0 %v6425
        %6516 = vmatprep.subr.bf16.mxu0 %v6430
        %6517 = vmatpush1.bf16.msra.mxu0 %v6429
        %6518 = vmatprep.subr.bf16.mxu0 %v6434
        %6519 = vmatpush1.bf16.msra.mxu0 %v6433
        %6520 = vmatprep.subr.bf16.mxu0 %v6438
        %6521 = vmatpush1.bf16.msra.mxu0 %v6437
        %6522 = vmatprep.subr.bf16.mxu0 %v6442
        %6523 = vmatpush1.bf16.msra.mxu0 %v6441
        %6524 = vmatprep.subr.bf16.mxu0 %v6446
        %6525 = vmatpush1.bf16.msra.mxu0 %v6445
        %6526 = vmatprep.subr.bf16.mxu0 %v6450
        %6527 = vmatpush1.bf16.msra.mxu0 %v6449
        %6528 = vmatprep.mubr.bf16.mxu0 %v6477
        %6529 = vmatmul.mubr.bf16.gmra.mrb[0].mxu0 %v6476
        %v6530 = vpop.f32.mrb[0].mxu0
        %v6531 = vadd.f32 0.0, %v6530
        %v6532 = vpop.f32.mrb[0].mxu0
        %v6533 = vadd.f32 0.0, %v6532
        %v6534 = vpop.f32.mrb[0].mxu0
        %v6535 = vadd.f32 0.0, %v6534
        %v6536 = vpop.f32.mrb[0].mxu0
        %v6537 = vadd.f32 0.0, %v6536
        %6538 = vdwg.mxu0
        %6539 = vmatprep.subr.bf16.mxu0 %v6454
        %6540 = vmatpush1.bf16.msra.mxu0 %v6453
        %6541 = vmatprep.subr.bf16.mxu0 %v6488
        %6542 = vmatpush1.bf16.msra.mxu0 %v6485
        %6543 = vmatprep.subr.bf16.mxu0 0
        %6544 = vmatpush1.bf16.msra.mxu0 0
        %6545 = vmatprep.subr.bf16.mxu0 0
        %6546 = vmatpush1.bf16.msra.mxu0 0
        %6547 = vmatprep.subr.bf16.mxu0 0
        %6548 = vmatpush1.bf16.msra.mxu0 0
        %6549 = vmatprep.subr.bf16.mxu0 0
        %6550 = vmatpush1.bf16.msra.mxu0 0
        %6551 = vmatprep.subr.bf16.mxu0 0
        %6552 = vmatpush1.bf16.msra.mxu0 0
        %6553 = vmatprep.subr.bf16.mxu0 0
        %6554 = vmatpush1.bf16.msra.mxu0 0
        %6555 = vmatprep.subr.bf16.mxu0 0
        %6556 = vmatpush1.bf16.msra.mxu0 0
        %6557 = vmatprep.subr.bf16.mxu0 0
        %6558 = vmatpush1.bf16.msra.mxu0 0
        %6559 = vmatprep.subr.bf16.mxu0 0
        %6560 = vmatpush1.bf16.msra.mxu0 0
        %6561 = vmatprep.subr.bf16.mxu0 0
        %6562 = vmatpush1.bf16.msra.mxu0 0
        %6563 = vmatprep.subr.bf16.mxu0 0
        %6564 = vmatpush1.bf16.msra.mxu0 0
        %6565 = vmatprep.subr.bf16.mxu0 0
        %6566 = vmatpush1.bf16.msra.mxu0 0
        %6567 = vmatprep.subr.bf16.mxu0 0
        %6568 = vmatpush1.bf16.msra.mxu0 0
        %6569 = vmatprep.subr.bf16.mxu0 0
        %6570 = vmatpush1.bf16.msra.mxu0 0
        %6571 = vmatprep.mubr.bf16.mxu0 0
        %6572 = vmatmul.mubr.bf16.gmra.mrb[0].mxu0 %v6482
        %v6573 = vpop.f32.mrb[0].mxu0
        %v6574 = vadd.f32 %v6531, %v6573
        %v6575 = vpop.f32.mrb[0].mxu0
        %v6576 = vadd.f32 %v6533, %v6575
        %v6577 = vpop.f32.mrb[0].mxu0
        %v6578 = vadd.f32 %v6535, %v6577
        %v6579 = vpop.f32.mrb[0].mxu0
        %v6580 = vadd.f32 %v6537, %v6579
        %6581 = vdwg.mxu0
        %6582 = vmatprep.subr.bf16.mxu0 %v6392
        %6583 = vmatpush1.bf16.msra.mxu0 %v6391
        %6584 = vmatprep.subr.bf16.mxu0 %v6396
        %6585 = vmatpush1.bf16.msra.mxu0 %v6395
        %6586 = vmatprep.subr.bf16.mxu0 %v6400
        %6587 = vmatpush1.bf16.msra.mxu0 %v6399
        %6588 = vmatprep.subr.bf16.mxu0 %v6404
        %6589 = vmatpush1.bf16.msra.mxu0 %v6403
        %6590 = vmatprep.subr.bf16.mxu0 %v6408
        %6591 = vmatpush1.bf16.msra.mxu0 %v6407
        %6592 = vmatprep.subr.bf16.mxu0 %v6412
        %6593 = vmatpush1.bf16.msra.mxu0 %v6411
        %6594 = vmatprep.subr.bf16.mxu0 %v6416
        %6595 = vmatpush1.bf16.msra.mxu0 %v6415
        %6596 = vmatprep.subr.bf16.mxu0 %v6420
        %6597 = vmatpush1.bf16.msra.mxu0 %v6419
        %6598 = vmatprep.subr.bf16.mxu0 %v6424
        %6599 = vmatpush1.bf16.msra.mxu0 %v6423
        %6600 = vmatprep.subr.bf16.mxu0 %v6428
        %6601 = vmatpush1.bf16.msra.mxu0 %v6427
        %6602 = vmatprep.subr.bf16.mxu0 %v6432
        %6603 = vmatpush1.bf16.msra.mxu0 %v6431
        %6604 = vmatprep.subr.bf16.mxu0 %v6436
        %6605 = vmatpush1.bf16.msra.mxu0 %v6435
        %6606 = vmatprep.subr.bf16.mxu0 %v6440
        %6607 = vmatpush1.bf16.msra.mxu0 %v6439
        %6608 = vmatprep.subr.bf16.mxu0 %v6444
        %6609 = vmatpush1.bf16.msra.mxu0 %v6443
        %6610 = vmatprep.subr.bf16.mxu0 %v6448
        %6611 = vmatpush1.bf16.msra.mxu0 %v6447
        %6612 = vmatprep.subr.bf16.mxu0 %v6452
        %6613 = vmatpush1.bf16.msra.mxu0 %v6451
        %6614 = vmatprep.mubr.bf16.mxu0 %v6477
        %6615 = vmatmul.mubr.bf16.gmra.mrb[0].mxu0 %v6476
        %v6616 = vpop.f32.mrb[0].mxu0
        %v6617 = vadd.f32 0.0, %v6616
        %v6618 = vpop.f32.mrb[0].mxu0
        %v6619 = vadd.f32 0.0, %v6618
        %v6620 = vpop.f32.mrb[0].mxu0
        %v6621 = vadd.f32 0.0, %v6620
        %v6622 = vpop.f32.mrb[0].mxu0
        %v6623 = vadd.f32 0.0, %v6622
        %6624 = vdwg.mxu0
        %6625 = vmatprep.subr.bf16.mxu0 %v6456
        %6626 = vmatpush1.bf16.msra.mxu0 %v6455
        %6627 = vmatprep.subr.bf16.mxu0 %v6494
        %6628 = vmatpush1.bf16.msra.mxu0 %v6491
        %6629 = vmatprep.subr.bf16.mxu0 0
        %6630 = vmatpush1.bf16.msra.mxu0 0
        %6631 = vmatprep.subr.bf16.mxu0 0
        %6632 = vmatpush1.bf16.msra.mxu0 0
        %6633 = vmatprep.subr.bf16.mxu0 0
        %6634 = vmatpush1.bf16.msra.mxu0 0
        %6635 = vmatprep.subr.bf16.mxu0 0
        %6636 = vmatpush1.bf16.msra.mxu0 0
        %6637 = vmatprep.subr.bf16.mxu0 0
        %6638 = vmatpush1.bf16.msra.mxu0 0
        %6639 = vmatprep.subr.bf16.mxu0 0
        %6640 = vmatpush1.bf16.msra.mxu0 0
        %6641 = vmatprep.subr.bf16.mxu0 0
        %6642 = vmatpush1.bf16.msra.mxu0 0
        %6643 = vmatprep.subr.bf16.mxu0 0
        %6644 = vmatpush1.bf16.msra.mxu0 0
        %6645 = vmatprep.subr.bf16.mxu0 0
        %6646 = vmatpush1.bf16.msra.mxu0 0
        %6647 = vmatprep.subr.bf16.mxu0 0
        %6648 = vmatpush1.bf16.msra.mxu0 0
        %6649 = vmatprep.subr.bf16.mxu0 0
        %6650 = vmatpush1.bf16.msra.mxu0 0
        %6651 = vmatprep.subr.bf16.mxu0 0
        %6652 = vmatpush1.bf16.msra.mxu0 0
        %6653 = vmatprep.subr.bf16.mxu0 0
        %6654 = vmatpush1.bf16.msra.mxu0 0
        %6655 = vmatprep.subr.bf16.mxu0 0
        %6656 = vmatpush1.bf16.msra.mxu0 0
        %6657 = vmatprep.mubr.bf16.mxu0 0
        %6658 = vmatmul.mubr.bf16.gmra.mrb[0].mxu0 %v6482
        %v6659 = vpop.f32.mrb[0].mxu0
        %v6660 = vadd.f32 %v6617, %v6659
        %v6661 = vpop.f32.mrb[0].mxu0
        %v6662 = vadd.f32 %v6619, %v6661
        %v6663 = vpop.f32.mrb[0].mxu0
        %v6664 = vadd.f32 %v6621, %v6663
        %v6665 = vpop.f32.mrb[0].mxu0
        %v6666 = vadd.f32 %v6623, %v6665
        %6667 = vdwg.mxu0
        %v6668 = vadd.f32 %v5961, %v6574
        %v6669 = vadd.f32 %v5962, %v6576
        %v6670 = vadd.f32 %v5963, %v6660
        %v6671 = vadd.f32 %v5964, %v6662
        %v6672 = vadd.f32 %v5965, %v6578
        %v6673 = vadd.f32 %v5966, %v6580
        %v6674 = vadd.f32 %v5967, %v6664
        %v6675 = vadd.f32 %v5968, %v6666
        %6676 = vrot.lane.b32.xlu0 %v3920, 38
        %v6677 = vpop.permute.xlu0 %6676
        %6678 = vrot.lane.b32.xlu0 %v3924, 38
        %v6679 = vpop.permute.xlu0 %6678
        %6680 = vrot.lane.b32.xlu0 %v3928, 38
        %v6681 = vpop.permute.xlu0 %6680
        %6682 = vrot.lane.b32.xlu0 %v3932, 38
        %v6683 = vpop.permute.xlu0 %6682
        %6684 = vrot.lane.b32.xlu0 %v3936, 38
        %v6685 = vpop.permute.xlu0 %6684
        %6686 = vrot.lane.b32.xlu0 %v3940, 38
        %v6687 = vpop.permute.xlu0 %6686
        %6688 = vrot.lane.b32.xlu0 %v3944, 38
        %v6689 = vpop.permute.xlu0 %6688
        %6690 = vrot.lane.b32.xlu0 %v3921, 38
        %v6691 = vpop.permute.xlu0 %6690
        %6692 = vrot.lane.b32.xlu0 %v3925, 38
        %v6693 = vpop.permute.xlu0 %6692
        %6694 = vrot.lane.b32.xlu0 %v3929, 38
        %v6695 = vpop.permute.xlu0 %6694
        %6696 = vrot.lane.b32.xlu0 %v3933, 38
        %v6697 = vpop.permute.xlu0 %6696
        %6698 = vrot.lane.b32.xlu0 %v3937, 38
        %v6699 = vpop.permute.xlu0 %6698
        %6700 = vrot.lane.b32.xlu0 %v3941, 38
        %v6701 = vpop.permute.xlu0 %6700
        %6702 = vrot.lane.b32.xlu0 %v3945, 38
        %v6703 = vpop.permute.xlu0 %6702
        %6704 = vrot.lane.b32.xlu0 %v3922, 38
        %v6705 = vpop.permute.xlu0 %6704
        %6706 = vrot.lane.b32.xlu0 %v3926, 38
        %v6707 = vpop.permute.xlu0 %6706
        %6708 = vrot.lane.b32.xlu0 %v3930, 38
        %v6709 = vpop.permute.xlu0 %6708
        %6710 = vrot.lane.b32.xlu0 %v3934, 38
        %v6711 = vpop.permute.xlu0 %6710
        %6712 = vrot.lane.b32.xlu0 %v3938, 38
        %v6713 = vpop.permute.xlu0 %6712
        %6714 = vrot.lane.b32.xlu0 %v3942, 38
        %v6715 = vpop.permute.xlu0 %6714
        %6716 = vrot.lane.b32.xlu0 %v3946, 38
        %v6717 = vpop.permute.xlu0 %6716
        %6718 = vrot.lane.b32.xlu0 %v3923, 38
        %v6719 = vpop.permute.xlu0 %6718
        %6720 = vrot.lane.b32.xlu0 %v3927, 38
        %v6721 = vpop.permute.xlu0 %6720
        %6722 = vrot.lane.b32.xlu0 %v3931, 38
        %v6723 = vpop.permute.xlu0 %6722
        %6724 = vrot.lane.b32.xlu0 %v3935, 38
        %v6725 = vpop.permute.xlu0 %6724
        %6726 = vrot.lane.b32.xlu0 %v3939, 38
        %v6727 = vpop.permute.xlu0 %6726
        %6728 = vrot.lane.b32.xlu0 %v3943, 38
        %v6729 = vpop.permute.xlu0 %6728
        %6730 = vrot.lane.b32.xlu0 %v3947, 38
        %v6731 = vpop.permute.xlu0 %6730
        %v6732 = vsel %vm1122, %v6705, %v6719
        %v6733 = vsel %vm1122, %v6707, %v6721
        %v6734 = vsel %vm1122, %v6709, %v6723
        %v6735 = vsel %vm1122, %v6711, %v6725
        %v6736 = vsel %vm1122, %v6713, %v6727
        %v6737 = vsel %vm1122, %v6715, %v6729
        %v6738 = vsel %vm1122, %v6717, %v6731
        %v6739 = vsel %vm1122, %v6691, %v6705
        %v6740 = vsel %vm1122, %v6693, %v6707
        %v6741 = vsel %vm1122, %v6695, %v6709
        %v6742 = vsel %vm1122, %v6697, %v6711
        %v6743 = vsel %vm1122, %v6699, %v6713
        %v6744 = vsel %vm1122, %v6701, %v6715
        %v6745 = vsel %vm1122, %v6703, %v6717
        %v6746 = vsel %vm1122, %v6677, %v6691
        %v6747 = vsel %vm1122, %v6679, %v6693
        %v6748 = vsel %vm1122, %v6681, %v6695
        %v6749 = vsel %vm1122, %v6683, %v6697
        %v6750 = vsel %vm1122, %v6685, %v6699
        %v6751 = vsel %vm1122, %v6687, %v6701
        %v6752 = vsel %vm1122, %v6689, %v6703
        %v6753 = vsel %vm1122, %v6719, %v6677
        %v6754 = vsel %vm1122, %v6721, %v6679
        %v6755 = vsel %vm1122, %v6723, %v6681
        %v6756 = vsel %vm1122, %v6725, %v6683
        %v6757 = vsel %vm1122, %v6727, %v6685
        %v6758 = vsel %vm1122, %v6729, %v6687
        %v6759 = vsel %vm1122, %v6731, %v6689
        %6760 = vrot.lane.b32.xlu0 %v3920, 39
        %v6761 = vpop.permute.xlu0 %6760
        %6762 = vrot.lane.b32.xlu0 %v3924, 39
        %v6763 = vpop.permute.xlu0 %6762
        %6764 = vrot.lane.b32.xlu0 %v3928, 39
        %v6765 = vpop.permute.xlu0 %6764
        %6766 = vrot.lane.b32.xlu0 %v3932, 39
        %v6767 = vpop.permute.xlu0 %6766
        %6768 = vrot.lane.b32.xlu0 %v3936, 39
        %v6769 = vpop.permute.xlu0 %6768
        %6770 = vrot.lane.b32.xlu0 %v3940, 39
        %v6771 = vpop.permute.xlu0 %6770
        %6772 = vrot.lane.b32.xlu0 %v3944, 39
        %v6773 = vpop.permute.xlu0 %6772
        %6774 = vrot.lane.b32.xlu0 %v3921, 39
        %v6775 = vpop.permute.xlu0 %6774
        %6776 = vrot.lane.b32.xlu0 %v3925, 39
        %v6777 = vpop.permute.xlu0 %6776
        %6778 = vrot.lane.b32.xlu0 %v3929, 39
        %v6779 = vpop.permute.xlu0 %6778
        %6780 = vrot.lane.b32.xlu0 %v3933, 39
        %v6781 = vpop.permute.xlu0 %6780
        %6782 = vrot.lane.b32.xlu0 %v3937, 39
        %v6783 = vpop.permute.xlu0 %6782
        %6784 = vrot.lane.b32.xlu0 %v3941, 39
        %v6785 = vpop.permute.xlu0 %6784
        %6786 = vrot.lane.b32.xlu0 %v3945, 39
        %v6787 = vpop.permute.xlu0 %6786
        %6788 = vrot.lane.b32.xlu0 %v3922, 39
        %v6789 = vpop.permute.xlu0 %6788
        %6790 = vrot.lane.b32.xlu0 %v3926, 39
        %v6791 = vpop.permute.xlu0 %6790
        %6792 = vrot.lane.b32.xlu0 %v3930, 39
        %v6793 = vpop.permute.xlu0 %6792
        %6794 = vrot.lane.b32.xlu0 %v3934, 39
        %v6795 = vpop.permute.xlu0 %6794
        %6796 = vrot.lane.b32.xlu0 %v3938, 39
        %v6797 = vpop.permute.xlu0 %6796
        %6798 = vrot.lane.b32.xlu0 %v3942, 39
        %v6799 = vpop.permute.xlu0 %6798
        %6800 = vrot.lane.b32.xlu0 %v3946, 39
        %v6801 = vpop.permute.xlu0 %6800
        %6802 = vrot.lane.b32.xlu0 %v3923, 39
        %v6803 = vpop.permute.xlu0 %6802
        %6804 = vrot.lane.b32.xlu0 %v3927, 39
        %v6805 = vpop.permute.xlu0 %6804
        %6806 = vrot.lane.b32.xlu0 %v3931, 39
        %v6807 = vpop.permute.xlu0 %6806
        %6808 = vrot.lane.b32.xlu0 %v3935, 39
        %v6809 = vpop.permute.xlu0 %6808
        %6810 = vrot.lane.b32.xlu0 %v3939, 39
        %v6811 = vpop.permute.xlu0 %6810
        %6812 = vrot.lane.b32.xlu0 %v3943, 39
        %v6813 = vpop.permute.xlu0 %6812
        %6814 = vrot.lane.b32.xlu0 %v3947, 39
        %v6815 = vpop.permute.xlu0 %6814
        %v6816 = vsel %vm1109, %v6789, %v6803
        %v6817 = vsel %vm1109, %v6791, %v6805
        %v6818 = vsel %vm1109, %v6793, %v6807
        %v6819 = vsel %vm1109, %v6795, %v6809
        %v6820 = vsel %vm1109, %v6797, %v6811
        %v6821 = vsel %vm1109, %v6799, %v6813
        %v6822 = vsel %vm1109, %v6801, %v6815
        %v6823 = vsel %vm1109, %v6775, %v6789
        %v6824 = vsel %vm1109, %v6777, %v6791
        %v6825 = vsel %vm1109, %v6779, %v6793
        %v6826 = vsel %vm1109, %v6781, %v6795
        %v6827 = vsel %vm1109, %v6783, %v6797
        %v6828 = vsel %vm1109, %v6785, %v6799
        %v6829 = vsel %vm1109, %v6787, %v6801
        %v6830 = vsel %vm1109, %v6761, %v6775
        %v6831 = vsel %vm1109, %v6763, %v6777
        %v6832 = vsel %vm1109, %v6765, %v6779
        %v6833 = vsel %vm1109, %v6767, %v6781
        %v6834 = vsel %vm1109, %v6769, %v6783
        %v6835 = vsel %vm1109, %v6771, %v6785
        %v6836 = vsel %vm1109, %v6773, %v6787
        %v6837 = vsel %vm1109, %v6803, %v6761
        %v6838 = vsel %vm1109, %v6805, %v6763
        %v6839 = vsel %vm1109, %v6807, %v6765
        %v6840 = vsel %vm1109, %v6809, %v6767
        %v6841 = vsel %vm1109, %v6811, %v6769
        %v6842 = vsel %vm1109, %v6813, %v6771
        %v6843 = vsel %vm1109, %v6815, %v6773
        %6844 = vrot.lane.b32.xlu0 %v3920, 40
        %v6845 = vpop.permute.xlu0 %6844
        %6846 = vrot.lane.b32.xlu0 %v3924, 40
        %v6847 = vpop.permute.xlu0 %6846
        %6848 = vrot.lane.b32.xlu0 %v3928, 40
        %v6849 = vpop.permute.xlu0 %6848
        %6850 = vrot.lane.b32.xlu0 %v3932, 40
        %v6851 = vpop.permute.xlu0 %6850
        %6852 = vrot.lane.b32.xlu0 %v3936, 40
        %v6853 = vpop.permute.xlu0 %6852
        %6854 = vrot.lane.b32.xlu0 %v3940, 40
        %v6855 = vpop.permute.xlu0 %6854
        %6856 = vrot.lane.b32.xlu0 %v3944, 40
        %v6857 = vpop.permute.xlu0 %6856
        %6858 = vrot.lane.b32.xlu0 %v3921, 40
        %v6859 = vpop.permute.xlu0 %6858
        %6860 = vrot.lane.b32.xlu0 %v3925, 40
        %v6861 = vpop.permute.xlu0 %6860
        %6862 = vrot.lane.b32.xlu0 %v3929, 40
        %v6863 = vpop.permute.xlu0 %6862
        %6864 = vrot.lane.b32.xlu0 %v3933, 40
        %v6865 = vpop.permute.xlu0 %6864
        %6866 = vrot.lane.b32.xlu0 %v3937, 40
        %v6867 = vpop.permute.xlu0 %6866
        %6868 = vrot.lane.b32.xlu0 %v3941, 40
        %v6869 = vpop.permute.xlu0 %6868
        %6870 = vrot.lane.b32.xlu0 %v3945, 40
        %v6871 = vpop.permute.xlu0 %6870
        %6872 = vrot.lane.b32.xlu0 %v3922, 40
        %v6873 = vpop.permute.xlu0 %6872
        %6874 = vrot.lane.b32.xlu0 %v3926, 40
        %v6875 = vpop.permute.xlu0 %6874
        %6876 = vrot.lane.b32.xlu0 %v3930, 40
        %v6877 = vpop.permute.xlu0 %6876
        %6878 = vrot.lane.b32.xlu0 %v3934, 40
        %v6879 = vpop.permute.xlu0 %6878
        %6880 = vrot.lane.b32.xlu0 %v3938, 40
        %v6881 = vpop.permute.xlu0 %6880
        %6882 = vrot.lane.b32.xlu0 %v3942, 40
        %v6883 = vpop.permute.xlu0 %6882
        %6884 = vrot.lane.b32.xlu0 %v3946, 40
        %v6885 = vpop.permute.xlu0 %6884
        %6886 = vrot.lane.b32.xlu0 %v3923, 40
        %v6887 = vpop.permute.xlu0 %6886
        %6888 = vrot.lane.b32.xlu0 %v3927, 40
        %v6889 = vpop.permute.xlu0 %6888
        %6890 = vrot.lane.b32.xlu0 %v3931, 40
        %v6891 = vpop.permute.xlu0 %6890
        %6892 = vrot.lane.b32.xlu0 %v3935, 40
        %v6893 = vpop.permute.xlu0 %6892
        %6894 = vrot.lane.b32.xlu0 %v3939, 40
        %v6895 = vpop.permute.xlu0 %6894
        %6896 = vrot.lane.b32.xlu0 %v3943, 40
        %v6897 = vpop.permute.xlu0 %6896
        %6898 = vrot.lane.b32.xlu0 %v3947, 40
        %v6899 = vpop.permute.xlu0 %6898
        %v6900 = vsel %vm1096, %v6873, %v6887
        %v6901 = vsel %vm1096, %v6875, %v6889
        %v6902 = vsel %vm1096, %v6877, %v6891
        %v6903 = vsel %vm1096, %v6879, %v6893
        %v6904 = vsel %vm1096, %v6881, %v6895
        %v6905 = vsel %vm1096, %v6883, %v6897
        %v6906 = vsel %vm1096, %v6885, %v6899
        %v6907 = vsel %vm1096, %v6859, %v6873
        %v6908 = vsel %vm1096, %v6861, %v6875
        %v6909 = vsel %vm1096, %v6863, %v6877
        %v6910 = vsel %vm1096, %v6865, %v6879
        %v6911 = vsel %vm1096, %v6867, %v6881
        %v6912 = vsel %vm1096, %v6869, %v6883
        %v6913 = vsel %vm1096, %v6871, %v6885
        %v6914 = vsel %vm1096, %v6845, %v6859
        %v6915 = vsel %vm1096, %v6847, %v6861
        %v6916 = vsel %vm1096, %v6849, %v6863
        %v6917 = vsel %vm1096, %v6851, %v6865
        %v6918 = vsel %vm1096, %v6853, %v6867
        %v6919 = vsel %vm1096, %v6855, %v6869
        %v6920 = vsel %vm1096, %v6857, %v6871
        %v6921 = vsel %vm1096, %v6887, %v6845
        %v6922 = vsel %vm1096, %v6889, %v6847
        %v6923 = vsel %vm1096, %v6891, %v6849
        %v6924 = vsel %vm1096, %v6893, %v6851
        %v6925 = vsel %vm1096, %v6895, %v6853
        %v6926 = vsel %vm1096, %v6897, %v6855
        %v6927 = vsel %vm1096, %v6899, %v6857
        %6928 = vrot.lane.b32.xlu0 %v3920, 41
        %v6929 = vpop.permute.xlu0 %6928
        %6930 = vrot.lane.b32.xlu0 %v3924, 41
        %v6931 = vpop.permute.xlu0 %6930
        %6932 = vrot.lane.b32.xlu0 %v3928, 41
        %v6933 = vpop.permute.xlu0 %6932
        %6934 = vrot.lane.b32.xlu0 %v3932, 41
        %v6935 = vpop.permute.xlu0 %6934
        %6936 = vrot.lane.b32.xlu0 %v3936, 41
        %v6937 = vpop.permute.xlu0 %6936
        %6938 = vrot.lane.b32.xlu0 %v3940, 41
        %v6939 = vpop.permute.xlu0 %6938
        %6940 = vrot.lane.b32.xlu0 %v3944, 41
        %v6941 = vpop.permute.xlu0 %6940
        %6942 = vrot.lane.b32.xlu0 %v3921, 41
        %v6943 = vpop.permute.xlu0 %6942
        %6944 = vrot.lane.b32.xlu0 %v3925, 41
        %v6945 = vpop.permute.xlu0 %6944
        %6946 = vrot.lane.b32.xlu0 %v3929, 41
        %v6947 = vpop.permute.xlu0 %6946
        %6948 = vrot.lane.b32.xlu0 %v3933, 41
        %v6949 = vpop.permute.xlu0 %6948
        %6950 = vrot.lane.b32.xlu0 %v3937, 41
        %v6951 = vpop.permute.xlu0 %6950
        %6952 = vrot.lane.b32.xlu0 %v3941, 41
        %v6953 = vpop.permute.xlu0 %6952
        %6954 = vrot.lane.b32.xlu0 %v3945, 41
        %v6955 = vpop.permute.xlu0 %6954
        %6956 = vrot.lane.b32.xlu0 %v3922, 41
        %v6957 = vpop.permute.xlu0 %6956
        %6958 = vrot.lane.b32.xlu0 %v3926, 41
        %v6959 = vpop.permute.xlu0 %6958
        %6960 = vrot.lane.b32.xlu0 %v3930, 41
        %v6961 = vpop.permute.xlu0 %6960
        %6962 = vrot.lane.b32.xlu0 %v3934, 41
        %v6963 = vpop.permute.xlu0 %6962
        %6964 = vrot.lane.b32.xlu0 %v3938, 41
        %v6965 = vpop.permute.xlu0 %6964
        %6966 = vrot.lane.b32.xlu0 %v3942, 41
        %v6967 = vpop.permute.xlu0 %6966
        %6968 = vrot.lane.b32.xlu0 %v3946, 41
        %v6969 = vpop.permute.xlu0 %6968
        %6970 = vrot.lane.b32.xlu0 %v3923, 41
        %v6971 = vpop.permute.xlu0 %6970
        %6972 = vrot.lane.b32.xlu0 %v3927, 41
        %v6973 = vpop.permute.xlu0 %6972
        %6974 = vrot.lane.b32.xlu0 %v3931, 41
        %v6975 = vpop.permute.xlu0 %6974
        %6976 = vrot.lane.b32.xlu0 %v3935, 41
        %v6977 = vpop.permute.xlu0 %6976
        %6978 = vrot.lane.b32.xlu0 %v3939, 41
        %v6979 = vpop.permute.xlu0 %6978
        %6980 = vrot.lane.b32.xlu0 %v3943, 41
        %v6981 = vpop.permute.xlu0 %6980
        %6982 = vrot.lane.b32.xlu0 %v3947, 41
        %v6983 = vpop.permute.xlu0 %6982
        %v6984 = vsel %vm1083, %v6957, %v6971
        %v6985 = vsel %vm1083, %v6959, %v6973
        %v6986 = vsel %vm1083, %v6961, %v6975
        %v6987 = vsel %vm1083, %v6963, %v6977
        %v6988 = vsel %vm1083, %v6965, %v6979
        %v6989 = vsel %vm1083, %v6967, %v6981
        %v6990 = vsel %vm1083, %v6969, %v6983
        %v6991 = vsel %vm1083, %v6943, %v6957
        %v6992 = vsel %vm1083, %v6945, %v6959
        %v6993 = vsel %vm1083, %v6947, %v6961
        %v6994 = vsel %vm1083, %v6949, %v6963
        %v6995 = vsel %vm1083, %v6951, %v6965
        %v6996 = vsel %vm1083, %v6953, %v6967
        %v6997 = vsel %vm1083, %v6955, %v6969
        %v6998 = vsel %vm1083, %v6929, %v6943
        %v6999 = vsel %vm1083, %v6931, %v6945
        %v7000 = vsel %vm1083, %v6933, %v6947
        %v7001 = vsel %vm1083, %v6935, %v6949
        %v7002 = vsel %vm1083, %v6937, %v6951
        %v7003 = vsel %vm1083, %v6939, %v6953
        %v7004 = vsel %vm1083, %v6941, %v6955
        %v7005 = vsel %vm1083, %v6971, %v6929
        %v7006 = vsel %vm1083, %v6973, %v6931
        %v7007 = vsel %vm1083, %v6975, %v6933
        %v7008 = vsel %vm1083, %v6977, %v6935
        %v7009 = vsel %vm1083, %v6979, %v6937
        %v7010 = vsel %vm1083, %v6981, %v6939
        %v7011 = vsel %vm1083, %v6983, %v6941
        %7012 = vrot.lane.b32.xlu0 %v3920, 42
        %v7013 = vpop.permute.xlu0 %7012
        %7014 = vrot.lane.b32.xlu0 %v3924, 42
        %v7015 = vpop.permute.xlu0 %7014
        %7016 = vrot.lane.b32.xlu0 %v3928, 42
        %v7017 = vpop.permute.xlu0 %7016
        %7018 = vrot.lane.b32.xlu0 %v3932, 42
        %v7019 = vpop.permute.xlu0 %7018
        %7020 = vrot.lane.b32.xlu0 %v3936, 42
        %v7021 = vpop.permute.xlu0 %7020
        %7022 = vrot.lane.b32.xlu0 %v3940, 42
        %v7023 = vpop.permute.xlu0 %7022
        %7024 = vrot.lane.b32.xlu0 %v3944, 42
        %v7025 = vpop.permute.xlu0 %7024
        %7026 = vrot.lane.b32.xlu0 %v3921, 42
        %v7027 = vpop.permute.xlu0 %7026
        %7028 = vrot.lane.b32.xlu0 %v3925, 42
        %v7029 = vpop.permute.xlu0 %7028
        %7030 = vrot.lane.b32.xlu0 %v3929, 42
        %v7031 = vpop.permute.xlu0 %7030
        %7032 = vrot.lane.b32.xlu0 %v3933, 42
        %v7033 = vpop.permute.xlu0 %7032
        %7034 = vrot.lane.b32.xlu0 %v3937, 42
        %v7035 = vpop.permute.xlu0 %7034
        %7036 = vrot.lane.b32.xlu0 %v3941, 42
        %v7037 = vpop.permute.xlu0 %7036
        %7038 = vrot.lane.b32.xlu0 %v3945, 42
        %v7039 = vpop.permute.xlu0 %7038
        %7040 = vrot.lane.b32.xlu0 %v3922, 42
        %v7041 = vpop.permute.xlu0 %7040
        %7042 = vrot.lane.b32.xlu0 %v3926, 42
        %v7043 = vpop.permute.xlu0 %7042
        %7044 = vrot.lane.b32.xlu0 %v3930, 42
        %v7045 = vpop.permute.xlu0 %7044
        %7046 = vrot.lane.b32.xlu0 %v3934, 42
        %v7047 = vpop.permute.xlu0 %7046
        %7048 = vrot.lane.b32.xlu0 %v3938, 42
        %v7049 = vpop.permute.xlu0 %7048
        %7050 = vrot.lane.b32.xlu0 %v3942, 42
        %v7051 = vpop.permute.xlu0 %7050
        %7052 = vrot.lane.b32.xlu0 %v3946, 42
        %v7053 = vpop.permute.xlu0 %7052
        %7054 = vrot.lane.b32.xlu0 %v3923, 42
        %v7055 = vpop.permute.xlu0 %7054
        %7056 = vrot.lane.b32.xlu0 %v3927, 42
        %v7057 = vpop.permute.xlu0 %7056
        %7058 = vrot.lane.b32.xlu0 %v3931, 42
        %v7059 = vpop.permute.xlu0 %7058
        %7060 = vrot.lane.b32.xlu0 %v3935, 42
        %v7061 = vpop.permute.xlu0 %7060
        %7062 = vrot.lane.b32.xlu0 %v3939, 42
        %v7063 = vpop.permute.xlu0 %7062
        %7064 = vrot.lane.b32.xlu0 %v3943, 42
        %v7065 = vpop.permute.xlu0 %7064
        %7066 = vrot.lane.b32.xlu0 %v3947, 42
        %v7067 = vpop.permute.xlu0 %7066
        %v7068 = vsel %vm1070, %v7041, %v7055
        %v7069 = vsel %vm1070, %v7043, %v7057
        %v7070 = vsel %vm1070, %v7045, %v7059
        %v7071 = vsel %vm1070, %v7047, %v7061
        %v7072 = vsel %vm1070, %v7049, %v7063
        %v7073 = vsel %vm1070, %v7051, %v7065
        %v7074 = vsel %vm1070, %v7053, %v7067
        %v7075 = vsel %vm1070, %v7027, %v7041
        %v7076 = vsel %vm1070, %v7029, %v7043
        %v7077 = vsel %vm1070, %v7031, %v7045
        %v7078 = vsel %vm1070, %v7033, %v7047
        %v7079 = vsel %vm1070, %v7035, %v7049
        %v7080 = vsel %vm1070, %v7037, %v7051
        %v7081 = vsel %vm1070, %v7039, %v7053
        %v7082 = vsel %vm1070, %v7013, %v7027
        %v7083 = vsel %vm1070, %v7015, %v7029
        %v7084 = vsel %vm1070, %v7017, %v7031
        %v7085 = vsel %vm1070, %v7019, %v7033
        %v7086 = vsel %vm1070, %v7021, %v7035
        %v7087 = vsel %vm1070, %v7023, %v7037
        %v7088 = vsel %vm1070, %v7025, %v7039
        %v7089 = vsel %vm1070, %v7055, %v7013
        %v7090 = vsel %vm1070, %v7057, %v7015
        %v7091 = vsel %vm1070, %v7059, %v7017
        %v7092 = vsel %vm1070, %v7061, %v7019
        %v7093 = vsel %vm1070, %v7063, %v7021
        %v7094 = vsel %vm1070, %v7065, %v7023
        %v7095 = vsel %vm1070, %v7067, %v7025
        %v7096 = vpack.c.bf16 %v6754, %v6753
        %v7097 = vpack.c.bf16 %v6747, %v6746
        %v7098 = vpack.c.bf16 %v6740, %v6739
        %v7099 = vpack.c.bf16 %v6733, %v6732
        %v7100 = vpack.c.bf16 %v6756, %v6755
        %v7101 = vpack.c.bf16 %v6749, %v6748
        %v7102 = vpack.c.bf16 %v6742, %v6741
        %v7103 = vpack.c.bf16 %v6735, %v6734
        %v7104 = vpack.c.bf16 %v6758, %v6757
        %v7105 = vpack.c.bf16 %v6751, %v6750
        %v7106 = vpack.c.bf16 %v6744, %v6743
        %v7107 = vpack.c.bf16 %v6737, %v6736
        %v7108 = vpack.c.bf16 %v6837, %v6759
        %v7109 = vpack.c.bf16 %v6830, %v6752
        %v7110 = vpack.c.bf16 %v6823, %v6745
        %v7111 = vpack.c.bf16 %v6816, %v6738
        %v7112 = vpack.c.bf16 %v6839, %v6838
        %v7113 = vpack.c.bf16 %v6832, %v6831
        %v7114 = vpack.c.bf16 %v6825, %v6824
        %v7115 = vpack.c.bf16 %v6818, %v6817
        %v7116 = vpack.c.bf16 %v6841, %v6840
        %v7117 = vpack.c.bf16 %v6834, %v6833
        %v7118 = vpack.c.bf16 %v6827, %v6826
        %v7119 = vpack.c.bf16 %v6820, %v6819
        %v7120 = vpack.c.bf16 %v6843, %v6842
        %v7121 = vpack.c.bf16 %v6836, %v6835
        %v7122 = vpack.c.bf16 %v6829, %v6828
        %v7123 = vpack.c.bf16 %v6822, %v6821
        %v7124 = vpack.c.bf16 %v6922, %v6921
        %v7125 = vpack.c.bf16 %v6915, %v6914
        %v7126 = vpack.c.bf16 %v6908, %v6907
        %v7127 = vpack.c.bf16 %v6901, %v6900
        %v7128 = vpack.c.bf16 %v6924, %v6923
        %v7129 = vpack.c.bf16 %v6917, %v6916
        %v7130 = vpack.c.bf16 %v6910, %v6909
        %v7131 = vpack.c.bf16 %v6903, %v6902
        %v7132 = vpack.c.bf16 %v6926, %v6925
        %v7133 = vpack.c.bf16 %v6919, %v6918
        %v7134 = vpack.c.bf16 %v6912, %v6911
        %v7135 = vpack.c.bf16 %v6905, %v6904
        %v7136 = vpack.c.bf16 %v7005, %v6927
        %v7137 = vpack.c.bf16 %v6998, %v6920
        %v7138 = vpack.c.bf16 %v6991, %v6913
        %v7139 = vpack.c.bf16 %v6984, %v6906
        %v7140 = vpack.c.bf16 %v7007, %v7006
        %v7141 = vpack.c.bf16 %v7000, %v6999
        %v7142 = vpack.c.bf16 %v6993, %v6992
        %v7143 = vpack.c.bf16 %v6986, %v6985
        %v7144 = vpack.c.bf16 %v7009, %v7008
        %v7145 = vpack.c.bf16 %v7002, %v7001
        %v7146 = vpack.c.bf16 %v6995, %v6994
        %v7147 = vpack.c.bf16 %v6988, %v6987
        %v7148 = vpack.c.bf16 %v7011, %v7010
        %v7149 = vpack.c.bf16 %v7004, %v7003
        %v7150 = vpack.c.bf16 %v6997, %v6996
        %v7151 = vpack.c.bf16 %v6990, %v6989
        %v7152 = vpack.c.bf16 %v7090, %v7089
        %v7153 = vpack.c.bf16 %v7083, %v7082
        %v7154 = vpack.c.bf16 %v7076, %v7075
        %v7155 = vpack.c.bf16 %v7069, %v7068
        %v7156 = vpack.c.bf16 %v7092, %v7091
        %v7157 = vpack.c.bf16 %v7085, %v7084
        %v7158 = vpack.c.bf16 %v7078, %v7077
        %v7159 = vpack.c.bf16 %v7071, %v7070
        %v7160 = vpack.c.bf16 %v7094, %v7093
        %v7161 = vpack.c.bf16 %v7087, %v7086
        %v7162 = vpack.c.bf16 %v7080, %v7079
        %v7163 = vpack.c.bf16 %v7073, %v7072
        %v7164 = vpack.c.bf16 %v7095, %v7095
        %v7165 = vpack.c.bf16 %v7088, %v7088
        %v7166 = vpack.c.bf16 %v7081, %v7081
        %v7167 = vpack.c.bf16 %v7074, %v7074
        %s7168 = scalar_lea.vmem [#allocation30], 96
        %v7169 = vld [vmem:[%s7168] sm:$0xff]
        %v7170 = vld [vmem:[%s7168 + $0x8] sm:$0xf]
        %v7171 = vld [vmem:[%s7168 + $0xc] sm:$0x33]
        %v7172 = vld [vmem:[%s7168 + $0x14] sm:$0x3]
        %v7177 = vunpack.c.l.b16 %v7169
        %v7178 = vunpack.c.h.b16 %v7169
        %v7179 = vunpack.c.l.b16 %v7170
        %v7180 = vunpack.c.l.b16 %v7171
        %v7181 = vunpack.c.h.b16 %v7171
        %v7182 = vunpack.c.l.b16 %v7172
        %v7183 = vpack.c.b16 %v7180, %v7177
        %v7184 = vpack.c.b16 %v7181, %v7178
        %v7185 = vpack.c.b16 %v7182, %v7179
        %v7189 = vsel %vm4956, %v7185, 0
        %v7192 = vsel %vm1521, %v7164, 0
        %v7195 = vsel %vm1521, %v7165, 0
        %v7198 = vsel %vm1521, %v7166, 0
        %v7201 = vsel %vm1521, %v7167, 0
        %7203 = vmatprep.subr.bf16.mxu0 %v7097
        %7204 = vmatpush1.bf16.msra.mxu0 %v7096
        %7205 = vmatprep.subr.bf16.mxu0 %v7101
        %7206 = vmatpush1.bf16.msra.mxu0 %v7100
        %7207 = vmatprep.subr.bf16.mxu0 %v7105
        %7208 = vmatpush1.bf16.msra.mxu0 %v7104
        %7209 = vmatprep.subr.bf16.mxu0 %v7109
        %7210 = vmatpush1.bf16.msra.mxu0 %v7108
        %7211 = vmatprep.subr.bf16.mxu0 %v7113
        %7212 = vmatpush1.bf16.msra.mxu0 %v7112
        %7213 = vmatprep.subr.bf16.mxu0 %v7117
        %7214 = vmatpush1.bf16.msra.mxu0 %v7116
        %7215 = vmatprep.subr.bf16.mxu0 %v7121
        %7216 = vmatpush1.bf16.msra.mxu0 %v7120
        %7217 = vmatprep.subr.bf16.mxu0 %v7125
        %7218 = vmatpush1.bf16.msra.mxu0 %v7124
        %7219 = vmatprep.subr.bf16.mxu0 %v7129
        %7220 = vmatpush1.bf16.msra.mxu0 %v7128
        %7221 = vmatprep.subr.bf16.mxu0 %v7133
        %7222 = vmatpush1.bf16.msra.mxu0 %v7132
        %7223 = vmatprep.subr.bf16.mxu0 %v7137
        %7224 = vmatpush1.bf16.msra.mxu0 %v7136
        %7225 = vmatprep.subr.bf16.mxu0 %v7141
        %7226 = vmatpush1.bf16.msra.mxu0 %v7140
        %7227 = vmatprep.subr.bf16.mxu0 %v7145
        %7228 = vmatpush1.bf16.msra.mxu0 %v7144
        %7229 = vmatprep.subr.bf16.mxu0 %v7149
        %7230 = vmatpush1.bf16.msra.mxu0 %v7148
        %7231 = vmatprep.subr.bf16.mxu0 %v7153
        %7232 = vmatpush1.bf16.msra.mxu0 %v7152
        %7233 = vmatprep.subr.bf16.mxu0 %v7157
        %7234 = vmatpush1.bf16.msra.mxu0 %v7156
        %7235 = vmatprep.mubr.bf16.mxu0 %v7184
        %7236 = vmatmul.mubr.bf16.gmra.mrb[0].mxu0 %v7183
        %v7237 = vpop.f32.mrb[0].mxu0
        %v7238 = vadd.f32 0.0, %v7237
        %v7239 = vpop.f32.mrb[0].mxu0
        %v7240 = vadd.f32 0.0, %v7239
        %v7241 = vpop.f32.mrb[0].mxu0
        %v7242 = vadd.f32 0.0, %v7241
        %v7243 = vpop.f32.mrb[0].mxu0
        %v7244 = vadd.f32 0.0, %v7243
        %7245 = vdwg.mxu0
        %7246 = vmatprep.subr.bf16.mxu0 %v7161
        %7247 = vmatpush1.bf16.msra.mxu0 %v7160
        %7248 = vmatprep.subr.bf16.mxu0 %v7195
        %7249 = vmatpush1.bf16.msra.mxu0 %v7192
        %7250 = vmatprep.subr.bf16.mxu0 0
        %7251 = vmatpush1.bf16.msra.mxu0 0
        %7252 = vmatprep.subr.bf16.mxu0 0
        %7253 = vmatpush1.bf16.msra.mxu0 0
        %7254 = vmatprep.subr.bf16.mxu0 0
        %7255 = vmatpush1.bf16.msra.mxu0 0
        %7256 = vmatprep.subr.bf16.mxu0 0
        %7257 = vmatpush1.bf16.msra.mxu0 0
        %7258 = vmatprep.subr.bf16.mxu0 0
        %7259 = vmatpush1.bf16.msra.mxu0 0
        %7260 = vmatprep.subr.bf16.mxu0 0
        %7261 = vmatpush1.bf16.msra.mxu0 0
        %7262 = vmatprep.subr.bf16.mxu0 0
        %7263 = vmatpush1.bf16.msra.mxu0 0
        %7264 = vmatprep.subr.bf16.mxu0 0
        %7265 = vmatpush1.bf16.msra.mxu0 0
        %7266 = vmatprep.subr.bf16.mxu0 0
        %7267 = vmatpush1.bf16.msra.mxu0 0
        %7268 = vmatprep.subr.bf16.mxu0 0
        %7269 = vmatpush1.bf16.msra.mxu0 0
        %7270 = vmatprep.subr.bf16.mxu0 0
        %7271 = vmatpush1.bf16.msra.mxu0 0
        %7272 = vmatprep.subr.bf16.mxu0 0
        %7273 = vmatpush1.bf16.msra.mxu0 0
        %7274 = vmatprep.subr.bf16.mxu0 0
        %7275 = vmatpush1.bf16.msra.mxu0 0
        %7276 = vmatprep.subr.bf16.mxu0 0
        %7277 = vmatpush1.bf16.msra.mxu0 0
        %7278 = vmatprep.mubr.bf16.mxu0 0
        %7279 = vmatmul.mubr.bf16.gmra.mrb[0].mxu0 %v7189
        %v7280 = vpop.f32.mrb[0].mxu0
        %v7281 = vadd.f32 %v7238, %v7280
        %v7282 = vpop.f32.mrb[0].mxu0
        %v7283 = vadd.f32 %v7240, %v7282
        %v7284 = vpop.f32.mrb[0].mxu0
        %v7285 = vadd.f32 %v7242, %v7284
        %v7286 = vpop.f32.mrb[0].mxu0
        %v7287 = vadd.f32 %v7244, %v7286
        %7288 = vdwg.mxu0
        %7289 = vmatprep.subr.bf16.mxu0 %v7099
        %7290 = vmatpush1.bf16.msra.mxu0 %v7098
        %7291 = vmatprep.subr.bf16.mxu0 %v7103
        %7292 = vmatpush1.bf16.msra.mxu0 %v7102
        %7293 = vmatprep.subr.bf16.mxu0 %v7107
        %7294 = vmatpush1.bf16.msra.mxu0 %v7106
        %7295 = vmatprep.subr.bf16.mxu0 %v7111
        %7296 = vmatpush1.bf16.msra.mxu0 %v7110
        %7297 = vmatprep.subr.bf16.mxu0 %v7115
        %7298 = vmatpush1.bf16.msra.mxu0 %v7114
        %7299 = vmatprep.subr.bf16.mxu0 %v7119
        %7300 = vmatpush1.bf16.msra.mxu0 %v7118
        %7301 = vmatprep.subr.bf16.mxu0 %v7123
        %7302 = vmatpush1.bf16.msra.mxu0 %v7122
        %7303 = vmatprep.subr.bf16.mxu0 %v7127
        %7304 = vmatpush1.bf16.msra.mxu0 %v7126
        %7305 = vmatprep.subr.bf16.mxu0 %v7131
        %7306 = vmatpush1.bf16.msra.mxu0 %v7130
        %7307 = vmatprep.subr.bf16.mxu0 %v7135
        %7308 = vmatpush1.bf16.msra.mxu0 %v7134
        %7309 = vmatprep.subr.bf16.mxu0 %v7139
        %7310 = vmatpush1.bf16.msra.mxu0 %v7138
        %7311 = vmatprep.subr.bf16.mxu0 %v7143
        %7312 = vmatpush1.bf16.msra.mxu0 %v7142
        %7313 = vmatprep.subr.bf16.mxu0 %v7147
        %7314 = vmatpush1.bf16.msra.mxu0 %v7146
        %7315 = vmatprep.subr.bf16.mxu0 %v7151
        %7316 = vmatpush1.bf16.msra.mxu0 %v7150
        %7317 = vmatprep.subr.bf16.mxu0 %v7155
        %7318 = vmatpush1.bf16.msra.mxu0 %v7154
        %7319 = vmatprep.subr.bf16.mxu0 %v7159
        %7320 = vmatpush1.bf16.msra.mxu0 %v7158
        %7321 = vmatprep.mubr.bf16.mxu0 %v7184
        %7322 = vmatmul.mubr.bf16.gmra.mrb[0].mxu0 %v7183
        %v7323 = vpop.f32.mrb[0].mxu0
        %v7324 = vadd.f32 0.0, %v7323
        %v7325 = vpop.f32.mrb[0].mxu0
        %v7326 = vadd.f32 0.0, %v7325
        %v7327 = vpop.f32.mrb[0].mxu0
        %v7328 = vadd.f32 0.0, %v7327
        %v7329 = vpop.f32.mrb[0].mxu0
        %v7330 = vadd.f32 0.0, %v7329
        %7331 = vdwg.mxu0
        %7332 = vmatprep.subr.bf16.mxu0 %v7163
        %7333 = vmatpush1.bf16.msra.mxu0 %v7162
        %7334 = vmatprep.subr.bf16.mxu0 %v7201
        %7335 = vmatpush1.bf16.msra.mxu0 %v7198
        %7336 = vmatprep.subr.bf16.mxu0 0
        %7337 = vmatpush1.bf16.msra.mxu0 0
        %7338 = vmatprep.subr.bf16.mxu0 0
        %7339 = vmatpush1.bf16.msra.mxu0 0
        %7340 = vmatprep.subr.bf16.mxu0 0
        %7341 = vmatpush1.bf16.msra.mxu0 0
        %7342 = vmatprep.subr.bf16.mxu0 0
        %7343 = vmatpush1.bf16.msra.mxu0 0
        %7344 = vmatprep.subr.bf16.mxu0 0
        %7345 = vmatpush1.bf16.msra.mxu0 0
        %7346 = vmatprep.subr.bf16.mxu0 0
        %7347 = vmatpush1.bf16.msra.mxu0 0
        %7348 = vmatprep.subr.bf16.mxu0 0
        %7349 = vmatpush1.bf16.msra.mxu0 0
        %7350 = vmatprep.subr.bf16.mxu0 0
        %7351 = vmatpush1.bf16.msra.mxu0 0
        %7352 = vmatprep.subr.bf16.mxu0 0
        %7353 = vmatpush1.bf16.msra.mxu0 0
        %7354 = vmatprep.subr.bf16.mxu0 0
        %7355 = vmatpush1.bf16.msra.mxu0 0
        %7356 = vmatprep.subr.bf16.mxu0 0
        %7357 = vmatpush1.bf16.msra.mxu0 0
        %7358 = vmatprep.subr.bf16.mxu0 0
        %7359 = vmatpush1.bf16.msra.mxu0 0
        %7360 = vmatprep.subr.bf16.mxu0 0
        %7361 = vmatpush1.bf16.msra.mxu0 0
        %7362 = vmatprep.subr.bf16.mxu0 0
        %7363 = vmatpush1.bf16.msra.mxu0 0
        %7364 = vmatprep.mubr.bf16.mxu0 0
        %7365 = vmatmul.mubr.bf16.gmra.mrb[0].mxu0 %v7189
        %v7366 = vpop.f32.mrb[0].mxu0
        %v7367 = vadd.f32 %v7324, %v7366
        %v7368 = vpop.f32.mrb[0].mxu0
        %v7369 = vadd.f32 %v7326, %v7368
        %v7370 = vpop.f32.mrb[0].mxu0
        %v7371 = vadd.f32 %v7328, %v7370
        %v7372 = vpop.f32.mrb[0].mxu0
        %v7373 = vadd.f32 %v7330, %v7372
        %7374 = vdwg.mxu0
        %v7375 = vadd.f32 %v6668, %v7281
        %v7376 = vadd.f32 %v6669, %v7283
        %v7377 = vadd.f32 %v6670, %v7367
        %v7378 = vadd.f32 %v6671, %v7369
        %v7379 = vadd.f32 %v6672, %v7285
        %v7380 = vadd.f32 %v6673, %v7287
        %v7381 = vadd.f32 %v6674, %v7371
        %v7382 = vadd.f32 %v6675, %v7373
        %v7383 = vld [vmem:[#allocation31] sm:$0xff]
        %v7384 = vld [vmem:[#allocation31 + $0x8] sm:$0xf]
        %7386 = vset.pattern.permute.xlu0 0
        %7387 = vperm.xlu0 %7386, %v7383
        %v7388 = vpop.permute.xlu0 %7387
        %7391 = vset.pattern.permute.xlu0 0
        %7392 = vperm.xlu0 %7391, %v7384
        %v7393 = vpop.permute.xlu0 %7392
        %v7395 = vadd.f32 %v7375, %v7388
        %v7396 = vadd.f32 %v7376, %v7388
        %v7397 = vadd.f32 %v7377, %v7388
        %v7398 = vadd.f32 %v7378, %v7388
        %v7399 = vadd.f32 %v7379, %v7393
        %v7400 = vadd.f32 %v7380, %v7393
        %v7401 = vadd.f32 %v7381, %v7393
        %v7402 = vadd.f32 %v7382, %v7393
        %7403 = vst [vmem:[%s1053] sm:$0xff] %v7395
        %7404 = vst [vmem:[%s1053 + $0x8] sm:$0xff] %v7396
        %7405 = vst [vmem:[%s1053 + $0x10] sm:$0xff] %v7397
        %7406 = vst [vmem:[%s1053 + $0x18] sm:$0xff] %v7398
        %7407 = vst [vmem:[%s1053 + $0x20] sm:$0xf] %v7399
        %7408 = vst [vmem:[%s1053 + $0x28] sm:$0xf] %v7400
        %7409 = vst [vmem:[%s1053 + $0x30] sm:$0xf] %v7401
        %7410 = vst [vmem:[%s1053 + $0x38] sm:$0xf] %v7402
        %p7411 = scmp.lt.s32.totalorder %s47, 1
        %s7412 = scalar_select %p7411, %s47, 1
        %s7413 = smul.addr %s7412, 8
        %s7414 = smul.addr %s7413, 8
        %s7415 = scalar_lea.vmem %s25, %s7414
        // Predicated region
        $region201: #{_lambda_.1} parent=119 // pred_check
          %p7416 = pneg %p595
        $region202: #{_lambda_.1} parent=119 // pred_check_branch
          %7418 = sbr.rel (%p7416) target = $region204
        $region203: #{_lambda_.1} parent=119 // pred_region
          _
        $region204: #{_lambda_.1} parent=119 // pred_fallthru
          _
      $region120: #{_lambda_.1} parent=5 // pred_fallthru
        _
      %p7419 = scmp.le.s32.totalorder 2, %s42
      // Predicated region
      $region205: #{_lambda_.1} parent=5 // pred_check
        %p7420 = pneg %p7419
      $region206: #{_lambda_.1} parent=5 // pred_check_branch
        %7422 = sbr.rel (%p7420) target = $region208
      $region207: #{_lambda_.1} parent=5 // pred_region
        %s7423 = ssub.s32 %s42, 2
        // Predicated region
        $region209: #{_lambda_.1} parent=207 // pred_check
          %p7424 = pneg %p601
        $region210: #{_lambda_.1} parent=207 // pred_check_branch
          %7426 = sbr.rel (%p7424) target = $region212
        $region211: #{_lambda_.1} parent=207 // pred_region
          %p7427 = scmp.lt.s32.totalorder %s48, 1
          %s7428 = scalar_select %p7427, %s48, 1
          %s7429 = smul.addr %s7428, 8
          %s7430 = smul.addr %s7429, 8
          %s7431 = scalar_lea.vmem %s25, %s7430
        $region212: #{_lambda_.1} parent=207 // pred_fallthru
          _
      $region208: #{_lambda_.1} parent=5 // pred_fallthru
        _
    $region6: #{_lambda_.1} parent=1 // loop_footer
      %s46 = sadd.s32 1, %s42
    $region7: #{_lambda_.1} parent=1 // loop_footer_branch
      %41 = sbr.rel target = $region3
    $region8: #{_lambda_.1} parent=1 // loop_exit
      _
    %7432 = vsyncpa [#allocation3], 1
    %s7433 = scalar_lea.sflag [#allocation3], 1
    %7434 = vsyncpa %s7433, 1
    %7435 = vsyncpa [#allocation5], 1
    %7436 = vsyncpa [#allocation8], 1
    %7437 = vsyncpa [#allocation11], 1
    %7438 = vsyncpa [#allocation14], 1
    %7439 = vsyncpa [#allocation17], 1
    %7440 = vsyncpa [#allocation20], 1
    %7441 = vsyncpa [#allocation23], 1
    %7442 = vsyncpa [#allocation26], 1
    %7443 = vsyncpa [#allocation29], 1
    %7444 = vsyncpa [#allocation32], 1

</llo_original>
